<compile_context>
chip_gen: v7x
topology: tpu7x:2x2x1
jax: 0.10.0
libtpu: 0.0.40
codegen_flags: <defaults>
</compile_context>

<pallas_src>
import functools

import jax
import jax.numpy as jnp
from jax.experimental import pallas as pl
from jax.experimental.pallas import tpu as pltpu

COMPUTE_DTYPE = jnp.bfloat16            # MXU operand dtype
_VMEM_LIMIT = 32 * 1024 * 1024          # safe on v5e/v6e/v7x at these tile sizes


# ----------------------------------------------------------------------------
# Kernel 1: fused matmul  y = (A @ W) * scale + shift [+ res] [relu]
#           (M-tiled, parallel grid; used for im2col / stride-2 conv paths)
# ----------------------------------------------------------------------------
def _fused_matmul_kernel(a_ref, w_ref, scale_ref, shift_ref, *rest,
                         apply_relu, has_residual):
    if has_residual:
        res_ref, o_ref = rest
    else:
        (o_ref,) = rest
    y = jnp.dot(a_ref[...], w_ref[...], preferred_element_type=jnp.float32)
    y = y * scale_ref[...] + shift_ref[...]
    if has_residual:
        y = y + res_ref[...].astype(jnp.float32)
    if apply_relu:
        y = jnp.maximum(y, 0.0)
    o_ref[...] = y.astype(o_ref.dtype)


def fused_matmul(a, w, scale, shift, residual=None, relu=False,
                 out_dtype=COMPUTE_DTYPE, tm=256):
    M, K = a.shape
    N = w.shape[1]
    tm = M if M <= tm else tm            # full block for small M, tiles otherwise
    scale = jnp.reshape(scale, (1, N)).astype(jnp.float32)
    shift = jnp.reshape(shift, (1, N)).astype(jnp.float32)
    has_res = residual is not None
    kernel = functools.partial(_fused_matmul_kernel, apply_relu=relu,
                               has_residual=has_res)

    in_specs = [
        pl.BlockSpec((tm, K), lambda i: (i, 0)),
        pl.BlockSpec((K, N), lambda i: (0, 0)),
        pl.BlockSpec((1, N), lambda i: (0, 0)),
        pl.BlockSpec((1, N), lambda i: (0, 0)),
    ]
    inputs = [a.astype(COMPUTE_DTYPE), w.astype(COMPUTE_DTYPE), scale, shift]
    if has_res:
        in_specs.append(pl.BlockSpec((tm, N), lambda i: (i, 0)))
        inputs.append(residual.astype(COMPUTE_DTYPE))

    return pl.pallas_call(
        kernel,
        out_shape=jax.ShapeDtypeStruct((M, N), out_dtype),
        grid=(pl.cdiv(M, tm),),
        in_specs=in_specs,
        out_specs=pl.BlockSpec((tm, N), lambda i: (i, 0)),
        compiler_params=pltpu.CompilerParams(
            dimension_semantics=("parallel",),
            vmem_limit_bytes=_VMEM_LIMIT),
    )(*inputs)


# ----------------------------------------------------------------------------
# Kernel 2: direct stride-1 3x3 conv + BN + (residual) + (relu)
#           (in-kernel im2col: padded input DMA'd once, 9 shifted-window dots)
# ----------------------------------------------------------------------------
def _direct_conv_kernel(x_ref, w_ref, scale_ref, shift_ref, *rest,
                        kh, kw, ho, wo, apply_relu, has_residual):
    if has_residual:
        res_ref, o_ref = rest
    else:
        (o_ref,) = rest
    cin = w_ref.shape[1]
    cout = w_ref.shape[2]

    acc = jnp.zeros((ho * wo, cout), jnp.float32)
    for t in range(kh * kw):                    # unrolled: kh*kw MXU dots
        i, j = divmod(t, kw)
        # (ho, wo, cin) window read from the VMEM-resident padded block.
        win = x_ref[0, pl.ds(i, ho), pl.ds(j, wo), :].astype(jnp.float32)
        a2 = win.reshape(ho * wo, cin).astype(COMPUTE_DTYPE)
        acc += jnp.dot(a2, w_ref[t], preferred_element_type=jnp.float32)

    y = acc * scale_ref[...] + shift_ref[...]   # folded eval-mode BN (f32)
    if has_residual:
        y = y + res_ref[0].astype(jnp.float32).reshape(ho * wo, cout)
    if apply_relu:
        y = jnp.maximum(y, 0.0)
    o_ref[0] = y.reshape(ho, wo, cout).astype(o_ref.dtype)


def conv_bn_direct(x_nhwc, w_oihw, bn, relu, residual_nhwc=None):
    """3x3 stride-1 'same' conv -> folded BN -> (+residual) -> (relu)."""
    B, H, W, Cin = x_nhwc.shape
    O, I, kh, kw = w_oihw.shape
    pad = (kh - 1) // 2
    Ho, Wo = H, W
    Hp, Wp = H + 2 * pad, W + 2 * pad

    xp = jnp.pad(x_nhwc, ((0, 0), (pad, pad), (pad, pad), (0, 0))).astype(COMPUTE_DTYPE)
    # taps ordered (kh, kw) to match tap index t = i*kw + j in the kernel
    w_taps = jnp.transpose(w_oihw, (2, 3, 1, 0)).reshape(kh * kw, I, O)
    w_taps = w_taps.astype(COMPUTE_DTYPE)
    scale, shift = _fold_bn(bn)
    scale = scale.reshape(1, O).astype(jnp.float32)
    shift = shift.reshape(1, O).astype(jnp.float32)

    has_res = residual_nhwc is not None
    kernel = functools.partial(_direct_conv_kernel, kh=kh, kw=kw, ho=Ho, wo=Wo,
                               apply_relu=relu, has_residual=has_res)
    in_specs = [
        pl.BlockSpec((1, Hp, Wp, Cin), lambda b: (b, 0, 0, 0)),
        pl.BlockSpec((kh * kw, I, O), lambda b: (0, 0, 0)),
        pl.BlockSpec((1, O), lambda b: (0, 0)),
        pl.BlockSpec((1, O), lambda b: (0, 0)),
    ]
    inputs = [xp, w_taps, scale, shift]
    if has_res:
        in_specs.append(pl.BlockSpec((1, Ho, Wo, O), lambda b: (b, 0, 0, 0)))
        inputs.append(residual_nhwc.astype(COMPUTE_DTYPE))

    return pl.pallas_call(
        kernel,
        out_shape=jax.ShapeDtypeStruct((B, Ho, Wo, O), COMPUTE_DTYPE),
        grid=(B,),                                   # batch: parallel (v7x 2 TCs)
        in_specs=in_specs,
        out_specs=pl.BlockSpec((1, Ho, Wo, O), lambda b: (b, 0, 0, 0)),
        compiler_params=pltpu.CompilerParams(
            dimension_semantics=("parallel",),
            vmem_limit_bytes=_VMEM_LIMIT),
    )(*inputs)


# ----------------------------------------------------------------------------
# Kernel 3: fused tail  -- global average pool + explicit MLP decoder
# ----------------------------------------------------------------------------
def _tail_kernel(x_ref, *rest, n_layers):
    o_ref = rest[-1]
    h = jnp.mean(x_ref[...].astype(jnp.float32), axis=1)        # GAP -> (B, C)
    for l in range(n_layers):
        w = rest[2 * l][...]                                     # (in, out) bf16
        b = rest[2 * l + 1][...]                                 # (1, out)  f32
        h = jnp.dot(h.astype(COMPUTE_DTYPE), w,
                    preferred_element_type=jnp.float32) + b
        if l < n_layers - 1:
            h = jnp.maximum(h, 0.0)
    o_ref[...] = h.astype(o_ref.dtype)


def decode_tail(x_nhwc, dec_params):
    """Fused GAP + MLP decoder in a single pallas_call (weights VMEM-resident)."""
    B, H, W, C = x_nhwc.shape
    S = H * W
    xr = x_nhwc.reshape(B, S, C).astype(COMPUTE_DTYPE)
    n_layers = len(dec_params)
    out_dim = dec_params[-1][0].shape[1]

    in_specs = [pl.BlockSpec((B, S, C), lambda i: (0, 0, 0))]
    inputs = [xr]
    for (w, b) in dec_params:
        n_in, n_out = w.shape
        in_specs.append(pl.BlockSpec((n_in, n_out), lambda i: (0, 0)))
        in_specs.append(pl.BlockSpec((1, n_out), lambda i: (0, 0)))
        inputs.append(w.astype(COMPUTE_DTYPE))
        inputs.append(b.reshape(1, n_out).astype(jnp.float32))

    kernel = functools.partial(_tail_kernel, n_layers=n_layers)
    return pl.pallas_call(
        kernel,
        out_shape=jax.ShapeDtypeStruct((B, out_dim), jnp.float32),
        grid=(1,),
        in_specs=in_specs,
        out_specs=pl.BlockSpec((B, out_dim), lambda i: (0, 0)),
        compiler_params=pltpu.CompilerParams(
            dimension_semantics=("arbitrary",),
            vmem_limit_bytes=_VMEM_LIMIT),
    )(*inputs)


# ----------------------------------------------------------------------------
# Glue (pure JAX): BN folding, im2col for the stride-2 / stem path, routing
# ----------------------------------------------------------------------------
def _fold_bn(bn, eps=1e-5):
    gamma, beta, mean, var = bn
    scale = gamma / jnp.sqrt(var + eps)
    shift = beta - mean * scale
    return scale, shift


def _im2col(x_nhwc, kh, kw, stride, pad):
    B, H, W, C = x_nhwc.shape
    xp = jnp.pad(x_nhwc, ((0, 0), (pad, pad), (pad, pad), (0, 0)))
    Ho = (H + 2 * pad - kh) // stride + 1
    Wo = (W + 2 * pad - kw) // stride + 1
    cols = []
    for i in range(kh):
        for j in range(kw):
            cols.append(xp[:, i:i + (Ho - 1) * stride + 1:stride,
                           j:j + (Wo - 1) * stride + 1:stride, :])
    patches = jnp.stack(cols, axis=3)                 # (B, Ho, Wo, kh*kw, C)
    return patches.reshape(B * Ho * Wo, kh * kw * C), Ho, Wo


def conv_bn_im2col(x_nhwc, w_oihw, bn, stride, pad, relu, residual_nhwc=None):
    O, I, kh, kw = w_oihw.shape
    a, Ho, Wo = _im2col(x_nhwc.astype(COMPUTE_DTYPE), kh, kw, stride, pad)
    # weight columns ordered (kh, kw, in_ch) to match im2col patch ordering
    wmat = jnp.transpose(w_oihw, (2, 3, 1, 0)).reshape(kh * kw * I, O)
    scale, shift = _fold_bn(bn)
    res = residual_nhwc.reshape(-1, O) if residual_nhwc is not None else None
    y = fused_matmul(a, wmat, scale, shift, residual=res, relu=relu)
    B = x_nhwc.shape[0]
    return y.reshape(B, Ho, Wo, O)


_DIRECT_CONV_OK = None


def _direct_conv_supported():
    """Probe (once) that the direct-conv kernel lowers on this jax/libtpu build
    and matches the im2col reference on the geometries this net uses."""
    global _DIRECT_CONV_OK
    if _DIRECT_CONV_OK is not None:
        return _DIRECT_CONV_OK
    try:
        ok = True
        key = jax.random.PRNGKey(123)
        for (hw, c, use_res) in ((16, 16, False), (8, 32, True)):
            kx, kwt, kr, key = jax.random.split(key, 4)
            x = jax.random.normal(kx, (1, hw, hw, c), jnp.float32).astype(COMPUTE_DTYPE)
            w = 0.1 * jax.random.normal(kwt, (c, c, 3, 3), jnp.float32)
            res = (jax.random.normal(kr, (1, hw, hw, c), jnp.float32)
                   .astype(COMPUTE_DTYPE) if use_res else None)
            bn = (jnp.ones((c,), jnp.float32), jnp.zeros((c,), jnp.float32),
                  jnp.zeros((c,), jnp.float32), jnp.ones((c,), jnp.float32))
            y_fast = conv_bn_direct(x, w, bn, relu=True, residual_nhwc=res)
            y_ref = conv_bn_im2col(x, w, bn, stride=1, pad=1, relu=True,
                                   residual_nhwc=res)
            ok = ok and bool(jnp.allclose(y_fast.astype(jnp.float32),
                                          y_ref.astype(jnp.float32),
                                          atol=5e-2, rtol=5e-2))
        _DIRECT_CONV_OK = ok
    except Exception:
        # Mosaic rejected the direct-conv lowering -> safe im2col fallback.
        _DIRECT_CONV_OK = False
    return _DIRECT_CONV_OK


def conv_bn(x_nhwc, w_oihw, bn, stride, pad, relu, residual_nhwc=None):
    O, I, kh, kw = w_oihw.shape
    B, H, W, _ = x_nhwc.shape
    if (_direct_conv_supported() and stride == 1 and kh == 3 and kw == 3
            and pad == 1 and I % 8 == 0 and H % 8 == 0 and W % 8 == 0):
        return conv_bn_direct(x_nhwc, w_oihw, bn, relu, residual_nhwc)
    return conv_bn_im2col(x_nhwc, w_oihw, bn, stride, pad, relu, residual_nhwc)


# ----------------------------------------------------------------------------
# Parameter construction (deterministic, synthetic)
# ----------------------------------------------------------------------------
def _conv_w(key, o, i, k):
    return 0.1 * jax.random.normal(key, (o, i, k, k), jnp.float32)


def _bn(key, c):
    k1, k2, k3 = jax.random.split(key, 3)
    gamma = 1.0 + 0.05 * jax.random.normal(k1, (c,), jnp.float32)
    beta = 0.05 * jax.random.normal(k2, (c,), jnp.float32)
    mean = 0.05 * jax.random.normal(k3, (c,), jnp.float32)
    var = jnp.ones((c,), jnp.float32)
    return (gamma, beta, mean, var)


def init_params(key, c_in, hidden_channels, dec_hidden, out_dim):
    params = {}
    keys = jax.random.split(key, 64)
    ki = iter(range(64))

    # encoder stem
    params["stem_w"] = _conv_w(keys[next(ki)], hidden_channels[0], c_in, 3)
    params["stem_bn"] = _bn(keys[next(ki)], hidden_channels[0])

    # BasicBlocks
    blocks = []
    in_ch = hidden_channels[0]
    for idx, out_ch in enumerate(hidden_channels):
        stride = 1 if idx == 0 else 2
        blk = {
            "w1": _conv_w(keys[next(ki)], out_ch, in_ch, 3),
            "bn1": _bn(keys[next(ki)], out_ch),
            "w2": _conv_w(keys[next(ki)], out_ch, out_ch, 3),
            "bn2": _bn(keys[next(ki)], out_ch),
            "stride": stride,
        }
        if stride != 1 or in_ch != out_ch:
            blk["w_ds"] = _conv_w(keys[next(ki)], out_ch, in_ch, 1)
            blk["bn_ds"] = _bn(keys[next(ki)], out_ch)
        blocks.append(blk)
        in_ch = out_ch
    params["blocks"] = blocks

    # explicit MLP decoder: Linear+ReLU ... Linear
    dec = []
    last = hidden_channels[-1]
    for h in list(dec_hidden) + [out_dim]:
        w = 0.1 * jax.random.normal(keys[next(ki)], (last, h), jnp.float32)
        b = 0.05 * jax.random.normal(keys[next(ki)], (h,), jnp.float32)
        dec.append((w, b))
        last = h
    params["decoder"] = dec
    return params


# ----------------------------------------------------------------------------
# Forward pass
# ----------------------------------------------------------------------------
def resnet_forward(params, x_nchw):
    # NCHW -> NHWC; activations kept in bf16 (MXU operands), epilogues in f32.
    x = jnp.transpose(x_nchw, (0, 2, 3, 1)).astype(COMPUTE_DTYPE)

    # --- encoder (stem + BasicBlocks, eval-mode BN folded) ---
    x = conv_bn(x, params["stem_w"], params["stem_bn"], stride=1, pad=1, relu=True)
    for blk in params["blocks"]:
        stride = blk["stride"]
        out1 = conv_bn(x, blk["w1"], blk["bn1"], stride=stride, pad=1, relu=True)
        if "w_ds" in blk:
            identity = conv_bn(x, blk["w_ds"], blk["bn_ds"], stride=stride, pad=0,
                               relu=False)
        else:
            identity = x
        # conv2 + bn2 + residual-add + relu fused in one kernel
        x = conv_bn(out1, blk["w2"], blk["bn2"], stride=1, pad=1, relu=True,
                    residual_nhwc=identity)

    # --- fused global-average-pool + explicit MLP decoder ---
    return decode_tail(x, params["decoder"])


# ----------------------------------------------------------------------------
if __name__ == "__main__":
    B, C_IN, H, W = 2, 1, 16, 16
    HIDDEN_CHANNELS = [16, 32]        # encoder.hidden_channels
    DEC_HIDDEN = [32, 32]             # decoder.hidden_channels
    N_FREQ = 32                       # n_frequencies (out_dim)

    x = jax.random.normal(jax.random.PRNGKey(0), (B, C_IN, H, W), jnp.float32)
    params = init_params(jax.random.PRNGKey(1), C_IN, HIDDEN_CHANNELS,
                         DEC_HIDDEN, N_FREQ)

    # Resolve the direct-conv capability before tracing so routing is static.
    _direct_conv_supported()

    fwd = jax.jit(lambda xx: resnet_forward(params, xx))
    out = jax.block_until_ready(fwd(x))
    assert out.shape == (B, N_FREQ), out.shape
    assert bool(jnp.all(jnp.isfinite(out)))
    print("KERNEL_OK")
</pallas_src>

<mosaic_0001>
module attributes {stable_mosaic.version = 11 : i64} {
  func.func @_direct_conv_kernel(%arg0: i32, %arg1: memref<1x18x18x16xbf16, #tpu.memory_space<vmem>>, %arg2: memref<9x16x16xbf16, #tpu.memory_space<vmem>>, %arg3: memref<1x16xf32, #tpu.memory_space<vmem>>, %arg4: memref<1x16xf32, #tpu.memory_space<vmem>>, %arg5: memref<1x16x16x16xbf16, #tpu.memory_space<vmem>>) attributes {dimension_semantics = [#tpu.dimension_semantics<parallel>], iteration_bounds = array<i64: 1>, scalar_prefetch = 0 : i64, scratch_operands = 0 : i64, tpu.core_type = #tpu.core_type<tc>, window_params = [{transform_indices = @transform_0, window_bounds = array<i64: 1, 18, 18, 16>}, {pipeline_mode = #tpu.pipeline_mode<synchronous>, transform_indices = @transform_1, window_bounds = array<i64: 9, 16, 16>}, {pipeline_mode = #tpu.pipeline_mode<synchronous>, transform_indices = @transform_2, window_bounds = array<i64: 1, 16>}, {pipeline_mode = #tpu.pipeline_mode<synchronous>, transform_indices = @transform_3, window_bounds = array<i64: 1, 16>}, {transform_indices = @transform_4, window_bounds = array<i64: 1, 16, 16, 16>}]} {
    %cst = arith.constant 0.000000e+00 : f32
    %0 = vector.broadcast %cst : f32 to vector<256x16xf32>
    %c0 = arith.constant 0 : index
    %c0_0 = arith.constant 0 : index
    %c0_1 = arith.constant 0 : index
    %c0_2 = arith.constant 0 : index
    %1 = vector.load %arg1[%c0, %c0_0, %c0_1, %c0_2] : memref<1x18x18x16xbf16, #tpu.memory_space<vmem>>, vector<1x16x16x16xbf16>
    %2 = vector.shape_cast %1 : vector<1x16x16x16xbf16> to vector<16x16x16xbf16>
    %3 = arith.extf %2 : vector<16x16x16xbf16> to vector<16x16x16xf32>
    %4 = vector.shape_cast %3 : vector<16x16x16xf32> to vector<256x16xf32>
    %5 = arith.truncf %4 : vector<256x16xf32> to vector<256x16xbf16>
    %c0_3 = arith.constant 0 : index
    %c0_4 = arith.constant 0 : index
    %c0_5 = arith.constant 0 : index
    %6 = vector.load %arg2[%c0_3, %c0_4, %c0_5] : memref<9x16x16xbf16, #tpu.memory_space<vmem>>, vector<1x16x16xbf16>
    %7 = vector.shape_cast %6 : vector<1x16x16xbf16> to vector<16x16xbf16>
    %cst_6 = arith.constant dense<0.000000e+00> : vector<256x16xf32>
    %8 = tpu.matmul %5, %7, %cst_6 {dimension_numbers = #tpu.dot_dimension_numbers<[1], [0], [0], [1], [0, 0, 1, 1], [], []>} : vector<256x16xbf16>, vector<16x16xbf16>, vector<256x16xf32> -> vector<256x16xf32>
    %9 = arith.addf %0, %8 : vector<256x16xf32>
    %c0_7 = arith.constant 0 : index
    %c0_8 = arith.constant 0 : index
    %c1 = arith.constant 1 : index
    %c0_9 = arith.constant 0 : index
    %10 = vector.load %arg1[%c0_7, %c0_8, %c1, %c0_9] : memref<1x18x18x16xbf16, #tpu.memory_space<vmem>>, vector<1x16x16x16xbf16>
    %11 = vector.shape_cast %10 : vector<1x16x16x16xbf16> to vector<16x16x16xbf16>
    %12 = arith.extf %11 : vector<16x16x16xbf16> to vector<16x16x16xf32>
    %13 = vector.shape_cast %12 : vector<16x16x16xf32> to vector<256x16xf32>
    %14 = arith.truncf %13 : vector<256x16xf32> to vector<256x16xbf16>
    %c1_10 = arith.constant 1 : index
    %c0_11 = arith.constant 0 : index
    %c0_12 = arith.constant 0 : index
    %15 = vector.load %arg2[%c1_10, %c0_11, %c0_12] : memref<9x16x16xbf16, #tpu.memory_space<vmem>>, vector<1x16x16xbf16>
    %16 = vector.shape_cast %15 : vector<1x16x16xbf16> to vector<16x16xbf16>
    %cst_13 = arith.constant dense<0.000000e+00> : vector<256x16xf32>
    %17 = tpu.matmul %14, %16, %cst_13 {dimension_numbers = #tpu.dot_dimension_numbers<[1], [0], [0], [1], [0, 0, 1, 1], [], []>} : vector<256x16xbf16>, vector<16x16xbf16>, vector<256x16xf32> -> vector<256x16xf32>
    %18 = arith.addf %9, %17 : vector<256x16xf32>
    %c0_14 = arith.constant 0 : index
    %c0_15 = arith.constant 0 : index
    %c2 = arith.constant 2 : index
    %c0_16 = arith.constant 0 : index
    %19 = vector.load %arg1[%c0_14, %c0_15, %c2, %c0_16] : memref<1x18x18x16xbf16, #tpu.memory_space<vmem>>, vector<1x16x16x16xbf16>
    %20 = vector.shape_cast %19 : vector<1x16x16x16xbf16> to vector<16x16x16xbf16>
    %21 = arith.extf %20 : vector<16x16x16xbf16> to vector<16x16x16xf32>
    %22 = vector.shape_cast %21 : vector<16x16x16xf32> to vector<256x16xf32>
    %23 = arith.truncf %22 : vector<256x16xf32> to vector<256x16xbf16>
    %c2_17 = arith.constant 2 : index
    %c0_18 = arith.constant 0 : index
    %c0_19 = arith.constant 0 : index
    %24 = vector.load %arg2[%c2_17, %c0_18, %c0_19] : memref<9x16x16xbf16, #tpu.memory_space<vmem>>, vector<1x16x16xbf16>
    %25 = vector.shape_cast %24 : vector<1x16x16xbf16> to vector<16x16xbf16>
    %cst_20 = arith.constant dense<0.000000e+00> : vector<256x16xf32>
    %26 = tpu.matmul %23, %25, %cst_20 {dimension_numbers = #tpu.dot_dimension_numbers<[1], [0], [0], [1], [0, 0, 1, 1], [], []>} : vector<256x16xbf16>, vector<16x16xbf16>, vector<256x16xf32> -> vector<256x16xf32>
    %27 = arith.addf %18, %26 : vector<256x16xf32>
    %c0_21 = arith.constant 0 : index
    %c1_22 = arith.constant 1 : index
    %c0_23 = arith.constant 0 : index
    %c0_24 = arith.constant 0 : index
    %28 = vector.load %arg1[%c0_21, %c1_22, %c0_23, %c0_24] : memref<1x18x18x16xbf16, #tpu.memory_space<vmem>>, vector<1x16x16x16xbf16>
    %29 = vector.shape_cast %28 : vector<1x16x16x16xbf16> to vector<16x16x16xbf16>
    %30 = arith.extf %29 : vector<16x16x16xbf16> to vector<16x16x16xf32>
    %31 = vector.shape_cast %30 : vector<16x16x16xf32> to vector<256x16xf32>
    %32 = arith.truncf %31 : vector<256x16xf32> to vector<256x16xbf16>
    %c3 = arith.constant 3 : index
    %c0_25 = arith.constant 0 : index
    %c0_26 = arith.constant 0 : index
    %33 = vector.load %arg2[%c3, %c0_25, %c0_26] : memref<9x16x16xbf16, #tpu.memory_space<vmem>>, vector<1x16x16xbf16>
    %34 = vector.shape_cast %33 : vector<1x16x16xbf16> to vector<16x16xbf16>
    %cst_27 = arith.constant dense<0.000000e+00> : vector<256x16xf32>
    %35 = tpu.matmul %32, %34, %cst_27 {dimension_numbers = #tpu.dot_dimension_numbers<[1], [0], [0], [1], [0, 0, 1, 1], [], []>} : vector<256x16xbf16>, vector<16x16xbf16>, vector<256x16xf32> -> vector<256x16xf32>
    %36 = arith.addf %27, %35 : vector<256x16xf32>
    %c0_28 = arith.constant 0 : index
    %c1_29 = arith.constant 1 : index
    %c1_30 = arith.constant 1 : index
    %c0_31 = arith.constant 0 : index
    %37 = vector.load %arg1[%c0_28, %c1_29, %c1_30, %c0_31] : memref<1x18x18x16xbf16, #tpu.memory_space<vmem>>, vector<1x16x16x16xbf16>
    %38 = vector.shape_cast %37 : vector<1x16x16x16xbf16> to vector<16x16x16xbf16>
    %39 = arith.extf %38 : vector<16x16x16xbf16> to vector<16x16x16xf32>
    %40 = vector.shape_cast %39 : vector<16x16x16xf32> to vector<256x16xf32>
    %41 = arith.truncf %40 : vector<256x16xf32> to vector<256x16xbf16>
    %c4 = arith.constant 4 : index
    %c0_32 = arith.constant 0 : index
    %c0_33 = arith.constant 0 : index
    %42 = vector.load %arg2[%c4, %c0_32, %c0_33] : memref<9x16x16xbf16, #tpu.memory_space<vmem>>, vector<1x16x16xbf16>
    %43 = vector.shape_cast %42 : vector<1x16x16xbf16> to vector<16x16xbf16>
    %cst_34 = arith.constant dense<0.000000e+00> : vector<256x16xf32>
    %44 = tpu.matmul %41, %43, %cst_34 {dimension_numbers = #tpu.dot_dimension_numbers<[1], [0], [0], [1], [0, 0, 1, 1], [], []>} : vector<256x16xbf16>, vector<16x16xbf16>, vector<256x16xf32> -> vector<256x16xf32>
    %45 = arith.addf %36, %44 : vector<256x16xf32>
    %c0_35 = arith.constant 0 : index
    %c1_36 = arith.constant 1 : index
    %c2_37 = arith.constant 2 : index
    %c0_38 = arith.constant 0 : index
    %46 = vector.load %arg1[%c0_35, %c1_36, %c2_37, %c0_38] : memref<1x18x18x16xbf16, #tpu.memory_space<vmem>>, vector<1x16x16x16xbf16>
    %47 = vector.shape_cast %46 : vector<1x16x16x16xbf16> to vector<16x16x16xbf16>
    %48 = arith.extf %47 : vector<16x16x16xbf16> to vector<16x16x16xf32>
    %49 = vector.shape_cast %48 : vector<16x16x16xf32> to vector<256x16xf32>
    %50 = arith.truncf %49 : vector<256x16xf32> to vector<256x16xbf16>
    %c5 = arith.constant 5 : index
    %c0_39 = arith.constant 0 : index
    %c0_40 = arith.constant 0 : index
    %51 = vector.load %arg2[%c5, %c0_39, %c0_40] : memref<9x16x16xbf16, #tpu.memory_space<vmem>>, vector<1x16x16xbf16>
    %52 = vector.shape_cast %51 : vector<1x16x16xbf16> to vector<16x16xbf16>
    %cst_41 = arith.constant dense<0.000000e+00> : vector<256x16xf32>
    %53 = tpu.matmul %50, %52, %cst_41 {dimension_numbers = #tpu.dot_dimension_numbers<[1], [0], [0], [1], [0, 0, 1, 1], [], []>} : vector<256x16xbf16>, vector<16x16xbf16>, vector<256x16xf32> -> vector<256x16xf32>
    %54 = arith.addf %45, %53 : vector<256x16xf32>
    %c0_42 = arith.constant 0 : index
    %c2_43 = arith.constant 2 : index
    %c0_44 = arith.constant 0 : index
    %c0_45 = arith.constant 0 : index
    %55 = vector.load %arg1[%c0_42, %c2_43, %c0_44, %c0_45] : memref<1x18x18x16xbf16, #tpu.memory_space<vmem>>, vector<1x16x16x16xbf16>
    %56 = vector.shape_cast %55 : vector<1x16x16x16xbf16> to vector<16x16x16xbf16>
    %57 = arith.extf %56 : vector<16x16x16xbf16> to vector<16x16x16xf32>
    %58 = vector.shape_cast %57 : vector<16x16x16xf32> to vector<256x16xf32>
    %59 = arith.truncf %58 : vector<256x16xf32> to vector<256x16xbf16>
    %c6 = arith.constant 6 : index
    %c0_46 = arith.constant 0 : index
    %c0_47 = arith.constant 0 : index
    %60 = vector.load %arg2[%c6, %c0_46, %c0_47] : memref<9x16x16xbf16, #tpu.memory_space<vmem>>, vector<1x16x16xbf16>
    %61 = vector.shape_cast %60 : vector<1x16x16xbf16> to vector<16x16xbf16>
    %cst_48 = arith.constant dense<0.000000e+00> : vector<256x16xf32>
    %62 = tpu.matmul %59, %61, %cst_48 {dimension_numbers = #tpu.dot_dimension_numbers<[1], [0], [0], [1], [0, 0, 1, 1], [], []>} : vector<256x16xbf16>, vector<16x16xbf16>, vector<256x16xf32> -> vector<256x16xf32>
    %63 = arith.addf %54, %62 : vector<256x16xf32>
    %c0_49 = arith.constant 0 : index
    %c2_50 = arith.constant 2 : index
    %c1_51 = arith.constant 1 : index
    %c0_52 = arith.constant 0 : index
    %64 = vector.load %arg1[%c0_49, %c2_50, %c1_51, %c0_52] : memref<1x18x18x16xbf16, #tpu.memory_space<vmem>>, vector<1x16x16x16xbf16>
    %65 = vector.shape_cast %64 : vector<1x16x16x16xbf16> to vector<16x16x16xbf16>
    %66 = arith.extf %65 : vector<16x16x16xbf16> to vector<16x16x16xf32>
    %67 = vector.shape_cast %66 : vector<16x16x16xf32> to vector<256x16xf32>
    %68 = arith.truncf %67 : vector<256x16xf32> to vector<256x16xbf16>
    %c7 = arith.constant 7 : index
    %c0_53 = arith.constant 0 : index
    %c0_54 = arith.constant 0 : index
    %69 = vector.load %arg2[%c7, %c0_53, %c0_54] : memref<9x16x16xbf16, #tpu.memory_space<vmem>>, vector<1x16x16xbf16>
    %70 = vector.shape_cast %69 : vector<1x16x16xbf16> to vector<16x16xbf16>
    %cst_55 = arith.constant dense<0.000000e+00> : vector<256x16xf32>
    %71 = tpu.matmul %68, %70, %cst_55 {dimension_numbers = #tpu.dot_dimension_numbers<[1], [0], [0], [1], [0, 0, 1, 1], [], []>} : vector<256x16xbf16>, vector<16x16xbf16>, vector<256x16xf32> -> vector<256x16xf32>
    %72 = arith.addf %63, %71 : vector<256x16xf32>
    %c0_56 = arith.constant 0 : index
    %c2_57 = arith.constant 2 : index
    %c2_58 = arith.constant 2 : index
    %c0_59 = arith.constant 0 : index
    %73 = vector.load %arg1[%c0_56, %c2_57, %c2_58, %c0_59] : memref<1x18x18x16xbf16, #tpu.memory_space<vmem>>, vector<1x16x16x16xbf16>
    %74 = vector.shape_cast %73 : vector<1x16x16x16xbf16> to vector<16x16x16xbf16>
    %75 = arith.extf %74 : vector<16x16x16xbf16> to vector<16x16x16xf32>
    %76 = vector.shape_cast %75 : vector<16x16x16xf32> to vector<256x16xf32>
    %77 = arith.truncf %76 : vector<256x16xf32> to vector<256x16xbf16>
    %c8 = arith.constant 8 : index
    %c0_60 = arith.constant 0 : index
    %c0_61 = arith.constant 0 : index
    %78 = vector.load %arg2[%c8, %c0_60, %c0_61] : memref<9x16x16xbf16, #tpu.memory_space<vmem>>, vector<1x16x16xbf16>
    %79 = vector.shape_cast %78 : vector<1x16x16xbf16> to vector<16x16xbf16>
    %cst_62 = arith.constant dense<0.000000e+00> : vector<256x16xf32>
    %80 = tpu.matmul %77, %79, %cst_62 {dimension_numbers = #tpu.dot_dimension_numbers<[1], [0], [0], [1], [0, 0, 1, 1], [], []>} : vector<256x16xbf16>, vector<16x16xbf16>, vector<256x16xf32> -> vector<256x16xf32>
    %81 = arith.addf %72, %80 : vector<256x16xf32>
    %c0_63 = arith.constant 0 : index
    %c0_64 = arith.constant 0 : index
    %82 = vector.load %arg3[%c0_63, %c0_64] : memref<1x16xf32, #tpu.memory_space<vmem>>, vector<1x16xf32>
    %83 = vector.broadcast %82 : vector<1x16xf32> to vector<256x16xf32>
    %84 = arith.mulf %81, %83 : vector<256x16xf32>
    %c0_65 = arith.constant 0 : index
    %c0_66 = arith.constant 0 : index
    %85 = vector.load %arg4[%c0_65, %c0_66] : memref<1x16xf32, #tpu.memory_space<vmem>>, vector<1x16xf32>
    %86 = vector.broadcast %85 : vector<1x16xf32> to vector<256x16xf32>
    %87 = arith.addf %84, %86 : vector<256x16xf32>
    %cst_67 = arith.constant 0.000000e+00 : f32
    %88 = vector.broadcast %cst_67 : f32 to vector<256x16xf32>
    %89 = arith.maximumf %87, %88 : vector<256x16xf32>
    %90 = vector.shape_cast %89 : vector<256x16xf32> to vector<16x16x16xf32>
    %91 = arith.truncf %90 : vector<16x16x16xf32> to vector<16x16x16xbf16>
    %c0_68 = arith.constant 0 : index
    %c0_69 = arith.constant 0 : index
    %c0_70 = arith.constant 0 : index
    %c0_71 = arith.constant 0 : index
    %92 = vector.load %arg5[%c0_68, %c0_69, %c0_70, %c0_71] : memref<1x16x16x16xbf16, #tpu.memory_space<vmem>>, vector<1x16x16x16xbf16>
    %93 = vector.shape_cast %92 : vector<1x16x16x16xbf16> to vector<16x16x16xbf16>
    %94 = vector.shape_cast %91 : vector<16x16x16xbf16> to vector<1x16x16x16xbf16>
    tpu.vector_store %arg5[%c0_68, %c0_69, %c0_70, %c0_71], %94 {strides = array<i32>} : memref<1x16x16x16xbf16, #tpu.memory_space<vmem>>, vector<1x16x16x16xbf16>,
    return
  }
  func.func @transform_0(%arg0: i32) -> (i32, i32, i32, i32) {
    %c0_i32 = arith.constant 0 : i32
    %c0_i32_0 = arith.constant 0 : i32
    %c0_i32_1 = arith.constant 0 : i32
    %c0_i32_2 = arith.constant 0 : i32
    return %arg0, %c0_i32, %c0_i32_0, %c0_i32_1 : i32, i32, i32, i32
  }
  func.func @transform_1(%arg0: i32) -> (i32, i32, i32) {
    %c0_i32 = arith.constant 0 : i32
    %c0_i32_0 = arith.constant 0 : i32
    %c0_i32_1 = arith.constant 0 : i32
    %c0_i32_2 = arith.constant 0 : i32
    return %c0_i32, %c0_i32_0, %c0_i32_1 : i32, i32, i32
  }
  func.func @transform_2(%arg0: i32) -> (i32, i32) {
    %c0_i32 = arith.constant 0 : i32
    %c0_i32_0 = arith.constant 0 : i32
    %c0_i32_1 = arith.constant 0 : i32
    return %c0_i32, %c0_i32_0 : i32, i32
  }
  func.func @transform_3(%arg0: i32) -> (i32, i32) {
    %c0_i32 = arith.constant 0 : i32
    %c0_i32_0 = arith.constant 0 : i32
    %c0_i32_1 = arith.constant 0 : i32
    return %c0_i32, %c0_i32_0 : i32, i32
  }
  func.func @transform_4(%arg0: i32) -> (i32, i32, i32, i32) {
    %c0_i32 = arith.constant 0 : i32
    %c0_i32_0 = arith.constant 0 : i32
    %c0_i32_1 = arith.constant 0 : i32
    %c0_i32_2 = arith.constant 0 : i32
    return %arg0, %c0_i32, %c0_i32_0, %c0_i32_1 : i32, i32, i32, i32
  }
}

module attributes {stable_mosaic.version = 11 : i64} {
  func.func @_fused_matmul_kernel(%arg0: i32, %arg1: memref<256x9xbf16, #tpu.memory_space<vmem>>, %arg2: memref<9x16xbf16, #tpu.memory_space<vmem>>, %arg3: memref<1x16xf32, #tpu.memory_space<vmem>>, %arg4: memref<1x16xf32, #tpu.memory_space<vmem>>, %arg5: memref<256x16xbf16, #tpu.memory_space<vmem>>) attributes {dimension_semantics = [#tpu.dimension_semantics<parallel>], iteration_bounds = array<i64: 2>, scalar_prefetch = 0 : i64, scratch_operands = 0 : i64, tpu.core_type = #tpu.core_type<tc>, window_params = [{transform_indices = @transform_0, window_bounds = array<i64: 256, 9>}, {pipeline_mode = #tpu.pipeline_mode<synchronous>, transform_indices = @transform_1, window_bounds = array<i64: 9, 16>}, {pipeline_mode = #tpu.pipeline_mode<synchronous>, transform_indices = @transform_2, window_bounds = array<i64: 1, 16>}, {pipeline_mode = #tpu.pipeline_mode<synchronous>, transform_indices = @transform_3, window_bounds = array<i64: 1, 16>}, {transform_indices = @transform_4, window_bounds = array<i64: 256, 16>}]} {
    %c0 = arith.constant 0 : index
    %c0_0 = arith.constant 0 : index
    %0 = vector.load %arg1[%c0, %c0_0] : memref<256x9xbf16, #tpu.memory_space<vmem>>, vector<256x9xbf16>
    %c0_1 = arith.constant 0 : index
    %c0_2 = arith.constant 0 : index
    %1 = vector.load %arg2[%c0_1, %c0_2] : memref<9x16xbf16, #tpu.memory_space<vmem>>, vector<9x16xbf16>
    %cst = arith.constant dense<0.000000e+00> : vector<256x16xf32>
    %2 = tpu.matmul %0, %1, %cst {dimension_numbers = #tpu.dot_dimension_numbers<[1], [0], [0], [1], [0, 0, 1, 1], [], []>} : vector<256x9xbf16>, vector<9x16xbf16>, vector<256x16xf32> -> vector<256x16xf32>
    %c0_3 = arith.constant 0 : index
    %c0_4 = arith.constant 0 : index
    %3 = vector.load %arg3[%c0_3, %c0_4] : memref<1x16xf32, #tpu.memory_space<vmem>>, vector<1x16xf32>
    %4 = vector.broadcast %3 : vector<1x16xf32> to vector<256x16xf32>
    %5 = arith.mulf %2, %4 : vector<256x16xf32>
    %c0_5 = arith.constant 0 : index
    %c0_6 = arith.constant 0 : index
    %6 = vector.load %arg4[%c0_5, %c0_6] : memref<1x16xf32, #tpu.memory_space<vmem>>, vector<1x16xf32>
    %7 = vector.broadcast %6 : vector<1x16xf32> to vector<256x16xf32>
    %8 = arith.addf %5, %7 : vector<256x16xf32>
    %cst_7 = arith.constant 0.000000e+00 : f32
    %9 = vector.broadcast %cst_7 : f32 to vector<256x16xf32>
    %10 = arith.maximumf %8, %9 : vector<256x16xf32>
    %11 = arith.truncf %10 : vector<256x16xf32> to vector<256x16xbf16>
    %c0_8 = arith.constant 0 : index
    %c0_9 = arith.constant 0 : index
    %12 = vector.load %arg5[%c0_8, %c0_9] : memref<256x16xbf16, #tpu.memory_space<vmem>>, vector<256x16xbf16>
    tpu.vector_store %arg5[%c0_8, %c0_9], %11 {strides = array<i32>} : memref<256x16xbf16, #tpu.memory_space<vmem>>, vector<256x16xbf16>,
    return
  }
  func.func @transform_0(%arg0: i32) -> (i32, i32) {
    %c0_i32 = arith.constant 0 : i32
    %c0_i32_0 = arith.constant 0 : i32
    return %arg0, %c0_i32 : i32, i32
  }
  func.func @transform_1(%arg0: i32) -> (i32, i32) {
    %c0_i32 = arith.constant 0 : i32
    %c0_i32_0 = arith.constant 0 : i32
    %c0_i32_1 = arith.constant 0 : i32
    return %c0_i32, %c0_i32_0 : i32, i32
  }
  func.func @transform_2(%arg0: i32) -> (i32, i32) {
    %c0_i32 = arith.constant 0 : i32
    %c0_i32_0 = arith.constant 0 : i32
    %c0_i32_1 = arith.constant 0 : i32
    return %c0_i32, %c0_i32_0 : i32, i32
  }
  func.func @transform_3(%arg0: i32) -> (i32, i32) {
    %c0_i32 = arith.constant 0 : i32
    %c0_i32_0 = arith.constant 0 : i32
    %c0_i32_1 = arith.constant 0 : i32
    return %c0_i32, %c0_i32_0 : i32, i32
  }
  func.func @transform_4(%arg0: i32) -> (i32, i32) {
    %c0_i32 = arith.constant 0 : i32
    %c0_i32_0 = arith.constant 0 : i32
    return %arg0, %c0_i32 : i32, i32
  }
}

module attributes {stable_mosaic.version = 11 : i64} {
  func.func @_fused_matmul_kernel(%arg0: i32, %arg1: memref<256x144xbf16, #tpu.memory_space<vmem>>, %arg2: memref<144x16xbf16, #tpu.memory_space<vmem>>, %arg3: memref<1x16xf32, #tpu.memory_space<vmem>>, %arg4: memref<1x16xf32, #tpu.memory_space<vmem>>, %arg5: memref<256x16xbf16, #tpu.memory_space<vmem>>) attributes {dimension_semantics = [#tpu.dimension_semantics<parallel>], iteration_bounds = array<i64: 2>, scalar_prefetch = 0 : i64, scratch_operands = 0 : i64, tpu.core_type = #tpu.core_type<tc>, window_params = [{transform_indices = @transform_0, window_bounds = array<i64: 256, 144>}, {pipeline_mode = #tpu.pipeline_mode<synchronous>, transform_indices = @transform_1, window_bounds = array<i64: 144, 16>}, {pipeline_mode = #tpu.pipeline_mode<synchronous>, transform_indices = @transform_2, window_bounds = array<i64: 1, 16>}, {pipeline_mode = #tpu.pipeline_mode<synchronous>, transform_indices = @transform_3, window_bounds = array<i64: 1, 16>}, {transform_indices = @transform_4, window_bounds = array<i64: 256, 16>}]} {
    %c0 = arith.constant 0 : index
    %c0_0 = arith.constant 0 : index
    %0 = vector.load %arg1[%c0, %c0_0] : memref<256x144xbf16, #tpu.memory_space<vmem>>, vector<256x144xbf16>
    %c0_1 = arith.constant 0 : index
    %c0_2 = arith.constant 0 : index
    %1 = vector.load %arg2[%c0_1, %c0_2] : memref<144x16xbf16, #tpu.memory_space<vmem>>, vector<144x16xbf16>
    %cst = arith.constant dense<0.000000e+00> : vector<256x16xf32>
    %2 = tpu.matmul %0, %1, %cst {dimension_numbers = #tpu.dot_dimension_numbers<[1], [0], [0], [1], [0, 0, 1, 1], [], []>} : vector<256x144xbf16>, vector<144x16xbf16>, vector<256x16xf32> -> vector<256x16xf32>
    %c0_3 = arith.constant 0 : index
    %c0_4 = arith.constant 0 : index
    %3 = vector.load %arg3[%c0_3, %c0_4] : memref<1x16xf32, #tpu.memory_space<vmem>>, vector<1x16xf32>
    %4 = vector.broadcast %3 : vector<1x16xf32> to vector<256x16xf32>
    %5 = arith.mulf %2, %4 : vector<256x16xf32>
    %c0_5 = arith.constant 0 : index
    %c0_6 = arith.constant 0 : index
    %6 = vector.load %arg4[%c0_5, %c0_6] : memref<1x16xf32, #tpu.memory_space<vmem>>, vector<1x16xf32>
    %7 = vector.broadcast %6 : vector<1x16xf32> to vector<256x16xf32>
    %8 = arith.addf %5, %7 : vector<256x16xf32>
    %cst_7 = arith.constant 0.000000e+00 : f32
    %9 = vector.broadcast %cst_7 : f32 to vector<256x16xf32>
    %10 = arith.maximumf %8, %9 : vector<256x16xf32>
    %11 = arith.truncf %10 : vector<256x16xf32> to vector<256x16xbf16>
    %c0_8 = arith.constant 0 : index
    %c0_9 = arith.constant 0 : index
    %12 = vector.load %arg5[%c0_8, %c0_9] : memref<256x16xbf16, #tpu.memory_space<vmem>>, vector<256x16xbf16>
    tpu.vector_store %arg5[%c0_8, %c0_9], %11 {strides = array<i32>} : memref<256x16xbf16, #tpu.memory_space<vmem>>, vector<256x16xbf16>,
    return
  }
  func.func @transform_0(%arg0: i32) -> (i32, i32) {
    %c0_i32 = arith.constant 0 : i32
    %c0_i32_0 = arith.constant 0 : i32
    return %arg0, %c0_i32 : i32, i32
  }
  func.func @transform_1(%arg0: i32) -> (i32, i32) {
    %c0_i32 = arith.constant 0 : i32
    %c0_i32_0 = arith.constant 0 : i32
    %c0_i32_1 = arith.constant 0 : i32
    return %c0_i32, %c0_i32_0 : i32, i32
  }
  func.func @transform_2(%arg0: i32) -> (i32, i32) {
    %c0_i32 = arith.constant 0 : i32
    %c0_i32_0 = arith.constant 0 : i32
    %c0_i32_1 = arith.constant 0 : i32
    return %c0_i32, %c0_i32_0 : i32, i32
  }
  func.func @transform_3(%arg0: i32) -> (i32, i32) {
    %c0_i32 = arith.constant 0 : i32
    %c0_i32_0 = arith.constant 0 : i32
    %c0_i32_1 = arith.constant 0 : i32
    return %c0_i32, %c0_i32_0 : i32, i32
  }
  func.func @transform_4(%arg0: i32) -> (i32, i32) {
    %c0_i32 = arith.constant 0 : i32
    %c0_i32_0 = arith.constant 0 : i32
    return %arg0, %c0_i32 : i32, i32
  }
}

module attributes {stable_mosaic.version = 11 : i64} {
  func.func @_fused_matmul_kernel(%arg0: i32, %arg1: memref<256x144xbf16, #tpu.memory_space<vmem>>, %arg2: memref<144x16xbf16, #tpu.memory_space<vmem>>, %arg3: memref<1x16xf32, #tpu.memory_space<vmem>>, %arg4: memref<1x16xf32, #tpu.memory_space<vmem>>, %arg5: memref<256x16xbf16, #tpu.memory_space<vmem>>, %arg6: memref<256x16xbf16, #tpu.memory_space<vmem>>) attributes {dimension_semantics = [#tpu.dimension_semantics<parallel>], iteration_bounds = array<i64: 2>, scalar_prefetch = 0 : i64, scratch_operands = 0 : i64, tpu.core_type = #tpu.core_type<tc>, window_params = [{transform_indices = @transform_0, window_bounds = array<i64: 256, 144>}, {pipeline_mode = #tpu.pipeline_mode<synchronous>, transform_indices = @transform_1, window_bounds = array<i64: 144, 16>}, {pipeline_mode = #tpu.pipeline_mode<synchronous>, transform_indices = @transform_2, window_bounds = array<i64: 1, 16>}, {pipeline_mode = #tpu.pipeline_mode<synchronous>, transform_indices = @transform_3, window_bounds = array<i64: 1, 16>}, {transform_indices = @transform_4, window_bounds = array<i64: 256, 16>}, {transform_indices = @transform_5, window_bounds = array<i64: 256, 16>}]} {
    %c0 = arith.constant 0 : index
    %c0_0 = arith.constant 0 : index
    %0 = vector.load %arg1[%c0, %c0_0] : memref<256x144xbf16, #tpu.memory_space<vmem>>, vector<256x144xbf16>
    %c0_1 = arith.constant 0 : index
    %c0_2 = arith.constant 0 : index
    %1 = vector.load %arg2[%c0_1, %c0_2] : memref<144x16xbf16, #tpu.memory_space<vmem>>, vector<144x16xbf16>
    %cst = arith.constant dense<0.000000e+00> : vector<256x16xf32>
    %2 = tpu.matmul %0, %1, %cst {dimension_numbers = #tpu.dot_dimension_numbers<[1], [0], [0], [1], [0, 0, 1, 1], [], []>} : vector<256x144xbf16>, vector<144x16xbf16>, vector<256x16xf32> -> vector<256x16xf32>
    %c0_3 = arith.constant 0 : index
    %c0_4 = arith.constant 0 : index
    %3 = vector.load %arg3[%c0_3, %c0_4] : memref<1x16xf32, #tpu.memory_space<vmem>>, vector<1x16xf32>
    %4 = vector.broadcast %3 : vector<1x16xf32> to vector<256x16xf32>
    %5 = arith.mulf %2, %4 : vector<256x16xf32>
    %c0_5 = arith.constant 0 : index
    %c0_6 = arith.constant 0 : index
    %6 = vector.load %arg4[%c0_5, %c0_6] : memref<1x16xf32, #tpu.memory_space<vmem>>, vector<1x16xf32>
    %7 = vector.broadcast %6 : vector<1x16xf32> to vector<256x16xf32>
    %8 = arith.addf %5, %7 : vector<256x16xf32>
    %c0_7 = arith.constant 0 : index
    %c0_8 = arith.constant 0 : index
    %9 = vector.load %arg5[%c0_7, %c0_8] : memref<256x16xbf16, #tpu.memory_space<vmem>>, vector<256x16xbf16>
    %10 = arith.extf %9 : vector<256x16xbf16> to vector<256x16xf32>
    %11 = arith.addf %8, %10 : vector<256x16xf32>
    %cst_9 = arith.constant 0.000000e+00 : f32
    %12 = vector.broadcast %cst_9 : f32 to vector<256x16xf32>
    %13 = arith.maximumf %11, %12 : vector<256x16xf32>
    %14 = arith.truncf %13 : vector<256x16xf32> to vector<256x16xbf16>
    %c0_10 = arith.constant 0 : index
    %c0_11 = arith.constant 0 : index
    %15 = vector.load %arg6[%c0_10, %c0_11] : memref<256x16xbf16, #tpu.memory_space<vmem>>, vector<256x16xbf16>
    tpu.vector_store %arg6[%c0_10, %c0_11], %14 {strides = array<i32>} : memref<256x16xbf16, #tpu.memory_space<vmem>>, vector<256x16xbf16>,
    return
  }
  func.func @transform_0(%arg0: i32) -> (i32, i32) {
    %c0_i32 = arith.constant 0 : i32
    %c0_i32_0 = arith.constant 0 : i32
    return %arg0, %c0_i32 : i32, i32
  }
  func.func @transform_1(%arg0: i32) -> (i32, i32) {
    %c0_i32 = arith.constant 0 : i32
    %c0_i32_0 = arith.constant 0 : i32
    %c0_i32_1 = arith.constant 0 : i32
    return %c0_i32, %c0_i32_0 : i32, i32
  }
  func.func @transform_2(%arg0: i32) -> (i32, i32) {
    %c0_i32 = arith.constant 0 : i32
    %c0_i32_0 = arith.constant 0 : i32
    %c0_i32_1 = arith.constant 0 : i32
    return %c0_i32, %c0_i32_0 : i32, i32
  }
  func.func @transform_3(%arg0: i32) -> (i32, i32) {
    %c0_i32 = arith.constant 0 : i32
    %c0_i32_0 = arith.constant 0 : i32
    %c0_i32_1 = arith.constant 0 : i32
    return %c0_i32, %c0_i32_0 : i32, i32
  }
  func.func @transform_4(%arg0: i32) -> (i32, i32) {
    %c0_i32 = arith.constant 0 : i32
    %c0_i32_0 = arith.constant 0 : i32
    return %arg0, %c0_i32 : i32, i32
  }
  func.func @transform_5(%arg0: i32) -> (i32, i32) {
    %c0_i32 = arith.constant 0 : i32
    %c0_i32_0 = arith.constant 0 : i32
    return %arg0, %c0_i32 : i32, i32
  }
}

module attributes {stable_mosaic.version = 11 : i64} {
  func.func @_fused_matmul_kernel(%arg0: i32, %arg1: memref<128x16xbf16, #tpu.memory_space<vmem>>, %arg2: memref<16x32xbf16, #tpu.memory_space<vmem>>, %arg3: memref<1x32xf32, #tpu.memory_space<vmem>>, %arg4: memref<1x32xf32, #tpu.memory_space<vmem>>, %arg5: memref<128x32xbf16, #tpu.memory_space<vmem>>) attributes {dimension_semantics = [#tpu.dimension_semantics<parallel>], iteration_bounds = array<i64: 1>, scalar_prefetch = 0 : i64, scratch_operands = 0 : i64, tpu.core_type = #tpu.core_type<tc>, window_params = [{transform_indices = @transform_0, window_bounds = array<i64: 128, 16>}, {pipeline_mode = #tpu.pipeline_mode<synchronous>, transform_indices = @transform_1, window_bounds = array<i64: 16, 32>}, {pipeline_mode = #tpu.pipeline_mode<synchronous>, transform_indices = @transform_2, window_bounds = array<i64: 1, 32>}, {pipeline_mode = #tpu.pipeline_mode<synchronous>, transform_indices = @transform_3, window_bounds = array<i64: 1, 32>}, {transform_indices = @transform_4, window_bounds = array<i64: 128, 32>}]} {
    %c0 = arith.constant 0 : index
    %c0_0 = arith.constant 0 : index
    %0 = vector.load %arg1[%c0, %c0_0] : memref<128x16xbf16, #tpu.memory_space<vmem>>, vector<128x16xbf16>
    %c0_1 = arith.constant 0 : index
    %c0_2 = arith.constant 0 : index
    %1 = vector.load %arg2[%c0_1, %c0_2] : memref<16x32xbf16, #tpu.memory_space<vmem>>, vector<16x32xbf16>
    %cst = arith.constant dense<0.000000e+00> : vector<128x32xf32>
    %2 = tpu.matmul %0, %1, %cst {dimension_numbers = #tpu.dot_dimension_numbers<[1], [0], [0], [1], [0, 0, 1, 1], [], []>} : vector<128x16xbf16>, vector<16x32xbf16>, vector<128x32xf32> -> vector<128x32xf32>
    %c0_3 = arith.constant 0 : index
    %c0_4 = arith.constant 0 : index
    %3 = vector.load %arg3[%c0_3, %c0_4] : memref<1x32xf32, #tpu.memory_space<vmem>>, vector<1x32xf32>
    %4 = vector.broadcast %3 : vector<1x32xf32> to vector<128x32xf32>
    %5 = arith.mulf %2, %4 : vector<128x32xf32>
    %c0_5 = arith.constant 0 : index
    %c0_6 = arith.constant 0 : index
    %6 = vector.load %arg4[%c0_5, %c0_6] : memref<1x32xf32, #tpu.memory_space<vmem>>, vector<1x32xf32>
    %7 = vector.broadcast %6 : vector<1x32xf32> to vector<128x32xf32>
    %8 = arith.addf %5, %7 : vector<128x32xf32>
    %9 = arith.truncf %8 : vector<128x32xf32> to vector<128x32xbf16>
    %c0_7 = arith.constant 0 : index
    %c0_8 = arith.constant 0 : index
    %10 = vector.load %arg5[%c0_7, %c0_8] : memref<128x32xbf16, #tpu.memory_space<vmem>>, vector<128x32xbf16>
    tpu.vector_store %arg5[%c0_7, %c0_8], %9 {strides = array<i32>} : memref<128x32xbf16, #tpu.memory_space<vmem>>, vector<128x32xbf16>,
    return
  }
  func.func @transform_0(%arg0: i32) -> (i32, i32) {
    %c0_i32 = arith.constant 0 : i32
    %c0_i32_0 = arith.constant 0 : i32
    return %arg0, %c0_i32 : i32, i32
  }
  func.func @transform_1(%arg0: i32) -> (i32, i32) {
    %c0_i32 = arith.constant 0 : i32
    %c0_i32_0 = arith.constant 0 : i32
    %c0_i32_1 = arith.constant 0 : i32
    return %c0_i32, %c0_i32_0 : i32, i32
  }
  func.func @transform_2(%arg0: i32) -> (i32, i32) {
    %c0_i32 = arith.constant 0 : i32
    %c0_i32_0 = arith.constant 0 : i32
    %c0_i32_1 = arith.constant 0 : i32
    return %c0_i32, %c0_i32_0 : i32, i32
  }
  func.func @transform_3(%arg0: i32) -> (i32, i32) {
    %c0_i32 = arith.constant 0 : i32
    %c0_i32_0 = arith.constant 0 : i32
    %c0_i32_1 = arith.constant 0 : i32
    return %c0_i32, %c0_i32_0 : i32, i32
  }
  func.func @transform_4(%arg0: i32) -> (i32, i32) {
    %c0_i32 = arith.constant 0 : i32
    %c0_i32_0 = arith.constant 0 : i32
    return %arg0, %c0_i32 : i32, i32
  }
}

module attributes {stable_mosaic.version = 11 : i64} {
  func.func @_fused_matmul_kernel(%arg0: i32, %arg1: memref<128x144xbf16, #tpu.memory_space<vmem>>, %arg2: memref<144x32xbf16, #tpu.memory_space<vmem>>, %arg3: memref<1x32xf32, #tpu.memory_space<vmem>>, %arg4: memref<1x32xf32, #tpu.memory_space<vmem>>, %arg5: memref<128x32xbf16, #tpu.memory_space<vmem>>) attributes {dimension_semantics = [#tpu.dimension_semantics<parallel>], iteration_bounds = array<i64: 1>, scalar_prefetch = 0 : i64, scratch_operands = 0 : i64, tpu.core_type = #tpu.core_type<tc>, window_params = [{transform_indices = @transform_0, window_bounds = array<i64: 128, 144>}, {pipeline_mode = #tpu.pipeline_mode<synchronous>, transform_indices = @transform_1, window_bounds = array<i64: 144, 32>}, {pipeline_mode = #tpu.pipeline_mode<synchronous>, transform_indices = @transform_2, window_bounds = array<i64: 1, 32>}, {pipeline_mode = #tpu.pipeline_mode<synchronous>, transform_indices = @transform_3, window_bounds = array<i64: 1, 32>}, {transform_indices = @transform_4, window_bounds = array<i64: 128, 32>}]} {
    %c0 = arith.constant 0 : index
    %c0_0 = arith.constant 0 : index
    %0 = vector.load %arg1[%c0, %c0_0] : memref<128x144xbf16, #tpu.memory_space<vmem>>, vector<128x144xbf16>
    %c0_1 = arith.constant 0 : index
    %c0_2 = arith.constant 0 : index
    %1 = vector.load %arg2[%c0_1, %c0_2] : memref<144x32xbf16, #tpu.memory_space<vmem>>, vector<144x32xbf16>
    %cst = arith.constant dense<0.000000e+00> : vector<128x32xf32>
    %2 = tpu.matmul %0, %1, %cst {dimension_numbers = #tpu.dot_dimension_numbers<[1], [0], [0], [1], [0, 0, 1, 1], [], []>} : vector<128x144xbf16>, vector<144x32xbf16>, vector<128x32xf32> -> vector<128x32xf32>
    %c0_3 = arith.constant 0 : index
    %c0_4 = arith.constant 0 : index
    %3 = vector.load %arg3[%c0_3, %c0_4] : memref<1x32xf32, #tpu.memory_space<vmem>>, vector<1x32xf32>
    %4 = vector.broadcast %3 : vector<1x32xf32> to vector<128x32xf32>
    %5 = arith.mulf %2, %4 : vector<128x32xf32>
    %c0_5 = arith.constant 0 : index
    %c0_6 = arith.constant 0 : index
    %6 = vector.load %arg4[%c0_5, %c0_6] : memref<1x32xf32, #tpu.memory_space<vmem>>, vector<1x32xf32>
    %7 = vector.broadcast %6 : vector<1x32xf32> to vector<128x32xf32>
    %8 = arith.addf %5, %7 : vector<128x32xf32>
    %cst_7 = arith.constant 0.000000e+00 : f32
    %9 = vector.broadcast %cst_7 : f32 to vector<128x32xf32>
    %10 = arith.maximumf %8, %9 : vector<128x32xf32>
    %11 = arith.truncf %10 : vector<128x32xf32> to vector<128x32xbf16>
    %c0_8 = arith.constant 0 : index
    %c0_9 = arith.constant 0 : index
    %12 = vector.load %arg5[%c0_8, %c0_9] : memref<128x32xbf16, #tpu.memory_space<vmem>>, vector<128x32xbf16>
    tpu.vector_store %arg5[%c0_8, %c0_9], %11 {strides = array<i32>} : memref<128x32xbf16, #tpu.memory_space<vmem>>, vector<128x32xbf16>,
    return
  }
  func.func @transform_0(%arg0: i32) -> (i32, i32) {
    %c0_i32 = arith.constant 0 : i32
    %c0_i32_0 = arith.constant 0 : i32
    return %arg0, %c0_i32 : i32, i32
  }
  func.func @transform_1(%arg0: i32) -> (i32, i32) {
    %c0_i32 = arith.constant 0 : i32
    %c0_i32_0 = arith.constant 0 : i32
    %c0_i32_1 = arith.constant 0 : i32
    return %c0_i32, %c0_i32_0 : i32, i32
  }
  func.func @transform_2(%arg0: i32) -> (i32, i32) {
    %c0_i32 = arith.constant 0 : i32
    %c0_i32_0 = arith.constant 0 : i32
    %c0_i32_1 = arith.constant 0 : i32
    return %c0_i32, %c0_i32_0 : i32, i32
  }
  func.func @transform_3(%arg0: i32) -> (i32, i32) {
    %c0_i32 = arith.constant 0 : i32
    %c0_i32_0 = arith.constant 0 : i32
    %c0_i32_1 = arith.constant 0 : i32
    return %c0_i32, %c0_i32_0 : i32, i32
  }
  func.func @transform_4(%arg0: i32) -> (i32, i32) {
    %c0_i32 = arith.constant 0 : i32
    %c0_i32_0 = arith.constant 0 : i32
    return %arg0, %c0_i32 : i32, i32
  }
}

module attributes {stable_mosaic.version = 11 : i64} {
  func.func @_fused_matmul_kernel(%arg0: i32, %arg1: memref<128x288xbf16, #tpu.memory_space<vmem>>, %arg2: memref<288x32xbf16, #tpu.memory_space<vmem>>, %arg3: memref<1x32xf32, #tpu.memory_space<vmem>>, %arg4: memref<1x32xf32, #tpu.memory_space<vmem>>, %arg5: memref<128x32xbf16, #tpu.memory_space<vmem>>, %arg6: memref<128x32xbf16, #tpu.memory_space<vmem>>) attributes {dimension_semantics = [#tpu.dimension_semantics<parallel>], iteration_bounds = array<i64: 1>, scalar_prefetch = 0 : i64, scratch_operands = 0 : i64, tpu.core_type = #tpu.core_type<tc>, window_params = [{transform_indices = @transform_0, window_bounds = array<i64: 128, 288>}, {pipeline_mode = #tpu.pipeline_mode<synchronous>, transform_indices = @transform_1, window_bounds = array<i64: 288, 32>}, {pipeline_mode = #tpu.pipeline_mode<synchronous>, transform_indices = @transform_2, window_bounds = array<i64: 1, 32>}, {pipeline_mode = #tpu.pipeline_mode<synchronous>, transform_indices = @transform_3, window_bounds = array<i64: 1, 32>}, {transform_indices = @transform_4, window_bounds = array<i64: 128, 32>}, {transform_indices = @transform_5, window_bounds = array<i64: 128, 32>}]} {
    %c0 = arith.constant 0 : index
    %c0_0 = arith.constant 0 : index
    %0 = vector.load %arg1[%c0, %c0_0] : memref<128x288xbf16, #tpu.memory_space<vmem>>, vector<128x288xbf16>
    %c0_1 = arith.constant 0 : index
    %c0_2 = arith.constant 0 : index
    %1 = vector.load %arg2[%c0_1, %c0_2] : memref<288x32xbf16, #tpu.memory_space<vmem>>, vector<288x32xbf16>
    %cst = arith.constant dense<0.000000e+00> : vector<128x32xf32>
    %2 = tpu.matmul %0, %1, %cst {dimension_numbers = #tpu.dot_dimension_numbers<[1], [0], [0], [1], [0, 0, 1, 1], [], []>} : vector<128x288xbf16>, vector<288x32xbf16>, vector<128x32xf32> -> vector<128x32xf32>
    %c0_3 = arith.constant 0 : index
    %c0_4 = arith.constant 0 : index
    %3 = vector.load %arg3[%c0_3, %c0_4] : memref<1x32xf32, #tpu.memory_space<vmem>>, vector<1x32xf32>
    %4 = vector.broadcast %3 : vector<1x32xf32> to vector<128x32xf32>
    %5 = arith.mulf %2, %4 : vector<128x32xf32>
    %c0_5 = arith.constant 0 : index
    %c0_6 = arith.constant 0 : index
    %6 = vector.load %arg4[%c0_5, %c0_6] : memref<1x32xf32, #tpu.memory_space<vmem>>, vector<1x32xf32>
    %7 = vector.broadcast %6 : vector<1x32xf32> to vector<128x32xf32>
    %8 = arith.addf %5, %7 : vector<128x32xf32>
    %c0_7 = arith.constant 0 : index
    %c0_8 = arith.constant 0 : index
    %9 = vector.load %arg5[%c0_7, %c0_8] : memref<128x32xbf16, #tpu.memory_space<vmem>>, vector<128x32xbf16>
    %10 = arith.extf %9 : vector<128x32xbf16> to vector<128x32xf32>
    %11 = arith.addf %8, %10 : vector<128x32xf32>
    %cst_9 = arith.constant 0.000000e+00 : f32
    %12 = vector.broadcast %cst_9 : f32 to vector<128x32xf32>
    %13 = arith.maximumf %11, %12 : vector<128x32xf32>
    %14 = arith.truncf %13 : vector<128x32xf32> to vector<128x32xbf16>
    %c0_10 = arith.constant 0 : index
    %c0_11 = arith.constant 0 : index
    %15 = vector.load %arg6[%c0_10, %c0_11] : memref<128x32xbf16, #tpu.memory_space<vmem>>, vector<128x32xbf16>
    tpu.vector_store %arg6[%c0_10, %c0_11], %14 {strides = array<i32>} : memref<128x32xbf16, #tpu.memory_space<vmem>>, vector<128x32xbf16>,
    return
  }
  func.func @transform_0(%arg0: i32) -> (i32, i32) {
    %c0_i32 = arith.constant 0 : i32
    %c0_i32_0 = arith.constant 0 : i32
    return %arg0, %c0_i32 : i32, i32
  }
  func.func @transform_1(%arg0: i32) -> (i32, i32) {
    %c0_i32 = arith.constant 0 : i32
    %c0_i32_0 = arith.constant 0 : i32
    %c0_i32_1 = arith.constant 0 : i32
    return %c0_i32, %c0_i32_0 : i32, i32
  }
  func.func @transform_2(%arg0: i32) -> (i32, i32) {
    %c0_i32 = arith.constant 0 : i32
    %c0_i32_0 = arith.constant 0 : i32
    %c0_i32_1 = arith.constant 0 : i32
    return %c0_i32, %c0_i32_0 : i32, i32
  }
  func.func @transform_3(%arg0: i32) -> (i32, i32) {
    %c0_i32 = arith.constant 0 : i32
    %c0_i32_0 = arith.constant 0 : i32
    %c0_i32_1 = arith.constant 0 : i32
    return %c0_i32, %c0_i32_0 : i32, i32
  }
  func.func @transform_4(%arg0: i32) -> (i32, i32) {
    %c0_i32 = arith.constant 0 : i32
    %c0_i32_0 = arith.constant 0 : i32
    return %arg0, %c0_i32 : i32, i32
  }
  func.func @transform_5(%arg0: i32) -> (i32, i32) {
    %c0_i32 = arith.constant 0 : i32
    %c0_i32_0 = arith.constant 0 : i32
    return %arg0, %c0_i32 : i32, i32
  }
}

module attributes {stable_mosaic.version = 11 : i64} {
  func.func @_tail_kernel(%arg0: i32, %arg1: memref<2x64x32xbf16, #tpu.memory_space<vmem>>, %arg2: memref<32x32xbf16, #tpu.memory_space<vmem>>, %arg3: memref<1x32xf32, #tpu.memory_space<vmem>>, %arg4: memref<32x32xbf16, #tpu.memory_space<vmem>>, %arg5: memref<1x32xf32, #tpu.memory_space<vmem>>, %arg6: memref<32x32xbf16, #tpu.memory_space<vmem>>, %arg7: memref<1x32xf32, #tpu.memory_space<vmem>>, %arg8: memref<2x32xf32, #tpu.memory_space<vmem>>) attributes {dimension_semantics = [#tpu.dimension_semantics<arbitrary>], iteration_bounds = array<i64: 1>, scalar_prefetch = 0 : i64, scratch_operands = 0 : i64, tpu.core_type = #tpu.core_type<tc>, window_params = [{pipeline_mode = #tpu.pipeline_mode<synchronous>, transform_indices = @transform_0, window_bounds = array<i64: 2, 64, 32>}, {pipeline_mode = #tpu.pipeline_mode<synchronous>, transform_indices = @transform_1, window_bounds = array<i64: 32, 32>}, {pipeline_mode = #tpu.pipeline_mode<synchronous>, transform_indices = @transform_2, window_bounds = array<i64: 1, 32>}, {pipeline_mode = #tpu.pipeline_mode<synchronous>, transform_indices = @transform_3, window_bounds = array<i64: 32, 32>}, {pipeline_mode = #tpu.pipeline_mode<synchronous>, transform_indices = @transform_4, window_bounds = array<i64: 1, 32>}, {pipeline_mode = #tpu.pipeline_mode<synchronous>, transform_indices = @transform_5, window_bounds = array<i64: 32, 32>}, {pipeline_mode = #tpu.pipeline_mode<synchronous>, transform_indices = @transform_6, window_bounds = array<i64: 1, 32>}, {pipeline_mode = #tpu.pipeline_mode<synchronous>, transform_indices = @transform_7, window_bounds = array<i64: 2, 32>}]} {
    %c0 = arith.constant 0 : index
    %c0_0 = arith.constant 0 : index
    %c0_1 = arith.constant 0 : index
    %0 = vector.load %arg1[%c0, %c0_0, %c0_1] : memref<2x64x32xbf16, #tpu.memory_space<vmem>>, vector<2x64x32xbf16>
    %1 = arith.extf %0 : vector<2x64x32xbf16> to vector<2x64x32xf32>
    %cst = arith.constant dense<0.000000e+00> : vector<2x32xf32>
    %2 = vector.multi_reduction <add>, %1, %cst [1] : vector<2x64x32xf32> to vector<2x32xf32>
    %cst_2 = arith.constant 6.400000e+01 : f32
    %3 = vector.broadcast %cst_2 : f32 to vector<2x32xf32>
    %4 = arith.divf %2, %3 : vector<2x32xf32>
    %c0_3 = arith.constant 0 : index
    %c0_4 = arith.constant 0 : index
    %5 = vector.load %arg2[%c0_3, %c0_4] : memref<32x32xbf16, #tpu.memory_space<vmem>>, vector<32x32xbf16>
    %c0_5 = arith.constant 0 : index
    %c0_6 = arith.constant 0 : index
    %6 = vector.load %arg3[%c0_5, %c0_6] : memref<1x32xf32, #tpu.memory_space<vmem>>, vector<1x32xf32>
    %7 = arith.truncf %4 : vector<2x32xf32> to vector<2x32xbf16>
    %cst_7 = arith.constant dense<0.000000e+00> : vector<2x32xf32>
    %8 = tpu.matmul %7, %5, %cst_7 {dimension_numbers = #tpu.dot_dimension_numbers<[1], [0], [0], [1], [0, 0, 1, 1], [], []>} : vector<2x32xbf16>, vector<32x32xbf16>, vector<2x32xf32> -> vector<2x32xf32>
    %9 = vector.broadcast %6 : vector<1x32xf32> to vector<2x32xf32>
    %10 = arith.addf %8, %9 : vector<2x32xf32>
    %cst_8 = arith.constant 0.000000e+00 : f32
    %11 = vector.broadcast %cst_8 : f32 to vector<2x32xf32>
    %12 = arith.maximumf %10, %11 : vector<2x32xf32>
    %c0_9 = arith.constant 0 : index
    %c0_10 = arith.constant 0 : index
    %13 = vector.load %arg4[%c0_9, %c0_10] : memref<32x32xbf16, #tpu.memory_space<vmem>>, vector<32x32xbf16>
    %c0_11 = arith.constant 0 : index
    %c0_12 = arith.constant 0 : index
    %14 = vector.load %arg5[%c0_11, %c0_12] : memref<1x32xf32, #tpu.memory_space<vmem>>, vector<1x32xf32>
    %15 = arith.truncf %12 : vector<2x32xf32> to vector<2x32xbf16>
    %cst_13 = arith.constant dense<0.000000e+00> : vector<2x32xf32>
    %16 = tpu.matmul %15, %13, %cst_13 {dimension_numbers = #tpu.dot_dimension_numbers<[1], [0], [0], [1], [0, 0, 1, 1], [], []>} : vector<2x32xbf16>, vector<32x32xbf16>, vector<2x32xf32> -> vector<2x32xf32>
    %17 = vector.broadcast %14 : vector<1x32xf32> to vector<2x32xf32>
    %18 = arith.addf %16, %17 : vector<2x32xf32>
    %cst_14 = arith.constant 0.000000e+00 : f32
    %19 = vector.broadcast %cst_14 : f32 to vector<2x32xf32>
    %20 = arith.maximumf %18, %19 : vector<2x32xf32>
    %c0_15 = arith.constant 0 : index
    %c0_16 = arith.constant 0 : index
    %21 = vector.load %arg6[%c0_15, %c0_16] : memref<32x32xbf16, #tpu.memory_space<vmem>>, vector<32x32xbf16>
    %c0_17 = arith.constant 0 : index
    %c0_18 = arith.constant 0 : index
    %22 = vector.load %arg7[%c0_17, %c0_18] : memref<1x32xf32, #tpu.memory_space<vmem>>, vector<1x32xf32>
    %23 = arith.truncf %20 : vector<2x32xf32> to vector<2x32xbf16>
    %cst_19 = arith.constant dense<0.000000e+00> : vector<2x32xf32>
    %24 = tpu.matmul %23, %21, %cst_19 {dimension_numbers = #tpu.dot_dimension_numbers<[1], [0], [0], [1], [0, 0, 1, 1], [], []>} : vector<2x32xbf16>, vector<32x32xbf16>, vector<2x32xf32> -> vector<2x32xf32>
    %25 = vector.broadcast %22 : vector<1x32xf32> to vector<2x32xf32>
    %26 = arith.addf %24, %25 : vector<2x32xf32>
    %c0_20 = arith.constant 0 : index
    %c0_21 = arith.constant 0 : index
    %27 = vector.load %arg8[%c0_20, %c0_21] : memref<2x32xf32, #tpu.memory_space<vmem>>, vector<2x32xf32>
    tpu.vector_store %arg8[%c0_20, %c0_21], %26 {strides = array<i32>} : memref<2x32xf32, #tpu.memory_space<vmem>>, vector<2x32xf32>,
    return
  }
  func.func @transform_0(%arg0: i32) -> (i32, i32, i32) {
    %c0_i32 = arith.constant 0 : i32
    %c0_i32_0 = arith.constant 0 : i32
    %c0_i32_1 = arith.constant 0 : i32
    %c0_i32_2 = arith.constant 0 : i32
    return %c0_i32, %c0_i32_0, %c0_i32_1 : i32, i32, i32
  }
  func.func @transform_1(%arg0: i32) -> (i32, i32) {
    %c0_i32 = arith.constant 0 : i32
    %c0_i32_0 = arith.constant 0 : i32
    %c0_i32_1 = arith.constant 0 : i32
    return %c0_i32, %c0_i32_0 : i32, i32
  }
  func.func @transform_2(%arg0: i32) -> (i32, i32) {
    %c0_i32 = arith.constant 0 : i32
    %c0_i32_0 = arith.constant 0 : i32
    %c0_i32_1 = arith.constant 0 : i32
    return %c0_i32, %c0_i32_0 : i32, i32
  }
  func.func @transform_3(%arg0: i32) -> (i32, i32) {
    %c0_i32 = arith.constant 0 : i32
    %c0_i32_0 = arith.constant 0 : i32
    %c0_i32_1 = arith.constant 0 : i32
    return %c0_i32, %c0_i32_0 : i32, i32
  }
  func.func @transform_4(%arg0: i32) -> (i32, i32) {
    %c0_i32 = arith.constant 0 : i32
    %c0_i32_0 = arith.constant 0 : i32
    %c0_i32_1 = arith.constant 0 : i32
    return %c0_i32, %c0_i32_0 : i32, i32
  }
  func.func @transform_5(%arg0: i32) -> (i32, i32) {
    %c0_i32 = arith.constant 0 : i32
    %c0_i32_0 = arith.constant 0 : i32
    %c0_i32_1 = arith.constant 0 : i32
    return %c0_i32, %c0_i32_0 : i32, i32
  }
  func.func @transform_6(%arg0: i32) -> (i32, i32) {
    %c0_i32 = arith.constant 0 : i32
    %c0_i32_0 = arith.constant 0 : i32
    %c0_i32_1 = arith.constant 0 : i32
    return %c0_i32, %c0_i32_0 : i32, i32
  }
  func.func @transform_7(%arg0: i32) -> (i32, i32) {
    %c0_i32 = arith.constant 0 : i32
    %c0_i32_0 = arith.constant 0 : i32
    %c0_i32_1 = arith.constant 0 : i32
    return %c0_i32, %c0_i32_0 : i32, i32
  }
}

</mosaic_0001>

<llo_original>
// kernel: tpu_custom_call.1
$region0: #{tpu_custom_call.1}
  #allocation0 [shape = 'u32[]', space=smem, size = 0x4, offset = 0x4, fixed_abs, tag = 'smem constant byte address 0x4 - core index']
  #allocation1 [shape = 'u32[144,128]{1,0:T(1,128)}', space=vmem, size = 0x12000, scoped, tag = 'internal scratch']
  %s0 = inlined_call_operand.vmem [shape: bf16[1,18,18,16], index: 0, kind: input, shape index: {}]
  %s1 = inlined_call_operand.vmem [shape: bf16[9,16,16], index: 1, kind: input, shape index: {}]
  %s2 = inlined_call_operand.vmem [shape: f32[1,16], index: 2, kind: input, shape index: {}]
  %s3 = inlined_call_operand.vmem [shape: f32[1,16], index: 3, kind: input, shape index: {}]
  %s4 = inlined_call_operand.hbm [shape: bf16[1,16,16,16], index: 4, kind: output, shape index: {}]
  %s5 = sld [smem:[#allocation0]]
  $region26: #{tpu_custom_call.1} parent=0
    _
  %s7 = ssub.s32 1, %s5
  %s8 = scalar_select 0, %s7, %s5
  $region1: #{tpu_custom_call.1} parent=0
    #allocation2 [shape = 'u8[65536]{0}', space=vmem, size = 0x10000, scoped, tag = 'output window, operand 0, single buffered']
    #allocation3 [shape = 's32[1]{0}', space=sflag, size = 0x4, scoped, tag = 'scoped memory for tpu_custom_call.1']
    %9 = vsyncpa [#allocation3], 0
    // Predicated region
    $region2: #{tpu_custom_call.1} parent=1 // pred_check
      _
    $region3: #{tpu_custom_call.1} parent=1 // pred_check_branch
      %11 = sbr.rel (0) target = $region5
    $region4: #{tpu_custom_call.1} parent=1 // pred_region
      _
    $region5: #{tpu_custom_call.1} parent=1 // pred_fallthru
      _
    // Predicated region
    $region6: #{tpu_custom_call.1} parent=1 // pred_check
      _
    $region7: #{tpu_custom_call.1} parent=1 // pred_check_branch
      %13 = sbr.rel (0) target = $region9
    $region8: #{tpu_custom_call.1} parent=1 // pred_region
      _
    $region9: #{tpu_custom_call.1} parent=1 // pred_fallthru
      _
    // Predicated region
    $region10: #{tpu_custom_call.1} parent=1 // pred_check
      _
    $region11: #{tpu_custom_call.1} parent=1 // pred_check_branch
      %15 = sbr.rel (0) target = $region13
    $region12: #{tpu_custom_call.1} parent=1 // pred_region
      _
    $region13: #{tpu_custom_call.1} parent=1 // pred_fallthru
      _
    // Predicated region
    $region14: #{tpu_custom_call.1} parent=1 // pred_check
      _
    $region15: #{tpu_custom_call.1} parent=1 // pred_check_branch
      %17 = sbr.rel (0) target = $region17
    $region16: #{tpu_custom_call.1} parent=1 // pred_region
      _
    $region17: #{tpu_custom_call.1} parent=1 // pred_fallthru
      _
    %v19 = vld [vmem:[%s0] sm:$0xf]
    %v20 = vld [vmem:[%s0 + $0x4] sm:$0xf]
    %v21 = vld [vmem:[%s0 + $0xc] sm:$0xf]
    %v22 = vld [vmem:[%s0 + $0x10] sm:$0xf]
    %v23 = vld [vmem:[%s0 + $0x18] sm:$0xf]
    %v24 = vld [vmem:[%s0 + $0x1c] sm:$0xf]
    %v25 = vld [vmem:[%s0 + $0x24] sm:$0xf]
    %v26 = vld [vmem:[%s0 + $0x28] sm:$0xf]
    %v27 = vld [vmem:[%s0 + $0x30] sm:$0xf]
    %v28 = vld [vmem:[%s0 + $0x34] sm:$0xf]
    %v29 = vld [vmem:[%s0 + $0x3c] sm:$0xf]
    %v30 = vld [vmem:[%s0 + $0x40] sm:$0xf]
    %v31 = vld [vmem:[%s0 + $0x48] sm:$0xf]
    %v32 = vld [vmem:[%s0 + $0x4c] sm:$0xf]
    %v33 = vld [vmem:[%s0 + $0x54] sm:$0xf]
    %v34 = vld [vmem:[%s0 + $0x58] sm:$0xf]
    %v35 = vld [vmem:[%s0 + $0x60] sm:$0xf]
    %v36 = vld [vmem:[%s0 + $0x64] sm:$0xf]
    %v37 = vld [vmem:[%s0 + $0x6c] sm:$0xf]
    %v38 = vld [vmem:[%s0 + $0x70] sm:$0xf]
    %v39 = vld [vmem:[%s0 + $0x78] sm:$0xf]
    %v40 = vld [vmem:[%s0 + $0x7c] sm:$0xf]
    %v41 = vld [vmem:[%s0 + $0x84] sm:$0xf]
    %v42 = vld [vmem:[%s0 + $0x88] sm:$0xf]
    %v43 = vld [vmem:[%s0 + $0x90] sm:$0xf]
    %v44 = vld [vmem:[%s0 + $0x94] sm:$0xf]
    %v45 = vld [vmem:[%s0 + $0x9c] sm:$0xf]
    %v46 = vld [vmem:[%s0 + $0xa0] sm:$0xf]
    %v47 = vld [vmem:[%s0 + $0xa8] sm:$0xf]
    %v48 = vld [vmem:[%s0 + $0xac] sm:$0xf]
    %v49 = vld [vmem:[%s0 + $0xb4] sm:$0xf]
    %v50 = vld [vmem:[%s0 + $0xb8] sm:$0xf]
    %v51 = vunpack.c.l.bf16 %v19
    %v52 = vunpack.c.l.bf16 %v20
    %v53 = vunpack.c.l.bf16 %v21
    %v54 = vunpack.c.l.bf16 %v22
    %v55 = vunpack.c.l.bf16 %v23
    %v56 = vunpack.c.l.bf16 %v24
    %v57 = vunpack.c.l.bf16 %v25
    %v58 = vunpack.c.l.bf16 %v26
    %v59 = vunpack.c.l.bf16 %v27
    %v60 = vunpack.c.l.bf16 %v28
    %v61 = vunpack.c.l.bf16 %v29
    %v62 = vunpack.c.l.bf16 %v30
    %v63 = vunpack.c.l.bf16 %v31
    %v64 = vunpack.c.l.bf16 %v32
    %v65 = vunpack.c.l.bf16 %v33
    %v66 = vunpack.c.l.bf16 %v34
    %v67 = vunpack.c.l.bf16 %v35
    %v68 = vunpack.c.l.bf16 %v36
    %v69 = vunpack.c.l.bf16 %v37
    %v70 = vunpack.c.l.bf16 %v38
    %v71 = vunpack.c.l.bf16 %v39
    %v72 = vunpack.c.l.bf16 %v40
    %v73 = vunpack.c.l.bf16 %v41
    %v74 = vunpack.c.l.bf16 %v42
    %v75 = vunpack.c.l.bf16 %v43
    %v76 = vunpack.c.l.bf16 %v44
    %v77 = vunpack.c.l.bf16 %v45
    %v78 = vunpack.c.l.bf16 %v46
    %v79 = vunpack.c.l.bf16 %v47
    %v80 = vunpack.c.l.bf16 %v48
    %v81 = vunpack.c.l.bf16 %v49
    %v82 = vunpack.c.l.bf16 %v50
    %v83 = vpack.c.bf16 %v52, %v51
    %v84 = vpack.c.bf16 %v54, %v53
    %v85 = vpack.c.bf16 %v56, %v55
    %v86 = vpack.c.bf16 %v58, %v57
    %v87 = vpack.c.bf16 %v60, %v59
    %v88 = vpack.c.bf16 %v62, %v61
    %v89 = vpack.c.bf16 %v64, %v63
    %v90 = vpack.c.bf16 %v66, %v65
    %v91 = vpack.c.bf16 %v68, %v67
    %v92 = vpack.c.bf16 %v70, %v69
    %v93 = vpack.c.bf16 %v72, %v71
    %v94 = vpack.c.bf16 %v74, %v73
    %v95 = vpack.c.bf16 %v76, %v75
    %v96 = vpack.c.bf16 %v78, %v77
    %v97 = vpack.c.bf16 %v80, %v79
    %v98 = vpack.c.bf16 %v82, %v81
    %v99 = vld [vmem:[%s1] sm:$0xf]
    %v100 = vld [vmem:[%s1 + $0x4] sm:$0xf]
    %v101 = vld [vmem:[%s0 + $0x8] sm:$0x1]
    %v102 = vld [vmem:[%s0 + $0x14] sm:$0x1]
    %v103 = vld [vmem:[%s0 + $0x20] sm:$0x1]
    %v104 = vld [vmem:[%s0 + $0x2c] sm:$0x1]
    %v105 = vld [vmem:[%s0 + $0x38] sm:$0x1]
    %v106 = vld [vmem:[%s0 + $0x44] sm:$0x1]
    %v107 = vld [vmem:[%s0 + $0x50] sm:$0x1]
    %v108 = vld [vmem:[%s0 + $0x5c] sm:$0x1]
    %v109 = vld [vmem:[%s0 + $0x68] sm:$0x1]
    %v110 = vld [vmem:[%s0 + $0x74] sm:$0x1]
    %v111 = vld [vmem:[%s0 + $0x80] sm:$0x1]
    %v112 = vld [vmem:[%s0 + $0x8c] sm:$0x1]
    %v113 = vld [vmem:[%s0 + $0x98] sm:$0x1]
    %v114 = vld [vmem:[%s0 + $0xa4] sm:$0x1]
    %v115 = vld [vmem:[%s0 + $0xb0] sm:$0x1]
    %v116 = vld [vmem:[%s0 + $0xbc] sm:$0x1]
    %v117 = vunpack.c.l.bf16 %v101
    %v118 = vunpack.c.l.bf16 %v102
    %v119 = vunpack.c.l.bf16 %v103
    %v120 = vunpack.c.l.bf16 %v104
    %v121 = vunpack.c.l.bf16 %v105
    %v122 = vunpack.c.l.bf16 %v106
    %v123 = vunpack.c.l.bf16 %v107
    %v124 = vunpack.c.l.bf16 %v108
    %v125 = vunpack.c.l.bf16 %v109
    %v126 = vunpack.c.l.bf16 %v110
    %v127 = vunpack.c.l.bf16 %v111
    %v128 = vunpack.c.l.bf16 %v112
    %v129 = vunpack.c.l.bf16 %v113
    %v130 = vunpack.c.l.bf16 %v114
    %v131 = vunpack.c.l.bf16 %v115
    %v132 = vunpack.c.l.bf16 %v116
    %vm181 = vcmask 1046528
    %v182 = vrot.slane %v51, 1
    %v183 = vrot.slane %v52, 1
    %v184 = vsel %vm181, %v182, %v183
    %v185 = vrot.slane %v117, 1
    %v186 = vsel %vm181, %v183, %v185
    %v187 = vrot.slane %v53, 1
    %v188 = vrot.slane %v54, 1
    %v189 = vsel %vm181, %v187, %v188
    %v190 = vrot.slane %v118, 1
    %v191 = vsel %vm181, %v188, %v190
    %v192 = vrot.slane %v55, 1
    %v193 = vrot.slane %v56, 1
    %v194 = vsel %vm181, %v192, %v193
    %v195 = vrot.slane %v119, 1
    %v196 = vsel %vm181, %v193, %v195
    %v197 = vrot.slane %v57, 1
    %v198 = vrot.slane %v58, 1
    %v199 = vsel %vm181, %v197, %v198
    %v200 = vrot.slane %v120, 1
    %v201 = vsel %vm181, %v198, %v200
    %v202 = vrot.slane %v59, 1
    %v203 = vrot.slane %v60, 1
    %v204 = vsel %vm181, %v202, %v203
    %v205 = vrot.slane %v121, 1
    %v206 = vsel %vm181, %v203, %v205
    %v207 = vrot.slane %v61, 1
    %v208 = vrot.slane %v62, 1
    %v209 = vsel %vm181, %v207, %v208
    %v210 = vrot.slane %v122, 1
    %v211 = vsel %vm181, %v208, %v210
    %v212 = vrot.slane %v63, 1
    %v213 = vrot.slane %v64, 1
    %v214 = vsel %vm181, %v212, %v213
    %v215 = vrot.slane %v123, 1
    %v216 = vsel %vm181, %v213, %v215
    %v217 = vrot.slane %v65, 1
    %v218 = vrot.slane %v66, 1
    %v219 = vsel %vm181, %v217, %v218
    %v220 = vrot.slane %v124, 1
    %v221 = vsel %vm181, %v218, %v220
    %v222 = vrot.slane %v67, 1
    %v223 = vrot.slane %v68, 1
    %v224 = vsel %vm181, %v222, %v223
    %v225 = vrot.slane %v125, 1
    %v226 = vsel %vm181, %v223, %v225
    %v227 = vrot.slane %v69, 1
    %v228 = vrot.slane %v70, 1
    %v229 = vsel %vm181, %v227, %v228
    %v230 = vrot.slane %v126, 1
    %v231 = vsel %vm181, %v228, %v230
    %v232 = vrot.slane %v71, 1
    %v233 = vrot.slane %v72, 1
    %v234 = vsel %vm181, %v232, %v233
    %v235 = vrot.slane %v127, 1
    %v236 = vsel %vm181, %v233, %v235
    %v237 = vrot.slane %v73, 1
    %v238 = vrot.slane %v74, 1
    %v239 = vsel %vm181, %v237, %v238
    %v240 = vrot.slane %v128, 1
    %v241 = vsel %vm181, %v238, %v240
    %v242 = vrot.slane %v75, 1
    %v243 = vrot.slane %v76, 1
    %v244 = vsel %vm181, %v242, %v243
    %v245 = vrot.slane %v129, 1
    %v246 = vsel %vm181, %v243, %v245
    %v247 = vrot.slane %v77, 1
    %v248 = vrot.slane %v78, 1
    %v249 = vsel %vm181, %v247, %v248
    %v250 = vrot.slane %v130, 1
    %v251 = vsel %vm181, %v248, %v250
    %v252 = vrot.slane %v79, 1
    %v253 = vrot.slane %v80, 1
    %v254 = vsel %vm181, %v252, %v253
    %v255 = vrot.slane %v131, 1
    %v256 = vsel %vm181, %v253, %v255
    %v257 = vrot.slane %v81, 1
    %v258 = vrot.slane %v82, 1
    %v259 = vsel %vm181, %v257, %v258
    %v260 = vrot.slane %v132, 1
    %v261 = vsel %vm181, %v258, %v260
    %v294 = vpack.c.bf16 %v186, %v184
    %v295 = vpack.c.bf16 %v191, %v189
    %v296 = vpack.c.bf16 %v196, %v194
    %v297 = vpack.c.bf16 %v201, %v199
    %v298 = vpack.c.bf16 %v206, %v204
    %v299 = vpack.c.bf16 %v211, %v209
    %v300 = vpack.c.bf16 %v216, %v214
    %v301 = vpack.c.bf16 %v221, %v219
    %v302 = vpack.c.bf16 %v226, %v224
    %v303 = vpack.c.bf16 %v231, %v229
    %v304 = vpack.c.bf16 %v236, %v234
    %v305 = vpack.c.bf16 %v241, %v239
    %v306 = vpack.c.bf16 %v246, %v244
    %v307 = vpack.c.bf16 %v251, %v249
    %v308 = vpack.c.bf16 %v256, %v254
    %v309 = vpack.c.bf16 %v261, %v259
    %s310 = scalar_lea.vmem %s1, 8
    %v311 = vld [vmem:[%s310] sm:$0xf]
    %v312 = vld [vmem:[%s310 + $0x4] sm:$0xf]
    %v315 = vunpack.c.l.b16 %v311
    %v316 = vunpack.c.l.b16 %v312
    %v317 = vpack.c.b16 %v316, %v315
    %vm319 = vcmask 130048
    %v321 = vsel %vm319, %v294, 0
    %v324 = vsel %vm319, %v295, 0
    %v327 = vsel %vm319, %v296, 0
    %v330 = vsel %vm319, %v297, 0
    %v333 = vsel %vm319, %v298, 0
    %v336 = vsel %vm319, %v299, 0
    %v339 = vsel %vm319, %v300, 0
    %v342 = vsel %vm319, %v301, 0
    %v345 = vsel %vm319, %v302, 0
    %v348 = vsel %vm319, %v303, 0
    %v351 = vsel %vm319, %v304, 0
    %v354 = vsel %vm319, %v305, 0
    %v357 = vsel %vm319, %v306, 0
    %v360 = vsel %vm319, %v307, 0
    %v363 = vsel %vm319, %v308, 0
    %v366 = vsel %vm319, %v309, 0
    %368 = vmatprep.subr.bf16.mxu0 0
    %369 = vmatpush1.bf16.msra.mxu0 %v317
    %370 = vmatprep.subr.bf16.mxu0 0
    %371 = vmatpush1.bf16.msra.mxu0 0
    %372 = vmatprep.subr.bf16.mxu0 0
    %373 = vmatpush1.bf16.msra.mxu0 0
    %374 = vmatprep.subr.bf16.mxu0 0
    %375 = vmatpush1.bf16.msra.mxu0 0
    %376 = vmatprep.subr.bf16.mxu0 0
    %377 = vmatpush1.bf16.msra.mxu0 0
    %378 = vmatprep.subr.bf16.mxu0 0
    %379 = vmatpush1.bf16.msra.mxu0 0
    %380 = vmatprep.subr.bf16.mxu0 0
    %381 = vmatpush1.bf16.msra.mxu0 0
    %382 = vmatprep.subr.bf16.mxu0 0
    %383 = vmatpush1.bf16.msra.mxu0 0
    %384 = vmatprep.subr.bf16.mxu0 0
    %385 = vmatpush1.bf16.msra.mxu0 0
    %386 = vmatprep.subr.bf16.mxu0 0
    %387 = vmatpush1.bf16.msra.mxu0 0
    %388 = vmatprep.subr.bf16.mxu0 0
    %389 = vmatpush1.bf16.msra.mxu0 0
    %390 = vmatprep.subr.bf16.mxu0 0
    %391 = vmatpush1.bf16.msra.mxu0 0
    %392 = vmatprep.subr.bf16.mxu0 0
    %393 = vmatpush1.bf16.msra.mxu0 0
    %394 = vmatprep.subr.bf16.mxu0 0
    %395 = vmatpush1.bf16.msra.mxu0 0
    %396 = vmatprep.subr.bf16.mxu0 0
    %397 = vmatpush1.bf16.msra.mxu0 0
    %398 = vmatprep.subr.bf16.mxu0 0
    %399 = vmatpush1.bf16.msra.mxu0 0
    %400 = vmatprep.mubr.bf16.mxu0 0
    %401 = vmatmul.mubr.bf16.gmra.mrb[0].mxu0 %v321
    %v402 = vpop.f32.mrb[0].mxu0
    %v403 = vadd.f32 0.0, %v402
    %v404 = vpop.f32.mrb[0].mxu0
    %v405 = vpop.f32.mrb[0].mxu0
    %v406 = vadd.f32 0.0, %v405
    %v407 = vpop.f32.mrb[0].mxu0
    %408 = vmatprep.mubr.bf16.mxu0 0
    %409 = vmatmul.mubr.bf16.gmra.mrb[0].mxu0 %v324
    %v410 = vpop.f32.mrb[0].mxu0
    %v411 = vadd.f32 0.0, %v410
    %v412 = vpop.f32.mrb[0].mxu0
    %v413 = vpop.f32.mrb[0].mxu0
    %v414 = vadd.f32 0.0, %v413
    %v415 = vpop.f32.mrb[0].mxu0
    %416 = vmatprep.mubr.bf16.mxu0 0
    %417 = vmatmul.mubr.bf16.gmra.mrb[0].mxu0 %v327
    %v418 = vpop.f32.mrb[0].mxu0
    %v419 = vadd.f32 0.0, %v418
    %v420 = vpop.f32.mrb[0].mxu0
    %v421 = vpop.f32.mrb[0].mxu0
    %v422 = vadd.f32 0.0, %v421
    %v423 = vpop.f32.mrb[0].mxu0
    %424 = vmatprep.mubr.bf16.mxu0 0
    %425 = vmatmul.mubr.bf16.gmra.mrb[0].mxu0 %v330
    %v426 = vpop.f32.mrb[0].mxu0
    %v427 = vadd.f32 0.0, %v426
    %v428 = vpop.f32.mrb[0].mxu0
    %v429 = vpop.f32.mrb[0].mxu0
    %v430 = vadd.f32 0.0, %v429
    %v431 = vpop.f32.mrb[0].mxu0
    %432 = vmatprep.mubr.bf16.mxu0 0
    %433 = vmatmul.mubr.bf16.gmra.mrb[0].mxu0 %v333
    %v434 = vpop.f32.mrb[0].mxu0
    %v435 = vadd.f32 0.0, %v434
    %v436 = vpop.f32.mrb[0].mxu0
    %v437 = vpop.f32.mrb[0].mxu0
    %v438 = vadd.f32 0.0, %v437
    %v439 = vpop.f32.mrb[0].mxu0
    %440 = vmatprep.mubr.bf16.mxu0 0
    %441 = vmatmul.mubr.bf16.gmra.mrb[0].mxu0 %v336
    %v442 = vpop.f32.mrb[0].mxu0
    %v443 = vadd.f32 0.0, %v442
    %v444 = vpop.f32.mrb[0].mxu0
    %v445 = vpop.f32.mrb[0].mxu0
    %v446 = vadd.f32 0.0, %v445
    %v447 = vpop.f32.mrb[0].mxu0
    %448 = vmatprep.mubr.bf16.mxu0 0
    %449 = vmatmul.mubr.bf16.gmra.mrb[0].mxu0 %v339
    %v450 = vpop.f32.mrb[0].mxu0
    %v451 = vadd.f32 0.0, %v450
    %v452 = vpop.f32.mrb[0].mxu0
    %v453 = vpop.f32.mrb[0].mxu0
    %v454 = vadd.f32 0.0, %v453
    %v455 = vpop.f32.mrb[0].mxu0
    %456 = vmatprep.mubr.bf16.mxu0 0
    %457 = vmatmul.mubr.bf16.gmra.mrb[0].mxu0 %v342
    %v458 = vpop.f32.mrb[0].mxu0
    %v459 = vadd.f32 0.0, %v458
    %v460 = vpop.f32.mrb[0].mxu0
    %v461 = vpop.f32.mrb[0].mxu0
    %v462 = vadd.f32 0.0, %v461
    %v463 = vpop.f32.mrb[0].mxu0
    %464 = vmatprep.mubr.bf16.mxu0 0
    %465 = vmatmul.mubr.bf16.gmra.mrb[0].mxu0 %v345
    %v466 = vpop.f32.mrb[0].mxu0
    %v467 = vadd.f32 0.0, %v466
    %v468 = vpop.f32.mrb[0].mxu0
    %v469 = vpop.f32.mrb[0].mxu0
    %v470 = vadd.f32 0.0, %v469
    %v471 = vpop.f32.mrb[0].mxu0
    %472 = vmatprep.mubr.bf16.mxu0 0
    %473 = vmatmul.mubr.bf16.gmra.mrb[0].mxu0 %v348
    %v474 = vpop.f32.mrb[0].mxu0
    %v475 = vadd.f32 0.0, %v474
    %v476 = vpop.f32.mrb[0].mxu0
    %v477 = vpop.f32.mrb[0].mxu0
    %v478 = vadd.f32 0.0, %v477
    %v479 = vpop.f32.mrb[0].mxu0
    %480 = vmatprep.mubr.bf16.mxu0 0
    %481 = vmatmul.mubr.bf16.gmra.mrb[0].mxu0 %v351
    %v482 = vpop.f32.mrb[0].mxu0
    %v483 = vadd.f32 0.0, %v482
    %v484 = vpop.f32.mrb[0].mxu0
    %v485 = vpop.f32.mrb[0].mxu0
    %v486 = vadd.f32 0.0, %v485
    %v487 = vpop.f32.mrb[0].mxu0
    %488 = vmatprep.mubr.bf16.mxu0 0
    %489 = vmatmul.mubr.bf16.gmra.mrb[0].mxu0 %v354
    %v490 = vpop.f32.mrb[0].mxu0
    %v491 = vadd.f32 0.0, %v490
    %v492 = vpop.f32.mrb[0].mxu0
    %v493 = vpop.f32.mrb[0].mxu0
    %v494 = vadd.f32 0.0, %v493
    %v495 = vpop.f32.mrb[0].mxu0
    %496 = vmatprep.mubr.bf16.mxu0 0
    %497 = vmatmul.mubr.bf16.gmra.mrb[0].mxu0 %v357
    %v498 = vpop.f32.mrb[0].mxu0
    %v499 = vadd.f32 0.0, %v498
    %v500 = vpop.f32.mrb[0].mxu0
    %v501 = vpop.f32.mrb[0].mxu0
    %v502 = vadd.f32 0.0, %v501
    %v503 = vpop.f32.mrb[0].mxu0
    %504 = vmatprep.mubr.bf16.mxu0 0
    %505 = vmatmul.mubr.bf16.gmra.mrb[0].mxu0 %v360
    %v506 = vpop.f32.mrb[0].mxu0
    %v507 = vadd.f32 0.0, %v506
    %v508 = vpop.f32.mrb[0].mxu0
    %v509 = vpop.f32.mrb[0].mxu0
    %v510 = vadd.f32 0.0, %v509
    %v511 = vpop.f32.mrb[0].mxu0
    %512 = vmatprep.mubr.bf16.mxu0 0
    %513 = vmatmul.mubr.bf16.gmra.mrb[0].mxu0 %v363
    %v514 = vpop.f32.mrb[0].mxu0
    %v515 = vadd.f32 0.0, %v514
    %v516 = vpop.f32.mrb[0].mxu0
    %v517 = vpop.f32.mrb[0].mxu0
    %v518 = vadd.f32 0.0, %v517
    %v519 = vpop.f32.mrb[0].mxu0
    %520 = vmatprep.mubr.bf16.mxu0 0
    %521 = vmatmul.mubr.bf16.gmra.mrb[0].mxu0 %v366
    %v522 = vpop.f32.mrb[0].mxu0
    %v523 = vadd.f32 0.0, %v522
    %v524 = vpop.f32.mrb[0].mxu0
    %v525 = vpop.f32.mrb[0].mxu0
    %v526 = vadd.f32 0.0, %v525
    %v527 = vpop.f32.mrb[0].mxu0
    %528 = vdwg.mxu0
    %v531 = vunpack.c.l.b16 %v99
    %v532 = vunpack.c.l.b16 %v100
    %v533 = vpack.c.b16 %v532, %v531
    %v536 = vsel %vm319, %v83, 0
    %v539 = vsel %vm319, %v84, 0
    %v542 = vsel %vm319, %v85, 0
    %v545 = vsel %vm319, %v86, 0
    %v548 = vsel %vm319, %v87, 0
    %v551 = vsel %vm319, %v88, 0
    %v554 = vsel %vm319, %v89, 0
    %v557 = vsel %vm319, %v90, 0
    %v560 = vsel %vm319, %v91, 0
    %v563 = vsel %vm319, %v92, 0
    %v566 = vsel %vm319, %v93, 0
    %v569 = vsel %vm319, %v94, 0
    %v572 = vsel %vm319, %v95, 0
    %v575 = vsel %vm319, %v96, 0
    %v578 = vsel %vm319, %v97, 0
    %v581 = vsel %vm319, %v98, 0
    %583 = vmatprep.subr.bf16.mxu0 0
    %584 = vmatpush1.bf16.msra.mxu0 %v533
    %585 = vmatprep.subr.bf16.mxu0 0
    %586 = vmatpush1.bf16.msra.mxu0 0
    %587 = vmatprep.subr.bf16.mxu0 0
    %588 = vmatpush1.bf16.msra.mxu0 0
    %589 = vmatprep.subr.bf16.mxu0 0
    %590 = vmatpush1.bf16.msra.mxu0 0
    %591 = vmatprep.subr.bf16.mxu0 0
    %592 = vmatpush1.bf16.msra.mxu0 0
    %593 = vmatprep.subr.bf16.mxu0 0
    %594 = vmatpush1.bf16.msra.mxu0 0
    %595 = vmatprep.subr.bf16.mxu0 0
    %596 = vmatpush1.bf16.msra.mxu0 0
    %597 = vmatprep.subr.bf16.mxu0 0
    %598 = vmatpush1.bf16.msra.mxu0 0
    %599 = vmatprep.subr.bf16.mxu0 0
    %600 = vmatpush1.bf16.msra.mxu0 0
    %601 = vmatprep.subr.bf16.mxu0 0
    %602 = vmatpush1.bf16.msra.mxu0 0
    %603 = vmatprep.subr.bf16.mxu0 0
    %604 = vmatpush1.bf16.msra.mxu0 0
    %605 = vmatprep.subr.bf16.mxu0 0
    %606 = vmatpush1.bf16.msra.mxu0 0
    %607 = vmatprep.subr.bf16.mxu0 0
    %608 = vmatpush1.bf16.msra.mxu0 0
    %609 = vmatprep.subr.bf16.mxu0 0
    %610 = vmatpush1.bf16.msra.mxu0 0
    %611 = vmatprep.subr.bf16.mxu0 0
    %612 = vmatpush1.bf16.msra.mxu0 0
    %613 = vmatprep.subr.bf16.mxu0 0
    %614 = vmatpush1.bf16.msra.mxu0 0
    %615 = vmatprep.mubr.bf16.mxu0 0
    %616 = vmatmul.mubr.bf16.gmra.mrb[0].mxu0 %v536
    %v617 = vpop.f32.mrb[0].mxu0
    %v618 = vadd.f32 %v403, %v617
    %v619 = vpop.f32.mrb[0].mxu0
    %v620 = vpop.f32.mrb[0].mxu0
    %v621 = vadd.f32 %v406, %v620
    %v622 = vpop.f32.mrb[0].mxu0
    %623 = vmatprep.mubr.bf16.mxu0 0
    %624 = vmatmul.mubr.bf16.gmra.mrb[0].mxu0 %v539
    %v625 = vpop.f32.mrb[0].mxu0
    %v626 = vadd.f32 %v411, %v625
    %v627 = vpop.f32.mrb[0].mxu0
    %v628 = vpop.f32.mrb[0].mxu0
    %v629 = vadd.f32 %v414, %v628
    %v630 = vpop.f32.mrb[0].mxu0
    %631 = vmatprep.mubr.bf16.mxu0 0
    %632 = vmatmul.mubr.bf16.gmra.mrb[0].mxu0 %v542
    %v633 = vpop.f32.mrb[0].mxu0
    %v634 = vadd.f32 %v419, %v633
    %v635 = vpop.f32.mrb[0].mxu0
    %v636 = vpop.f32.mrb[0].mxu0
    %v637 = vadd.f32 %v422, %v636
    %v638 = vpop.f32.mrb[0].mxu0
    %639 = vmatprep.mubr.bf16.mxu0 0
    %640 = vmatmul.mubr.bf16.gmra.mrb[0].mxu0 %v545
    %v641 = vpop.f32.mrb[0].mxu0
    %v642 = vadd.f32 %v427, %v641
    %v643 = vpop.f32.mrb[0].mxu0
    %v644 = vpop.f32.mrb[0].mxu0
    %v645 = vadd.f32 %v430, %v644
    %v646 = vpop.f32.mrb[0].mxu0
    %647 = vmatprep.mubr.bf16.mxu0 0
    %648 = vmatmul.mubr.bf16.gmra.mrb[0].mxu0 %v548
    %v649 = vpop.f32.mrb[0].mxu0
    %v650 = vadd.f32 %v435, %v649
    %v651 = vpop.f32.mrb[0].mxu0
    %v652 = vpop.f32.mrb[0].mxu0
    %v653 = vadd.f32 %v438, %v652
    %v654 = vpop.f32.mrb[0].mxu0
    %655 = vmatprep.mubr.bf16.mxu0 0
    %656 = vmatmul.mubr.bf16.gmra.mrb[0].mxu0 %v551
    %v657 = vpop.f32.mrb[0].mxu0
    %v658 = vadd.f32 %v443, %v657
    %v659 = vpop.f32.mrb[0].mxu0
    %v660 = vpop.f32.mrb[0].mxu0
    %v661 = vadd.f32 %v446, %v660
    %v662 = vpop.f32.mrb[0].mxu0
    %663 = vmatprep.mubr.bf16.mxu0 0
    %664 = vmatmul.mubr.bf16.gmra.mrb[0].mxu0 %v554
    %v665 = vpop.f32.mrb[0].mxu0
    %v666 = vadd.f32 %v451, %v665
    %v667 = vpop.f32.mrb[0].mxu0
    %v668 = vpop.f32.mrb[0].mxu0
    %v669 = vadd.f32 %v454, %v668
    %v670 = vpop.f32.mrb[0].mxu0
    %671 = vmatprep.mubr.bf16.mxu0 0
    %672 = vmatmul.mubr.bf16.gmra.mrb[0].mxu0 %v557
    %v673 = vpop.f32.mrb[0].mxu0
    %v674 = vadd.f32 %v459, %v673
    %v675 = vpop.f32.mrb[0].mxu0
    %v676 = vpop.f32.mrb[0].mxu0
    %v677 = vadd.f32 %v462, %v676
    %v678 = vpop.f32.mrb[0].mxu0
    %679 = vmatprep.mubr.bf16.mxu0 0
    %680 = vmatmul.mubr.bf16.gmra.mrb[0].mxu0 %v560
    %v681 = vpop.f32.mrb[0].mxu0
    %v682 = vadd.f32 %v467, %v681
    %v683 = vpop.f32.mrb[0].mxu0
    %v684 = vpop.f32.mrb[0].mxu0
    %v685 = vadd.f32 %v470, %v684
    %v686 = vpop.f32.mrb[0].mxu0
    %687 = vmatprep.mubr.bf16.mxu0 0
    %688 = vmatmul.mubr.bf16.gmra.mrb[0].mxu0 %v563
    %v689 = vpop.f32.mrb[0].mxu0
    %v690 = vadd.f32 %v475, %v689
    %v691 = vpop.f32.mrb[0].mxu0
    %v692 = vpop.f32.mrb[0].mxu0
    %v693 = vadd.f32 %v478, %v692
    %v694 = vpop.f32.mrb[0].mxu0
    %695 = vmatprep.mubr.bf16.mxu0 0
    %696 = vmatmul.mubr.bf16.gmra.mrb[0].mxu0 %v566
    %v697 = vpop.f32.mrb[0].mxu0
    %v698 = vadd.f32 %v483, %v697
    %v699 = vpop.f32.mrb[0].mxu0
    %v700 = vpop.f32.mrb[0].mxu0
    %v701 = vadd.f32 %v486, %v700
    %v702 = vpop.f32.mrb[0].mxu0
    %703 = vmatprep.mubr.bf16.mxu0 0
    %704 = vmatmul.mubr.bf16.gmra.mrb[0].mxu0 %v569
    %v705 = vpop.f32.mrb[0].mxu0
    %v706 = vadd.f32 %v491, %v705
    %v707 = vpop.f32.mrb[0].mxu0
    %v708 = vpop.f32.mrb[0].mxu0
    %v709 = vadd.f32 %v494, %v708
    %v710 = vpop.f32.mrb[0].mxu0
    %711 = vmatprep.mubr.bf16.mxu0 0
    %712 = vmatmul.mubr.bf16.gmra.mrb[0].mxu0 %v572
    %v713 = vpop.f32.mrb[0].mxu0
    %v714 = vadd.f32 %v499, %v713
    %v715 = vpop.f32.mrb[0].mxu0
    %v716 = vpop.f32.mrb[0].mxu0
    %v717 = vadd.f32 %v502, %v716
    %v718 = vpop.f32.mrb[0].mxu0
    %719 = vmatprep.mubr.bf16.mxu0 0
    %720 = vmatmul.mubr.bf16.gmra.mrb[0].mxu0 %v575
    %v721 = vpop.f32.mrb[0].mxu0
    %v722 = vadd.f32 %v507, %v721
    %v723 = vpop.f32.mrb[0].mxu0
    %v724 = vpop.f32.mrb[0].mxu0
    %v725 = vadd.f32 %v510, %v724
    %v726 = vpop.f32.mrb[0].mxu0
    %727 = vmatprep.mubr.bf16.mxu0 0
    %728 = vmatmul.mubr.bf16.gmra.mrb[0].mxu0 %v578
    %v729 = vpop.f32.mrb[0].mxu0
    %v730 = vadd.f32 %v515, %v729
    %v731 = vpop.f32.mrb[0].mxu0
    %v732 = vpop.f32.mrb[0].mxu0
    %v733 = vadd.f32 %v518, %v732
    %v734 = vpop.f32.mrb[0].mxu0
    %735 = vmatprep.mubr.bf16.mxu0 0
    %736 = vmatmul.mubr.bf16.gmra.mrb[0].mxu0 %v581
    %v737 = vpop.f32.mrb[0].mxu0
    %v738 = vadd.f32 %v523, %v737
    %v739 = vpop.f32.mrb[0].mxu0
    %v740 = vpop.f32.mrb[0].mxu0
    %v741 = vadd.f32 %v526, %v740
    %v742 = vpop.f32.mrb[0].mxu0
    %743 = vdwg.mxu0
    %v744 = vld [vmem:[%s0] sm:$0xe]
    %v745 = vld [vmem:[%s0 + $0xc] sm:$0xe]
    %v746 = vld [vmem:[%s0 + $0x18] sm:$0xe]
    %v747 = vld [vmem:[%s0 + $0x24] sm:$0xe]
    %v748 = vld [vmem:[%s0 + $0x30] sm:$0xe]
    %v749 = vld [vmem:[%s0 + $0x3c] sm:$0xe]
    %v750 = vld [vmem:[%s0 + $0x48] sm:$0xe]
    %v751 = vld [vmem:[%s0 + $0x54] sm:$0xe]
    %v752 = vld [vmem:[%s0 + $0x60] sm:$0xe]
    %v753 = vld [vmem:[%s0 + $0x6c] sm:$0xe]
    %v754 = vld [vmem:[%s0 + $0x78] sm:$0xe]
    %v755 = vld [vmem:[%s0 + $0x84] sm:$0xe]
    %v756 = vld [vmem:[%s0 + $0x90] sm:$0xe]
    %v757 = vld [vmem:[%s0 + $0x9c] sm:$0xe]
    %v758 = vld [vmem:[%s0 + $0xa8] sm:$0xe]
    %v759 = vld [vmem:[%s0 + $0xb4] sm:$0xe]
    %v760 = vunpack.c.l.bf16 %v744
    %v761 = vunpack.c.l.bf16 %v745
    %v762 = vunpack.c.l.bf16 %v746
    %v763 = vunpack.c.l.bf16 %v747
    %v764 = vunpack.c.l.bf16 %v748
    %v765 = vunpack.c.l.bf16 %v749
    %v766 = vunpack.c.l.bf16 %v750
    %v767 = vunpack.c.l.bf16 %v751
    %v768 = vunpack.c.l.bf16 %v752
    %v769 = vunpack.c.l.bf16 %v753
    %v770 = vunpack.c.l.bf16 %v754
    %v771 = vunpack.c.l.bf16 %v755
    %v772 = vunpack.c.l.bf16 %v756
    %v773 = vunpack.c.l.bf16 %v757
    %v774 = vunpack.c.l.bf16 %v758
    %v775 = vunpack.c.l.bf16 %v759
    %vm792 = vcmask 1045504
    %v793 = vrot.slane %v760, 2
    %v794 = vrot.slane %v52, 2
    %v795 = vsel %vm792, %v793, %v794
    %v796 = vrot.slane %v117, 2
    %v797 = vsel %vm792, %v794, %v796
    %v798 = vrot.slane %v761, 2
    %v799 = vrot.slane %v54, 2
    %v800 = vsel %vm792, %v798, %v799
    %v801 = vrot.slane %v118, 2
    %v802 = vsel %vm792, %v799, %v801
    %v803 = vrot.slane %v762, 2
    %v804 = vrot.slane %v56, 2
    %v805 = vsel %vm792, %v803, %v804
    %v806 = vrot.slane %v119, 2
    %v807 = vsel %vm792, %v804, %v806
    %v808 = vrot.slane %v763, 2
    %v809 = vrot.slane %v58, 2
    %v810 = vsel %vm792, %v808, %v809
    %v811 = vrot.slane %v120, 2
    %v812 = vsel %vm792, %v809, %v811
    %v813 = vrot.slane %v764, 2
    %v814 = vrot.slane %v60, 2
    %v815 = vsel %vm792, %v813, %v814
    %v816 = vrot.slane %v121, 2
    %v817 = vsel %vm792, %v814, %v816
    %v818 = vrot.slane %v765, 2
    %v819 = vrot.slane %v62, 2
    %v820 = vsel %vm792, %v818, %v819
    %v821 = vrot.slane %v122, 2
    %v822 = vsel %vm792, %v819, %v821
    %v823 = vrot.slane %v766, 2
    %v824 = vrot.slane %v64, 2
    %v825 = vsel %vm792, %v823, %v824
    %v826 = vrot.slane %v123, 2
    %v827 = vsel %vm792, %v824, %v826
    %v828 = vrot.slane %v767, 2
    %v829 = vrot.slane %v66, 2
    %v830 = vsel %vm792, %v828, %v829
    %v831 = vrot.slane %v124, 2
    %v832 = vsel %vm792, %v829, %v831
    %v833 = vrot.slane %v768, 2
    %v834 = vrot.slane %v68, 2
    %v835 = vsel %vm792, %v833, %v834
    %v836 = vrot.slane %v125, 2
    %v837 = vsel %vm792, %v834, %v836
    %v838 = vrot.slane %v769, 2
    %v839 = vrot.slane %v70, 2
    %v840 = vsel %vm792, %v838, %v839
    %v841 = vrot.slane %v126, 2
    %v842 = vsel %vm792, %v839, %v841
    %v843 = vrot.slane %v770, 2
    %v844 = vrot.slane %v72, 2
    %v845 = vsel %vm792, %v843, %v844
    %v846 = vrot.slane %v127, 2
    %v847 = vsel %vm792, %v844, %v846
    %v848 = vrot.slane %v771, 2
    %v849 = vrot.slane %v74, 2
    %v850 = vsel %vm792, %v848, %v849
    %v851 = vrot.slane %v128, 2
    %v852 = vsel %vm792, %v849, %v851
    %v853 = vrot.slane %v772, 2
    %v854 = vrot.slane %v76, 2
    %v855 = vsel %vm792, %v853, %v854
    %v856 = vrot.slane %v129, 2
    %v857 = vsel %vm792, %v854, %v856
    %v858 = vrot.slane %v773, 2
    %v859 = vrot.slane %v78, 2
    %v860 = vsel %vm792, %v858, %v859
    %v861 = vrot.slane %v130, 2
    %v862 = vsel %vm792, %v859, %v861
    %v863 = vrot.slane %v774, 2
    %v864 = vrot.slane %v80, 2
    %v865 = vsel %vm792, %v863, %v864
    %v866 = vrot.slane %v131, 2
    %v867 = vsel %vm792, %v864, %v866
    %v868 = vrot.slane %v775, 2
    %v869 = vrot.slane %v82, 2
    %v870 = vsel %vm792, %v868, %v869
    %v871 = vrot.slane %v132, 2
    %v872 = vsel %vm792, %v869, %v871
    %v905 = vpack.c.bf16 %v797, %v795
    %v906 = vpack.c.bf16 %v802, %v800
    %v907 = vpack.c.bf16 %v807, %v805
    %v908 = vpack.c.bf16 %v812, %v810
    %v909 = vpack.c.bf16 %v817, %v815
    %v910 = vpack.c.bf16 %v822, %v820
    %v911 = vpack.c.bf16 %v827, %v825
    %v912 = vpack.c.bf16 %v832, %v830
    %v913 = vpack.c.bf16 %v837, %v835
    %v914 = vpack.c.bf16 %v842, %v840
    %v915 = vpack.c.bf16 %v847, %v845
    %v916 = vpack.c.bf16 %v852, %v850
    %v917 = vpack.c.bf16 %v857, %v855
    %v918 = vpack.c.bf16 %v862, %v860
    %v919 = vpack.c.bf16 %v867, %v865
    %v920 = vpack.c.bf16 %v872, %v870
    %s921 = scalar_lea.vmem %s1, 16
    %v922 = vld [vmem:[%s921] sm:$0xf]
    %v923 = vld [vmem:[%s921 + $0x4] sm:$0xf]
    %v926 = vunpack.c.l.b16 %v922
    %v927 = vunpack.c.l.b16 %v923
    %v928 = vpack.c.b16 %v927, %v926
    %v931 = vsel %vm319, %v905, 0
    %v934 = vsel %vm319, %v906, 0
    %v937 = vsel %vm319, %v907, 0
    %v940 = vsel %vm319, %v908, 0
    %v943 = vsel %vm319, %v909, 0
    %v946 = vsel %vm319, %v910, 0
    %v949 = vsel %vm319, %v911, 0
    %v952 = vsel %vm319, %v912, 0
    %v955 = vsel %vm319, %v913, 0
    %v958 = vsel %vm319, %v914, 0
    %v961 = vsel %vm319, %v915, 0
    %v964 = vsel %vm319, %v916, 0
    %v967 = vsel %vm319, %v917, 0
    %v970 = vsel %vm319, %v918, 0
    %v973 = vsel %vm319, %v919, 0
    %v976 = vsel %vm319, %v920, 0
    %978 = vmatprep.subr.bf16.mxu0 0
    %979 = vmatpush1.bf16.msra.mxu0 %v928
    %980 = vmatprep.subr.bf16.mxu0 0
    %981 = vmatpush1.bf16.msra.mxu0 0
    %982 = vmatprep.subr.bf16.mxu0 0
    %983 = vmatpush1.bf16.msra.mxu0 0
    %984 = vmatprep.subr.bf16.mxu0 0
    %985 = vmatpush1.bf16.msra.mxu0 0
    %986 = vmatprep.subr.bf16.mxu0 0
    %987 = vmatpush1.bf16.msra.mxu0 0
    %988 = vmatprep.subr.bf16.mxu0 0
    %989 = vmatpush1.bf16.msra.mxu0 0
    %990 = vmatprep.subr.bf16.mxu0 0
    %991 = vmatpush1.bf16.msra.mxu0 0
    %992 = vmatprep.subr.bf16.mxu0 0
    %993 = vmatpush1.bf16.msra.mxu0 0
    %994 = vmatprep.subr.bf16.mxu0 0
    %995 = vmatpush1.bf16.msra.mxu0 0
    %996 = vmatprep.subr.bf16.mxu0 0
    %997 = vmatpush1.bf16.msra.mxu0 0
    %998 = vmatprep.subr.bf16.mxu0 0
    %999 = vmatpush1.bf16.msra.mxu0 0
    %1000 = vmatprep.subr.bf16.mxu0 0
    %1001 = vmatpush1.bf16.msra.mxu0 0
    %1002 = vmatprep.subr.bf16.mxu0 0
    %1003 = vmatpush1.bf16.msra.mxu0 0
    %1004 = vmatprep.subr.bf16.mxu0 0
    %1005 = vmatpush1.bf16.msra.mxu0 0
    %1006 = vmatprep.subr.bf16.mxu0 0
    %1007 = vmatpush1.bf16.msra.mxu0 0
    %1008 = vmatprep.subr.bf16.mxu0 0
    %1009 = vmatpush1.bf16.msra.mxu0 0
    %1010 = vmatprep.mubr.bf16.mxu0 0
    %1011 = vmatmul.mubr.bf16.gmra.mrb[0].mxu0 %v931
    %v1012 = vpop.f32.mrb[0].mxu0
    %v1013 = vadd.f32 0.0, %v1012
    %v1014 = vpop.f32.mrb[0].mxu0
    %v1015 = vpop.f32.mrb[0].mxu0
    %v1016 = vadd.f32 0.0, %v1015
    %v1017 = vpop.f32.mrb[0].mxu0
    %1018 = vmatprep.mubr.bf16.mxu0 0
    %1019 = vmatmul.mubr.bf16.gmra.mrb[0].mxu0 %v934
    %v1020 = vpop.f32.mrb[0].mxu0
    %v1021 = vadd.f32 0.0, %v1020
    %v1022 = vpop.f32.mrb[0].mxu0
    %v1023 = vpop.f32.mrb[0].mxu0
    %v1024 = vadd.f32 0.0, %v1023
    %v1025 = vpop.f32.mrb[0].mxu0
    %1026 = vmatprep.mubr.bf16.mxu0 0
    %1027 = vmatmul.mubr.bf16.gmra.mrb[0].mxu0 %v937
    %v1028 = vpop.f32.mrb[0].mxu0
    %v1029 = vadd.f32 0.0, %v1028
    %v1030 = vpop.f32.mrb[0].mxu0
    %v1031 = vpop.f32.mrb[0].mxu0
    %v1032 = vadd.f32 0.0, %v1031
    %v1033 = vpop.f32.mrb[0].mxu0
    %1034 = vmatprep.mubr.bf16.mxu0 0
    %1035 = vmatmul.mubr.bf16.gmra.mrb[0].mxu0 %v940
    %v1036 = vpop.f32.mrb[0].mxu0
    %v1037 = vadd.f32 0.0, %v1036
    %v1038 = vpop.f32.mrb[0].mxu0
    %v1039 = vpop.f32.mrb[0].mxu0
    %v1040 = vadd.f32 0.0, %v1039
    %v1041 = vpop.f32.mrb[0].mxu0
    %1042 = vmatprep.mubr.bf16.mxu0 0
    %1043 = vmatmul.mubr.bf16.gmra.mrb[0].mxu0 %v943
    %v1044 = vpop.f32.mrb[0].mxu0
    %v1045 = vadd.f32 0.0, %v1044
    %v1046 = vpop.f32.mrb[0].mxu0
    %v1047 = vpop.f32.mrb[0].mxu0
    %v1048 = vadd.f32 0.0, %v1047
    %v1049 = vpop.f32.mrb[0].mxu0
    %1050 = vmatprep.mubr.bf16.mxu0 0
    %1051 = vmatmul.mubr.bf16.gmra.mrb[0].mxu0 %v946
    %v1052 = vpop.f32.mrb[0].mxu0
    %v1053 = vadd.f32 0.0, %v1052
    %v1054 = vpop.f32.mrb[0].mxu0
    %v1055 = vpop.f32.mrb[0].mxu0
    %v1056 = vadd.f32 0.0, %v1055
    %v1057 = vpop.f32.mrb[0].mxu0
    %1058 = vmatprep.mubr.bf16.mxu0 0
    %1059 = vmatmul.mubr.bf16.gmra.mrb[0].mxu0 %v949
    %v1060 = vpop.f32.mrb[0].mxu0
    %v1061 = vadd.f32 0.0, %v1060
    %v1062 = vpop.f32.mrb[0].mxu0
    %v1063 = vpop.f32.mrb[0].mxu0
    %v1064 = vadd.f32 0.0, %v1063
    %v1065 = vpop.f32.mrb[0].mxu0
    %1066 = vmatprep.mubr.bf16.mxu0 0
    %1067 = vmatmul.mubr.bf16.gmra.mrb[0].mxu0 %v952
    %v1068 = vpop.f32.mrb[0].mxu0
    %v1069 = vadd.f32 0.0, %v1068
    %v1070 = vpop.f32.mrb[0].mxu0
    %v1071 = vpop.f32.mrb[0].mxu0
    %v1072 = vadd.f32 0.0, %v1071
    %v1073 = vpop.f32.mrb[0].mxu0
    %1074 = vmatprep.mubr.bf16.mxu0 0
    %1075 = vmatmul.mubr.bf16.gmra.mrb[0].mxu0 %v955
    %v1076 = vpop.f32.mrb[0].mxu0
    %v1077 = vadd.f32 0.0, %v1076
    %v1078 = vpop.f32.mrb[0].mxu0
    %v1079 = vpop.f32.mrb[0].mxu0
    %v1080 = vadd.f32 0.0, %v1079
    %v1081 = vpop.f32.mrb[0].mxu0
    %1082 = vmatprep.mubr.bf16.mxu0 0
    %1083 = vmatmul.mubr.bf16.gmra.mrb[0].mxu0 %v958
    %v1084 = vpop.f32.mrb[0].mxu0
    %v1085 = vadd.f32 0.0, %v1084
    %v1086 = vpop.f32.mrb[0].mxu0
    %v1087 = vpop.f32.mrb[0].mxu0
    %v1088 = vadd.f32 0.0, %v1087
    %v1089 = vpop.f32.mrb[0].mxu0
    %1090 = vmatprep.mubr.bf16.mxu0 0
    %1091 = vmatmul.mubr.bf16.gmra.mrb[0].mxu0 %v961
    %v1092 = vpop.f32.mrb[0].mxu0
    %v1093 = vadd.f32 0.0, %v1092
    %v1094 = vpop.f32.mrb[0].mxu0
    %v1095 = vpop.f32.mrb[0].mxu0
    %v1096 = vadd.f32 0.0, %v1095
    %v1097 = vpop.f32.mrb[0].mxu0
    %1098 = vmatprep.mubr.bf16.mxu0 0
    %1099 = vmatmul.mubr.bf16.gmra.mrb[0].mxu0 %v964
    %v1100 = vpop.f32.mrb[0].mxu0
    %v1101 = vadd.f32 0.0, %v1100
    %v1102 = vpop.f32.mrb[0].mxu0
    %v1103 = vpop.f32.mrb[0].mxu0
    %v1104 = vadd.f32 0.0, %v1103
    %v1105 = vpop.f32.mrb[0].mxu0
    %1106 = vmatprep.mubr.bf16.mxu0 0
    %1107 = vmatmul.mubr.bf16.gmra.mrb[0].mxu0 %v967
    %v1108 = vpop.f32.mrb[0].mxu0
    %v1109 = vadd.f32 0.0, %v1108
    %v1110 = vpop.f32.mrb[0].mxu0
    %v1111 = vpop.f32.mrb[0].mxu0
    %v1112 = vadd.f32 0.0, %v1111
    %v1113 = vpop.f32.mrb[0].mxu0
    %1114 = vmatprep.mubr.bf16.mxu0 0
    %1115 = vmatmul.mubr.bf16.gmra.mrb[0].mxu0 %v970
    %v1116 = vpop.f32.mrb[0].mxu0
    %v1117 = vadd.f32 0.0, %v1116
    %v1118 = vpop.f32.mrb[0].mxu0
    %v1119 = vpop.f32.mrb[0].mxu0
    %v1120 = vadd.f32 0.0, %v1119
    %v1121 = vpop.f32.mrb[0].mxu0
    %1122 = vmatprep.mubr.bf16.mxu0 0
    %1123 = vmatmul.mubr.bf16.gmra.mrb[0].mxu0 %v973
    %v1124 = vpop.f32.mrb[0].mxu0
    %v1125 = vadd.f32 0.0, %v1124
    %v1126 = vpop.f32.mrb[0].mxu0
    %v1127 = vpop.f32.mrb[0].mxu0
    %v1128 = vadd.f32 0.0, %v1127
    %v1129 = vpop.f32.mrb[0].mxu0
    %1130 = vmatprep.mubr.bf16.mxu0 0
    %1131 = vmatmul.mubr.bf16.gmra.mrb[0].mxu0 %v976
    %v1132 = vpop.f32.mrb[0].mxu0
    %v1133 = vadd.f32 0.0, %v1132
    %v1134 = vpop.f32.mrb[0].mxu0
    %v1135 = vpop.f32.mrb[0].mxu0
    %v1136 = vadd.f32 0.0, %v1135
    %v1137 = vpop.f32.mrb[0].mxu0
    %1138 = vdwg.mxu0
    %v1139 = vadd.f32 %v618, %v1013
    %v1140 = vadd.f32 %v621, %v1016
    %v1141 = vadd.f32 %v626, %v1021
    %v1142 = vadd.f32 %v629, %v1024
    %v1143 = vadd.f32 %v634, %v1029
    %v1144 = vadd.f32 %v637, %v1032
    %v1145 = vadd.f32 %v642, %v1037
    %v1146 = vadd.f32 %v645, %v1040
    %v1147 = vadd.f32 %v650, %v1045
    %v1148 = vadd.f32 %v653, %v1048
    %v1149 = vadd.f32 %v658, %v1053
    %v1150 = vadd.f32 %v661, %v1056
    %v1151 = vadd.f32 %v666, %v1061
    %v1152 = vadd.f32 %v669, %v1064
    %v1153 = vadd.f32 %v674, %v1069
    %v1154 = vadd.f32 %v677, %v1072
    %v1155 = vadd.f32 %v682, %v1077
    %v1156 = vadd.f32 %v685, %v1080
    %v1157 = vadd.f32 %v690, %v1085
    %v1158 = vadd.f32 %v693, %v1088
    %v1159 = vadd.f32 %v698, %v1093
    %v1160 = vadd.f32 %v701, %v1096
    %v1161 = vadd.f32 %v706, %v1101
    %v1162 = vadd.f32 %v709, %v1104
    %v1163 = vadd.f32 %v714, %v1109
    %v1164 = vadd.f32 %v717, %v1112
    %v1165 = vadd.f32 %v722, %v1117
    %v1166 = vadd.f32 %v725, %v1120
    %v1167 = vadd.f32 %v730, %v1125
    %v1168 = vadd.f32 %v733, %v1128
    %v1169 = vadd.f32 %v738, %v1133
    %v1170 = vadd.f32 %v741, %v1136
    %s1171 = scalar_lea.vmem %s0, 12
    %v1172 = vld [vmem:[%s1171] sm:$0xf]
    %v1173 = vld [vmem:[%s1171 + $0x4] sm:$0xf]
    %v1174 = vld [vmem:[%s1171 + $0xc] sm:$0xf]
    %v1175 = vld [vmem:[%s1171 + $0x10] sm:$0xf]
    %v1176 = vld [vmem:[%s1171 + $0x18] sm:$0xf]
    %v1177 = vld [vmem:[%s1171 + $0x1c] sm:$0xf]
    %v1178 = vld [vmem:[%s1171 + $0x24] sm:$0xf]
    %v1179 = vld [vmem:[%s1171 + $0x28] sm:$0xf]
    %v1180 = vld [vmem:[%s1171 + $0x30] sm:$0xf]
    %v1181 = vld [vmem:[%s1171 + $0x34] sm:$0xf]
    %v1182 = vld [vmem:[%s1171 + $0x3c] sm:$0xf]
    %v1183 = vld [vmem:[%s1171 + $0x40] sm:$0xf]
    %v1184 = vld [vmem:[%s1171 + $0x48] sm:$0xf]
    %v1185 = vld [vmem:[%s1171 + $0x4c] sm:$0xf]
    %v1186 = vld [vmem:[%s1171 + $0x54] sm:$0xf]
    %v1187 = vld [vmem:[%s1171 + $0x58] sm:$0xf]
    %v1188 = vld [vmem:[%s1171 + $0x60] sm:$0xf]
    %v1189 = vld [vmem:[%s1171 + $0x64] sm:$0xf]
    %v1190 = vld [vmem:[%s1171 + $0x6c] sm:$0xf]
    %v1191 = vld [vmem:[%s1171 + $0x70] sm:$0xf]
    %v1192 = vld [vmem:[%s1171 + $0x78] sm:$0xf]
    %v1193 = vld [vmem:[%s1171 + $0x7c] sm:$0xf]
    %v1194 = vld [vmem:[%s1171 + $0x84] sm:$0xf]
    %v1195 = vld [vmem:[%s1171 + $0x88] sm:$0xf]
    %v1196 = vld [vmem:[%s1171 + $0x90] sm:$0xf]
    %v1197 = vld [vmem:[%s1171 + $0x94] sm:$0xf]
    %v1198 = vld [vmem:[%s1171 + $0x9c] sm:$0xf]
    %v1199 = vld [vmem:[%s1171 + $0xa0] sm:$0xf]
    %v1200 = vld [vmem:[%s1171 + $0xa8] sm:$0xf]
    %v1201 = vld [vmem:[%s1171 + $0xac] sm:$0xf]
    %v1202 = vld [vmem:[%s1171 + $0xb4] sm:$0xf]
    %v1203 = vld [vmem:[%s1171 + $0xb8] sm:$0xf]
    %v1204 = vunpack.c.l.bf16 %v1172
    %v1205 = vunpack.c.l.bf16 %v1173
    %v1206 = vunpack.c.l.bf16 %v1174
    %v1207 = vunpack.c.l.bf16 %v1175
    %v1208 = vunpack.c.l.bf16 %v1176
    %v1209 = vunpack.c.l.bf16 %v1177
    %v1210 = vunpack.c.l.bf16 %v1178
    %v1211 = vunpack.c.l.bf16 %v1179
    %v1212 = vunpack.c.l.bf16 %v1180
    %v1213 = vunpack.c.l.bf16 %v1181
    %v1214 = vunpack.c.l.bf16 %v1182
    %v1215 = vunpack.c.l.bf16 %v1183
    %v1216 = vunpack.c.l.bf16 %v1184
    %v1217 = vunpack.c.l.bf16 %v1185
    %v1218 = vunpack.c.l.bf16 %v1186
    %v1219 = vunpack.c.l.bf16 %v1187
    %v1220 = vunpack.c.l.bf16 %v1188
    %v1221 = vunpack.c.l.bf16 %v1189
    %v1222 = vunpack.c.l.bf16 %v1190
    %v1223 = vunpack.c.l.bf16 %v1191
    %v1224 = vunpack.c.l.bf16 %v1192
    %v1225 = vunpack.c.l.bf16 %v1193
    %v1226 = vunpack.c.l.bf16 %v1194
    %v1227 = vunpack.c.l.bf16 %v1195
    %v1228 = vunpack.c.l.bf16 %v1196
    %v1229 = vunpack.c.l.bf16 %v1197
    %v1230 = vunpack.c.l.bf16 %v1198
    %v1231 = vunpack.c.l.bf16 %v1199
    %v1232 = vunpack.c.l.bf16 %v1200
    %v1233 = vunpack.c.l.bf16 %v1201
    %v1234 = vunpack.c.l.bf16 %v1202
    %v1235 = vunpack.c.l.bf16 %v1203
    %v1236 = vpack.c.bf16 %v1205, %v1204
    %v1237 = vpack.c.bf16 %v1207, %v1206
    %v1238 = vpack.c.bf16 %v1209, %v1208
    %v1239 = vpack.c.bf16 %v1211, %v1210
    %v1240 = vpack.c.bf16 %v1213, %v1212
    %v1241 = vpack.c.bf16 %v1215, %v1214
    %v1242 = vpack.c.bf16 %v1217, %v1216
    %v1243 = vpack.c.bf16 %v1219, %v1218
    %v1244 = vpack.c.bf16 %v1221, %v1220
    %v1245 = vpack.c.bf16 %v1223, %v1222
    %v1246 = vpack.c.bf16 %v1225, %v1224
    %v1247 = vpack.c.bf16 %v1227, %v1226
    %v1248 = vpack.c.bf16 %v1229, %v1228
    %v1249 = vpack.c.bf16 %v1231, %v1230
    %v1250 = vpack.c.bf16 %v1233, %v1232
    %v1251 = vpack.c.bf16 %v1235, %v1234
    %s1252 = scalar_lea.vmem %s1, 24
    %v1253 = vld [vmem:[%s1252] sm:$0xf]
    %v1254 = vld [vmem:[%s1252 + $0x4] sm:$0xf]
    %v1257 = vunpack.c.l.b16 %v1253
    %v1258 = vunpack.c.l.b16 %v1254
    %v1259 = vpack.c.b16 %v1258, %v1257
    %v1262 = vsel %vm319, %v1236, 0
    %v1265 = vsel %vm319, %v1237, 0
    %v1268 = vsel %vm319, %v1238, 0
    %v1271 = vsel %vm319, %v1239, 0
    %v1274 = vsel %vm319, %v1240, 0
    %v1277 = vsel %vm319, %v1241, 0
    %v1280 = vsel %vm319, %v1242, 0
    %v1283 = vsel %vm319, %v1243, 0
    %v1286 = vsel %vm319, %v1244, 0
    %v1289 = vsel %vm319, %v1245, 0
    %v1292 = vsel %vm319, %v1246, 0
    %v1295 = vsel %vm319, %v1247, 0
    %v1298 = vsel %vm319, %v1248, 0
    %v1301 = vsel %vm319, %v1249, 0
    %v1304 = vsel %vm319, %v1250, 0
    %v1307 = vsel %vm319, %v1251, 0
    %1309 = vmatprep.subr.bf16.mxu0 0
    %1310 = vmatpush1.bf16.msra.mxu0 %v1259
    %1311 = vmatprep.subr.bf16.mxu0 0
    %1312 = vmatpush1.bf16.msra.mxu0 0
    %1313 = vmatprep.subr.bf16.mxu0 0
    %1314 = vmatpush1.bf16.msra.mxu0 0
    %1315 = vmatprep.subr.bf16.mxu0 0
    %1316 = vmatpush1.bf16.msra.mxu0 0
    %1317 = vmatprep.subr.bf16.mxu0 0
    %1318 = vmatpush1.bf16.msra.mxu0 0
    %1319 = vmatprep.subr.bf16.mxu0 0
    %1320 = vmatpush1.bf16.msra.mxu0 0
    %1321 = vmatprep.subr.bf16.mxu0 0
    %1322 = vmatpush1.bf16.msra.mxu0 0
    %1323 = vmatprep.subr.bf16.mxu0 0
    %1324 = vmatpush1.bf16.msra.mxu0 0
    %1325 = vmatprep.subr.bf16.mxu0 0
    %1326 = vmatpush1.bf16.msra.mxu0 0
    %1327 = vmatprep.subr.bf16.mxu0 0
    %1328 = vmatpush1.bf16.msra.mxu0 0
    %1329 = vmatprep.subr.bf16.mxu0 0
    %1330 = vmatpush1.bf16.msra.mxu0 0
    %1331 = vmatprep.subr.bf16.mxu0 0
    %1332 = vmatpush1.bf16.msra.mxu0 0
    %1333 = vmatprep.subr.bf16.mxu0 0
    %1334 = vmatpush1.bf16.msra.mxu0 0
    %1335 = vmatprep.subr.bf16.mxu0 0
    %1336 = vmatpush1.bf16.msra.mxu0 0
    %1337 = vmatprep.subr.bf16.mxu0 0
    %1338 = vmatpush1.bf16.msra.mxu0 0
    %1339 = vmatprep.subr.bf16.mxu0 0
    %1340 = vmatpush1.bf16.msra.mxu0 0
    %1341 = vmatprep.mubr.bf16.mxu0 0
    %1342 = vmatmul.mubr.bf16.gmra.mrb[0].mxu0 %v1262
    %v1343 = vpop.f32.mrb[0].mxu0
    %v1344 = vadd.f32 0.0, %v1343
    %v1345 = vpop.f32.mrb[0].mxu0
    %v1346 = vpop.f32.mrb[0].mxu0
    %v1347 = vadd.f32 0.0, %v1346
    %v1348 = vpop.f32.mrb[0].mxu0
    %1349 = vmatprep.mubr.bf16.mxu0 0
    %1350 = vmatmul.mubr.bf16.gmra.mrb[0].mxu0 %v1265
    %v1351 = vpop.f32.mrb[0].mxu0
    %v1352 = vadd.f32 0.0, %v1351
    %v1353 = vpop.f32.mrb[0].mxu0
    %v1354 = vpop.f32.mrb[0].mxu0
    %v1355 = vadd.f32 0.0, %v1354
    %v1356 = vpop.f32.mrb[0].mxu0
    %1357 = vmatprep.mubr.bf16.mxu0 0
    %1358 = vmatmul.mubr.bf16.gmra.mrb[0].mxu0 %v1268
    %v1359 = vpop.f32.mrb[0].mxu0
    %v1360 = vadd.f32 0.0, %v1359
    %v1361 = vpop.f32.mrb[0].mxu0
    %v1362 = vpop.f32.mrb[0].mxu0
    %v1363 = vadd.f32 0.0, %v1362
    %v1364 = vpop.f32.mrb[0].mxu0
    %1365 = vmatprep.mubr.bf16.mxu0 0
    %1366 = vmatmul.mubr.bf16.gmra.mrb[0].mxu0 %v1271
    %v1367 = vpop.f32.mrb[0].mxu0
    %v1368 = vadd.f32 0.0, %v1367
    %v1369 = vpop.f32.mrb[0].mxu0
    %v1370 = vpop.f32.mrb[0].mxu0
    %v1371 = vadd.f32 0.0, %v1370
    %v1372 = vpop.f32.mrb[0].mxu0
    %1373 = vmatprep.mubr.bf16.mxu0 0
    %1374 = vmatmul.mubr.bf16.gmra.mrb[0].mxu0 %v1274
    %v1375 = vpop.f32.mrb[0].mxu0
    %v1376 = vadd.f32 0.0, %v1375
    %v1377 = vpop.f32.mrb[0].mxu0
    %v1378 = vpop.f32.mrb[0].mxu0
    %v1379 = vadd.f32 0.0, %v1378
    %v1380 = vpop.f32.mrb[0].mxu0
    %1381 = vmatprep.mubr.bf16.mxu0 0
    %1382 = vmatmul.mubr.bf16.gmra.mrb[0].mxu0 %v1277
    %v1383 = vpop.f32.mrb[0].mxu0
    %v1384 = vadd.f32 0.0, %v1383
    %v1385 = vpop.f32.mrb[0].mxu0
    %v1386 = vpop.f32.mrb[0].mxu0
    %v1387 = vadd.f32 0.0, %v1386
    %v1388 = vpop.f32.mrb[0].mxu0
    %1389 = vmatprep.mubr.bf16.mxu0 0
    %1390 = vmatmul.mubr.bf16.gmra.mrb[0].mxu0 %v1280
    %v1391 = vpop.f32.mrb[0].mxu0
    %v1392 = vadd.f32 0.0, %v1391
    %v1393 = vpop.f32.mrb[0].mxu0
    %v1394 = vpop.f32.mrb[0].mxu0
    %v1395 = vadd.f32 0.0, %v1394
    %v1396 = vpop.f32.mrb[0].mxu0
    %1397 = vmatprep.mubr.bf16.mxu0 0
    %1398 = vmatmul.mubr.bf16.gmra.mrb[0].mxu0 %v1283
    %v1399 = vpop.f32.mrb[0].mxu0
    %v1400 = vadd.f32 0.0, %v1399
    %v1401 = vpop.f32.mrb[0].mxu0
    %v1402 = vpop.f32.mrb[0].mxu0
    %v1403 = vadd.f32 0.0, %v1402
    %v1404 = vpop.f32.mrb[0].mxu0
    %1405 = vmatprep.mubr.bf16.mxu0 0
    %1406 = vmatmul.mubr.bf16.gmra.mrb[0].mxu0 %v1286
    %v1407 = vpop.f32.mrb[0].mxu0
    %v1408 = vadd.f32 0.0, %v1407
    %v1409 = vpop.f32.mrb[0].mxu0
    %v1410 = vpop.f32.mrb[0].mxu0
    %v1411 = vadd.f32 0.0, %v1410
    %v1412 = vpop.f32.mrb[0].mxu0
    %1413 = vmatprep.mubr.bf16.mxu0 0
    %1414 = vmatmul.mubr.bf16.gmra.mrb[0].mxu0 %v1289
    %v1415 = vpop.f32.mrb[0].mxu0
    %v1416 = vadd.f32 0.0, %v1415
    %v1417 = vpop.f32.mrb[0].mxu0
    %v1418 = vpop.f32.mrb[0].mxu0
    %v1419 = vadd.f32 0.0, %v1418
    %v1420 = vpop.f32.mrb[0].mxu0
    %1421 = vmatprep.mubr.bf16.mxu0 0
    %1422 = vmatmul.mubr.bf16.gmra.mrb[0].mxu0 %v1292
    %v1423 = vpop.f32.mrb[0].mxu0
    %v1424 = vadd.f32 0.0, %v1423
    %v1425 = vpop.f32.mrb[0].mxu0
    %v1426 = vpop.f32.mrb[0].mxu0
    %v1427 = vadd.f32 0.0, %v1426
    %v1428 = vpop.f32.mrb[0].mxu0
    %1429 = vmatprep.mubr.bf16.mxu0 0
    %1430 = vmatmul.mubr.bf16.gmra.mrb[0].mxu0 %v1295
    %v1431 = vpop.f32.mrb[0].mxu0
    %v1432 = vadd.f32 0.0, %v1431
    %v1433 = vpop.f32.mrb[0].mxu0
    %v1434 = vpop.f32.mrb[0].mxu0
    %v1435 = vadd.f32 0.0, %v1434
    %v1436 = vpop.f32.mrb[0].mxu0
    %1437 = vmatprep.mubr.bf16.mxu0 0
    %1438 = vmatmul.mubr.bf16.gmra.mrb[0].mxu0 %v1298
    %v1439 = vpop.f32.mrb[0].mxu0
    %v1440 = vadd.f32 0.0, %v1439
    %v1441 = vpop.f32.mrb[0].mxu0
    %v1442 = vpop.f32.mrb[0].mxu0
    %v1443 = vadd.f32 0.0, %v1442
    %v1444 = vpop.f32.mrb[0].mxu0
    %1445 = vmatprep.mubr.bf16.mxu0 0
    %1446 = vmatmul.mubr.bf16.gmra.mrb[0].mxu0 %v1301
    %v1447 = vpop.f32.mrb[0].mxu0
    %v1448 = vadd.f32 0.0, %v1447
    %v1449 = vpop.f32.mrb[0].mxu0
    %v1450 = vpop.f32.mrb[0].mxu0
    %v1451 = vadd.f32 0.0, %v1450
    %v1452 = vpop.f32.mrb[0].mxu0
    %1453 = vmatprep.mubr.bf16.mxu0 0
    %1454 = vmatmul.mubr.bf16.gmra.mrb[0].mxu0 %v1304
    %v1455 = vpop.f32.mrb[0].mxu0
    %v1456 = vadd.f32 0.0, %v1455
    %v1457 = vpop.f32.mrb[0].mxu0
    %v1458 = vpop.f32.mrb[0].mxu0
    %v1459 = vadd.f32 0.0, %v1458
    %v1460 = vpop.f32.mrb[0].mxu0
    %1461 = vmatprep.mubr.bf16.mxu0 0
    %1462 = vmatmul.mubr.bf16.gmra.mrb[0].mxu0 %v1307
    %v1463 = vpop.f32.mrb[0].mxu0
    %v1464 = vadd.f32 0.0, %v1463
    %v1465 = vpop.f32.mrb[0].mxu0
    %v1466 = vpop.f32.mrb[0].mxu0
    %v1467 = vadd.f32 0.0, %v1466
    %v1468 = vpop.f32.mrb[0].mxu0
    %1469 = vdwg.mxu0
    %v1470 = vadd.f32 %v1139, %v1344
    %v1471 = vadd.f32 %v1140, %v1347
    %v1472 = vadd.f32 %v1141, %v1352
    %v1473 = vadd.f32 %v1142, %v1355
    %v1474 = vadd.f32 %v1143, %v1360
    %v1475 = vadd.f32 %v1144, %v1363
    %v1476 = vadd.f32 %v1145, %v1368
    %v1477 = vadd.f32 %v1146, %v1371
    %v1478 = vadd.f32 %v1147, %v1376
    %v1479 = vadd.f32 %v1148, %v1379
    %v1480 = vadd.f32 %v1149, %v1384
    %v1481 = vadd.f32 %v1150, %v1387
    %v1482 = vadd.f32 %v1151, %v1392
    %v1483 = vadd.f32 %v1152, %v1395
    %v1484 = vadd.f32 %v1153, %v1400
    %v1485 = vadd.f32 %v1154, %v1403
    %v1486 = vadd.f32 %v1155, %v1408
    %v1487 = vadd.f32 %v1156, %v1411
    %v1488 = vadd.f32 %v1157, %v1416
    %v1489 = vadd.f32 %v1158, %v1419
    %v1490 = vadd.f32 %v1159, %v1424
    %v1491 = vadd.f32 %v1160, %v1427
    %v1492 = vadd.f32 %v1161, %v1432
    %v1493 = vadd.f32 %v1162, %v1435
    %v1494 = vadd.f32 %v1163, %v1440
    %v1495 = vadd.f32 %v1164, %v1443
    %v1496 = vadd.f32 %v1165, %v1448
    %v1497 = vadd.f32 %v1166, %v1451
    %v1498 = vadd.f32 %v1167, %v1456
    %v1499 = vadd.f32 %v1168, %v1459
    %v1500 = vadd.f32 %v1169, %v1464
    %v1501 = vadd.f32 %v1170, %v1467
    %v1502 = vld [vmem:[%s1171] sm:$0xf]
    %v1503 = vld [vmem:[%s1171 + $0x4] sm:$0xf]
    %v1504 = vld [vmem:[%s1171 + $0x8] sm:$0x1]
    %v1505 = vld [vmem:[%s1171 + $0xc] sm:$0xf]
    %v1506 = vld [vmem:[%s1171 + $0x10] sm:$0xf]
    %v1507 = vld [vmem:[%s1171 + $0x14] sm:$0x1]
    %v1508 = vld [vmem:[%s1171 + $0x18] sm:$0xf]
    %v1509 = vld [vmem:[%s1171 + $0x1c] sm:$0xf]
    %v1510 = vld [vmem:[%s1171 + $0x20] sm:$0x1]
    %v1511 = vld [vmem:[%s1171 + $0x24] sm:$0xf]
    %v1512 = vld [vmem:[%s1171 + $0x28] sm:$0xf]
    %v1513 = vld [vmem:[%s1171 + $0x2c] sm:$0x1]
    %v1514 = vld [vmem:[%s1171 + $0x30] sm:$0xf]
    %v1515 = vld [vmem:[%s1171 + $0x34] sm:$0xf]
    %v1516 = vld [vmem:[%s1171 + $0x38] sm:$0x1]
    %v1517 = vld [vmem:[%s1171 + $0x3c] sm:$0xf]
    %v1518 = vld [vmem:[%s1171 + $0x40] sm:$0xf]
    %v1519 = vld [vmem:[%s1171 + $0x44] sm:$0x1]
    %v1520 = vld [vmem:[%s1171 + $0x48] sm:$0xf]
    %v1521 = vld [vmem:[%s1171 + $0x4c] sm:$0xf]
    %v1522 = vld [vmem:[%s1171 + $0x50] sm:$0x1]
    %v1523 = vld [vmem:[%s1171 + $0x54] sm:$0xf]
    %v1524 = vld [vmem:[%s1171 + $0x58] sm:$0xf]
    %v1525 = vld [vmem:[%s1171 + $0x5c] sm:$0x1]
    %v1526 = vld [vmem:[%s1171 + $0x60] sm:$0xf]
    %v1527 = vld [vmem:[%s1171 + $0x64] sm:$0xf]
    %v1528 = vld [vmem:[%s1171 + $0x68] sm:$0x1]
    %v1529 = vld [vmem:[%s1171 + $0x6c] sm:$0xf]
    %v1530 = vld [vmem:[%s1171 + $0x70] sm:$0xf]
    %v1531 = vld [vmem:[%s1171 + $0x74] sm:$0x1]
    %v1532 = vld [vmem:[%s1171 + $0x78] sm:$0xf]
    %v1533 = vld [vmem:[%s1171 + $0x7c] sm:$0xf]
    %v1534 = vld [vmem:[%s1171 + $0x80] sm:$0x1]
    %v1535 = vld [vmem:[%s1171 + $0x84] sm:$0xf]
    %v1536 = vld [vmem:[%s1171 + $0x88] sm:$0xf]
    %v1537 = vld [vmem:[%s1171 + $0x8c] sm:$0x1]
    %v1538 = vld [vmem:[%s1171 + $0x90] sm:$0xf]
    %v1539 = vld [vmem:[%s1171 + $0x94] sm:$0xf]
    %v1540 = vld [vmem:[%s1171 + $0x98] sm:$0x1]
    %v1541 = vld [vmem:[%s1171 + $0x9c] sm:$0xf]
    %v1542 = vld [vmem:[%s1171 + $0xa0] sm:$0xf]
    %v1543 = vld [vmem:[%s1171 + $0xa4] sm:$0x1]
    %v1544 = vld [vmem:[%s1171 + $0xa8] sm:$0xf]
    %v1545 = vld [vmem:[%s1171 + $0xac] sm:$0xf]
    %v1546 = vld [vmem:[%s1171 + $0xb0] sm:$0x1]
    %v1547 = vld [vmem:[%s1171 + $0xb4] sm:$0xf]
    %v1548 = vld [vmem:[%s1171 + $0xb8] sm:$0xf]
    %v1549 = vld [vmem:[%s1171 + $0xbc] sm:$0x1]
    %v1550 = vunpack.c.l.bf16 %v1502
    %v1551 = vunpack.c.l.bf16 %v1503
    %v1552 = vunpack.c.l.bf16 %v1504
    %v1553 = vunpack.c.l.bf16 %v1505
    %v1554 = vunpack.c.l.bf16 %v1506
    %v1555 = vunpack.c.l.bf16 %v1507
    %v1556 = vunpack.c.l.bf16 %v1508
    %v1557 = vunpack.c.l.bf16 %v1509
    %v1558 = vunpack.c.l.bf16 %v1510
    %v1559 = vunpack.c.l.bf16 %v1511
    %v1560 = vunpack.c.l.bf16 %v1512
    %v1561 = vunpack.c.l.bf16 %v1513
    %v1562 = vunpack.c.l.bf16 %v1514
    %v1563 = vunpack.c.l.bf16 %v1515
    %v1564 = vunpack.c.l.bf16 %v1516
    %v1565 = vunpack.c.l.bf16 %v1517
    %v1566 = vunpack.c.l.bf16 %v1518
    %v1567 = vunpack.c.l.bf16 %v1519
    %v1568 = vunpack.c.l.bf16 %v1520
    %v1569 = vunpack.c.l.bf16 %v1521
    %v1570 = vunpack.c.l.bf16 %v1522
    %v1571 = vunpack.c.l.bf16 %v1523
    %v1572 = vunpack.c.l.bf16 %v1524
    %v1573 = vunpack.c.l.bf16 %v1525
    %v1574 = vunpack.c.l.bf16 %v1526
    %v1575 = vunpack.c.l.bf16 %v1527
    %v1576 = vunpack.c.l.bf16 %v1528
    %v1577 = vunpack.c.l.bf16 %v1529
    %v1578 = vunpack.c.l.bf16 %v1530
    %v1579 = vunpack.c.l.bf16 %v1531
    %v1580 = vunpack.c.l.bf16 %v1532
    %v1581 = vunpack.c.l.bf16 %v1533
    %v1582 = vunpack.c.l.bf16 %v1534
    %v1583 = vunpack.c.l.bf16 %v1535
    %v1584 = vunpack.c.l.bf16 %v1536
    %v1585 = vunpack.c.l.bf16 %v1537
    %v1586 = vunpack.c.l.bf16 %v1538
    %v1587 = vunpack.c.l.bf16 %v1539
    %v1588 = vunpack.c.l.bf16 %v1540
    %v1589 = vunpack.c.l.bf16 %v1541
    %v1590 = vunpack.c.l.bf16 %v1542
    %v1591 = vunpack.c.l.bf16 %v1543
    %v1592 = vunpack.c.l.bf16 %v1544
    %v1593 = vunpack.c.l.bf16 %v1545
    %v1594 = vunpack.c.l.bf16 %v1546
    %v1595 = vunpack.c.l.bf16 %v1547
    %v1596 = vunpack.c.l.bf16 %v1548
    %v1597 = vunpack.c.l.bf16 %v1549
    %v1646 = vrot.slane %v1550, 1
    %v1647 = vrot.slane %v1551, 1
    %v1648 = vsel %vm181, %v1646, %v1647
    %v1649 = vrot.slane %v1552, 1
    %v1650 = vsel %vm181, %v1647, %v1649
    %v1651 = vrot.slane %v1553, 1
    %v1652 = vrot.slane %v1554, 1
    %v1653 = vsel %vm181, %v1651, %v1652
    %v1654 = vrot.slane %v1555, 1
    %v1655 = vsel %vm181, %v1652, %v1654
    %v1656 = vrot.slane %v1556, 1
    %v1657 = vrot.slane %v1557, 1
    %v1658 = vsel %vm181, %v1656, %v1657
    %v1659 = vrot.slane %v1558, 1
    %v1660 = vsel %vm181, %v1657, %v1659
    %v1661 = vrot.slane %v1559, 1
    %v1662 = vrot.slane %v1560, 1
    %v1663 = vsel %vm181, %v1661, %v1662
    %v1664 = vrot.slane %v1561, 1
    %v1665 = vsel %vm181, %v1662, %v1664
    %v1666 = vrot.slane %v1562, 1
    %v1667 = vrot.slane %v1563, 1
    %v1668 = vsel %vm181, %v1666, %v1667
    %v1669 = vrot.slane %v1564, 1
    %v1670 = vsel %vm181, %v1667, %v1669
    %v1671 = vrot.slane %v1565, 1
    %v1672 = vrot.slane %v1566, 1
    %v1673 = vsel %vm181, %v1671, %v1672
    %v1674 = vrot.slane %v1567, 1
    %v1675 = vsel %vm181, %v1672, %v1674
    %v1676 = vrot.slane %v1568, 1
    %v1677 = vrot.slane %v1569, 1
    %v1678 = vsel %vm181, %v1676, %v1677
    %v1679 = vrot.slane %v1570, 1
    %v1680 = vsel %vm181, %v1677, %v1679
    %v1681 = vrot.slane %v1571, 1
    %v1682 = vrot.slane %v1572, 1
    %v1683 = vsel %vm181, %v1681, %v1682
    %v1684 = vrot.slane %v1573, 1
    %v1685 = vsel %vm181, %v1682, %v1684
    %v1686 = vrot.slane %v1574, 1
    %v1687 = vrot.slane %v1575, 1
    %v1688 = vsel %vm181, %v1686, %v1687
    %v1689 = vrot.slane %v1576, 1
    %v1690 = vsel %vm181, %v1687, %v1689
    %v1691 = vrot.slane %v1577, 1
    %v1692 = vrot.slane %v1578, 1
    %v1693 = vsel %vm181, %v1691, %v1692
    %v1694 = vrot.slane %v1579, 1
    %v1695 = vsel %vm181, %v1692, %v1694
    %v1696 = vrot.slane %v1580, 1
    %v1697 = vrot.slane %v1581, 1
    %v1698 = vsel %vm181, %v1696, %v1697
    %v1699 = vrot.slane %v1582, 1
    %v1700 = vsel %vm181, %v1697, %v1699
    %v1701 = vrot.slane %v1583, 1
    %v1702 = vrot.slane %v1584, 1
    %v1703 = vsel %vm181, %v1701, %v1702
    %v1704 = vrot.slane %v1585, 1
    %v1705 = vsel %vm181, %v1702, %v1704
    %v1706 = vrot.slane %v1586, 1
    %v1707 = vrot.slane %v1587, 1
    %v1708 = vsel %vm181, %v1706, %v1707
    %v1709 = vrot.slane %v1588, 1
    %v1710 = vsel %vm181, %v1707, %v1709
    %v1711 = vrot.slane %v1589, 1
    %v1712 = vrot.slane %v1590, 1
    %v1713 = vsel %vm181, %v1711, %v1712
    %v1714 = vrot.slane %v1591, 1
    %v1715 = vsel %vm181, %v1712, %v1714
    %v1716 = vrot.slane %v1592, 1
    %v1717 = vrot.slane %v1593, 1
    %v1718 = vsel %vm181, %v1716, %v1717
    %v1719 = vrot.slane %v1594, 1
    %v1720 = vsel %vm181, %v1717, %v1719
    %v1721 = vrot.slane %v1595, 1
    %v1722 = vrot.slane %v1596, 1
    %v1723 = vsel %vm181, %v1721, %v1722
    %v1724 = vrot.slane %v1597, 1
    %v1725 = vsel %vm181, %v1722, %v1724
    %v1758 = vpack.c.bf16 %v1650, %v1648
    %v1759 = vpack.c.bf16 %v1655, %v1653
    %v1760 = vpack.c.bf16 %v1660, %v1658
    %v1761 = vpack.c.bf16 %v1665, %v1663
    %v1762 = vpack.c.bf16 %v1670, %v1668
    %v1763 = vpack.c.bf16 %v1675, %v1673
    %v1764 = vpack.c.bf16 %v1680, %v1678
    %v1765 = vpack.c.bf16 %v1685, %v1683
    %v1766 = vpack.c.bf16 %v1690, %v1688
    %v1767 = vpack.c.bf16 %v1695, %v1693
    %v1768 = vpack.c.bf16 %v1700, %v1698
    %v1769 = vpack.c.bf16 %v1705, %v1703
    %v1770 = vpack.c.bf16 %v1710, %v1708
    %v1771 = vpack.c.bf16 %v1715, %v1713
    %v1772 = vpack.c.bf16 %v1720, %v1718
    %v1773 = vpack.c.bf16 %v1725, %v1723
    %s1774 = scalar_lea.vmem %s1, 32
    %v1775 = vld [vmem:[%s1774] sm:$0xf]
    %v1776 = vld [vmem:[%s1774 + $0x4] sm:$0xf]
    %v1779 = vunpack.c.l.b16 %v1775
    %v1780 = vunpack.c.l.b16 %v1776
    %v1781 = vpack.c.b16 %v1780, %v1779
    %v1784 = vsel %vm319, %v1758, 0
    %v1787 = vsel %vm319, %v1759, 0
    %v1790 = vsel %vm319, %v1760, 0
    %v1793 = vsel %vm319, %v1761, 0
    %v1796 = vsel %vm319, %v1762, 0
    %v1799 = vsel %vm319, %v1763, 0
    %v1802 = vsel %vm319, %v1764, 0
    %v1805 = vsel %vm319, %v1765, 0
    %v1808 = vsel %vm319, %v1766, 0
    %v1811 = vsel %vm319, %v1767, 0
    %v1814 = vsel %vm319, %v1768, 0
    %v1817 = vsel %vm319, %v1769, 0
    %v1820 = vsel %vm319, %v1770, 0
    %v1823 = vsel %vm319, %v1771, 0
    %v1826 = vsel %vm319, %v1772, 0
    %v1829 = vsel %vm319, %v1773, 0
    %1831 = vmatprep.subr.bf16.mxu0 0
    %1832 = vmatpush1.bf16.msra.mxu0 %v1781
    %1833 = vmatprep.subr.bf16.mxu0 0
    %1834 = vmatpush1.bf16.msra.mxu0 0
    %1835 = vmatprep.subr.bf16.mxu0 0
    %1836 = vmatpush1.bf16.msra.mxu0 0
    %1837 = vmatprep.subr.bf16.mxu0 0
    %1838 = vmatpush1.bf16.msra.mxu0 0
    %1839 = vmatprep.subr.bf16.mxu0 0
    %1840 = vmatpush1.bf16.msra.mxu0 0
    %1841 = vmatprep.subr.bf16.mxu0 0
    %1842 = vmatpush1.bf16.msra.mxu0 0
    %1843 = vmatprep.subr.bf16.mxu0 0
    %1844 = vmatpush1.bf16.msra.mxu0 0
    %1845 = vmatprep.subr.bf16.mxu0 0
    %1846 = vmatpush1.bf16.msra.mxu0 0
    %1847 = vmatprep.subr.bf16.mxu0 0
    %1848 = vmatpush1.bf16.msra.mxu0 0
    %1849 = vmatprep.subr.bf16.mxu0 0
    %1850 = vmatpush1.bf16.msra.mxu0 0
    %1851 = vmatprep.subr.bf16.mxu0 0
    %1852 = vmatpush1.bf16.msra.mxu0 0
    %1853 = vmatprep.subr.bf16.mxu0 0
    %1854 = vmatpush1.bf16.msra.mxu0 0
    %1855 = vmatprep.subr.bf16.mxu0 0
    %1856 = vmatpush1.bf16.msra.mxu0 0
    %1857 = vmatprep.subr.bf16.mxu0 0
    %1858 = vmatpush1.bf16.msra.mxu0 0
    %1859 = vmatprep.subr.bf16.mxu0 0
    %1860 = vmatpush1.bf16.msra.mxu0 0
    %1861 = vmatprep.subr.bf16.mxu0 0
    %1862 = vmatpush1.bf16.msra.mxu0 0
    %1863 = vmatprep.mubr.bf16.mxu0 0
    %1864 = vmatmul.mubr.bf16.gmra.mrb[0].mxu0 %v1784
    %v1865 = vpop.f32.mrb[0].mxu0
    %v1866 = vadd.f32 0.0, %v1865
    %v1867 = vpop.f32.mrb[0].mxu0
    %v1868 = vpop.f32.mrb[0].mxu0
    %v1869 = vadd.f32 0.0, %v1868
    %v1870 = vpop.f32.mrb[0].mxu0
    %1871 = vmatprep.mubr.bf16.mxu0 0
    %1872 = vmatmul.mubr.bf16.gmra.mrb[0].mxu0 %v1787
    %v1873 = vpop.f32.mrb[0].mxu0
    %v1874 = vadd.f32 0.0, %v1873
    %v1875 = vpop.f32.mrb[0].mxu0
    %v1876 = vpop.f32.mrb[0].mxu0
    %v1877 = vadd.f32 0.0, %v1876
    %v1878 = vpop.f32.mrb[0].mxu0
    %1879 = vmatprep.mubr.bf16.mxu0 0
    %1880 = vmatmul.mubr.bf16.gmra.mrb[0].mxu0 %v1790
    %v1881 = vpop.f32.mrb[0].mxu0
    %v1882 = vadd.f32 0.0, %v1881
    %v1883 = vpop.f32.mrb[0].mxu0
    %v1884 = vpop.f32.mrb[0].mxu0
    %v1885 = vadd.f32 0.0, %v1884
    %v1886 = vpop.f32.mrb[0].mxu0
    %1887 = vmatprep.mubr.bf16.mxu0 0
    %1888 = vmatmul.mubr.bf16.gmra.mrb[0].mxu0 %v1793
    %v1889 = vpop.f32.mrb[0].mxu0
    %v1890 = vadd.f32 0.0, %v1889
    %v1891 = vpop.f32.mrb[0].mxu0
    %v1892 = vpop.f32.mrb[0].mxu0
    %v1893 = vadd.f32 0.0, %v1892
    %v1894 = vpop.f32.mrb[0].mxu0
    %1895 = vmatprep.mubr.bf16.mxu0 0
    %1896 = vmatmul.mubr.bf16.gmra.mrb[0].mxu0 %v1796
    %v1897 = vpop.f32.mrb[0].mxu0
    %v1898 = vadd.f32 0.0, %v1897
    %v1899 = vpop.f32.mrb[0].mxu0
    %v1900 = vpop.f32.mrb[0].mxu0
    %v1901 = vadd.f32 0.0, %v1900
    %v1902 = vpop.f32.mrb[0].mxu0
    %1903 = vmatprep.mubr.bf16.mxu0 0
    %1904 = vmatmul.mubr.bf16.gmra.mrb[0].mxu0 %v1799
    %v1905 = vpop.f32.mrb[0].mxu0
    %v1906 = vadd.f32 0.0, %v1905
    %v1907 = vpop.f32.mrb[0].mxu0
    %v1908 = vpop.f32.mrb[0].mxu0
    %v1909 = vadd.f32 0.0, %v1908
    %v1910 = vpop.f32.mrb[0].mxu0
    %1911 = vmatprep.mubr.bf16.mxu0 0
    %1912 = vmatmul.mubr.bf16.gmra.mrb[0].mxu0 %v1802
    %v1913 = vpop.f32.mrb[0].mxu0
    %v1914 = vadd.f32 0.0, %v1913
    %v1915 = vpop.f32.mrb[0].mxu0
    %v1916 = vpop.f32.mrb[0].mxu0
    %v1917 = vadd.f32 0.0, %v1916
    %v1918 = vpop.f32.mrb[0].mxu0
    %1919 = vmatprep.mubr.bf16.mxu0 0
    %1920 = vmatmul.mubr.bf16.gmra.mrb[0].mxu0 %v1805
    %v1921 = vpop.f32.mrb[0].mxu0
    %v1922 = vadd.f32 0.0, %v1921
    %v1923 = vpop.f32.mrb[0].mxu0
    %v1924 = vpop.f32.mrb[0].mxu0
    %v1925 = vadd.f32 0.0, %v1924
    %v1926 = vpop.f32.mrb[0].mxu0
    %1927 = vmatprep.mubr.bf16.mxu0 0
    %1928 = vmatmul.mubr.bf16.gmra.mrb[0].mxu0 %v1808
    %v1929 = vpop.f32.mrb[0].mxu0
    %v1930 = vadd.f32 0.0, %v1929
    %v1931 = vpop.f32.mrb[0].mxu0
    %v1932 = vpop.f32.mrb[0].mxu0
    %v1933 = vadd.f32 0.0, %v1932
    %v1934 = vpop.f32.mrb[0].mxu0
    %1935 = vmatprep.mubr.bf16.mxu0 0
    %1936 = vmatmul.mubr.bf16.gmra.mrb[0].mxu0 %v1811
    %v1937 = vpop.f32.mrb[0].mxu0
    %v1938 = vadd.f32 0.0, %v1937
    %v1939 = vpop.f32.mrb[0].mxu0
    %v1940 = vpop.f32.mrb[0].mxu0
    %v1941 = vadd.f32 0.0, %v1940
    %v1942 = vpop.f32.mrb[0].mxu0
    %1943 = vmatprep.mubr.bf16.mxu0 0
    %1944 = vmatmul.mubr.bf16.gmra.mrb[0].mxu0 %v1814
    %v1945 = vpop.f32.mrb[0].mxu0
    %v1946 = vadd.f32 0.0, %v1945
    %v1947 = vpop.f32.mrb[0].mxu0
    %v1948 = vpop.f32.mrb[0].mxu0
    %v1949 = vadd.f32 0.0, %v1948
    %v1950 = vpop.f32.mrb[0].mxu0
    %1951 = vmatprep.mubr.bf16.mxu0 0
    %1952 = vmatmul.mubr.bf16.gmra.mrb[0].mxu0 %v1817
    %v1953 = vpop.f32.mrb[0].mxu0
    %v1954 = vadd.f32 0.0, %v1953
    %v1955 = vpop.f32.mrb[0].mxu0
    %v1956 = vpop.f32.mrb[0].mxu0
    %v1957 = vadd.f32 0.0, %v1956
    %v1958 = vpop.f32.mrb[0].mxu0
    %1959 = vmatprep.mubr.bf16.mxu0 0
    %1960 = vmatmul.mubr.bf16.gmra.mrb[0].mxu0 %v1820
    %v1961 = vpop.f32.mrb[0].mxu0
    %v1962 = vadd.f32 0.0, %v1961
    %v1963 = vpop.f32.mrb[0].mxu0
    %v1964 = vpop.f32.mrb[0].mxu0
    %v1965 = vadd.f32 0.0, %v1964
    %v1966 = vpop.f32.mrb[0].mxu0
    %1967 = vmatprep.mubr.bf16.mxu0 0
    %1968 = vmatmul.mubr.bf16.gmra.mrb[0].mxu0 %v1823
    %v1969 = vpop.f32.mrb[0].mxu0
    %v1970 = vadd.f32 0.0, %v1969
    %v1971 = vpop.f32.mrb[0].mxu0
    %v1972 = vpop.f32.mrb[0].mxu0
    %v1973 = vadd.f32 0.0, %v1972
    %v1974 = vpop.f32.mrb[0].mxu0
    %1975 = vmatprep.mubr.bf16.mxu0 0
    %1976 = vmatmul.mubr.bf16.gmra.mrb[0].mxu0 %v1826
    %v1977 = vpop.f32.mrb[0].mxu0
    %v1978 = vadd.f32 0.0, %v1977
    %v1979 = vpop.f32.mrb[0].mxu0
    %v1980 = vpop.f32.mrb[0].mxu0
    %v1981 = vadd.f32 0.0, %v1980
    %v1982 = vpop.f32.mrb[0].mxu0
    %1983 = vmatprep.mubr.bf16.mxu0 0
    %1984 = vmatmul.mubr.bf16.gmra.mrb[0].mxu0 %v1829
    %v1985 = vpop.f32.mrb[0].mxu0
    %v1986 = vadd.f32 0.0, %v1985
    %v1987 = vpop.f32.mrb[0].mxu0
    %v1988 = vpop.f32.mrb[0].mxu0
    %v1989 = vadd.f32 0.0, %v1988
    %v1990 = vpop.f32.mrb[0].mxu0
    %1991 = vdwg.mxu0
    %v1992 = vadd.f32 %v1470, %v1866
    %v1993 = vadd.f32 %v1471, %v1869
    %v1994 = vadd.f32 %v1472, %v1874
    %v1995 = vadd.f32 %v1473, %v1877
    %v1996 = vadd.f32 %v1474, %v1882
    %v1997 = vadd.f32 %v1475, %v1885
    %v1998 = vadd.f32 %v1476, %v1890
    %v1999 = vadd.f32 %v1477, %v1893
    %v2000 = vadd.f32 %v1478, %v1898
    %v2001 = vadd.f32 %v1479, %v1901
    %v2002 = vadd.f32 %v1480, %v1906
    %v2003 = vadd.f32 %v1481, %v1909
    %v2004 = vadd.f32 %v1482, %v1914
    %v2005 = vadd.f32 %v1483, %v1917
    %v2006 = vadd.f32 %v1484, %v1922
    %v2007 = vadd.f32 %v1485, %v1925
    %v2008 = vadd.f32 %v1486, %v1930
    %v2009 = vadd.f32 %v1487, %v1933
    %v2010 = vadd.f32 %v1488, %v1938
    %v2011 = vadd.f32 %v1489, %v1941
    %v2012 = vadd.f32 %v1490, %v1946
    %v2013 = vadd.f32 %v1491, %v1949
    %v2014 = vadd.f32 %v1492, %v1954
    %v2015 = vadd.f32 %v1493, %v1957
    %v2016 = vadd.f32 %v1494, %v1962
    %v2017 = vadd.f32 %v1495, %v1965
    %v2018 = vadd.f32 %v1496, %v1970
    %v2019 = vadd.f32 %v1497, %v1973
    %v2020 = vadd.f32 %v1498, %v1978
    %v2021 = vadd.f32 %v1499, %v1981
    %v2022 = vadd.f32 %v1500, %v1986
    %v2023 = vadd.f32 %v1501, %v1989
    %v2024 = vld [vmem:[%s1171] sm:$0xe]
    %v2025 = vld [vmem:[%s1171 + $0xc] sm:$0xe]
    %v2026 = vld [vmem:[%s1171 + $0x18] sm:$0xe]
    %v2027 = vld [vmem:[%s1171 + $0x24] sm:$0xe]
    %v2028 = vld [vmem:[%s1171 + $0x30] sm:$0xe]
    %v2029 = vld [vmem:[%s1171 + $0x3c] sm:$0xe]
    %v2030 = vld [vmem:[%s1171 + $0x48] sm:$0xe]
    %v2031 = vld [vmem:[%s1171 + $0x54] sm:$0xe]
    %v2032 = vld [vmem:[%s1171 + $0x60] sm:$0xe]
    %v2033 = vld [vmem:[%s1171 + $0x6c] sm:$0xe]
    %v2034 = vld [vmem:[%s1171 + $0x78] sm:$0xe]
    %v2035 = vld [vmem:[%s1171 + $0x84] sm:$0xe]
    %v2036 = vld [vmem:[%s1171 + $0x90] sm:$0xe]
    %v2037 = vld [vmem:[%s1171 + $0x9c] sm:$0xe]
    %v2038 = vld [vmem:[%s1171 + $0xa8] sm:$0xe]
    %v2039 = vld [vmem:[%s1171 + $0xb4] sm:$0xe]
    %v2040 = vunpack.c.l.bf16 %v2024
    %v2041 = vunpack.c.l.bf16 %v2025
    %v2042 = vunpack.c.l.bf16 %v2026
    %v2043 = vunpack.c.l.bf16 %v2027
    %v2044 = vunpack.c.l.bf16 %v2028
    %v2045 = vunpack.c.l.bf16 %v2029
    %v2046 = vunpack.c.l.bf16 %v2030
    %v2047 = vunpack.c.l.bf16 %v2031
    %v2048 = vunpack.c.l.bf16 %v2032
    %v2049 = vunpack.c.l.bf16 %v2033
    %v2050 = vunpack.c.l.bf16 %v2034
    %v2051 = vunpack.c.l.bf16 %v2035
    %v2052 = vunpack.c.l.bf16 %v2036
    %v2053 = vunpack.c.l.bf16 %v2037
    %v2054 = vunpack.c.l.bf16 %v2038
    %v2055 = vunpack.c.l.bf16 %v2039
    %v2072 = vrot.slane %v2040, 2
    %v2073 = vrot.slane %v1551, 2
    %v2074 = vsel %vm792, %v2072, %v2073
    %v2075 = vrot.slane %v1552, 2
    %v2076 = vsel %vm792, %v2073, %v2075
    %v2077 = vrot.slane %v2041, 2
    %v2078 = vrot.slane %v1554, 2
    %v2079 = vsel %vm792, %v2077, %v2078
    %v2080 = vrot.slane %v1555, 2
    %v2081 = vsel %vm792, %v2078, %v2080
    %v2082 = vrot.slane %v2042, 2
    %v2083 = vrot.slane %v1557, 2
    %v2084 = vsel %vm792, %v2082, %v2083
    %v2085 = vrot.slane %v1558, 2
    %v2086 = vsel %vm792, %v2083, %v2085
    %v2087 = vrot.slane %v2043, 2
    %v2088 = vrot.slane %v1560, 2
    %v2089 = vsel %vm792, %v2087, %v2088
    %v2090 = vrot.slane %v1561, 2
    %v2091 = vsel %vm792, %v2088, %v2090
    %v2092 = vrot.slane %v2044, 2
    %v2093 = vrot.slane %v1563, 2
    %v2094 = vsel %vm792, %v2092, %v2093
    %v2095 = vrot.slane %v1564, 2
    %v2096 = vsel %vm792, %v2093, %v2095
    %v2097 = vrot.slane %v2045, 2
    %v2098 = vrot.slane %v1566, 2
    %v2099 = vsel %vm792, %v2097, %v2098
    %v2100 = vrot.slane %v1567, 2
    %v2101 = vsel %vm792, %v2098, %v2100
    %v2102 = vrot.slane %v2046, 2
    %v2103 = vrot.slane %v1569, 2
    %v2104 = vsel %vm792, %v2102, %v2103
    %v2105 = vrot.slane %v1570, 2
    %v2106 = vsel %vm792, %v2103, %v2105
    %v2107 = vrot.slane %v2047, 2
    %v2108 = vrot.slane %v1572, 2
    %v2109 = vsel %vm792, %v2107, %v2108
    %v2110 = vrot.slane %v1573, 2
    %v2111 = vsel %vm792, %v2108, %v2110
    %v2112 = vrot.slane %v2048, 2
    %v2113 = vrot.slane %v1575, 2
    %v2114 = vsel %vm792, %v2112, %v2113
    %v2115 = vrot.slane %v1576, 2
    %v2116 = vsel %vm792, %v2113, %v2115
    %v2117 = vrot.slane %v2049, 2
    %v2118 = vrot.slane %v1578, 2
    %v2119 = vsel %vm792, %v2117, %v2118
    %v2120 = vrot.slane %v1579, 2
    %v2121 = vsel %vm792, %v2118, %v2120
    %v2122 = vrot.slane %v2050, 2
    %v2123 = vrot.slane %v1581, 2
    %v2124 = vsel %vm792, %v2122, %v2123
    %v2125 = vrot.slane %v1582, 2
    %v2126 = vsel %vm792, %v2123, %v2125
    %v2127 = vrot.slane %v2051, 2
    %v2128 = vrot.slane %v1584, 2
    %v2129 = vsel %vm792, %v2127, %v2128
    %v2130 = vrot.slane %v1585, 2
    %v2131 = vsel %vm792, %v2128, %v2130
    %v2132 = vrot.slane %v2052, 2
    %v2133 = vrot.slane %v1587, 2
    %v2134 = vsel %vm792, %v2132, %v2133
    %v2135 = vrot.slane %v1588, 2
    %v2136 = vsel %vm792, %v2133, %v2135
    %v2137 = vrot.slane %v2053, 2
    %v2138 = vrot.slane %v1590, 2
    %v2139 = vsel %vm792, %v2137, %v2138
    %v2140 = vrot.slane %v1591, 2
    %v2141 = vsel %vm792, %v2138, %v2140
    %v2142 = vrot.slane %v2054, 2
    %v2143 = vrot.slane %v1593, 2
    %v2144 = vsel %vm792, %v2142, %v2143
    %v2145 = vrot.slane %v1594, 2
    %v2146 = vsel %vm792, %v2143, %v2145
    %v2147 = vrot.slane %v2055, 2
    %v2148 = vrot.slane %v1596, 2
    %v2149 = vsel %vm792, %v2147, %v2148
    %v2150 = vrot.slane %v1597, 2
    %v2151 = vsel %vm792, %v2148, %v2150
    %v2184 = vpack.c.bf16 %v2076, %v2074
    %v2185 = vpack.c.bf16 %v2081, %v2079
    %v2186 = vpack.c.bf16 %v2086, %v2084
    %v2187 = vpack.c.bf16 %v2091, %v2089
    %v2188 = vpack.c.bf16 %v2096, %v2094
    %v2189 = vpack.c.bf16 %v2101, %v2099
    %v2190 = vpack.c.bf16 %v2106, %v2104
    %v2191 = vpack.c.bf16 %v2111, %v2109
    %v2192 = vpack.c.bf16 %v2116, %v2114
    %v2193 = vpack.c.bf16 %v2121, %v2119
    %v2194 = vpack.c.bf16 %v2126, %v2124
    %v2195 = vpack.c.bf16 %v2131, %v2129
    %v2196 = vpack.c.bf16 %v2136, %v2134
    %v2197 = vpack.c.bf16 %v2141, %v2139
    %v2198 = vpack.c.bf16 %v2146, %v2144
    %v2199 = vpack.c.bf16 %v2151, %v2149
    %s2200 = scalar_lea.vmem %s1, 40
    %v2201 = vld [vmem:[%s2200] sm:$0xf]
    %v2202 = vld [vmem:[%s2200 + $0x4] sm:$0xf]
    %v2205 = vunpack.c.l.b16 %v2201
    %v2206 = vunpack.c.l.b16 %v2202
    %v2207 = vpack.c.b16 %v2206, %v2205
    %v2210 = vsel %vm319, %v2184, 0
    %v2213 = vsel %vm319, %v2185, 0
    %v2216 = vsel %vm319, %v2186, 0
    %v2219 = vsel %vm319, %v2187, 0
    %v2222 = vsel %vm319, %v2188, 0
    %v2225 = vsel %vm319, %v2189, 0
    %v2228 = vsel %vm319, %v2190, 0
    %v2231 = vsel %vm319, %v2191, 0
    %v2234 = vsel %vm319, %v2192, 0
    %v2237 = vsel %vm319, %v2193, 0
    %v2240 = vsel %vm319, %v2194, 0
    %v2243 = vsel %vm319, %v2195, 0
    %v2246 = vsel %vm319, %v2196, 0
    %v2249 = vsel %vm319, %v2197, 0
    %v2252 = vsel %vm319, %v2198, 0
    %v2255 = vsel %vm319, %v2199, 0
    %2257 = vmatprep.subr.bf16.mxu0 0
    %2258 = vmatpush1.bf16.msra.mxu0 %v2207
    %2259 = vmatprep.subr.bf16.mxu0 0
    %2260 = vmatpush1.bf16.msra.mxu0 0
    %2261 = vmatprep.subr.bf16.mxu0 0
    %2262 = vmatpush1.bf16.msra.mxu0 0
    %2263 = vmatprep.subr.bf16.mxu0 0
    %2264 = vmatpush1.bf16.msra.mxu0 0
    %2265 = vmatprep.subr.bf16.mxu0 0
    %2266 = vmatpush1.bf16.msra.mxu0 0
    %2267 = vmatprep.subr.bf16.mxu0 0
    %2268 = vmatpush1.bf16.msra.mxu0 0
    %2269 = vmatprep.subr.bf16.mxu0 0
    %2270 = vmatpush1.bf16.msra.mxu0 0
    %2271 = vmatprep.subr.bf16.mxu0 0
    %2272 = vmatpush1.bf16.msra.mxu0 0
    %2273 = vmatprep.subr.bf16.mxu0 0
    %2274 = vmatpush1.bf16.msra.mxu0 0
    %2275 = vmatprep.subr.bf16.mxu0 0
    %2276 = vmatpush1.bf16.msra.mxu0 0
    %2277 = vmatprep.subr.bf16.mxu0 0
    %2278 = vmatpush1.bf16.msra.mxu0 0
    %2279 = vmatprep.subr.bf16.mxu0 0
    %2280 = vmatpush1.bf16.msra.mxu0 0
    %2281 = vmatprep.subr.bf16.mxu0 0
    %2282 = vmatpush1.bf16.msra.mxu0 0
    %2283 = vmatprep.subr.bf16.mxu0 0
    %2284 = vmatpush1.bf16.msra.mxu0 0
    %2285 = vmatprep.subr.bf16.mxu0 0
    %2286 = vmatpush1.bf16.msra.mxu0 0
    %2287 = vmatprep.subr.bf16.mxu0 0
    %2288 = vmatpush1.bf16.msra.mxu0 0
    %2289 = vmatprep.mubr.bf16.mxu0 0
    %2290 = vmatmul.mubr.bf16.gmra.mrb[0].mxu0 %v2210
    %v2291 = vpop.f32.mrb[0].mxu0
    %v2292 = vadd.f32 0.0, %v2291
    %v2293 = vpop.f32.mrb[0].mxu0
    %v2294 = vpop.f32.mrb[0].mxu0
    %v2295 = vadd.f32 0.0, %v2294
    %v2296 = vpop.f32.mrb[0].mxu0
    %2297 = vmatprep.mubr.bf16.mxu0 0
    %2298 = vmatmul.mubr.bf16.gmra.mrb[0].mxu0 %v2213
    %v2299 = vpop.f32.mrb[0].mxu0
    %v2300 = vadd.f32 0.0, %v2299
    %v2301 = vpop.f32.mrb[0].mxu0
    %v2302 = vpop.f32.mrb[0].mxu0
    %v2303 = vadd.f32 0.0, %v2302
    %v2304 = vpop.f32.mrb[0].mxu0
    %2305 = vmatprep.mubr.bf16.mxu0 0
    %2306 = vmatmul.mubr.bf16.gmra.mrb[0].mxu0 %v2216
    %v2307 = vpop.f32.mrb[0].mxu0
    %v2308 = vadd.f32 0.0, %v2307
    %v2309 = vpop.f32.mrb[0].mxu0
    %v2310 = vpop.f32.mrb[0].mxu0
    %v2311 = vadd.f32 0.0, %v2310
    %v2312 = vpop.f32.mrb[0].mxu0
    %2313 = vmatprep.mubr.bf16.mxu0 0
    %2314 = vmatmul.mubr.bf16.gmra.mrb[0].mxu0 %v2219
    %v2315 = vpop.f32.mrb[0].mxu0
    %v2316 = vadd.f32 0.0, %v2315
    %v2317 = vpop.f32.mrb[0].mxu0
    %v2318 = vpop.f32.mrb[0].mxu0
    %v2319 = vadd.f32 0.0, %v2318
    %v2320 = vpop.f32.mrb[0].mxu0
    %2321 = vmatprep.mubr.bf16.mxu0 0
    %2322 = vmatmul.mubr.bf16.gmra.mrb[0].mxu0 %v2222
    %v2323 = vpop.f32.mrb[0].mxu0
    %v2324 = vadd.f32 0.0, %v2323
    %v2325 = vpop.f32.mrb[0].mxu0
    %v2326 = vpop.f32.mrb[0].mxu0
    %v2327 = vadd.f32 0.0, %v2326
    %v2328 = vpop.f32.mrb[0].mxu0
    %2329 = vmatprep.mubr.bf16.mxu0 0
    %2330 = vmatmul.mubr.bf16.gmra.mrb[0].mxu0 %v2225
    %v2331 = vpop.f32.mrb[0].mxu0
    %v2332 = vadd.f32 0.0, %v2331
    %v2333 = vpop.f32.mrb[0].mxu0
    %v2334 = vpop.f32.mrb[0].mxu0
    %v2335 = vadd.f32 0.0, %v2334
    %v2336 = vpop.f32.mrb[0].mxu0
    %2337 = vmatprep.mubr.bf16.mxu0 0
    %2338 = vmatmul.mubr.bf16.gmra.mrb[0].mxu0 %v2228
    %v2339 = vpop.f32.mrb[0].mxu0
    %v2340 = vadd.f32 0.0, %v2339
    %v2341 = vpop.f32.mrb[0].mxu0
    %v2342 = vpop.f32.mrb[0].mxu0
    %v2343 = vadd.f32 0.0, %v2342
    %v2344 = vpop.f32.mrb[0].mxu0
    %2345 = vmatprep.mubr.bf16.mxu0 0
    %2346 = vmatmul.mubr.bf16.gmra.mrb[0].mxu0 %v2231
    %v2347 = vpop.f32.mrb[0].mxu0
    %v2348 = vadd.f32 0.0, %v2347
    %v2349 = vpop.f32.mrb[0].mxu0
    %v2350 = vpop.f32.mrb[0].mxu0
    %v2351 = vadd.f32 0.0, %v2350
    %v2352 = vpop.f32.mrb[0].mxu0
    %2353 = vmatprep.mubr.bf16.mxu0 0
    %2354 = vmatmul.mubr.bf16.gmra.mrb[0].mxu0 %v2234
    %v2355 = vpop.f32.mrb[0].mxu0
    %v2356 = vadd.f32 0.0, %v2355
    %v2357 = vpop.f32.mrb[0].mxu0
    %v2358 = vpop.f32.mrb[0].mxu0
    %v2359 = vadd.f32 0.0, %v2358
    %v2360 = vpop.f32.mrb[0].mxu0
    %2361 = vmatprep.mubr.bf16.mxu0 0
    %2362 = vmatmul.mubr.bf16.gmra.mrb[0].mxu0 %v2237
    %v2363 = vpop.f32.mrb[0].mxu0
    %v2364 = vadd.f32 0.0, %v2363
    %v2365 = vpop.f32.mrb[0].mxu0
    %v2366 = vpop.f32.mrb[0].mxu0
    %v2367 = vadd.f32 0.0, %v2366
    %v2368 = vpop.f32.mrb[0].mxu0
    %2369 = vmatprep.mubr.bf16.mxu0 0
    %2370 = vmatmul.mubr.bf16.gmra.mrb[0].mxu0 %v2240
    %v2371 = vpop.f32.mrb[0].mxu0
    %v2372 = vadd.f32 0.0, %v2371
    %v2373 = vpop.f32.mrb[0].mxu0
    %v2374 = vpop.f32.mrb[0].mxu0
    %v2375 = vadd.f32 0.0, %v2374
    %v2376 = vpop.f32.mrb[0].mxu0
    %2377 = vmatprep.mubr.bf16.mxu0 0
    %2378 = vmatmul.mubr.bf16.gmra.mrb[0].mxu0 %v2243
    %v2379 = vpop.f32.mrb[0].mxu0
    %v2380 = vadd.f32 0.0, %v2379
    %v2381 = vpop.f32.mrb[0].mxu0
    %v2382 = vpop.f32.mrb[0].mxu0
    %v2383 = vadd.f32 0.0, %v2382
    %v2384 = vpop.f32.mrb[0].mxu0
    %2385 = vmatprep.mubr.bf16.mxu0 0
    %2386 = vmatmul.mubr.bf16.gmra.mrb[0].mxu0 %v2246
    %v2387 = vpop.f32.mrb[0].mxu0
    %v2388 = vadd.f32 0.0, %v2387
    %v2389 = vpop.f32.mrb[0].mxu0
    %v2390 = vpop.f32.mrb[0].mxu0
    %v2391 = vadd.f32 0.0, %v2390
    %v2392 = vpop.f32.mrb[0].mxu0
    %2393 = vmatprep.mubr.bf16.mxu0 0
    %2394 = vmatmul.mubr.bf16.gmra.mrb[0].mxu0 %v2249
    %v2395 = vpop.f32.mrb[0].mxu0
    %v2396 = vadd.f32 0.0, %v2395
    %v2397 = vpop.f32.mrb[0].mxu0
    %v2398 = vpop.f32.mrb[0].mxu0
    %v2399 = vadd.f32 0.0, %v2398
    %v2400 = vpop.f32.mrb[0].mxu0
    %2401 = vmatprep.mubr.bf16.mxu0 0
    %2402 = vmatmul.mubr.bf16.gmra.mrb[0].mxu0 %v2252
    %v2403 = vpop.f32.mrb[0].mxu0
    %v2404 = vadd.f32 0.0, %v2403
    %v2405 = vpop.f32.mrb[0].mxu0
    %v2406 = vpop.f32.mrb[0].mxu0
    %v2407 = vadd.f32 0.0, %v2406
    %v2408 = vpop.f32.mrb[0].mxu0
    %2409 = vmatprep.mubr.bf16.mxu0 0
    %2410 = vmatmul.mubr.bf16.gmra.mrb[0].mxu0 %v2255
    %v2411 = vpop.f32.mrb[0].mxu0
    %v2412 = vadd.f32 0.0, %v2411
    %v2413 = vpop.f32.mrb[0].mxu0
    %v2414 = vpop.f32.mrb[0].mxu0
    %v2415 = vadd.f32 0.0, %v2414
    %v2416 = vpop.f32.mrb[0].mxu0
    %2417 = vdwg.mxu0
    %v2418 = vadd.f32 %v1992, %v2292
    %v2419 = vadd.f32 %v1993, %v2295
    %v2420 = vadd.f32 %v1994, %v2300
    %v2421 = vadd.f32 %v1995, %v2303
    %v2422 = vadd.f32 %v1996, %v2308
    %v2423 = vadd.f32 %v1997, %v2311
    %v2424 = vadd.f32 %v1998, %v2316
    %v2425 = vadd.f32 %v1999, %v2319
    %v2426 = vadd.f32 %v2000, %v2324
    %v2427 = vadd.f32 %v2001, %v2327
    %v2428 = vadd.f32 %v2002, %v2332
    %v2429 = vadd.f32 %v2003, %v2335
    %v2430 = vadd.f32 %v2004, %v2340
    %v2431 = vadd.f32 %v2005, %v2343
    %v2432 = vadd.f32 %v2006, %v2348
    %v2433 = vadd.f32 %v2007, %v2351
    %v2434 = vadd.f32 %v2008, %v2356
    %v2435 = vadd.f32 %v2009, %v2359
    %v2436 = vadd.f32 %v2010, %v2364
    %v2437 = vadd.f32 %v2011, %v2367
    %v2438 = vadd.f32 %v2012, %v2372
    %v2439 = vadd.f32 %v2013, %v2375
    %v2440 = vadd.f32 %v2014, %v2380
    %v2441 = vadd.f32 %v2015, %v2383
    %v2442 = vadd.f32 %v2016, %v2388
    %v2443 = vadd.f32 %v2017, %v2391
    %v2444 = vadd.f32 %v2018, %v2396
    %v2445 = vadd.f32 %v2019, %v2399
    %v2446 = vadd.f32 %v2020, %v2404
    %v2447 = vadd.f32 %v2021, %v2407
    %v2448 = vadd.f32 %v2022, %v2412
    %v2449 = vadd.f32 %v2023, %v2415
    %s2450 = scalar_lea.vmem %s0, 24
    %v2451 = vld [vmem:[%s2450] sm:$0xf]
    %v2452 = vld [vmem:[%s2450 + $0x4] sm:$0xf]
    %v2453 = vld [vmem:[%s2450 + $0xc] sm:$0xf]
    %v2454 = vld [vmem:[%s2450 + $0x10] sm:$0xf]
    %v2455 = vld [vmem:[%s2450 + $0x18] sm:$0xf]
    %v2456 = vld [vmem:[%s2450 + $0x1c] sm:$0xf]
    %v2457 = vld [vmem:[%s2450 + $0x24] sm:$0xf]
    %v2458 = vld [vmem:[%s2450 + $0x28] sm:$0xf]
    %v2459 = vld [vmem:[%s2450 + $0x30] sm:$0xf]
    %v2460 = vld [vmem:[%s2450 + $0x34] sm:$0xf]
    %v2461 = vld [vmem:[%s2450 + $0x3c] sm:$0xf]
    %v2462 = vld [vmem:[%s2450 + $0x40] sm:$0xf]
    %v2463 = vld [vmem:[%s2450 + $0x48] sm:$0xf]
    %v2464 = vld [vmem:[%s2450 + $0x4c] sm:$0xf]
    %v2465 = vld [vmem:[%s2450 + $0x54] sm:$0xf]
    %v2466 = vld [vmem:[%s2450 + $0x58] sm:$0xf]
    %v2467 = vld [vmem:[%s2450 + $0x60] sm:$0xf]
    %v2468 = vld [vmem:[%s2450 + $0x64] sm:$0xf]
    %v2469 = vld [vmem:[%s2450 + $0x6c] sm:$0xf]
    %v2470 = vld [vmem:[%s2450 + $0x70] sm:$0xf]
    %v2471 = vld [vmem:[%s2450 + $0x78] sm:$0xf]
    %v2472 = vld [vmem:[%s2450 + $0x7c] sm:$0xf]
    %v2473 = vld [vmem:[%s2450 + $0x84] sm:$0xf]
    %v2474 = vld [vmem:[%s2450 + $0x88] sm:$0xf]
    %v2475 = vld [vmem:[%s2450 + $0x90] sm:$0xf]
    %v2476 = vld [vmem:[%s2450 + $0x94] sm:$0xf]
    %v2477 = vld [vmem:[%s2450 + $0x9c] sm:$0xf]
    %v2478 = vld [vmem:[%s2450 + $0xa0] sm:$0xf]
    %v2479 = vld [vmem:[%s2450 + $0xa8] sm:$0xf]
    %v2480 = vld [vmem:[%s2450 + $0xac] sm:$0xf]
    %v2481 = vld [vmem:[%s2450 + $0xb4] sm:$0xf]
    %v2482 = vld [vmem:[%s2450 + $0xb8] sm:$0xf]
    %v2483 = vunpack.c.l.bf16 %v2451
    %v2484 = vunpack.c.l.bf16 %v2452
    %v2485 = vunpack.c.l.bf16 %v2453
    %v2486 = vunpack.c.l.bf16 %v2454
    %v2487 = vunpack.c.l.bf16 %v2455
    %v2488 = vunpack.c.l.bf16 %v2456
    %v2489 = vunpack.c.l.bf16 %v2457
    %v2490 = vunpack.c.l.bf16 %v2458
    %v2491 = vunpack.c.l.bf16 %v2459
    %v2492 = vunpack.c.l.bf16 %v2460
    %v2493 = vunpack.c.l.bf16 %v2461
    %v2494 = vunpack.c.l.bf16 %v2462
    %v2495 = vunpack.c.l.bf16 %v2463
    %v2496 = vunpack.c.l.bf16 %v2464
    %v2497 = vunpack.c.l.bf16 %v2465
    %v2498 = vunpack.c.l.bf16 %v2466
    %v2499 = vunpack.c.l.bf16 %v2467
    %v2500 = vunpack.c.l.bf16 %v2468
    %v2501 = vunpack.c.l.bf16 %v2469
    %v2502 = vunpack.c.l.bf16 %v2470
    %v2503 = vunpack.c.l.bf16 %v2471
    %v2504 = vunpack.c.l.bf16 %v2472
    %v2505 = vunpack.c.l.bf16 %v2473
    %v2506 = vunpack.c.l.bf16 %v2474
    %v2507 = vunpack.c.l.bf16 %v2475
    %v2508 = vunpack.c.l.bf16 %v2476
    %v2509 = vunpack.c.l.bf16 %v2477
    %v2510 = vunpack.c.l.bf16 %v2478
    %v2511 = vunpack.c.l.bf16 %v2479
    %v2512 = vunpack.c.l.bf16 %v2480
    %v2513 = vunpack.c.l.bf16 %v2481
    %v2514 = vunpack.c.l.bf16 %v2482
    %v2515 = vpack.c.bf16 %v2484, %v2483
    %v2516 = vpack.c.bf16 %v2486, %v2485
    %v2517 = vpack.c.bf16 %v2488, %v2487
    %v2518 = vpack.c.bf16 %v2490, %v2489
    %v2519 = vpack.c.bf16 %v2492, %v2491
    %v2520 = vpack.c.bf16 %v2494, %v2493
    %v2521 = vpack.c.bf16 %v2496, %v2495
    %v2522 = vpack.c.bf16 %v2498, %v2497
    %v2523 = vpack.c.bf16 %v2500, %v2499
    %v2524 = vpack.c.bf16 %v2502, %v2501
    %v2525 = vpack.c.bf16 %v2504, %v2503
    %v2526 = vpack.c.bf16 %v2506, %v2505
    %v2527 = vpack.c.bf16 %v2508, %v2507
    %v2528 = vpack.c.bf16 %v2510, %v2509
    %v2529 = vpack.c.bf16 %v2512, %v2511
    %v2530 = vpack.c.bf16 %v2514, %v2513
    %s2531 = scalar_lea.vmem %s1, 48
    %v2532 = vld [vmem:[%s2531] sm:$0xf]
    %v2533 = vld [vmem:[%s2531 + $0x4] sm:$0xf]
    %v2536 = vunpack.c.l.b16 %v2532
    %v2537 = vunpack.c.l.b16 %v2533
    %v2538 = vpack.c.b16 %v2537, %v2536
    %v2541 = vsel %vm319, %v2515, 0
    %v2544 = vsel %vm319, %v2516, 0
    %v2547 = vsel %vm319, %v2517, 0
    %v2550 = vsel %vm319, %v2518, 0
    %v2553 = vsel %vm319, %v2519, 0
    %v2556 = vsel %vm319, %v2520, 0
    %v2559 = vsel %vm319, %v2521, 0
    %v2562 = vsel %vm319, %v2522, 0
    %v2565 = vsel %vm319, %v2523, 0
    %v2568 = vsel %vm319, %v2524, 0
    %v2571 = vsel %vm319, %v2525, 0
    %v2574 = vsel %vm319, %v2526, 0
    %v2577 = vsel %vm319, %v2527, 0
    %v2580 = vsel %vm319, %v2528, 0
    %v2583 = vsel %vm319, %v2529, 0
    %v2586 = vsel %vm319, %v2530, 0
    %2588 = vmatprep.subr.bf16.mxu0 0
    %2589 = vmatpush1.bf16.msra.mxu0 %v2538
    %2590 = vmatprep.subr.bf16.mxu0 0
    %2591 = vmatpush1.bf16.msra.mxu0 0
    %2592 = vmatprep.subr.bf16.mxu0 0
    %2593 = vmatpush1.bf16.msra.mxu0 0
    %2594 = vmatprep.subr.bf16.mxu0 0
    %2595 = vmatpush1.bf16.msra.mxu0 0
    %2596 = vmatprep.subr.bf16.mxu0 0
    %2597 = vmatpush1.bf16.msra.mxu0 0
    %2598 = vmatprep.subr.bf16.mxu0 0
    %2599 = vmatpush1.bf16.msra.mxu0 0
    %2600 = vmatprep.subr.bf16.mxu0 0
    %2601 = vmatpush1.bf16.msra.mxu0 0
    %2602 = vmatprep.subr.bf16.mxu0 0
    %2603 = vmatpush1.bf16.msra.mxu0 0
    %2604 = vmatprep.subr.bf16.mxu0 0
    %2605 = vmatpush1.bf16.msra.mxu0 0
    %2606 = vmatprep.subr.bf16.mxu0 0
    %2607 = vmatpush1.bf16.msra.mxu0 0
    %2608 = vmatprep.subr.bf16.mxu0 0
    %2609 = vmatpush1.bf16.msra.mxu0 0
    %2610 = vmatprep.subr.bf16.mxu0 0
    %2611 = vmatpush1.bf16.msra.mxu0 0
    %2612 = vmatprep.subr.bf16.mxu0 0
    %2613 = vmatpush1.bf16.msra.mxu0 0
    %2614 = vmatprep.subr.bf16.mxu0 0
    %2615 = vmatpush1.bf16.msra.mxu0 0
    %2616 = vmatprep.subr.bf16.mxu0 0
    %2617 = vmatpush1.bf16.msra.mxu0 0
    %2618 = vmatprep.subr.bf16.mxu0 0
    %2619 = vmatpush1.bf16.msra.mxu0 0
    %2620 = vmatprep.mubr.bf16.mxu0 0
    %2621 = vmatmul.mubr.bf16.gmra.mrb[0].mxu0 %v2541
    %v2622 = vpop.f32.mrb[0].mxu0
    %v2623 = vadd.f32 0.0, %v2622
    %v2624 = vpop.f32.mrb[0].mxu0
    %v2625 = vpop.f32.mrb[0].mxu0
    %v2626 = vadd.f32 0.0, %v2625
    %v2627 = vpop.f32.mrb[0].mxu0
    %2628 = vmatprep.mubr.bf16.mxu0 0
    %2629 = vmatmul.mubr.bf16.gmra.mrb[0].mxu0 %v2544
    %v2630 = vpop.f32.mrb[0].mxu0
    %v2631 = vadd.f32 0.0, %v2630
    %v2632 = vpop.f32.mrb[0].mxu0
    %v2633 = vpop.f32.mrb[0].mxu0
    %v2634 = vadd.f32 0.0, %v2633
    %v2635 = vpop.f32.mrb[0].mxu0
    %2636 = vmatprep.mubr.bf16.mxu0 0
    %2637 = vmatmul.mubr.bf16.gmra.mrb[0].mxu0 %v2547
    %v2638 = vpop.f32.mrb[0].mxu0
    %v2639 = vadd.f32 0.0, %v2638
    %v2640 = vpop.f32.mrb[0].mxu0
    %v2641 = vpop.f32.mrb[0].mxu0
    %v2642 = vadd.f32 0.0, %v2641
    %v2643 = vpop.f32.mrb[0].mxu0
    %2644 = vmatprep.mubr.bf16.mxu0 0
    %2645 = vmatmul.mubr.bf16.gmra.mrb[0].mxu0 %v2550
    %v2646 = vpop.f32.mrb[0].mxu0
    %v2647 = vadd.f32 0.0, %v2646
    %v2648 = vpop.f32.mrb[0].mxu0
    %v2649 = vpop.f32.mrb[0].mxu0
    %v2650 = vadd.f32 0.0, %v2649
    %v2651 = vpop.f32.mrb[0].mxu0
    %2652 = vmatprep.mubr.bf16.mxu0 0
    %2653 = vmatmul.mubr.bf16.gmra.mrb[0].mxu0 %v2553
    %v2654 = vpop.f32.mrb[0].mxu0
    %v2655 = vadd.f32 0.0, %v2654
    %v2656 = vpop.f32.mrb[0].mxu0
    %v2657 = vpop.f32.mrb[0].mxu0
    %v2658 = vadd.f32 0.0, %v2657
    %v2659 = vpop.f32.mrb[0].mxu0
    %2660 = vmatprep.mubr.bf16.mxu0 0
    %2661 = vmatmul.mubr.bf16.gmra.mrb[0].mxu0 %v2556
    %v2662 = vpop.f32.mrb[0].mxu0
    %v2663 = vadd.f32 0.0, %v2662
    %v2664 = vpop.f32.mrb[0].mxu0
    %v2665 = vpop.f32.mrb[0].mxu0
    %v2666 = vadd.f32 0.0, %v2665
    %v2667 = vpop.f32.mrb[0].mxu0
    %2668 = vmatprep.mubr.bf16.mxu0 0
    %2669 = vmatmul.mubr.bf16.gmra.mrb[0].mxu0 %v2559
    %v2670 = vpop.f32.mrb[0].mxu0
    %v2671 = vadd.f32 0.0, %v2670
    %v2672 = vpop.f32.mrb[0].mxu0
    %v2673 = vpop.f32.mrb[0].mxu0
    %v2674 = vadd.f32 0.0, %v2673
    %v2675 = vpop.f32.mrb[0].mxu0
    %2676 = vmatprep.mubr.bf16.mxu0 0
    %2677 = vmatmul.mubr.bf16.gmra.mrb[0].mxu0 %v2562
    %v2678 = vpop.f32.mrb[0].mxu0
    %v2679 = vadd.f32 0.0, %v2678
    %v2680 = vpop.f32.mrb[0].mxu0
    %v2681 = vpop.f32.mrb[0].mxu0
    %v2682 = vadd.f32 0.0, %v2681
    %v2683 = vpop.f32.mrb[0].mxu0
    %2684 = vmatprep.mubr.bf16.mxu0 0
    %2685 = vmatmul.mubr.bf16.gmra.mrb[0].mxu0 %v2565
    %v2686 = vpop.f32.mrb[0].mxu0
    %v2687 = vadd.f32 0.0, %v2686
    %v2688 = vpop.f32.mrb[0].mxu0
    %v2689 = vpop.f32.mrb[0].mxu0
    %v2690 = vadd.f32 0.0, %v2689
    %v2691 = vpop.f32.mrb[0].mxu0
    %2692 = vmatprep.mubr.bf16.mxu0 0
    %2693 = vmatmul.mubr.bf16.gmra.mrb[0].mxu0 %v2568
    %v2694 = vpop.f32.mrb[0].mxu0
    %v2695 = vadd.f32 0.0, %v2694
    %v2696 = vpop.f32.mrb[0].mxu0
    %v2697 = vpop.f32.mrb[0].mxu0
    %v2698 = vadd.f32 0.0, %v2697
    %v2699 = vpop.f32.mrb[0].mxu0
    %2700 = vmatprep.mubr.bf16.mxu0 0
    %2701 = vmatmul.mubr.bf16.gmra.mrb[0].mxu0 %v2571
    %v2702 = vpop.f32.mrb[0].mxu0
    %v2703 = vadd.f32 0.0, %v2702
    %v2704 = vpop.f32.mrb[0].mxu0
    %v2705 = vpop.f32.mrb[0].mxu0
    %v2706 = vadd.f32 0.0, %v2705
    %v2707 = vpop.f32.mrb[0].mxu0
    %2708 = vmatprep.mubr.bf16.mxu0 0
    %2709 = vmatmul.mubr.bf16.gmra.mrb[0].mxu0 %v2574
    %v2710 = vpop.f32.mrb[0].mxu0
    %v2711 = vadd.f32 0.0, %v2710
    %v2712 = vpop.f32.mrb[0].mxu0
    %v2713 = vpop.f32.mrb[0].mxu0
    %v2714 = vadd.f32 0.0, %v2713
    %v2715 = vpop.f32.mrb[0].mxu0
    %2716 = vmatprep.mubr.bf16.mxu0 0
    %2717 = vmatmul.mubr.bf16.gmra.mrb[0].mxu0 %v2577
    %v2718 = vpop.f32.mrb[0].mxu0
    %v2719 = vadd.f32 0.0, %v2718
    %v2720 = vpop.f32.mrb[0].mxu0
    %v2721 = vpop.f32.mrb[0].mxu0
    %v2722 = vadd.f32 0.0, %v2721
    %v2723 = vpop.f32.mrb[0].mxu0
    %2724 = vmatprep.mubr.bf16.mxu0 0
    %2725 = vmatmul.mubr.bf16.gmra.mrb[0].mxu0 %v2580
    %v2726 = vpop.f32.mrb[0].mxu0
    %v2727 = vadd.f32 0.0, %v2726
    %v2728 = vpop.f32.mrb[0].mxu0
    %v2729 = vpop.f32.mrb[0].mxu0
    %v2730 = vadd.f32 0.0, %v2729
    %v2731 = vpop.f32.mrb[0].mxu0
    %2732 = vmatprep.mubr.bf16.mxu0 0
    %2733 = vmatmul.mubr.bf16.gmra.mrb[0].mxu0 %v2583
    %v2734 = vpop.f32.mrb[0].mxu0
    %v2735 = vadd.f32 0.0, %v2734
    %v2736 = vpop.f32.mrb[0].mxu0
    %v2737 = vpop.f32.mrb[0].mxu0
    %v2738 = vadd.f32 0.0, %v2737
    %v2739 = vpop.f32.mrb[0].mxu0
    %2740 = vmatprep.mubr.bf16.mxu0 0
    %2741 = vmatmul.mubr.bf16.gmra.mrb[0].mxu0 %v2586
    %v2742 = vpop.f32.mrb[0].mxu0
    %v2743 = vadd.f32 0.0, %v2742
    %v2744 = vpop.f32.mrb[0].mxu0
    %v2745 = vpop.f32.mrb[0].mxu0
    %v2746 = vadd.f32 0.0, %v2745
    %v2747 = vpop.f32.mrb[0].mxu0
    %2748 = vdwg.mxu0
    %v2749 = vadd.f32 %v2418, %v2623
    %v2750 = vadd.f32 %v2419, %v2626
    %v2751 = vadd.f32 %v2420, %v2631
    %v2752 = vadd.f32 %v2421, %v2634
    %v2753 = vadd.f32 %v2422, %v2639
    %v2754 = vadd.f32 %v2423, %v2642
    %v2755 = vadd.f32 %v2424, %v2647
    %v2756 = vadd.f32 %v2425, %v2650
    %v2757 = vadd.f32 %v2426, %v2655
    %v2758 = vadd.f32 %v2427, %v2658
    %v2759 = vadd.f32 %v2428, %v2663
    %v2760 = vadd.f32 %v2429, %v2666
    %v2761 = vadd.f32 %v2430, %v2671
    %v2762 = vadd.f32 %v2431, %v2674
    %v2763 = vadd.f32 %v2432, %v2679
    %v2764 = vadd.f32 %v2433, %v2682
    %v2765 = vadd.f32 %v2434, %v2687
    %v2766 = vadd.f32 %v2435, %v2690
    %v2767 = vadd.f32 %v2436, %v2695
    %v2768 = vadd.f32 %v2437, %v2698
    %v2769 = vadd.f32 %v2438, %v2703
    %v2770 = vadd.f32 %v2439, %v2706
    %v2771 = vadd.f32 %v2440, %v2711
    %v2772 = vadd.f32 %v2441, %v2714
    %v2773 = vadd.f32 %v2442, %v2719
    %v2774 = vadd.f32 %v2443, %v2722
    %v2775 = vadd.f32 %v2444, %v2727
    %v2776 = vadd.f32 %v2445, %v2730
    %v2777 = vadd.f32 %v2446, %v2735
    %v2778 = vadd.f32 %v2447, %v2738
    %v2779 = vadd.f32 %v2448, %v2743
    %v2780 = vadd.f32 %v2449, %v2746
    %v2781 = vld [vmem:[%s2450] sm:$0xf]
    %v2782 = vld [vmem:[%s2450 + $0x4] sm:$0xf]
    %v2783 = vld [vmem:[%s2450 + $0x8] sm:$0x1]
    %v2784 = vld [vmem:[%s2450 + $0xc] sm:$0xf]
    %v2785 = vld [vmem:[%s2450 + $0x10] sm:$0xf]
    %v2786 = vld [vmem:[%s2450 + $0x14] sm:$0x1]
    %v2787 = vld [vmem:[%s2450 + $0x18] sm:$0xf]
    %v2788 = vld [vmem:[%s2450 + $0x1c] sm:$0xf]
    %v2789 = vld [vmem:[%s2450 + $0x20] sm:$0x1]
    %v2790 = vld [vmem:[%s2450 + $0x24] sm:$0xf]
    %v2791 = vld [vmem:[%s2450 + $0x28] sm:$0xf]
    %v2792 = vld [vmem:[%s2450 + $0x2c] sm:$0x1]
    %v2793 = vld [vmem:[%s2450 + $0x30] sm:$0xf]
    %v2794 = vld [vmem:[%s2450 + $0x34] sm:$0xf]
    %v2795 = vld [vmem:[%s2450 + $0x38] sm:$0x1]
    %v2796 = vld [vmem:[%s2450 + $0x3c] sm:$0xf]
    %v2797 = vld [vmem:[%s2450 + $0x40] sm:$0xf]
    %v2798 = vld [vmem:[%s2450 + $0x44] sm:$0x1]
    %v2799 = vld [vmem:[%s2450 + $0x48] sm:$0xf]
    %v2800 = vld [vmem:[%s2450 + $0x4c] sm:$0xf]
    %v2801 = vld [vmem:[%s2450 + $0x50] sm:$0x1]
    %v2802 = vld [vmem:[%s2450 + $0x54] sm:$0xf]
    %v2803 = vld [vmem:[%s2450 + $0x58] sm:$0xf]
    %v2804 = vld [vmem:[%s2450 + $0x5c] sm:$0x1]
    %v2805 = vld [vmem:[%s2450 + $0x60] sm:$0xf]
    %v2806 = vld [vmem:[%s2450 + $0x64] sm:$0xf]
    %v2807 = vld [vmem:[%s2450 + $0x68] sm:$0x1]
    %v2808 = vld [vmem:[%s2450 + $0x6c] sm:$0xf]
    %v2809 = vld [vmem:[%s2450 + $0x70] sm:$0xf]
    %v2810 = vld [vmem:[%s2450 + $0x74] sm:$0x1]
    %v2811 = vld [vmem:[%s2450 + $0x78] sm:$0xf]
    %v2812 = vld [vmem:[%s2450 + $0x7c] sm:$0xf]
    %v2813 = vld [vmem:[%s2450 + $0x80] sm:$0x1]
    %v2814 = vld [vmem:[%s2450 + $0x84] sm:$0xf]
    %v2815 = vld [vmem:[%s2450 + $0x88] sm:$0xf]
    %v2816 = vld [vmem:[%s2450 + $0x8c] sm:$0x1]
    %v2817 = vld [vmem:[%s2450 + $0x90] sm:$0xf]
    %v2818 = vld [vmem:[%s2450 + $0x94] sm:$0xf]
    %v2819 = vld [vmem:[%s2450 + $0x98] sm:$0x1]
    %v2820 = vld [vmem:[%s2450 + $0x9c] sm:$0xf]
    %v2821 = vld [vmem:[%s2450 + $0xa0] sm:$0xf]
    %v2822 = vld [vmem:[%s2450 + $0xa4] sm:$0x1]
    %v2823 = vld [vmem:[%s2450 + $0xa8] sm:$0xf]
    %v2824 = vld [vmem:[%s2450 + $0xac] sm:$0xf]
    %v2825 = vld [vmem:[%s2450 + $0xb0] sm:$0x1]
    %v2826 = vld [vmem:[%s2450 + $0xb4] sm:$0xf]
    %v2827 = vld [vmem:[%s2450 + $0xb8] sm:$0xf]
    %v2828 = vld [vmem:[%s2450 + $0xbc] sm:$0x1]
    %v2829 = vunpack.c.l.bf16 %v2781
    %v2830 = vunpack.c.l.bf16 %v2782
    %v2831 = vunpack.c.l.bf16 %v2783
    %v2832 = vunpack.c.l.bf16 %v2784
    %v2833 = vunpack.c.l.bf16 %v2785
    %v2834 = vunpack.c.l.bf16 %v2786
    %v2835 = vunpack.c.l.bf16 %v2787
    %v2836 = vunpack.c.l.bf16 %v2788
    %v2837 = vunpack.c.l.bf16 %v2789
    %v2838 = vunpack.c.l.bf16 %v2790
    %v2839 = vunpack.c.l.bf16 %v2791
    %v2840 = vunpack.c.l.bf16 %v2792
    %v2841 = vunpack.c.l.bf16 %v2793
    %v2842 = vunpack.c.l.bf16 %v2794
    %v2843 = vunpack.c.l.bf16 %v2795
    %v2844 = vunpack.c.l.bf16 %v2796
    %v2845 = vunpack.c.l.bf16 %v2797
    %v2846 = vunpack.c.l.bf16 %v2798
    %v2847 = vunpack.c.l.bf16 %v2799
    %v2848 = vunpack.c.l.bf16 %v2800
    %v2849 = vunpack.c.l.bf16 %v2801
    %v2850 = vunpack.c.l.bf16 %v2802
    %v2851 = vunpack.c.l.bf16 %v2803
    %v2852 = vunpack.c.l.bf16 %v2804
    %v2853 = vunpack.c.l.bf16 %v2805
    %v2854 = vunpack.c.l.bf16 %v2806
    %v2855 = vunpack.c.l.bf16 %v2807
    %v2856 = vunpack.c.l.bf16 %v2808
    %v2857 = vunpack.c.l.bf16 %v2809
    %v2858 = vunpack.c.l.bf16 %v2810
    %v2859 = vunpack.c.l.bf16 %v2811
    %v2860 = vunpack.c.l.bf16 %v2812
    %v2861 = vunpack.c.l.bf16 %v2813
    %v2862 = vunpack.c.l.bf16 %v2814
    %v2863 = vunpack.c.l.bf16 %v2815
    %v2864 = vunpack.c.l.bf16 %v2816
    %v2865 = vunpack.c.l.bf16 %v2817
    %v2866 = vunpack.c.l.bf16 %v2818
    %v2867 = vunpack.c.l.bf16 %v2819
    %v2868 = vunpack.c.l.bf16 %v2820
    %v2869 = vunpack.c.l.bf16 %v2821
    %v2870 = vunpack.c.l.bf16 %v2822
    %v2871 = vunpack.c.l.bf16 %v2823
    %v2872 = vunpack.c.l.bf16 %v2824
    %v2873 = vunpack.c.l.bf16 %v2825
    %v2874 = vunpack.c.l.bf16 %v2826
    %v2875 = vunpack.c.l.bf16 %v2827
    %v2876 = vunpack.c.l.bf16 %v2828
    %v2925 = vrot.slane %v2829, 1
    %v2926 = vrot.slane %v2830, 1
    %v2927 = vsel %vm181, %v2925, %v2926
    %v2928 = vrot.slane %v2831, 1
    %v2929 = vsel %vm181, %v2926, %v2928
    %v2930 = vrot.slane %v2832, 1
    %v2931 = vrot.slane %v2833, 1
    %v2932 = vsel %vm181, %v2930, %v2931
    %v2933 = vrot.slane %v2834, 1
    %v2934 = vsel %vm181, %v2931, %v2933
    %v2935 = vrot.slane %v2835, 1
    %v2936 = vrot.slane %v2836, 1
    %v2937 = vsel %vm181, %v2935, %v2936
    %v2938 = vrot.slane %v2837, 1
    %v2939 = vsel %vm181, %v2936, %v2938
    %v2940 = vrot.slane %v2838, 1
    %v2941 = vrot.slane %v2839, 1
    %v2942 = vsel %vm181, %v2940, %v2941
    %v2943 = vrot.slane %v2840, 1
    %v2944 = vsel %vm181, %v2941, %v2943
    %v2945 = vrot.slane %v2841, 1
    %v2946 = vrot.slane %v2842, 1
    %v2947 = vsel %vm181, %v2945, %v2946
    %v2948 = vrot.slane %v2843, 1
    %v2949 = vsel %vm181, %v2946, %v2948
    %v2950 = vrot.slane %v2844, 1
    %v2951 = vrot.slane %v2845, 1
    %v2952 = vsel %vm181, %v2950, %v2951
    %v2953 = vrot.slane %v2846, 1
    %v2954 = vsel %vm181, %v2951, %v2953
    %v2955 = vrot.slane %v2847, 1
    %v2956 = vrot.slane %v2848, 1
    %v2957 = vsel %vm181, %v2955, %v2956
    %v2958 = vrot.slane %v2849, 1
    %v2959 = vsel %vm181, %v2956, %v2958
    %v2960 = vrot.slane %v2850, 1
    %v2961 = vrot.slane %v2851, 1
    %v2962 = vsel %vm181, %v2960, %v2961
    %v2963 = vrot.slane %v2852, 1
    %v2964 = vsel %vm181, %v2961, %v2963
    %v2965 = vrot.slane %v2853, 1
    %v2966 = vrot.slane %v2854, 1
    %v2967 = vsel %vm181, %v2965, %v2966
    %v2968 = vrot.slane %v2855, 1
    %v2969 = vsel %vm181, %v2966, %v2968
    %v2970 = vrot.slane %v2856, 1
    %v2971 = vrot.slane %v2857, 1
    %v2972 = vsel %vm181, %v2970, %v2971
    %v2973 = vrot.slane %v2858, 1
    %v2974 = vsel %vm181, %v2971, %v2973
    %v2975 = vrot.slane %v2859, 1
    %v2976 = vrot.slane %v2860, 1
    %v2977 = vsel %vm181, %v2975, %v2976
    %v2978 = vrot.slane %v2861, 1
    %v2979 = vsel %vm181, %v2976, %v2978
    %v2980 = vrot.slane %v2862, 1
    %v2981 = vrot.slane %v2863, 1
    %v2982 = vsel %vm181, %v2980, %v2981
    %v2983 = vrot.slane %v2864, 1
    %v2984 = vsel %vm181, %v2981, %v2983
    %v2985 = vrot.slane %v2865, 1
    %v2986 = vrot.slane %v2866, 1
    %v2987 = vsel %vm181, %v2985, %v2986
    %v2988 = vrot.slane %v2867, 1
    %v2989 = vsel %vm181, %v2986, %v2988
    %v2990 = vrot.slane %v2868, 1
    %v2991 = vrot.slane %v2869, 1
    %v2992 = vsel %vm181, %v2990, %v2991
    %v2993 = vrot.slane %v2870, 1
    %v2994 = vsel %vm181, %v2991, %v2993
    %v2995 = vrot.slane %v2871, 1
    %v2996 = vrot.slane %v2872, 1
    %v2997 = vsel %vm181, %v2995, %v2996
    %v2998 = vrot.slane %v2873, 1
    %v2999 = vsel %vm181, %v2996, %v2998
    %v3000 = vrot.slane %v2874, 1
    %v3001 = vrot.slane %v2875, 1
    %v3002 = vsel %vm181, %v3000, %v3001
    %v3003 = vrot.slane %v2876, 1
    %v3004 = vsel %vm181, %v3001, %v3003
    %v3037 = vpack.c.bf16 %v2929, %v2927
    %v3038 = vpack.c.bf16 %v2934, %v2932
    %v3039 = vpack.c.bf16 %v2939, %v2937
    %v3040 = vpack.c.bf16 %v2944, %v2942
    %v3041 = vpack.c.bf16 %v2949, %v2947
    %v3042 = vpack.c.bf16 %v2954, %v2952
    %v3043 = vpack.c.bf16 %v2959, %v2957
    %v3044 = vpack.c.bf16 %v2964, %v2962
    %v3045 = vpack.c.bf16 %v2969, %v2967
    %v3046 = vpack.c.bf16 %v2974, %v2972
    %v3047 = vpack.c.bf16 %v2979, %v2977
    %v3048 = vpack.c.bf16 %v2984, %v2982
    %v3049 = vpack.c.bf16 %v2989, %v2987
    %v3050 = vpack.c.bf16 %v2994, %v2992
    %v3051 = vpack.c.bf16 %v2999, %v2997
    %v3052 = vpack.c.bf16 %v3004, %v3002
    %s3053 = scalar_lea.vmem %s1, 56
    %v3054 = vld [vmem:[%s3053] sm:$0xf]
    %v3055 = vld [vmem:[%s3053 + $0x4] sm:$0xf]
    %v3058 = vunpack.c.l.b16 %v3054
    %v3059 = vunpack.c.l.b16 %v3055
    %v3060 = vpack.c.b16 %v3059, %v3058
    %v3063 = vsel %vm319, %v3037, 0
    %v3066 = vsel %vm319, %v3038, 0
    %v3069 = vsel %vm319, %v3039, 0
    %v3072 = vsel %vm319, %v3040, 0
    %v3075 = vsel %vm319, %v3041, 0
    %v3078 = vsel %vm319, %v3042, 0
    %v3081 = vsel %vm319, %v3043, 0
    %v3084 = vsel %vm319, %v3044, 0
    %v3087 = vsel %vm319, %v3045, 0
    %v3090 = vsel %vm319, %v3046, 0
    %v3093 = vsel %vm319, %v3047, 0
    %v3096 = vsel %vm319, %v3048, 0
    %v3099 = vsel %vm319, %v3049, 0
    %v3102 = vsel %vm319, %v3050, 0
    %v3105 = vsel %vm319, %v3051, 0
    %v3108 = vsel %vm319, %v3052, 0
    %3110 = vmatprep.subr.bf16.mxu0 0
    %3111 = vmatpush1.bf16.msra.mxu0 %v3060
    %3112 = vmatprep.subr.bf16.mxu0 0
    %3113 = vmatpush1.bf16.msra.mxu0 0
    %3114 = vmatprep.subr.bf16.mxu0 0
    %3115 = vmatpush1.bf16.msra.mxu0 0
    %3116 = vmatprep.subr.bf16.mxu0 0
    %3117 = vmatpush1.bf16.msra.mxu0 0
    %3118 = vmatprep.subr.bf16.mxu0 0
    %3119 = vmatpush1.bf16.msra.mxu0 0
    %3120 = vmatprep.subr.bf16.mxu0 0
    %3121 = vmatpush1.bf16.msra.mxu0 0
    %3122 = vmatprep.subr.bf16.mxu0 0
    %3123 = vmatpush1.bf16.msra.mxu0 0
    %3124 = vmatprep.subr.bf16.mxu0 0
    %3125 = vmatpush1.bf16.msra.mxu0 0
    %3126 = vmatprep.subr.bf16.mxu0 0
    %3127 = vmatpush1.bf16.msra.mxu0 0
    %3128 = vmatprep.subr.bf16.mxu0 0
    %3129 = vmatpush1.bf16.msra.mxu0 0
    %3130 = vmatprep.subr.bf16.mxu0 0
    %3131 = vmatpush1.bf16.msra.mxu0 0
    %3132 = vmatprep.subr.bf16.mxu0 0
    %3133 = vmatpush1.bf16.msra.mxu0 0
    %3134 = vmatprep.subr.bf16.mxu0 0
    %3135 = vmatpush1.bf16.msra.mxu0 0
    %3136 = vmatprep.subr.bf16.mxu0 0
    %3137 = vmatpush1.bf16.msra.mxu0 0
    %3138 = vmatprep.subr.bf16.mxu0 0
    %3139 = vmatpush1.bf16.msra.mxu0 0
    %3140 = vmatprep.subr.bf16.mxu0 0
    %3141 = vmatpush1.bf16.msra.mxu0 0
    %3142 = vmatprep.mubr.bf16.mxu0 0
    %3143 = vmatmul.mubr.bf16.gmra.mrb[0].mxu0 %v3063
    %v3144 = vpop.f32.mrb[0].mxu0
    %v3145 = vadd.f32 0.0, %v3144
    %v3146 = vpop.f32.mrb[0].mxu0
    %v3147 = vpop.f32.mrb[0].mxu0
    %v3148 = vadd.f32 0.0, %v3147
    %v3149 = vpop.f32.mrb[0].mxu0
    %3150 = vmatprep.mubr.bf16.mxu0 0
    %3151 = vmatmul.mubr.bf16.gmra.mrb[0].mxu0 %v3066
    %v3152 = vpop.f32.mrb[0].mxu0
    %v3153 = vadd.f32 0.0, %v3152
    %v3154 = vpop.f32.mrb[0].mxu0
    %v3155 = vpop.f32.mrb[0].mxu0
    %v3156 = vadd.f32 0.0, %v3155
    %v3157 = vpop.f32.mrb[0].mxu0
    %3158 = vmatprep.mubr.bf16.mxu0 0
    %3159 = vmatmul.mubr.bf16.gmra.mrb[0].mxu0 %v3069
    %v3160 = vpop.f32.mrb[0].mxu0
    %v3161 = vadd.f32 0.0, %v3160
    %v3162 = vpop.f32.mrb[0].mxu0
    %v3163 = vpop.f32.mrb[0].mxu0
    %v3164 = vadd.f32 0.0, %v3163
    %v3165 = vpop.f32.mrb[0].mxu0
    %3166 = vmatprep.mubr.bf16.mxu0 0
    %3167 = vmatmul.mubr.bf16.gmra.mrb[0].mxu0 %v3072
    %v3168 = vpop.f32.mrb[0].mxu0
    %v3169 = vadd.f32 0.0, %v3168
    %v3170 = vpop.f32.mrb[0].mxu0
    %v3171 = vpop.f32.mrb[0].mxu0
    %v3172 = vadd.f32 0.0, %v3171
    %v3173 = vpop.f32.mrb[0].mxu0
    %3174 = vmatprep.mubr.bf16.mxu0 0
    %3175 = vmatmul.mubr.bf16.gmra.mrb[0].mxu0 %v3075
    %v3176 = vpop.f32.mrb[0].mxu0
    %v3177 = vadd.f32 0.0, %v3176
    %v3178 = vpop.f32.mrb[0].mxu0
    %v3179 = vpop.f32.mrb[0].mxu0
    %v3180 = vadd.f32 0.0, %v3179
    %v3181 = vpop.f32.mrb[0].mxu0
    %3182 = vmatprep.mubr.bf16.mxu0 0
    %3183 = vmatmul.mubr.bf16.gmra.mrb[0].mxu0 %v3078
    %v3184 = vpop.f32.mrb[0].mxu0
    %v3185 = vadd.f32 0.0, %v3184
    %v3186 = vpop.f32.mrb[0].mxu0
    %v3187 = vpop.f32.mrb[0].mxu0
    %v3188 = vadd.f32 0.0, %v3187
    %v3189 = vpop.f32.mrb[0].mxu0
    %3190 = vmatprep.mubr.bf16.mxu0 0
    %3191 = vmatmul.mubr.bf16.gmra.mrb[0].mxu0 %v3081
    %v3192 = vpop.f32.mrb[0].mxu0
    %v3193 = vadd.f32 0.0, %v3192
    %v3194 = vpop.f32.mrb[0].mxu0
    %v3195 = vpop.f32.mrb[0].mxu0
    %v3196 = vadd.f32 0.0, %v3195
    %v3197 = vpop.f32.mrb[0].mxu0
    %3198 = vmatprep.mubr.bf16.mxu0 0
    %3199 = vmatmul.mubr.bf16.gmra.mrb[0].mxu0 %v3084
    %v3200 = vpop.f32.mrb[0].mxu0
    %v3201 = vadd.f32 0.0, %v3200
    %v3202 = vpop.f32.mrb[0].mxu0
    %v3203 = vpop.f32.mrb[0].mxu0
    %v3204 = vadd.f32 0.0, %v3203
    %v3205 = vpop.f32.mrb[0].mxu0
    %3206 = vmatprep.mubr.bf16.mxu0 0
    %3207 = vmatmul.mubr.bf16.gmra.mrb[0].mxu0 %v3087
    %v3208 = vpop.f32.mrb[0].mxu0
    %v3209 = vadd.f32 0.0, %v3208
    %v3210 = vpop.f32.mrb[0].mxu0
    %v3211 = vpop.f32.mrb[0].mxu0
    %v3212 = vadd.f32 0.0, %v3211
    %v3213 = vpop.f32.mrb[0].mxu0
    %3214 = vmatprep.mubr.bf16.mxu0 0
    %3215 = vmatmul.mubr.bf16.gmra.mrb[0].mxu0 %v3090
    %v3216 = vpop.f32.mrb[0].mxu0
    %v3217 = vadd.f32 0.0, %v3216
    %v3218 = vpop.f32.mrb[0].mxu0
    %v3219 = vpop.f32.mrb[0].mxu0
    %v3220 = vadd.f32 0.0, %v3219
    %v3221 = vpop.f32.mrb[0].mxu0
    %3222 = vmatprep.mubr.bf16.mxu0 0
    %3223 = vmatmul.mubr.bf16.gmra.mrb[0].mxu0 %v3093
    %v3224 = vpop.f32.mrb[0].mxu0
    %v3225 = vadd.f32 0.0, %v3224
    %v3226 = vpop.f32.mrb[0].mxu0
    %v3227 = vpop.f32.mrb[0].mxu0
    %v3228 = vadd.f32 0.0, %v3227
    %v3229 = vpop.f32.mrb[0].mxu0
    %3230 = vmatprep.mubr.bf16.mxu0 0
    %3231 = vmatmul.mubr.bf16.gmra.mrb[0].mxu0 %v3096
    %v3232 = vpop.f32.mrb[0].mxu0
    %v3233 = vadd.f32 0.0, %v3232
    %v3234 = vpop.f32.mrb[0].mxu0
    %v3235 = vpop.f32.mrb[0].mxu0
    %v3236 = vadd.f32 0.0, %v3235
    %v3237 = vpop.f32.mrb[0].mxu0
    %3238 = vmatprep.mubr.bf16.mxu0 0
    %3239 = vmatmul.mubr.bf16.gmra.mrb[0].mxu0 %v3099
    %v3240 = vpop.f32.mrb[0].mxu0
    %v3241 = vadd.f32 0.0, %v3240
    %v3242 = vpop.f32.mrb[0].mxu0
    %v3243 = vpop.f32.mrb[0].mxu0
    %v3244 = vadd.f32 0.0, %v3243
    %v3245 = vpop.f32.mrb[0].mxu0
    %3246 = vmatprep.mubr.bf16.mxu0 0
    %3247 = vmatmul.mubr.bf16.gmra.mrb[0].mxu0 %v3102
    %v3248 = vpop.f32.mrb[0].mxu0
    %v3249 = vadd.f32 0.0, %v3248
    %v3250 = vpop.f32.mrb[0].mxu0
    %v3251 = vpop.f32.mrb[0].mxu0
    %v3252 = vadd.f32 0.0, %v3251
    %v3253 = vpop.f32.mrb[0].mxu0
    %3254 = vmatprep.mubr.bf16.mxu0 0
    %3255 = vmatmul.mubr.bf16.gmra.mrb[0].mxu0 %v3105
    %v3256 = vpop.f32.mrb[0].mxu0
    %v3257 = vadd.f32 0.0, %v3256
    %v3258 = vpop.f32.mrb[0].mxu0
    %v3259 = vpop.f32.mrb[0].mxu0
    %v3260 = vadd.f32 0.0, %v3259
    %v3261 = vpop.f32.mrb[0].mxu0
    %3262 = vmatprep.mubr.bf16.mxu0 0
    %3263 = vmatmul.mubr.bf16.gmra.mrb[0].mxu0 %v3108
    %v3264 = vpop.f32.mrb[0].mxu0
    %v3265 = vadd.f32 0.0, %v3264
    %v3266 = vpop.f32.mrb[0].mxu0
    %v3267 = vpop.f32.mrb[0].mxu0
    %v3268 = vadd.f32 0.0, %v3267
    %v3269 = vpop.f32.mrb[0].mxu0
    %3270 = vdwg.mxu0
    %v3271 = vadd.f32 %v2749, %v3145
    %v3272 = vadd.f32 %v2750, %v3148
    %v3273 = vadd.f32 %v2751, %v3153
    %v3274 = vadd.f32 %v2752, %v3156
    %v3275 = vadd.f32 %v2753, %v3161
    %v3276 = vadd.f32 %v2754, %v3164
    %v3277 = vadd.f32 %v2755, %v3169
    %v3278 = vadd.f32 %v2756, %v3172
    %v3279 = vadd.f32 %v2757, %v3177
    %v3280 = vadd.f32 %v2758, %v3180
    %v3281 = vadd.f32 %v2759, %v3185
    %v3282 = vadd.f32 %v2760, %v3188
    %v3283 = vadd.f32 %v2761, %v3193
    %v3284 = vadd.f32 %v2762, %v3196
    %v3285 = vadd.f32 %v2763, %v3201
    %v3286 = vadd.f32 %v2764, %v3204
    %v3287 = vadd.f32 %v2765, %v3209
    %v3288 = vadd.f32 %v2766, %v3212
    %v3289 = vadd.f32 %v2767, %v3217
    %v3290 = vadd.f32 %v2768, %v3220
    %v3291 = vadd.f32 %v2769, %v3225
    %v3292 = vadd.f32 %v2770, %v3228
    %v3293 = vadd.f32 %v2771, %v3233
    %v3294 = vadd.f32 %v2772, %v3236
    %v3295 = vadd.f32 %v2773, %v3241
    %v3296 = vadd.f32 %v2774, %v3244
    %v3297 = vadd.f32 %v2775, %v3249
    %v3298 = vadd.f32 %v2776, %v3252
    %v3299 = vadd.f32 %v2777, %v3257
    %v3300 = vadd.f32 %v2778, %v3260
    %v3301 = vadd.f32 %v2779, %v3265
    %v3302 = vadd.f32 %v2780, %v3268
    %v3303 = vld [vmem:[%s2450] sm:$0xe]
    %v3304 = vld [vmem:[%s2450 + $0xc] sm:$0xe]
    %v3305 = vld [vmem:[%s2450 + $0x18] sm:$0xe]
    %v3306 = vld [vmem:[%s2450 + $0x24] sm:$0xe]
    %v3307 = vld [vmem:[%s2450 + $0x30] sm:$0xe]
    %v3308 = vld [vmem:[%s2450 + $0x3c] sm:$0xe]
    %v3309 = vld [vmem:[%s2450 + $0x48] sm:$0xe]
    %v3310 = vld [vmem:[%s2450 + $0x54] sm:$0xe]
    %v3311 = vld [vmem:[%s2450 + $0x60] sm:$0xe]
    %v3312 = vld [vmem:[%s2450 + $0x6c] sm:$0xe]
    %v3313 = vld [vmem:[%s2450 + $0x78] sm:$0xe]
    %v3314 = vld [vmem:[%s2450 + $0x84] sm:$0xe]
    %v3315 = vld [vmem:[%s2450 + $0x90] sm:$0xe]
    %v3316 = vld [vmem:[%s2450 + $0x9c] sm:$0xe]
    %v3317 = vld [vmem:[%s2450 + $0xa8] sm:$0xe]
    %v3318 = vld [vmem:[%s2450 + $0xb4] sm:$0xe]
    %v3319 = vunpack.c.l.bf16 %v3303
    %v3320 = vunpack.c.l.bf16 %v3304
    %v3321 = vunpack.c.l.bf16 %v3305
    %v3322 = vunpack.c.l.bf16 %v3306
    %v3323 = vunpack.c.l.bf16 %v3307
    %v3324 = vunpack.c.l.bf16 %v3308
    %v3325 = vunpack.c.l.bf16 %v3309
    %v3326 = vunpack.c.l.bf16 %v3310
    %v3327 = vunpack.c.l.bf16 %v3311
    %v3328 = vunpack.c.l.bf16 %v3312
    %v3329 = vunpack.c.l.bf16 %v3313
    %v3330 = vunpack.c.l.bf16 %v3314
    %v3331 = vunpack.c.l.bf16 %v3315
    %v3332 = vunpack.c.l.bf16 %v3316
    %v3333 = vunpack.c.l.bf16 %v3317
    %v3334 = vunpack.c.l.bf16 %v3318
    %v3351 = vrot.slane %v3319, 2
    %v3352 = vrot.slane %v2830, 2
    %v3353 = vsel %vm792, %v3351, %v3352
    %v3354 = vrot.slane %v2831, 2
    %v3355 = vsel %vm792, %v3352, %v3354
    %v3356 = vrot.slane %v3320, 2
    %v3357 = vrot.slane %v2833, 2
    %v3358 = vsel %vm792, %v3356, %v3357
    %v3359 = vrot.slane %v2834, 2
    %v3360 = vsel %vm792, %v3357, %v3359
    %v3361 = vrot.slane %v3321, 2
    %v3362 = vrot.slane %v2836, 2
    %v3363 = vsel %vm792, %v3361, %v3362
    %v3364 = vrot.slane %v2837, 2
    %v3365 = vsel %vm792, %v3362, %v3364
    %v3366 = vrot.slane %v3322, 2
    %v3367 = vrot.slane %v2839, 2
    %v3368 = vsel %vm792, %v3366, %v3367
    %v3369 = vrot.slane %v2840, 2
    %v3370 = vsel %vm792, %v3367, %v3369
    %v3371 = vrot.slane %v3323, 2
    %v3372 = vrot.slane %v2842, 2
    %v3373 = vsel %vm792, %v3371, %v3372
    %v3374 = vrot.slane %v2843, 2
    %v3375 = vsel %vm792, %v3372, %v3374
    %v3376 = vrot.slane %v3324, 2
    %v3377 = vrot.slane %v2845, 2
    %v3378 = vsel %vm792, %v3376, %v3377
    %v3379 = vrot.slane %v2846, 2
    %v3380 = vsel %vm792, %v3377, %v3379
    %v3381 = vrot.slane %v3325, 2
    %v3382 = vrot.slane %v2848, 2
    %v3383 = vsel %vm792, %v3381, %v3382
    %v3384 = vrot.slane %v2849, 2
    %v3385 = vsel %vm792, %v3382, %v3384
    %v3386 = vrot.slane %v3326, 2
    %v3387 = vrot.slane %v2851, 2
    %v3388 = vsel %vm792, %v3386, %v3387
    %v3389 = vrot.slane %v2852, 2
    %v3390 = vsel %vm792, %v3387, %v3389
    %v3391 = vrot.slane %v3327, 2
    %v3392 = vrot.slane %v2854, 2
    %v3393 = vsel %vm792, %v3391, %v3392
    %v3394 = vrot.slane %v2855, 2
    %v3395 = vsel %vm792, %v3392, %v3394
    %v3396 = vrot.slane %v3328, 2
    %v3397 = vrot.slane %v2857, 2
    %v3398 = vsel %vm792, %v3396, %v3397
    %v3399 = vrot.slane %v2858, 2
    %v3400 = vsel %vm792, %v3397, %v3399
    %v3401 = vrot.slane %v3329, 2
    %v3402 = vrot.slane %v2860, 2
    %v3403 = vsel %vm792, %v3401, %v3402
    %v3404 = vrot.slane %v2861, 2
    %v3405 = vsel %vm792, %v3402, %v3404
    %v3406 = vrot.slane %v3330, 2
    %v3407 = vrot.slane %v2863, 2
    %v3408 = vsel %vm792, %v3406, %v3407
    %v3409 = vrot.slane %v2864, 2
    %v3410 = vsel %vm792, %v3407, %v3409
    %v3411 = vrot.slane %v3331, 2
    %v3412 = vrot.slane %v2866, 2
    %v3413 = vsel %vm792, %v3411, %v3412
    %v3414 = vrot.slane %v2867, 2
    %v3415 = vsel %vm792, %v3412, %v3414
    %v3416 = vrot.slane %v3332, 2
    %v3417 = vrot.slane %v2869, 2
    %v3418 = vsel %vm792, %v3416, %v3417
    %v3419 = vrot.slane %v2870, 2
    %v3420 = vsel %vm792, %v3417, %v3419
    %v3421 = vrot.slane %v3333, 2
    %v3422 = vrot.slane %v2872, 2
    %v3423 = vsel %vm792, %v3421, %v3422
    %v3424 = vrot.slane %v2873, 2
    %v3425 = vsel %vm792, %v3422, %v3424
    %v3426 = vrot.slane %v3334, 2
    %v3427 = vrot.slane %v2875, 2
    %v3428 = vsel %vm792, %v3426, %v3427
    %v3429 = vrot.slane %v2876, 2
    %v3430 = vsel %vm792, %v3427, %v3429
    %v3463 = vpack.c.bf16 %v3355, %v3353
    %v3464 = vpack.c.bf16 %v3360, %v3358
    %v3465 = vpack.c.bf16 %v3365, %v3363
    %v3466 = vpack.c.bf16 %v3370, %v3368
    %v3467 = vpack.c.bf16 %v3375, %v3373
    %v3468 = vpack.c.bf16 %v3380, %v3378
    %v3469 = vpack.c.bf16 %v3385, %v3383
    %v3470 = vpack.c.bf16 %v3390, %v3388
    %v3471 = vpack.c.bf16 %v3395, %v3393
    %v3472 = vpack.c.bf16 %v3400, %v3398
    %v3473 = vpack.c.bf16 %v3405, %v3403
    %v3474 = vpack.c.bf16 %v3410, %v3408
    %v3475 = vpack.c.bf16 %v3415, %v3413
    %v3476 = vpack.c.bf16 %v3420, %v3418
    %v3477 = vpack.c.bf16 %v3425, %v3423
    %v3478 = vpack.c.bf16 %v3430, %v3428
    %s3479 = scalar_lea.vmem %s1, 64
    %v3480 = vld [vmem:[%s3479] sm:$0xf]
    %v3481 = vld [vmem:[%s3479 + $0x4] sm:$0xf]
    %v3484 = vunpack.c.l.b16 %v3480
    %v3485 = vunpack.c.l.b16 %v3481
    %v3486 = vpack.c.b16 %v3485, %v3484
    %v3489 = vsel %vm319, %v3463, 0
    %v3492 = vsel %vm319, %v3464, 0
    %v3495 = vsel %vm319, %v3465, 0
    %v3498 = vsel %vm319, %v3466, 0
    %v3501 = vsel %vm319, %v3467, 0
    %v3504 = vsel %vm319, %v3468, 0
    %v3507 = vsel %vm319, %v3469, 0
    %v3510 = vsel %vm319, %v3470, 0
    %v3513 = vsel %vm319, %v3471, 0
    %v3516 = vsel %vm319, %v3472, 0
    %v3519 = vsel %vm319, %v3473, 0
    %v3522 = vsel %vm319, %v3474, 0
    %v3525 = vsel %vm319, %v3475, 0
    %v3528 = vsel %vm319, %v3476, 0
    %v3531 = vsel %vm319, %v3477, 0
    %v3534 = vsel %vm319, %v3478, 0
    %3536 = vmatprep.subr.bf16.mxu0 0
    %3537 = vmatpush1.bf16.msra.mxu0 %v3486
    %3538 = vmatprep.subr.bf16.mxu0 0
    %3539 = vmatpush1.bf16.msra.mxu0 0
    %3540 = vmatprep.subr.bf16.mxu0 0
    %3541 = vmatpush1.bf16.msra.mxu0 0
    %3542 = vmatprep.subr.bf16.mxu0 0
    %3543 = vmatpush1.bf16.msra.mxu0 0
    %3544 = vmatprep.subr.bf16.mxu0 0
    %3545 = vmatpush1.bf16.msra.mxu0 0
    %3546 = vmatprep.subr.bf16.mxu0 0
    %3547 = vmatpush1.bf16.msra.mxu0 0
    %3548 = vmatprep.subr.bf16.mxu0 0
    %3549 = vmatpush1.bf16.msra.mxu0 0
    %3550 = vmatprep.subr.bf16.mxu0 0
    %3551 = vmatpush1.bf16.msra.mxu0 0
    %3552 = vmatprep.subr.bf16.mxu0 0
    %3553 = vmatpush1.bf16.msra.mxu0 0
    %3554 = vmatprep.subr.bf16.mxu0 0
    %3555 = vmatpush1.bf16.msra.mxu0 0
    %3556 = vmatprep.subr.bf16.mxu0 0
    %3557 = vmatpush1.bf16.msra.mxu0 0
    %3558 = vmatprep.subr.bf16.mxu0 0
    %3559 = vmatpush1.bf16.msra.mxu0 0
    %3560 = vmatprep.subr.bf16.mxu0 0
    %3561 = vmatpush1.bf16.msra.mxu0 0
    %3562 = vmatprep.subr.bf16.mxu0 0
    %3563 = vmatpush1.bf16.msra.mxu0 0
    %3564 = vmatprep.subr.bf16.mxu0 0
    %3565 = vmatpush1.bf16.msra.mxu0 0
    %3566 = vmatprep.subr.bf16.mxu0 0
    %3567 = vmatpush1.bf16.msra.mxu0 0
    %3568 = vmatprep.mubr.bf16.mxu0 0
    %3569 = vmatmul.mubr.bf16.gmra.mrb[0].mxu0 %v3489
    %v3570 = vpop.f32.mrb[0].mxu0
    %v3571 = vadd.f32 0.0, %v3570
    %v3572 = vpop.f32.mrb[0].mxu0
    %v3573 = vpop.f32.mrb[0].mxu0
    %v3574 = vadd.f32 0.0, %v3573
    %v3575 = vpop.f32.mrb[0].mxu0
    %3576 = vmatprep.mubr.bf16.mxu0 0
    %3577 = vmatmul.mubr.bf16.gmra.mrb[0].mxu0 %v3492
    %v3578 = vpop.f32.mrb[0].mxu0
    %v3579 = vadd.f32 0.0, %v3578
    %v3580 = vpop.f32.mrb[0].mxu0
    %v3581 = vpop.f32.mrb[0].mxu0
    %v3582 = vadd.f32 0.0, %v3581
    %v3583 = vpop.f32.mrb[0].mxu0
    %3584 = vmatprep.mubr.bf16.mxu0 0
    %3585 = vmatmul.mubr.bf16.gmra.mrb[0].mxu0 %v3495
    %v3586 = vpop.f32.mrb[0].mxu0
    %v3587 = vadd.f32 0.0, %v3586
    %v3588 = vpop.f32.mrb[0].mxu0
    %v3589 = vpop.f32.mrb[0].mxu0
    %v3590 = vadd.f32 0.0, %v3589
    %v3591 = vpop.f32.mrb[0].mxu0
    %3592 = vmatprep.mubr.bf16.mxu0 0
    %3593 = vmatmul.mubr.bf16.gmra.mrb[0].mxu0 %v3498
    %v3594 = vpop.f32.mrb[0].mxu0
    %v3595 = vadd.f32 0.0, %v3594
    %v3596 = vpop.f32.mrb[0].mxu0
    %v3597 = vpop.f32.mrb[0].mxu0
    %v3598 = vadd.f32 0.0, %v3597
    %v3599 = vpop.f32.mrb[0].mxu0
    %3600 = vmatprep.mubr.bf16.mxu0 0
    %3601 = vmatmul.mubr.bf16.gmra.mrb[0].mxu0 %v3501
    %v3602 = vpop.f32.mrb[0].mxu0
    %v3603 = vadd.f32 0.0, %v3602
    %v3604 = vpop.f32.mrb[0].mxu0
    %v3605 = vpop.f32.mrb[0].mxu0
    %v3606 = vadd.f32 0.0, %v3605
    %v3607 = vpop.f32.mrb[0].mxu0
    %3608 = vmatprep.mubr.bf16.mxu0 0
    %3609 = vmatmul.mubr.bf16.gmra.mrb[0].mxu0 %v3504
    %v3610 = vpop.f32.mrb[0].mxu0
    %v3611 = vadd.f32 0.0, %v3610
    %v3612 = vpop.f32.mrb[0].mxu0
    %v3613 = vpop.f32.mrb[0].mxu0
    %v3614 = vadd.f32 0.0, %v3613
    %v3615 = vpop.f32.mrb[0].mxu0
    %3616 = vmatprep.mubr.bf16.mxu0 0
    %3617 = vmatmul.mubr.bf16.gmra.mrb[0].mxu0 %v3507
    %v3618 = vpop.f32.mrb[0].mxu0
    %v3619 = vadd.f32 0.0, %v3618
    %v3620 = vpop.f32.mrb[0].mxu0
    %v3621 = vpop.f32.mrb[0].mxu0
    %v3622 = vadd.f32 0.0, %v3621
    %v3623 = vpop.f32.mrb[0].mxu0
    %3624 = vmatprep.mubr.bf16.mxu0 0
    %3625 = vmatmul.mubr.bf16.gmra.mrb[0].mxu0 %v3510
    %v3626 = vpop.f32.mrb[0].mxu0
    %v3627 = vadd.f32 0.0, %v3626
    %v3628 = vpop.f32.mrb[0].mxu0
    %v3629 = vpop.f32.mrb[0].mxu0
    %v3630 = vadd.f32 0.0, %v3629
    %v3631 = vpop.f32.mrb[0].mxu0
    %3632 = vmatprep.mubr.bf16.mxu0 0
    %3633 = vmatmul.mubr.bf16.gmra.mrb[0].mxu0 %v3513
    %v3634 = vpop.f32.mrb[0].mxu0
    %v3635 = vadd.f32 0.0, %v3634
    %v3636 = vpop.f32.mrb[0].mxu0
    %v3637 = vpop.f32.mrb[0].mxu0
    %v3638 = vadd.f32 0.0, %v3637
    %v3639 = vpop.f32.mrb[0].mxu0
    %3640 = vmatprep.mubr.bf16.mxu0 0
    %3641 = vmatmul.mubr.bf16.gmra.mrb[0].mxu0 %v3516
    %v3642 = vpop.f32.mrb[0].mxu0
    %v3643 = vadd.f32 0.0, %v3642
    %v3644 = vpop.f32.mrb[0].mxu0
    %v3645 = vpop.f32.mrb[0].mxu0
    %v3646 = vadd.f32 0.0, %v3645
    %v3647 = vpop.f32.mrb[0].mxu0
    %3648 = vmatprep.mubr.bf16.mxu0 0
    %3649 = vmatmul.mubr.bf16.gmra.mrb[0].mxu0 %v3519
    %v3650 = vpop.f32.mrb[0].mxu0
    %v3651 = vadd.f32 0.0, %v3650
    %v3652 = vpop.f32.mrb[0].mxu0
    %v3653 = vpop.f32.mrb[0].mxu0
    %v3654 = vadd.f32 0.0, %v3653
    %v3655 = vpop.f32.mrb[0].mxu0
    %3656 = vmatprep.mubr.bf16.mxu0 0
    %3657 = vmatmul.mubr.bf16.gmra.mrb[0].mxu0 %v3522
    %v3658 = vpop.f32.mrb[0].mxu0
    %v3659 = vadd.f32 0.0, %v3658
    %v3660 = vpop.f32.mrb[0].mxu0
    %v3661 = vpop.f32.mrb[0].mxu0
    %v3662 = vadd.f32 0.0, %v3661
    %v3663 = vpop.f32.mrb[0].mxu0
    %3664 = vmatprep.mubr.bf16.mxu0 0
    %3665 = vmatmul.mubr.bf16.gmra.mrb[0].mxu0 %v3525
    %v3666 = vpop.f32.mrb[0].mxu0
    %v3667 = vadd.f32 0.0, %v3666
    %v3668 = vpop.f32.mrb[0].mxu0
    %v3669 = vpop.f32.mrb[0].mxu0
    %v3670 = vadd.f32 0.0, %v3669
    %v3671 = vpop.f32.mrb[0].mxu0
    %3672 = vmatprep.mubr.bf16.mxu0 0
    %3673 = vmatmul.mubr.bf16.gmra.mrb[0].mxu0 %v3528
    %v3674 = vpop.f32.mrb[0].mxu0
    %v3675 = vadd.f32 0.0, %v3674
    %v3676 = vpop.f32.mrb[0].mxu0
    %v3677 = vpop.f32.mrb[0].mxu0
    %v3678 = vadd.f32 0.0, %v3677
    %v3679 = vpop.f32.mrb[0].mxu0
    %3680 = vmatprep.mubr.bf16.mxu0 0
    %3681 = vmatmul.mubr.bf16.gmra.mrb[0].mxu0 %v3531
    %v3682 = vpop.f32.mrb[0].mxu0
    %v3683 = vadd.f32 0.0, %v3682
    %v3684 = vpop.f32.mrb[0].mxu0
    %v3685 = vpop.f32.mrb[0].mxu0
    %v3686 = vadd.f32 0.0, %v3685
    %v3687 = vpop.f32.mrb[0].mxu0
    %3688 = vmatprep.mubr.bf16.mxu0 0
    %3689 = vmatmul.mubr.bf16.gmra.mrb[0].mxu0 %v3534
    %v3690 = vpop.f32.mrb[0].mxu0
    %v3691 = vadd.f32 0.0, %v3690
    %v3692 = vpop.f32.mrb[0].mxu0
    %v3693 = vpop.f32.mrb[0].mxu0
    %v3694 = vadd.f32 0.0, %v3693
    %v3695 = vpop.f32.mrb[0].mxu0
    %3696 = vdwg.mxu0
    %v3697 = vadd.f32 %v3271, %v3571
    %v3698 = vadd.f32 %v3272, %v3574
    %v3699 = vadd.f32 %v3273, %v3579
    %v3700 = vadd.f32 %v3274, %v3582
    %v3701 = vadd.f32 %v3275, %v3587
    %v3702 = vadd.f32 %v3276, %v3590
    %v3703 = vadd.f32 %v3277, %v3595
    %v3704 = vadd.f32 %v3278, %v3598
    %v3705 = vadd.f32 %v3279, %v3603
    %v3706 = vadd.f32 %v3280, %v3606
    %v3707 = vadd.f32 %v3281, %v3611
    %v3708 = vadd.f32 %v3282, %v3614
    %v3709 = vadd.f32 %v3283, %v3619
    %v3710 = vadd.f32 %v3284, %v3622
    %v3711 = vadd.f32 %v3285, %v3627
    %v3712 = vadd.f32 %v3286, %v3630
    %v3713 = vadd.f32 %v3287, %v3635
    %v3714 = vadd.f32 %v3288, %v3638
    %v3715 = vadd.f32 %v3289, %v3643
    %v3716 = vadd.f32 %v3290, %v3646
    %v3717 = vadd.f32 %v3291, %v3651
    %v3718 = vadd.f32 %v3292, %v3654
    %v3719 = vadd.f32 %v3293, %v3659
    %v3720 = vadd.f32 %v3294, %v3662
    %v3721 = vadd.f32 %v3295, %v3667
    %v3722 = vadd.f32 %v3296, %v3670
    %v3723 = vadd.f32 %v3297, %v3675
    %v3724 = vadd.f32 %v3298, %v3678
    %v3725 = vadd.f32 %v3299, %v3683
    %v3726 = vadd.f32 %v3300, %v3686
    %v3727 = vadd.f32 %v3301, %v3691
    %v3728 = vadd.f32 %v3302, %v3694
    %v3729 = vld [vmem:[%s2] sm:$0x1]
    %v3731 = vlaneseq
    %v3732 = vshrl.u32 %v3731, 7
    %v3733 = vsub.s32 0, %v3732
    %v3734 = vrot.slane %v3729, %v3733
    %v3736 = vmul.f32 %v3697, %v3734
    %v3737 = vmul.f32 %v3698, %v3734
    %v3738 = vmul.f32 %v3699, %v3734
    %v3739 = vmul.f32 %v3700, %v3734
    %v3740 = vmul.f32 %v3701, %v3734
    %v3741 = vmul.f32 %v3702, %v3734
    %v3742 = vmul.f32 %v3703, %v3734
    %v3743 = vmul.f32 %v3704, %v3734
    %v3744 = vmul.f32 %v3705, %v3734
    %v3745 = vmul.f32 %v3706, %v3734
    %v3746 = vmul.f32 %v3707, %v3734
    %v3747 = vmul.f32 %v3708, %v3734
    %v3748 = vmul.f32 %v3709, %v3734
    %v3749 = vmul.f32 %v3710, %v3734
    %v3750 = vmul.f32 %v3711, %v3734
    %v3751 = vmul.f32 %v3712, %v3734
    %v3752 = vmul.f32 %v3713, %v3734
    %v3753 = vmul.f32 %v3714, %v3734
    %v3754 = vmul.f32 %v3715, %v3734
    %v3755 = vmul.f32 %v3716, %v3734
    %v3756 = vmul.f32 %v3717, %v3734
    %v3757 = vmul.f32 %v3718, %v3734
    %v3758 = vmul.f32 %v3719, %v3734
    %v3759 = vmul.f32 %v3720, %v3734
    %v3760 = vmul.f32 %v3721, %v3734
    %v3761 = vmul.f32 %v3722, %v3734
    %v3762 = vmul.f32 %v3723, %v3734
    %v3763 = vmul.f32 %v3724, %v3734
    %v3764 = vmul.f32 %v3725, %v3734
    %v3765 = vmul.f32 %v3726, %v3734
    %v3766 = vmul.f32 %v3727, %v3734
    %v3767 = vmul.f32 %v3728, %v3734
    %v3768 = vld [vmem:[%s3] sm:$0x1]
    %v3770 = vlaneseq
    %v3771 = vshrl.u32 %v3770, 7
    %v3772 = vsub.s32 0, %v3771
    %v3773 = vrot.slane %v3768, %v3772
    %v3775 = vadd.f32 %v3736, %v3773
    %v3776 = vadd.f32 %v3737, %v3773
    %v3777 = vadd.f32 %v3738, %v3773
    %v3778 = vadd.f32 %v3739, %v3773
    %v3779 = vadd.f32 %v3740, %v3773
    %v3780 = vadd.f32 %v3741, %v3773
    %v3781 = vadd.f32 %v3742, %v3773
    %v3782 = vadd.f32 %v3743, %v3773
    %v3783 = vadd.f32 %v3744, %v3773
    %v3784 = vadd.f32 %v3745, %v3773
    %v3785 = vadd.f32 %v3746, %v3773
    %v3786 = vadd.f32 %v3747, %v3773
    %v3787 = vadd.f32 %v3748, %v3773
    %v3788 = vadd.f32 %v3749, %v3773
    %v3789 = vadd.f32 %v3750, %v3773
    %v3790 = vadd.f32 %v3751, %v3773
    %v3791 = vadd.f32 %v3752, %v3773
    %v3792 = vadd.f32 %v3753, %v3773
    %v3793 = vadd.f32 %v3754, %v3773
    %v3794 = vadd.f32 %v3755, %v3773
    %v3795 = vadd.f32 %v3756, %v3773
    %v3796 = vadd.f32 %v3757, %v3773
    %v3797 = vadd.f32 %v3758, %v3773
    %v3798 = vadd.f32 %v3759, %v3773
    %v3799 = vadd.f32 %v3760, %v3773
    %v3800 = vadd.f32 %v3761, %v3773
    %v3801 = vadd.f32 %v3762, %v3773
    %v3802 = vadd.f32 %v3763, %v3773
    %v3803 = vadd.f32 %v3764, %v3773
    %v3804 = vadd.f32 %v3765, %v3773
    %v3805 = vadd.f32 %v3766, %v3773
    %v3806 = vadd.f32 %v3767, %v3773
    %v3807 = vmax.f32 %v3775, 0.0
    %v3808 = vmax.f32 %v3776, 0.0
    %v3809 = vmax.f32 %v3777, 0.0
    %v3810 = vmax.f32 %v3778, 0.0
    %v3811 = vmax.f32 %v3779, 0.0
    %v3812 = vmax.f32 %v3780, 0.0
    %v3813 = vmax.f32 %v3781, 0.0
    %v3814 = vmax.f32 %v3782, 0.0
    %v3815 = vmax.f32 %v3783, 0.0
    %v3816 = vmax.f32 %v3784, 0.0
    %v3817 = vmax.f32 %v3785, 0.0
    %v3818 = vmax.f32 %v3786, 0.0
    %v3819 = vmax.f32 %v3787, 0.0
    %v3820 = vmax.f32 %v3788, 0.0
    %v3821 = vmax.f32 %v3789, 0.0
    %v3822 = vmax.f32 %v3790, 0.0
    %v3823 = vmax.f32 %v3791, 0.0
    %v3824 = vmax.f32 %v3792, 0.0
    %v3825 = vmax.f32 %v3793, 0.0
    %v3826 = vmax.f32 %v3794, 0.0
    %v3827 = vmax.f32 %v3795, 0.0
    %v3828 = vmax.f32 %v3796, 0.0
    %v3829 = vmax.f32 %v3797, 0.0
    %v3830 = vmax.f32 %v3798, 0.0
    %v3831 = vmax.f32 %v3799, 0.0
    %v3832 = vmax.f32 %v3800, 0.0
    %v3833 = vmax.f32 %v3801, 0.0
    %v3834 = vmax.f32 %v3802, 0.0
    %v3835 = vmax.f32 %v3803, 0.0
    %v3836 = vmax.f32 %v3804, 0.0
    %v3837 = vmax.f32 %v3805, 0.0
    %v3838 = vmax.f32 %v3806, 0.0
    %v3839 = vpack.c.bf16 %v3808, %v3807
    %v3840 = vpack.c.bf16 %v3810, %v3809
    %v3841 = vpack.c.bf16 %v3812, %v3811
    %v3842 = vpack.c.bf16 %v3814, %v3813
    %v3843 = vpack.c.bf16 %v3816, %v3815
    %v3844 = vpack.c.bf16 %v3818, %v3817
    %v3845 = vpack.c.bf16 %v3820, %v3819
    %v3846 = vpack.c.bf16 %v3822, %v3821
    %v3847 = vpack.c.bf16 %v3824, %v3823
    %v3848 = vpack.c.bf16 %v3826, %v3825
    %v3849 = vpack.c.bf16 %v3828, %v3827
    %v3850 = vpack.c.bf16 %v3830, %v3829
    %v3851 = vpack.c.bf16 %v3832, %v3831
    %v3852 = vpack.c.bf16 %v3834, %v3833
    %v3853 = vpack.c.bf16 %v3836, %v3835
    %v3854 = vpack.c.bf16 %v3838, %v3837
    %v3871 = vunpack.c.l.b16 %v3839
    %v3872 = vunpack.c.h.b16 %v3839
    %v3873 = vunpack.c.l.b16 %v3840
    %v3874 = vunpack.c.h.b16 %v3840
    %v3875 = vunpack.c.l.b16 %v3841
    %v3876 = vunpack.c.h.b16 %v3841
    %v3877 = vunpack.c.l.b16 %v3842
    %v3878 = vunpack.c.h.b16 %v3842
    %v3879 = vunpack.c.l.b16 %v3843
    %v3880 = vunpack.c.h.b16 %v3843
    %v3881 = vunpack.c.l.b16 %v3844
    %v3882 = vunpack.c.h.b16 %v3844
    %v3883 = vunpack.c.l.b16 %v3845
    %v3884 = vunpack.c.h.b16 %v3845
    %v3885 = vunpack.c.l.b16 %v3846
    %v3886 = vunpack.c.h.b16 %v3846
    %v3887 = vunpack.c.l.b16 %v3847
    %v3888 = vunpack.c.h.b16 %v3847
    %v3889 = vunpack.c.l.b16 %v3848
    %v3890 = vunpack.c.h.b16 %v3848
    %v3891 = vunpack.c.l.b16 %v3849
    %v3892 = vunpack.c.h.b16 %v3849
    %v3893 = vunpack.c.l.b16 %v3850
    %v3894 = vunpack.c.h.b16 %v3850
    %v3895 = vunpack.c.l.b16 %v3851
    %v3896 = vunpack.c.h.b16 %v3851
    %v3897 = vunpack.c.l.b16 %v3852
    %v3898 = vunpack.c.h.b16 %v3852
    %v3899 = vunpack.c.l.b16 %v3853
    %v3900 = vunpack.c.h.b16 %v3853
    %v3901 = vunpack.c.l.b16 %v3854
    %v3902 = vunpack.c.h.b16 %v3854
    %v3903 = vpack.c.b16 %v3871, %v3871
    %v3904 = vpack.c.b16 %v3872, %v3872
    %v3905 = vpack.c.b16 %v3873, %v3873
    %v3906 = vpack.c.b16 %v3874, %v3874
    %v3907 = vpack.c.b16 %v3875, %v3875
    %v3908 = vpack.c.b16 %v3876, %v3876
    %v3909 = vpack.c.b16 %v3877, %v3877
    %v3910 = vpack.c.b16 %v3878, %v3878
    %v3911 = vpack.c.b16 %v3879, %v3879
    %v3912 = vpack.c.b16 %v3880, %v3880
    %v3913 = vpack.c.b16 %v3881, %v3881
    %v3914 = vpack.c.b16 %v3882, %v3882
    %v3915 = vpack.c.b16 %v3883, %v3883
    %v3916 = vpack.c.b16 %v3884, %v3884
    %v3917 = vpack.c.b16 %v3885, %v3885
    %v3918 = vpack.c.b16 %v3886, %v3886
    %v3919 = vpack.c.b16 %v3887, %v3887
    %v3920 = vpack.c.b16 %v3888, %v3888
    %v3921 = vpack.c.b16 %v3889, %v3889
    %v3922 = vpack.c.b16 %v3890, %v3890
    %v3923 = vpack.c.b16 %v3891, %v3891
    %v3924 = vpack.c.b16 %v3892, %v3892
    %v3925 = vpack.c.b16 %v3893, %v3893
    %v3926 = vpack.c.b16 %v3894, %v3894
    %v3927 = vpack.c.b16 %v3895, %v3895
    %v3928 = vpack.c.b16 %v3896, %v3896
    %v3929 = vpack.c.b16 %v3897, %v3897
    %v3930 = vpack.c.b16 %v3898, %v3898
    %v3931 = vpack.c.b16 %v3899, %v3899
    %v3932 = vpack.c.b16 %v3900, %v3900
    %v3933 = vpack.c.b16 %v3901, %v3901
    %v3934 = vpack.c.b16 %v3902, %v3902
    %vm3967 = vcmask 125952
    %3968 = vst.msk [vmem:[#allocation2] sm:$0xf] %vm3967, %v3903
    %3969 = vst.msk [vmem:[#allocation2 + $0x4] sm:$0xf] %vm3967, %v3904
    %3970 = vst.msk [vmem:[#allocation2 + $0x8] sm:$0xf] %vm3967, %v3905
    %3971 = vst.msk [vmem:[#allocation2 + $0xc] sm:$0xf] %vm3967, %v3906
    %3972 = vst.msk [vmem:[#allocation2 + $0x10] sm:$0xf] %vm3967, %v3907
    %3973 = vst.msk [vmem:[#allocation2 + $0x14] sm:$0xf] %vm3967, %v3908
    %3974 = vst.msk [vmem:[#allocation2 + $0x18] sm:$0xf] %vm3967, %v3909
    %3975 = vst.msk [vmem:[#allocation2 + $0x1c] sm:$0xf] %vm3967, %v3910
    %3976 = vst.msk [vmem:[#allocation2 + $0x20] sm:$0xf] %vm3967, %v3911
    %3977 = vst.msk [vmem:[#allocation2 + $0x24] sm:$0xf] %vm3967, %v3912
    %3978 = vst.msk [vmem:[#allocation2 + $0x28] sm:$0xf] %vm3967, %v3913
    %3979 = vst.msk [vmem:[#allocation2 + $0x2c] sm:$0xf] %vm3967, %v3914
    %3980 = vst.msk [vmem:[#allocation2 + $0x30] sm:$0xf] %vm3967, %v3915
    %3981 = vst.msk [vmem:[#allocation2 + $0x34] sm:$0xf] %vm3967, %v3916
    %3982 = vst.msk [vmem:[#allocation2 + $0x38] sm:$0xf] %vm3967, %v3917
    %3983 = vst.msk [vmem:[#allocation2 + $0x3c] sm:$0xf] %vm3967, %v3918
    %3984 = vst.msk [vmem:[#allocation2 + $0x40] sm:$0xf] %vm3967, %v3919
    %3985 = vst.msk [vmem:[#allocation2 + $0x44] sm:$0xf] %vm3967, %v3920
    %3986 = vst.msk [vmem:[#allocation2 + $0x48] sm:$0xf] %vm3967, %v3921
    %3987 = vst.msk [vmem:[#allocation2 + $0x4c] sm:$0xf] %vm3967, %v3922
    %3988 = vst.msk [vmem:[#allocation2 + $0x50] sm:$0xf] %vm3967, %v3923
    %3989 = vst.msk [vmem:[#allocation2 + $0x54] sm:$0xf] %vm3967, %v3924
    %3990 = vst.msk [vmem:[#allocation2 + $0x58] sm:$0xf] %vm3967, %v3925
    %3991 = vst.msk [vmem:[#allocation2 + $0x5c] sm:$0xf] %vm3967, %v3926
    %3992 = vst.msk [vmem:[#allocation2 + $0x60] sm:$0xf] %vm3967, %v3927
    %3993 = vst.msk [vmem:[#allocation2 + $0x64] sm:$0xf] %vm3967, %v3928
    %3994 = vst.msk [vmem:[#allocation2 + $0x68] sm:$0xf] %vm3967, %v3929
    %3995 = vst.msk [vmem:[#allocation2 + $0x6c] sm:$0xf] %vm3967, %v3930
    %3996 = vst.msk [vmem:[#allocation2 + $0x70] sm:$0xf] %vm3967, %v3931
    %3997 = vst.msk [vmem:[#allocation2 + $0x74] sm:$0xf] %vm3967, %v3932
    %3998 = vst.msk [vmem:[#allocation2 + $0x78] sm:$0xf] %vm3967, %v3933
    %3999 = vst.msk [vmem:[#allocation2 + $0x7c] sm:$0xf] %vm3967, %v3934
    // Predicated region
    $region18: #{tpu_custom_call.1} parent=1 // pred_check
      _
    $region19: #{tpu_custom_call.1} parent=1 // pred_check_branch
      %4001 = sbr.rel (0) target = $region21
    $region20: #{tpu_custom_call.1} parent=1 // pred_region
      %s4003 = ssub.s32 2048, 2048
      %4004 = vsyncadd [#allocation3], %s4003
      %s4005 = sshll.u32 [#allocation2], 4
      %s4006 = int_to_ptr.vmem [resolvable:$true] %s4005
      %4011 = dma.vmem_to_hbm [thread:$0]  %s4006, 2048, %s4, [#allocation3], 64, 64, 4
    $region21: #{tpu_custom_call.1} parent=1 // pred_fallthru
      _
    // Predicated region
    $region22: #{tpu_custom_call.1} parent=1 // pred_check
      _
    $region23: #{tpu_custom_call.1} parent=1 // pred_check_branch
      %4013 = sbr.rel (0) target = $region25
    $region24: #{tpu_custom_call.1} parent=1 // pred_region
      %4014 = dma.done [#allocation3], 2048
    $region25: #{tpu_custom_call.1} parent=1 // pred_fallthru
      _
    %4015 = vsyncpa [#allocation3], 1

// kernel: _lambda_.7
$region0: #{_lambda_.7}
  #allocation0 [shape = 'u32[]', space=smem, size = 0x4, offset = 0x4, fixed_abs, tag = 'smem constant byte address 0x4 - core index']
  #allocation1 [shape = 'u32[144,128]{1,0:T(1,128)}', space=vmem, size = 0x12000, scoped, tag = 'internal scratch']
  %s0 = inlined_call_operand.vmem [shape: bf16[512,9], index: 0, kind: input, shape index: {}]
  %s1 = inlined_call_operand.hbm [shape: bf16[9,16], index: 1, kind: input, shape index: {}]
  %s2 = inlined_call_operand.hbm [shape: f32[1,16], index: 2, kind: input, shape index: {}]
  %s3 = inlined_call_operand.hbm [shape: f32[1,16], index: 3, kind: input, shape index: {}]
  %s4 = inlined_call_operand.vmem [shape: bf16[512,16], index: 4, kind: output, shape index: {}]
  %s5 = sld [smem:[#allocation0]]
  $region61: #{_lambda_.7} parent=0
    _
  %s7 = ssub.s32 1, %s5
  %s8 = scalar_select 0, %s7, %s5
  $region1: #{_lambda_.7} parent=0
    #allocation2 [shape = 'u8[4096]{0}', space=vmem, size = 0x1000, scoped, tag = 'input window, operand 1, single buffered']
    #allocation3 [shape = 's32[2]{0}', space=sflag, size = 0x8, scoped, tag = 'scoped memory for _lambda_.7']
    #allocation4 [shape = 'u8[512]{0}', space=vmem, size = 0x400, scoped, tag = 'input window, operand 2, single buffered']
    #allocation5 [shape = 's32[1]{0}', space=sflag, size = 0x4, scoped, tag = 'scoped memory for _lambda_.7']
    #allocation6 [shape = 'u8[512]{0}', space=vmem, size = 0x400, scoped, tag = 'input window, operand 3, single buffered']
    %9 = vsyncpa [#allocation3], 0
    %10 = vsyncpa [#allocation5], 0
    loop: start=0, step=1, limit=4
    $region2: #{_lambda_.7} parent=1 // loop_pre_header
      _
    $region3: #{_lambda_.7} parent=1 // loop_header
      %s12 = sphi 0, %s16
      %p13 = scmp.ge.s32.totalorder %s12, 4
      %s22 = sphi 0, %s24
      %s25 = sphi 0, %s22
      %s26 = sphi 0, %s25
      %s42 = sphi 0, %s26
      %s46 = sphi 0, %s46
      %s48 = sphi 0, %s46
      %s49 = sphi 0, %s48
      %s63 = sphi 0, %s49
      %s67 = sphi 0, %s67
      %s69 = sphi 0, %s67
      %s70 = sphi 0, %s69
      %s84 = sphi 0, %s70
      %s88 = sphi 0, %s88
      %s90 = sphi 0, %s88
      %s91 = sphi 0, %s90
      %s105 = sphi 0, %s91
      %s111 = sphi 0, %s113
      %s114 = sphi 0, %s111
      %s115 = sphi 0, %s114
      %s131 = sphi 0, %s115
    $region4: #{_lambda_.7} parent=1 // loop_header_branch
      %15 = sbr.rel (%p13) target = $region8
    $region5: #{_lambda_.7} parent=1 // loop_body
      %s17 = ssub.s32 %s12, 1
      %s18 = ssub.s32 %s12, 2
      %s19 = sadd.s32 %s12, 1
      %s20 = ssub.s32 %s12, %s19
      %p21 = scmp.eq.s32.totalorder %s20, 0
      %s23 = sadd.s32 %s22, 1
      %s24 = scalar_select %p21, %s22, %s23
      %p27 = pneg %p21
      %p28 = scmp.eq.s32.totalorder %s12, 1
      %p29 = por %p27, %p28
      %p30 = scmp.ne.s32.totalorder %s22, %s25
      %p31 = scmp.eq.s32.totalorder %s12, 0
      %p32 = por %p30, %p31
      %p33 = scmp.ne.s32.totalorder %s22, %s25
      %p34 = scmp.eq.s32.totalorder %s17, 1
      %p35 = por %p33, %p34
      %p36 = scmp.ne.s32.totalorder %s25, %s26
      %p37 = scmp.eq.s32.totalorder %s17, 0
      %p38 = por %p36, %p37
      %p39 = scmp.ne.s32.totalorder %s25, %s26
      %p40 = scmp.eq.s32.totalorder %s18, 1
      %p41 = por %p39, %p40
      %p43 = scmp.ne.s32.totalorder %s26, %s42
      %p44 = scmp.eq.s32.totalorder %s18, 0
      %p45 = por %p43, %p44
      %s47 = sadd.s32 %s46, 1
      %p50 = scmp.eq.s32.totalorder %s12, 1
      %p51 = scmp.ne.s32.totalorder %s46, %s48
      %p52 = scmp.eq.s32.totalorder %s12, 0
      %p53 = por %p51, %p52
      %p54 = scmp.ne.s32.totalorder %s46, %s48
      %p55 = scmp.eq.s32.totalorder %s17, 1
      %p56 = por %p54, %p55
      %p57 = scmp.ne.s32.totalorder %s48, %s49
      %p58 = scmp.eq.s32.totalorder %s17, 0
      %p59 = por %p57, %p58
      %p60 = scmp.ne.s32.totalorder %s48, %s49
      %p61 = scmp.eq.s32.totalorder %s18, 1
      %p62 = por %p60, %p61
      %p64 = scmp.ne.s32.totalorder %s49, %s63
      %p65 = scmp.eq.s32.totalorder %s18, 0
      %p66 = por %p64, %p65
      %s68 = sadd.s32 %s67, 1
      %p71 = scmp.eq.s32.totalorder %s12, 1
      %p72 = scmp.ne.s32.totalorder %s67, %s69
      %p73 = scmp.eq.s32.totalorder %s12, 0
      %p74 = por %p72, %p73
      %p75 = scmp.ne.s32.totalorder %s67, %s69
      %p76 = scmp.eq.s32.totalorder %s17, 1
      %p77 = por %p75, %p76
      %p78 = scmp.ne.s32.totalorder %s69, %s70
      %p79 = scmp.eq.s32.totalorder %s17, 0
      %p80 = por %p78, %p79
      %p81 = scmp.ne.s32.totalorder %s69, %s70
      %p82 = scmp.eq.s32.totalorder %s18, 1
      %p83 = por %p81, %p82
      %p85 = scmp.ne.s32.totalorder %s70, %s84
      %p86 = scmp.eq.s32.totalorder %s18, 0
      %p87 = por %p85, %p86
      %s89 = sadd.s32 %s88, 1
      %p92 = scmp.eq.s32.totalorder %s12, 1
      %p93 = scmp.ne.s32.totalorder %s88, %s90
      %p94 = scmp.eq.s32.totalorder %s12, 0
      %p95 = por %p93, %p94
      %p96 = scmp.ne.s32.totalorder %s88, %s90
      %p97 = scmp.eq.s32.totalorder %s17, 1
      %p98 = por %p96, %p97
      %p99 = scmp.ne.s32.totalorder %s90, %s91
      %p100 = scmp.eq.s32.totalorder %s17, 0
      %p101 = por %p99, %p100
      %p102 = scmp.ne.s32.totalorder %s90, %s91
      %p103 = scmp.eq.s32.totalorder %s18, 1
      %p104 = por %p102, %p103
      %p106 = scmp.ne.s32.totalorder %s91, %s105
      %p107 = scmp.eq.s32.totalorder %s18, 0
      %p108 = por %p106, %p107
      %s109 = ssub.s32 %s12, %s19
      %p110 = scmp.eq.s32.totalorder %s109, 0
      %s112 = sadd.s32 %s111, 1
      %s113 = scalar_select %p110, %s111, %s112
      %p116 = pneg %p110
      %p117 = scmp.eq.s32.totalorder %s12, 1
      %p118 = por %p116, %p117
      %p119 = scmp.ne.s32.totalorder %s111, %s114
      %p120 = scmp.eq.s32.totalorder %s12, 0
      %p121 = por %p119, %p120
      %p122 = scmp.ne.s32.totalorder %s111, %s114
      %p123 = scmp.eq.s32.totalorder %s17, 1
      %p124 = por %p122, %p123
      %p125 = scmp.ne.s32.totalorder %s114, %s115
      %p126 = scmp.eq.s32.totalorder %s17, 0
      %p127 = por %p125, %p126
      %p128 = scmp.ne.s32.totalorder %s114, %s115
      %p129 = scmp.eq.s32.totalorder %s18, 1
      %p130 = por %p128, %p129
      %p132 = scmp.ne.s32.totalorder %s115, %s131
      %p133 = scmp.eq.s32.totalorder %s18, 0
      %p134 = por %p132, %p133
      %p135 = scmp.le.s32.totalorder 1, %s12
      %p136 = scmp.lt.s32.totalorder %s12, 3
      %p137 = pnand %p135, %p136
      %p138 = pneg %p137
      // Predicated region
      $region9: #{_lambda_.7} parent=5 // pred_check
        _
      $region10: #{_lambda_.7} parent=5 // pred_check_branch
        %140 = sbr.rel (%p137) target = $region12
      $region11: #{_lambda_.7} parent=5 // pred_region
        %s141 = ssub.s32 %s12, 1
        // Predicated region
        $region13: #{_lambda_.7} parent=11 // pred_check
          %p142 = pneg %p59
        $region14: #{_lambda_.7} parent=11 // pred_check_branch
          %144 = sbr.rel (%p142) target = $region16
        $region15: #{_lambda_.7} parent=11 // pred_region
          %s146 = ssub.s32 128, 128
          %147 = vsyncadd [#allocation3], %s146
          %s148 = sshll.u32 [#allocation2], 4
          %s149 = int_to_ptr.vmem [resolvable:$true] %s148
          %154 = dma.hbm_to_vmem [thread:$0]  %s1, 128, %s149, [#allocation3], 64, 64, 4
        $region16: #{_lambda_.7} parent=11 // pred_fallthru
          _
        // Predicated region
        $region17: #{_lambda_.7} parent=11 // pred_check
          %p155 = pneg %p80
        $region18: #{_lambda_.7} parent=11 // pred_check_branch
          %157 = sbr.rel (%p155) target = $region20
        $region19: #{_lambda_.7} parent=11 // pred_region
          %s159 = ssub.s32 16, 16
          %160 = vsyncadd [#allocation5], %s159
          %s162 = sshll.u32 [#allocation4], 4
          %s163 = int_to_ptr.vmem [resolvable:$true] %s162
          %165 = dma.hbm_to_vmem [thread:$0]  %s2, 16, %s163, [#allocation5]
        $region20: #{_lambda_.7} parent=11 // pred_fallthru
          _
        // Predicated region
        $region21: #{_lambda_.7} parent=11 // pred_check
          %p166 = pneg %p101
        $region22: #{_lambda_.7} parent=11 // pred_check_branch
          %168 = sbr.rel (%p166) target = $region24
        $region23: #{_lambda_.7} parent=11 // pred_region
          %s170 = ssub.s32 16, 16
          %171 = vsyncadd [#allocation5], %s170
          %s173 = sshll.u32 [#allocation6], 4
          %s174 = int_to_ptr.vmem [resolvable:$true] %s173
          %176 = dma.hbm_to_vmem [thread:$0]  %s3, 16, %s174, [#allocation5]
        $region24: #{_lambda_.7} parent=11 // pred_fallthru
          _
      $region12: #{_lambda_.7} parent=5 // pred_fallthru
        _
      %p177 = scmp.lt.s32.totalorder %s12, 2
      // Predicated region
      $region25: #{_lambda_.7} parent=5 // pred_check
        %p178 = pneg %p177
      $region26: #{_lambda_.7} parent=5 // pred_check_branch
        %180 = sbr.rel (%p178) target = $region28
      $region27: #{_lambda_.7} parent=5 // pred_region
        // Predicated region
        $region29: #{_lambda_.7} parent=27 // pred_check
          %p181 = pneg %p32
        $region30: #{_lambda_.7} parent=27 // pred_check_branch
          %183 = sbr.rel (%p181) target = $region32
        $region31: #{_lambda_.7} parent=27 // pred_region
          %s184 = smul.u32 32, %s12
          %p185 = scmp.lt.s32.totalorder %s184, 63
          %s186 = scalar_select %p185, %s184, 63
          %s187 = smul.addr %s186, 4
          %s188 = scalar_lea.vmem %s0, %s187
          %s189 = smul.u32 32, %s12
        $region32: #{_lambda_.7} parent=27 // pred_fallthru
          _
      $region28: #{_lambda_.7} parent=5 // pred_fallthru
        _
      %p190 = scmp.le.s32.totalorder 1, %s12
      %p191 = scmp.lt.s32.totalorder %s12, 3
      %p192 = pnand %p190, %p191
      %p193 = pneg %p192
      // Predicated region
      $region33: #{_lambda_.7} parent=5 // pred_check
        _
      $region34: #{_lambda_.7} parent=5 // pred_check_branch
        %195 = sbr.rel (%p192) target = $region36
      $region35: #{_lambda_.7} parent=5 // pred_region
        %s196 = ssub.s32 %s12, 1
        // Predicated region
        $region37: #{_lambda_.7} parent=35 // pred_check
          %p197 = pneg %p59
        $region38: #{_lambda_.7} parent=35 // pred_check_branch
          %199 = sbr.rel (%p197) target = $region40
        $region39: #{_lambda_.7} parent=35 // pred_region
          %200 = dma.done [#allocation3], 128
        $region40: #{_lambda_.7} parent=35 // pred_fallthru
          _
        // Predicated region
        $region41: #{_lambda_.7} parent=35 // pred_check
          %p201 = pneg %p80
        $region42: #{_lambda_.7} parent=35 // pred_check_branch
          %203 = sbr.rel (%p201) target = $region44
        $region43: #{_lambda_.7} parent=35 // pred_region
          %204 = dma.done [#allocation5], 16
        $region44: #{_lambda_.7} parent=35 // pred_fallthru
          _
        // Predicated region
        $region45: #{_lambda_.7} parent=35 // pred_check
          %p205 = pneg %p101
        $region46: #{_lambda_.7} parent=35 // pred_check_branch
          %207 = sbr.rel (%p205) target = $region48
        $region47: #{_lambda_.7} parent=35 // pred_region
          %208 = dma.done [#allocation5], 16
        $region48: #{_lambda_.7} parent=35 // pred_fallthru
          _
        %s209 = smul.u32 32, %s17
        %p210 = scmp.lt.s32.totalorder %s209, 63
        %s211 = scalar_select %p210, %s209, 63
        %s212 = smul.addr %s211, 4
        %s213 = scalar_lea.vmem %s0, %s212
        %p214 = pneg %p38
        %p215 = pneg %p35
        %p216 = pneg %p59
        %p217 = pneg %p56
        %p218 = pneg %p80
        %p219 = pneg %p77
        %p220 = pneg %p101
        %p221 = pneg %p98
        %p222 = pneg %p127
        %p223 = pneg %p124
        %s224 = smul.u32 32, %s17
        %p225 = scmp.lt.s32.totalorder %s224, 63
        %s226 = scalar_select %p225, %s224, 63
        %s227 = smul.addr %s226, 4
        %s228 = scalar_lea.vmem %s4, %s227
        %s229 = smul.u32 32, %s17
        %p230 = scmp.lt.s32.totalorder %s229, 63
        %s231 = scalar_select %p230, %s229, 63
        %s232 = smul.addr %s231, 4
        %s233 = scalar_lea.vmem %s0, %s232
        %s234 = smul.u32 32, %s17
        %s235 = smul.u32 32, %s17
        %p236 = scmp.lt.s32.totalorder %s235, 63
        %s237 = scalar_select %p236, %s235, 63
        %s238 = smul.addr %s237, 4
        %s239 = scalar_lea.vmem %s4, %s238
        %s240 = smul.u32 32, %s17
        %v242 = vld [vmem:[%s233] sm:$0xf]
        %v243 = vld [vmem:[%s233 + $0x4] sm:$0xf]
        %v244 = vld [vmem:[%s233 + $0x8] sm:$0xf]
        %v245 = vld [vmem:[%s233 + $0xc] sm:$0xf]
        %v246 = vld [vmem:[%s233 + $0x10] sm:$0xf]
        %v247 = vld [vmem:[%s233 + $0x14] sm:$0xf]
        %v248 = vld [vmem:[%s233 + $0x18] sm:$0xf]
        %v249 = vld [vmem:[%s233 + $0x1c] sm:$0xf]
        %v250 = vld [vmem:[%s233 + $0x20] sm:$0xf]
        %v251 = vld [vmem:[%s233 + $0x24] sm:$0xf]
        %v252 = vld [vmem:[%s233 + $0x28] sm:$0xf]
        %v253 = vld [vmem:[%s233 + $0x2c] sm:$0xf]
        %v254 = vld [vmem:[%s233 + $0x30] sm:$0xf]
        %v255 = vld [vmem:[%s233 + $0x34] sm:$0xf]
        %v256 = vld [vmem:[%s233 + $0x38] sm:$0xf]
        %v257 = vld [vmem:[%s233 + $0x3c] sm:$0xf]
        %v258 = vld [vmem:[%s233 + $0x40] sm:$0xf]
        %v259 = vld [vmem:[%s233 + $0x44] sm:$0xf]
        %v260 = vld [vmem:[%s233 + $0x48] sm:$0xf]
        %v261 = vld [vmem:[%s233 + $0x4c] sm:$0xf]
        %v262 = vld [vmem:[%s233 + $0x50] sm:$0xf]
        %v263 = vld [vmem:[%s233 + $0x54] sm:$0xf]
        %v264 = vld [vmem:[%s233 + $0x58] sm:$0xf]
        %v265 = vld [vmem:[%s233 + $0x5c] sm:$0xf]
        %v266 = vld [vmem:[%s233 + $0x60] sm:$0xf]
        %v267 = vld [vmem:[%s233 + $0x64] sm:$0xf]
        %v268 = vld [vmem:[%s233 + $0x68] sm:$0xf]
        %v269 = vld [vmem:[%s233 + $0x6c] sm:$0xf]
        %v270 = vld [vmem:[%s233 + $0x70] sm:$0xf]
        %v271 = vld [vmem:[%s233 + $0x74] sm:$0xf]
        %v272 = vld [vmem:[%s233 + $0x78] sm:$0xf]
        %v273 = vld [vmem:[%s233 + $0x7c] sm:$0xf]
        %v274 = vld [vmem:[#allocation2] sm:$0xf]
        %v275 = vld [vmem:[#allocation2 + $0x4] sm:$0x1]
        %v308 = vunpack.c.l.b16 %v242
        %v309 = vunpack.c.l.b16 %v243
        %v310 = vunpack.c.l.b16 %v244
        %v311 = vunpack.c.l.b16 %v245
        %v312 = vunpack.c.l.b16 %v246
        %v313 = vunpack.c.l.b16 %v247
        %v314 = vunpack.c.l.b16 %v248
        %v315 = vunpack.c.l.b16 %v249
        %v316 = vunpack.c.l.b16 %v250
        %v317 = vunpack.c.l.b16 %v251
        %v318 = vunpack.c.l.b16 %v252
        %v319 = vunpack.c.l.b16 %v253
        %v320 = vunpack.c.l.b16 %v254
        %v321 = vunpack.c.l.b16 %v255
        %v322 = vunpack.c.l.b16 %v256
        %v323 = vunpack.c.l.b16 %v257
        %v324 = vunpack.c.l.b16 %v258
        %v325 = vunpack.c.l.b16 %v259
        %v326 = vunpack.c.l.b16 %v260
        %v327 = vunpack.c.l.b16 %v261
        %v328 = vunpack.c.l.b16 %v262
        %v329 = vunpack.c.l.b16 %v263
        %v330 = vunpack.c.l.b16 %v264
        %v331 = vunpack.c.l.b16 %v265
        %v332 = vunpack.c.l.b16 %v266
        %v333 = vunpack.c.l.b16 %v267
        %v334 = vunpack.c.l.b16 %v268
        %v335 = vunpack.c.l.b16 %v269
        %v336 = vunpack.c.l.b16 %v270
        %v337 = vunpack.c.l.b16 %v271
        %v338 = vunpack.c.l.b16 %v272
        %v339 = vunpack.c.l.b16 %v273
        %v340 = vpack.c.b16 %v309, %v308
        %v341 = vpack.c.b16 %v311, %v310
        %v342 = vpack.c.b16 %v313, %v312
        %v343 = vpack.c.b16 %v315, %v314
        %v344 = vpack.c.b16 %v317, %v316
        %v345 = vpack.c.b16 %v319, %v318
        %v346 = vpack.c.b16 %v321, %v320
        %v347 = vpack.c.b16 %v323, %v322
        %v348 = vpack.c.b16 %v325, %v324
        %v349 = vpack.c.b16 %v327, %v326
        %v350 = vpack.c.b16 %v329, %v328
        %v351 = vpack.c.b16 %v331, %v330
        %v352 = vpack.c.b16 %v333, %v332
        %v353 = vpack.c.b16 %v335, %v334
        %v354 = vpack.c.b16 %v337, %v336
        %v355 = vpack.c.b16 %v339, %v338
        %v358 = vunpack.c.l.b16 %v274
        %v359 = vunpack.c.l.b16 %v275
        %v360 = vpack.c.b16 %v359, %v358
        %vm361 = vcmask 72704
        %v363 = vsel %vm361, %v340, 0
        %v366 = vsel %vm361, %v341, 0
        %v369 = vsel %vm361, %v342, 0
        %v372 = vsel %vm361, %v343, 0
        %v375 = vsel %vm361, %v344, 0
        %v378 = vsel %vm361, %v345, 0
        %v381 = vsel %vm361, %v346, 0
        %v384 = vsel %vm361, %v347, 0
        %v387 = vsel %vm361, %v348, 0
        %v390 = vsel %vm361, %v349, 0
        %v393 = vsel %vm361, %v350, 0
        %v396 = vsel %vm361, %v351, 0
        %v399 = vsel %vm361, %v352, 0
        %v402 = vsel %vm361, %v353, 0
        %v405 = vsel %vm361, %v354, 0
        %v408 = vsel %vm361, %v355, 0
        %vm410 = vcmask 1043456
        %vm411 = vcmask 1044480
        %v412 = vsel %vm410, 4294967295, 65535
        %v413 = vsel %vm411, %v412, 0
        %v415 = vand.u32 %v360, %v413
        %417 = vmatprep.subr.bf16.mxu0 0
        %418 = vmatpush1.bf16.msra.mxu0 %v415
        %419 = vmatprep.subr.bf16.mxu0 0
        %420 = vmatpush1.bf16.msra.mxu0 0
        %421 = vmatprep.subr.bf16.mxu0 0
        %422 = vmatpush1.bf16.msra.mxu0 0
        %423 = vmatprep.subr.bf16.mxu0 0
        %424 = vmatpush1.bf16.msra.mxu0 0
        %425 = vmatprep.subr.bf16.mxu0 0
        %426 = vmatpush1.bf16.msra.mxu0 0
        %427 = vmatprep.subr.bf16.mxu0 0
        %428 = vmatpush1.bf16.msra.mxu0 0
        %429 = vmatprep.subr.bf16.mxu0 0
        %430 = vmatpush1.bf16.msra.mxu0 0
        %431 = vmatprep.subr.bf16.mxu0 0
        %432 = vmatpush1.bf16.msra.mxu0 0
        %433 = vmatprep.subr.bf16.mxu0 0
        %434 = vmatpush1.bf16.msra.mxu0 0
        %435 = vmatprep.subr.bf16.mxu0 0
        %436 = vmatpush1.bf16.msra.mxu0 0
        %437 = vmatprep.subr.bf16.mxu0 0
        %438 = vmatpush1.bf16.msra.mxu0 0
        %439 = vmatprep.subr.bf16.mxu0 0
        %440 = vmatpush1.bf16.msra.mxu0 0
        %441 = vmatprep.subr.bf16.mxu0 0
        %442 = vmatpush1.bf16.msra.mxu0 0
        %443 = vmatprep.subr.bf16.mxu0 0
        %444 = vmatpush1.bf16.msra.mxu0 0
        %445 = vmatprep.subr.bf16.mxu0 0
        %446 = vmatpush1.bf16.msra.mxu0 0
        %447 = vmatprep.subr.bf16.mxu0 0
        %448 = vmatpush1.bf16.msra.mxu0 0
        %449 = vmatprep.mubr.bf16.mxu0 0
        %450 = vmatmul.mubr.bf16.gmra.mrb[0].mxu0 %v363
        %v451 = vpop.f32.mrb[0].mxu0
        %v452 = vadd.f32 0.0, %v451
        %v453 = vpop.f32.mrb[0].mxu0
        %v454 = vpop.f32.mrb[0].mxu0
        %v455 = vadd.f32 0.0, %v454
        %v456 = vpop.f32.mrb[0].mxu0
        %457 = vmatprep.mubr.bf16.mxu0 0
        %458 = vmatmul.mubr.bf16.gmra.mrb[0].mxu0 %v366
        %v459 = vpop.f32.mrb[0].mxu0
        %v460 = vadd.f32 0.0, %v459
        %v461 = vpop.f32.mrb[0].mxu0
        %v462 = vpop.f32.mrb[0].mxu0
        %v463 = vadd.f32 0.0, %v462
        %v464 = vpop.f32.mrb[0].mxu0
        %465 = vmatprep.mubr.bf16.mxu0 0
        %466 = vmatmul.mubr.bf16.gmra.mrb[0].mxu0 %v369
        %v467 = vpop.f32.mrb[0].mxu0
        %v468 = vadd.f32 0.0, %v467
        %v469 = vpop.f32.mrb[0].mxu0
        %v470 = vpop.f32.mrb[0].mxu0
        %v471 = vadd.f32 0.0, %v470
        %v472 = vpop.f32.mrb[0].mxu0
        %473 = vmatprep.mubr.bf16.mxu0 0
        %474 = vmatmul.mubr.bf16.gmra.mrb[0].mxu0 %v372
        %v475 = vpop.f32.mrb[0].mxu0
        %v476 = vadd.f32 0.0, %v475
        %v477 = vpop.f32.mrb[0].mxu0
        %v478 = vpop.f32.mrb[0].mxu0
        %v479 = vadd.f32 0.0, %v478
        %v480 = vpop.f32.mrb[0].mxu0
        %481 = vmatprep.mubr.bf16.mxu0 0
        %482 = vmatmul.mubr.bf16.gmra.mrb[0].mxu0 %v375
        %v483 = vpop.f32.mrb[0].mxu0
        %v484 = vadd.f32 0.0, %v483
        %v485 = vpop.f32.mrb[0].mxu0
        %v486 = vpop.f32.mrb[0].mxu0
        %v487 = vadd.f32 0.0, %v486
        %v488 = vpop.f32.mrb[0].mxu0
        %489 = vmatprep.mubr.bf16.mxu0 0
        %490 = vmatmul.mubr.bf16.gmra.mrb[0].mxu0 %v378
        %v491 = vpop.f32.mrb[0].mxu0
        %v492 = vadd.f32 0.0, %v491
        %v493 = vpop.f32.mrb[0].mxu0
        %v494 = vpop.f32.mrb[0].mxu0
        %v495 = vadd.f32 0.0, %v494
        %v496 = vpop.f32.mrb[0].mxu0
        %497 = vmatprep.mubr.bf16.mxu0 0
        %498 = vmatmul.mubr.bf16.gmra.mrb[0].mxu0 %v381
        %v499 = vpop.f32.mrb[0].mxu0
        %v500 = vadd.f32 0.0, %v499
        %v501 = vpop.f32.mrb[0].mxu0
        %v502 = vpop.f32.mrb[0].mxu0
        %v503 = vadd.f32 0.0, %v502
        %v504 = vpop.f32.mrb[0].mxu0
        %505 = vmatprep.mubr.bf16.mxu0 0
        %506 = vmatmul.mubr.bf16.gmra.mrb[0].mxu0 %v384
        %v507 = vpop.f32.mrb[0].mxu0
        %v508 = vadd.f32 0.0, %v507
        %v509 = vpop.f32.mrb[0].mxu0
        %v510 = vpop.f32.mrb[0].mxu0
        %v511 = vadd.f32 0.0, %v510
        %v512 = vpop.f32.mrb[0].mxu0
        %513 = vmatprep.mubr.bf16.mxu0 0
        %514 = vmatmul.mubr.bf16.gmra.mrb[0].mxu0 %v387
        %v515 = vpop.f32.mrb[0].mxu0
        %v516 = vadd.f32 0.0, %v515
        %v517 = vpop.f32.mrb[0].mxu0
        %v518 = vpop.f32.mrb[0].mxu0
        %v519 = vadd.f32 0.0, %v518
        %v520 = vpop.f32.mrb[0].mxu0
        %521 = vmatprep.mubr.bf16.mxu0 0
        %522 = vmatmul.mubr.bf16.gmra.mrb[0].mxu0 %v390
        %v523 = vpop.f32.mrb[0].mxu0
        %v524 = vadd.f32 0.0, %v523
        %v525 = vpop.f32.mrb[0].mxu0
        %v526 = vpop.f32.mrb[0].mxu0
        %v527 = vadd.f32 0.0, %v526
        %v528 = vpop.f32.mrb[0].mxu0
        %529 = vmatprep.mubr.bf16.mxu0 0
        %530 = vmatmul.mubr.bf16.gmra.mrb[0].mxu0 %v393
        %v531 = vpop.f32.mrb[0].mxu0
        %v532 = vadd.f32 0.0, %v531
        %v533 = vpop.f32.mrb[0].mxu0
        %v534 = vpop.f32.mrb[0].mxu0
        %v535 = vadd.f32 0.0, %v534
        %v536 = vpop.f32.mrb[0].mxu0
        %537 = vmatprep.mubr.bf16.mxu0 0
        %538 = vmatmul.mubr.bf16.gmra.mrb[0].mxu0 %v396
        %v539 = vpop.f32.mrb[0].mxu0
        %v540 = vadd.f32 0.0, %v539
        %v541 = vpop.f32.mrb[0].mxu0
        %v542 = vpop.f32.mrb[0].mxu0
        %v543 = vadd.f32 0.0, %v542
        %v544 = vpop.f32.mrb[0].mxu0
        %545 = vmatprep.mubr.bf16.mxu0 0
        %546 = vmatmul.mubr.bf16.gmra.mrb[0].mxu0 %v399
        %v547 = vpop.f32.mrb[0].mxu0
        %v548 = vadd.f32 0.0, %v547
        %v549 = vpop.f32.mrb[0].mxu0
        %v550 = vpop.f32.mrb[0].mxu0
        %v551 = vadd.f32 0.0, %v550
        %v552 = vpop.f32.mrb[0].mxu0
        %553 = vmatprep.mubr.bf16.mxu0 0
        %554 = vmatmul.mubr.bf16.gmra.mrb[0].mxu0 %v402
        %v555 = vpop.f32.mrb[0].mxu0
        %v556 = vadd.f32 0.0, %v555
        %v557 = vpop.f32.mrb[0].mxu0
        %v558 = vpop.f32.mrb[0].mxu0
        %v559 = vadd.f32 0.0, %v558
        %v560 = vpop.f32.mrb[0].mxu0
        %561 = vmatprep.mubr.bf16.mxu0 0
        %562 = vmatmul.mubr.bf16.gmra.mrb[0].mxu0 %v405
        %v563 = vpop.f32.mrb[0].mxu0
        %v564 = vadd.f32 0.0, %v563
        %v565 = vpop.f32.mrb[0].mxu0
        %v566 = vpop.f32.mrb[0].mxu0
        %v567 = vadd.f32 0.0, %v566
        %v568 = vpop.f32.mrb[0].mxu0
        %569 = vmatprep.mubr.bf16.mxu0 0
        %570 = vmatmul.mubr.bf16.gmra.mrb[0].mxu0 %v408
        %v571 = vpop.f32.mrb[0].mxu0
        %v572 = vadd.f32 0.0, %v571
        %v573 = vpop.f32.mrb[0].mxu0
        %v574 = vpop.f32.mrb[0].mxu0
        %v575 = vadd.f32 0.0, %v574
        %v576 = vpop.f32.mrb[0].mxu0
        %577 = vdwg.mxu0
        %v578 = vld [vmem:[#allocation4] sm:$0x1]
        %v580 = vlaneseq
        %v581 = vshrl.u32 %v580, 7
        %v582 = vsub.s32 0, %v581
        %v583 = vrot.slane %v578, %v582
        %v585 = vmul.f32 %v452, %v583
        %v586 = vmul.f32 %v455, %v583
        %v587 = vmul.f32 %v460, %v583
        %v588 = vmul.f32 %v463, %v583
        %v589 = vmul.f32 %v468, %v583
        %v590 = vmul.f32 %v471, %v583
        %v591 = vmul.f32 %v476, %v583
        %v592 = vmul.f32 %v479, %v583
        %v593 = vmul.f32 %v484, %v583
        %v594 = vmul.f32 %v487, %v583
        %v595 = vmul.f32 %v492, %v583
        %v596 = vmul.f32 %v495, %v583
        %v597 = vmul.f32 %v500, %v583
        %v598 = vmul.f32 %v503, %v583
        %v599 = vmul.f32 %v508, %v583
        %v600 = vmul.f32 %v511, %v583
        %v601 = vmul.f32 %v516, %v583
        %v602 = vmul.f32 %v519, %v583
        %v603 = vmul.f32 %v524, %v583
        %v604 = vmul.f32 %v527, %v583
        %v605 = vmul.f32 %v532, %v583
        %v606 = vmul.f32 %v535, %v583
        %v607 = vmul.f32 %v540, %v583
        %v608 = vmul.f32 %v543, %v583
        %v609 = vmul.f32 %v548, %v583
        %v610 = vmul.f32 %v551, %v583
        %v611 = vmul.f32 %v556, %v583
        %v612 = vmul.f32 %v559, %v583
        %v613 = vmul.f32 %v564, %v583
        %v614 = vmul.f32 %v567, %v583
        %v615 = vmul.f32 %v572, %v583
        %v616 = vmul.f32 %v575, %v583
        %v617 = vld [vmem:[#allocation6] sm:$0x1]
        %v619 = vlaneseq
        %v620 = vshrl.u32 %v619, 7
        %v621 = vsub.s32 0, %v620
        %v622 = vrot.slane %v617, %v621
        %v624 = vadd.f32 %v585, %v622
        %v625 = vadd.f32 %v586, %v622
        %v626 = vadd.f32 %v587, %v622
        %v627 = vadd.f32 %v588, %v622
        %v628 = vadd.f32 %v589, %v622
        %v629 = vadd.f32 %v590, %v622
        %v630 = vadd.f32 %v591, %v622
        %v631 = vadd.f32 %v592, %v622
        %v632 = vadd.f32 %v593, %v622
        %v633 = vadd.f32 %v594, %v622
        %v634 = vadd.f32 %v595, %v622
        %v635 = vadd.f32 %v596, %v622
        %v636 = vadd.f32 %v597, %v622
        %v637 = vadd.f32 %v598, %v622
        %v638 = vadd.f32 %v599, %v622
        %v639 = vadd.f32 %v600, %v622
        %v640 = vadd.f32 %v601, %v622
        %v641 = vadd.f32 %v602, %v622
        %v642 = vadd.f32 %v603, %v622
        %v643 = vadd.f32 %v604, %v622
        %v644 = vadd.f32 %v605, %v622
        %v645 = vadd.f32 %v606, %v622
        %v646 = vadd.f32 %v607, %v622
        %v647 = vadd.f32 %v608, %v622
        %v648 = vadd.f32 %v609, %v622
        %v649 = vadd.f32 %v610, %v622
        %v650 = vadd.f32 %v611, %v622
        %v651 = vadd.f32 %v612, %v622
        %v652 = vadd.f32 %v613, %v622
        %v653 = vadd.f32 %v614, %v622
        %v654 = vadd.f32 %v615, %v622
        %v655 = vadd.f32 %v616, %v622
        %v656 = vmax.f32 %v624, 0.0
        %v657 = vmax.f32 %v625, 0.0
        %v658 = vmax.f32 %v626, 0.0
        %v659 = vmax.f32 %v627, 0.0
        %v660 = vmax.f32 %v628, 0.0
        %v661 = vmax.f32 %v629, 0.0
        %v662 = vmax.f32 %v630, 0.0
        %v663 = vmax.f32 %v631, 0.0
        %v664 = vmax.f32 %v632, 0.0
        %v665 = vmax.f32 %v633, 0.0
        %v666 = vmax.f32 %v634, 0.0
        %v667 = vmax.f32 %v635, 0.0
        %v668 = vmax.f32 %v636, 0.0
        %v669 = vmax.f32 %v637, 0.0
        %v670 = vmax.f32 %v638, 0.0
        %v671 = vmax.f32 %v639, 0.0
        %v672 = vmax.f32 %v640, 0.0
        %v673 = vmax.f32 %v641, 0.0
        %v674 = vmax.f32 %v642, 0.0
        %v675 = vmax.f32 %v643, 0.0
        %v676 = vmax.f32 %v644, 0.0
        %v677 = vmax.f32 %v645, 0.0
        %v678 = vmax.f32 %v646, 0.0
        %v679 = vmax.f32 %v647, 0.0
        %v680 = vmax.f32 %v648, 0.0
        %v681 = vmax.f32 %v649, 0.0
        %v682 = vmax.f32 %v650, 0.0
        %v683 = vmax.f32 %v651, 0.0
        %v684 = vmax.f32 %v652, 0.0
        %v685 = vmax.f32 %v653, 0.0
        %v686 = vmax.f32 %v654, 0.0
        %v687 = vmax.f32 %v655, 0.0
        %v688 = vpack.c.bf16 %v657, %v656
        %v689 = vpack.c.bf16 %v659, %v658
        %v690 = vpack.c.bf16 %v661, %v660
        %v691 = vpack.c.bf16 %v663, %v662
        %v692 = vpack.c.bf16 %v665, %v664
        %v693 = vpack.c.bf16 %v667, %v666
        %v694 = vpack.c.bf16 %v669, %v668
        %v695 = vpack.c.bf16 %v671, %v670
        %v696 = vpack.c.bf16 %v673, %v672
        %v697 = vpack.c.bf16 %v675, %v674
        %v698 = vpack.c.bf16 %v677, %v676
        %v699 = vpack.c.bf16 %v679, %v678
        %v700 = vpack.c.bf16 %v681, %v680
        %v701 = vpack.c.bf16 %v683, %v682
        %v702 = vpack.c.bf16 %v685, %v684
        %v703 = vpack.c.bf16 %v687, %v686
        %v720 = vunpack.c.l.b16 %v688
        %v721 = vunpack.c.h.b16 %v688
        %v722 = vunpack.c.l.b16 %v689
        %v723 = vunpack.c.h.b16 %v689
        %v724 = vunpack.c.l.b16 %v690
        %v725 = vunpack.c.h.b16 %v690
        %v726 = vunpack.c.l.b16 %v691
        %v727 = vunpack.c.h.b16 %v691
        %v728 = vunpack.c.l.b16 %v692
        %v729 = vunpack.c.h.b16 %v692
        %v730 = vunpack.c.l.b16 %v693
        %v731 = vunpack.c.h.b16 %v693
        %v732 = vunpack.c.l.b16 %v694
        %v733 = vunpack.c.h.b16 %v694
        %v734 = vunpack.c.l.b16 %v695
        %v735 = vunpack.c.h.b16 %v695
        %v736 = vunpack.c.l.b16 %v696
        %v737 = vunpack.c.h.b16 %v696
        %v738 = vunpack.c.l.b16 %v697
        %v739 = vunpack.c.h.b16 %v697
        %v740 = vunpack.c.l.b16 %v698
        %v741 = vunpack.c.h.b16 %v698
        %v742 = vunpack.c.l.b16 %v699
        %v743 = vunpack.c.h.b16 %v699
        %v744 = vunpack.c.l.b16 %v700
        %v745 = vunpack.c.h.b16 %v700
        %v746 = vunpack.c.l.b16 %v701
        %v747 = vunpack.c.h.b16 %v701
        %v748 = vunpack.c.l.b16 %v702
        %v749 = vunpack.c.h.b16 %v702
        %v750 = vunpack.c.l.b16 %v703
        %v751 = vunpack.c.h.b16 %v703
        %v752 = vpack.c.b16 %v720, %v720
        %v753 = vpack.c.b16 %v721, %v721
        %v754 = vpack.c.b16 %v722, %v722
        %v755 = vpack.c.b16 %v723, %v723
        %v756 = vpack.c.b16 %v724, %v724
        %v757 = vpack.c.b16 %v725, %v725
        %v758 = vpack.c.b16 %v726, %v726
        %v759 = vpack.c.b16 %v727, %v727
        %v760 = vpack.c.b16 %v728, %v728
        %v761 = vpack.c.b16 %v729, %v729
        %v762 = vpack.c.b16 %v730, %v730
        %v763 = vpack.c.b16 %v731, %v731
        %v764 = vpack.c.b16 %v732, %v732
        %v765 = vpack.c.b16 %v733, %v733
        %v766 = vpack.c.b16 %v734, %v734
        %v767 = vpack.c.b16 %v735, %v735
        %v768 = vpack.c.b16 %v736, %v736
        %v769 = vpack.c.b16 %v737, %v737
        %v770 = vpack.c.b16 %v738, %v738
        %v771 = vpack.c.b16 %v739, %v739
        %v772 = vpack.c.b16 %v740, %v740
        %v773 = vpack.c.b16 %v741, %v741
        %v774 = vpack.c.b16 %v742, %v742
        %v775 = vpack.c.b16 %v743, %v743
        %v776 = vpack.c.b16 %v744, %v744
        %v777 = vpack.c.b16 %v745, %v745
        %v778 = vpack.c.b16 %v746, %v746
        %v779 = vpack.c.b16 %v747, %v747
        %v780 = vpack.c.b16 %v748, %v748
        %v781 = vpack.c.b16 %v749, %v749
        %v782 = vpack.c.b16 %v750, %v750
        %v783 = vpack.c.b16 %v751, %v751
        %vm816 = vcmask 125952
        %817 = vst.msk [vmem:[%s239] sm:$0xf] %vm816, %v752
        %818 = vst.msk [vmem:[%s239 + $0x4] sm:$0xf] %vm816, %v753
        %819 = vst.msk [vmem:[%s239 + $0x8] sm:$0xf] %vm816, %v754
        %820 = vst.msk [vmem:[%s239 + $0xc] sm:$0xf] %vm816, %v755
        %821 = vst.msk [vmem:[%s239 + $0x10] sm:$0xf] %vm816, %v756
        %822 = vst.msk [vmem:[%s239 + $0x14] sm:$0xf] %vm816, %v757
        %823 = vst.msk [vmem:[%s239 + $0x18] sm:$0xf] %vm816, %v758
        %824 = vst.msk [vmem:[%s239 + $0x1c] sm:$0xf] %vm816, %v759
        %825 = vst.msk [vmem:[%s239 + $0x20] sm:$0xf] %vm816, %v760
        %826 = vst.msk [vmem:[%s239 + $0x24] sm:$0xf] %vm816, %v761
        %827 = vst.msk [vmem:[%s239 + $0x28] sm:$0xf] %vm816, %v762
        %828 = vst.msk [vmem:[%s239 + $0x2c] sm:$0xf] %vm816, %v763
        %829 = vst.msk [vmem:[%s239 + $0x30] sm:$0xf] %vm816, %v764
        %830 = vst.msk [vmem:[%s239 + $0x34] sm:$0xf] %vm816, %v765
        %831 = vst.msk [vmem:[%s239 + $0x38] sm:$0xf] %vm816, %v766
        %832 = vst.msk [vmem:[%s239 + $0x3c] sm:$0xf] %vm816, %v767
        %833 = vst.msk [vmem:[%s239 + $0x40] sm:$0xf] %vm816, %v768
        %834 = vst.msk [vmem:[%s239 + $0x44] sm:$0xf] %vm816, %v769
        %835 = vst.msk [vmem:[%s239 + $0x48] sm:$0xf] %vm816, %v770
        %836 = vst.msk [vmem:[%s239 + $0x4c] sm:$0xf] %vm816, %v771
        %837 = vst.msk [vmem:[%s239 + $0x50] sm:$0xf] %vm816, %v772
        %838 = vst.msk [vmem:[%s239 + $0x54] sm:$0xf] %vm816, %v773
        %839 = vst.msk [vmem:[%s239 + $0x58] sm:$0xf] %vm816, %v774
        %840 = vst.msk [vmem:[%s239 + $0x5c] sm:$0xf] %vm816, %v775
        %841 = vst.msk [vmem:[%s239 + $0x60] sm:$0xf] %vm816, %v776
        %842 = vst.msk [vmem:[%s239 + $0x64] sm:$0xf] %vm816, %v777
        %843 = vst.msk [vmem:[%s239 + $0x68] sm:$0xf] %vm816, %v778
        %844 = vst.msk [vmem:[%s239 + $0x6c] sm:$0xf] %vm816, %v779
        %845 = vst.msk [vmem:[%s239 + $0x70] sm:$0xf] %vm816, %v780
        %846 = vst.msk [vmem:[%s239 + $0x74] sm:$0xf] %vm816, %v781
        %847 = vst.msk [vmem:[%s239 + $0x78] sm:$0xf] %vm816, %v782
        %848 = vst.msk [vmem:[%s239 + $0x7c] sm:$0xf] %vm816, %v783
        %s849 = smul.u32 32, %s17
        %p850 = scmp.lt.s32.totalorder %s849, 63
        %s851 = scalar_select %p850, %s849, 63
        %s852 = smul.addr %s851, 4
        %s853 = scalar_lea.vmem %s4, %s852
        // Predicated region
        $region49: #{_lambda_.7} parent=35 // pred_check
          %p854 = pneg %p124
        $region50: #{_lambda_.7} parent=35 // pred_check_branch
          %856 = sbr.rel (%p854) target = $region52
        $region51: #{_lambda_.7} parent=35 // pred_region
          %s857 = smul.u32 32, %s17
        $region52: #{_lambda_.7} parent=35 // pred_fallthru
          _
      $region36: #{_lambda_.7} parent=5 // pred_fallthru
        _
      %p858 = scmp.le.s32.totalorder 2, %s12
      // Predicated region
      $region53: #{_lambda_.7} parent=5 // pred_check
        %p859 = pneg %p858
      $region54: #{_lambda_.7} parent=5 // pred_check_branch
        %861 = sbr.rel (%p859) target = $region56
      $region55: #{_lambda_.7} parent=5 // pred_region
        %s862 = ssub.s32 %s12, 2
        // Predicated region
        $region57: #{_lambda_.7} parent=55 // pred_check
          %p863 = pneg %p130
        $region58: #{_lambda_.7} parent=55 // pred_check_branch
          %865 = sbr.rel (%p863) target = $region60
        $region59: #{_lambda_.7} parent=55 // pred_region
          %s866 = smul.u32 32, %s18
          %p867 = scmp.lt.s32.totalorder %s866, 63
          %s868 = scalar_select %p867, %s866, 63
          %s869 = smul.addr %s868, 4
          %s870 = scalar_lea.vmem %s4, %s869
        $region60: #{_lambda_.7} parent=55 // pred_fallthru
          _
      $region56: #{_lambda_.7} parent=5 // pred_fallthru
        _
    $region6: #{_lambda_.7} parent=1 // loop_footer
      %s16 = sadd.s32 1, %s12
    $region7: #{_lambda_.7} parent=1 // loop_footer_branch
      %11 = sbr.rel target = $region3
    $region8: #{_lambda_.7} parent=1 // loop_exit
      _
    %871 = vsyncpa [#allocation3], 1
    %s872 = scalar_lea.sflag [#allocation3], 1
    %873 = vsyncpa %s872, 1
    %874 = vsyncpa [#allocation5], 1

// kernel: _lambda_.8
$region0: #{_lambda_.8}
  #allocation0 [shape = 'u32[]', space=smem, size = 0x4, offset = 0x4, fixed_abs, tag = 'smem constant byte address 0x4 - core index']
  #allocation1 [shape = 'u32[144,128]{1,0:T(1,128)}', space=vmem, size = 0x12000, scoped, tag = 'internal scratch']
  %s0 = inlined_call_operand.vmem [shape: bf16[512,144], index: 0, kind: input, shape index: {}]
  %s1 = inlined_call_operand.vmem [shape: bf16[144,16], index: 1, kind: input, shape index: {}]
  %s2 = inlined_call_operand.vmem [shape: f32[1,16], index: 2, kind: input, shape index: {}]
  %s3 = inlined_call_operand.vmem [shape: f32[1,16], index: 3, kind: input, shape index: {}]
  %s4 = inlined_call_operand.vmem [shape: bf16[512,16], index: 4, kind: output, shape index: {}]
  %s5 = sld [smem:[#allocation0]]
  $region49: #{_lambda_.8} parent=0
    _
  %s7 = ssub.s32 1, %s5
  %s8 = scalar_select 0, %s7, %s5
  loop: start=0, step=1, limit=4
  $region2: #{_lambda_.8} parent=0 // loop_pre_header
    _
  $region3: #{_lambda_.8} parent=0 // loop_header
    %s10 = sphi 0, %s14
    %p11 = scmp.ge.s32.totalorder %s10, 4
    %s20 = sphi 0, %s22
    %s23 = sphi 0, %s20
    %s24 = sphi 0, %s23
    %s40 = sphi 0, %s24
    %s44 = sphi 0, %s44
    %s46 = sphi 0, %s44
    %s47 = sphi 0, %s46
    %s61 = sphi 0, %s47
    %s65 = sphi 0, %s65
    %s67 = sphi 0, %s65
    %s68 = sphi 0, %s67
    %s82 = sphi 0, %s68
    %s86 = sphi 0, %s86
    %s88 = sphi 0, %s86
    %s89 = sphi 0, %s88
    %s103 = sphi 0, %s89
    %s109 = sphi 0, %s111
    %s112 = sphi 0, %s109
    %s113 = sphi 0, %s112
    %s129 = sphi 0, %s113
  $region4: #{_lambda_.8} parent=0 // loop_header_branch
    %13 = sbr.rel (%p11) target = $region8
  $region5: #{_lambda_.8} parent=0 // loop_body
    %s15 = ssub.s32 %s10, 1
    %s16 = ssub.s32 %s10, 2
    %s17 = sadd.s32 %s10, 1
    %s18 = ssub.s32 %s10, %s17
    %p19 = scmp.eq.s32.totalorder %s18, 0
    %s21 = sadd.s32 %s20, 1
    %s22 = scalar_select %p19, %s20, %s21
    %p25 = pneg %p19
    %p26 = scmp.eq.s32.totalorder %s10, 1
    %p27 = por %p25, %p26
    %p28 = scmp.ne.s32.totalorder %s20, %s23
    %p29 = scmp.eq.s32.totalorder %s10, 0
    %p30 = por %p28, %p29
    %p31 = scmp.ne.s32.totalorder %s20, %s23
    %p32 = scmp.eq.s32.totalorder %s15, 1
    %p33 = por %p31, %p32
    %p34 = scmp.ne.s32.totalorder %s23, %s24
    %p35 = scmp.eq.s32.totalorder %s15, 0
    %p36 = por %p34, %p35
    %p37 = scmp.ne.s32.totalorder %s23, %s24
    %p38 = scmp.eq.s32.totalorder %s16, 1
    %p39 = por %p37, %p38
    %p41 = scmp.ne.s32.totalorder %s24, %s40
    %p42 = scmp.eq.s32.totalorder %s16, 0
    %p43 = por %p41, %p42
    %s45 = sadd.s32 %s44, 1
    %p48 = scmp.eq.s32.totalorder %s10, 1
    %p49 = scmp.ne.s32.totalorder %s44, %s46
    %p50 = scmp.eq.s32.totalorder %s10, 0
    %p51 = por %p49, %p50
    %p52 = scmp.ne.s32.totalorder %s44, %s46
    %p53 = scmp.eq.s32.totalorder %s15, 1
    %p54 = por %p52, %p53
    %p55 = scmp.ne.s32.totalorder %s46, %s47
    %p56 = scmp.eq.s32.totalorder %s15, 0
    %p57 = por %p55, %p56
    %p58 = scmp.ne.s32.totalorder %s46, %s47
    %p59 = scmp.eq.s32.totalorder %s16, 1
    %p60 = por %p58, %p59
    %p62 = scmp.ne.s32.totalorder %s47, %s61
    %p63 = scmp.eq.s32.totalorder %s16, 0
    %p64 = por %p62, %p63
    %s66 = sadd.s32 %s65, 1
    %p69 = scmp.eq.s32.totalorder %s10, 1
    %p70 = scmp.ne.s32.totalorder %s65, %s67
    %p71 = scmp.eq.s32.totalorder %s10, 0
    %p72 = por %p70, %p71
    %p73 = scmp.ne.s32.totalorder %s65, %s67
    %p74 = scmp.eq.s32.totalorder %s15, 1
    %p75 = por %p73, %p74
    %p76 = scmp.ne.s32.totalorder %s67, %s68
    %p77 = scmp.eq.s32.totalorder %s15, 0
    %p78 = por %p76, %p77
    %p79 = scmp.ne.s32.totalorder %s67, %s68
    %p80 = scmp.eq.s32.totalorder %s16, 1
    %p81 = por %p79, %p80
    %p83 = scmp.ne.s32.totalorder %s68, %s82
    %p84 = scmp.eq.s32.totalorder %s16, 0
    %p85 = por %p83, %p84
    %s87 = sadd.s32 %s86, 1
    %p90 = scmp.eq.s32.totalorder %s10, 1
    %p91 = scmp.ne.s32.totalorder %s86, %s88
    %p92 = scmp.eq.s32.totalorder %s10, 0
    %p93 = por %p91, %p92
    %p94 = scmp.ne.s32.totalorder %s86, %s88
    %p95 = scmp.eq.s32.totalorder %s15, 1
    %p96 = por %p94, %p95
    %p97 = scmp.ne.s32.totalorder %s88, %s89
    %p98 = scmp.eq.s32.totalorder %s15, 0
    %p99 = por %p97, %p98
    %p100 = scmp.ne.s32.totalorder %s88, %s89
    %p101 = scmp.eq.s32.totalorder %s16, 1
    %p102 = por %p100, %p101
    %p104 = scmp.ne.s32.totalorder %s89, %s103
    %p105 = scmp.eq.s32.totalorder %s16, 0
    %p106 = por %p104, %p105
    %s107 = ssub.s32 %s10, %s17
    %p108 = scmp.eq.s32.totalorder %s107, 0
    %s110 = sadd.s32 %s109, 1
    %s111 = scalar_select %p108, %s109, %s110
    %p114 = pneg %p108
    %p115 = scmp.eq.s32.totalorder %s10, 1
    %p116 = por %p114, %p115
    %p117 = scmp.ne.s32.totalorder %s109, %s112
    %p118 = scmp.eq.s32.totalorder %s10, 0
    %p119 = por %p117, %p118
    %p120 = scmp.ne.s32.totalorder %s109, %s112
    %p121 = scmp.eq.s32.totalorder %s15, 1
    %p122 = por %p120, %p121
    %p123 = scmp.ne.s32.totalorder %s112, %s113
    %p124 = scmp.eq.s32.totalorder %s15, 0
    %p125 = por %p123, %p124
    %p126 = scmp.ne.s32.totalorder %s112, %s113
    %p127 = scmp.eq.s32.totalorder %s16, 1
    %p128 = por %p126, %p127
    %p130 = scmp.ne.s32.totalorder %s113, %s129
    %p131 = scmp.eq.s32.totalorder %s16, 0
    %p132 = por %p130, %p131
    %p133 = scmp.le.s32.totalorder 1, %s10
    %p134 = scmp.lt.s32.totalorder %s10, 3
    %p135 = pnand %p133, %p134
    %p136 = pneg %p135
    // Predicated region
    $region9: #{_lambda_.8} parent=5 // pred_check
      _
    $region10: #{_lambda_.8} parent=5 // pred_check_branch
      %138 = sbr.rel (%p135) target = $region12
    $region11: #{_lambda_.8} parent=5 // pred_region
      %s139 = ssub.s32 %s10, 1
      // Predicated region
      $region13: #{_lambda_.8} parent=11 // pred_check
        %p140 = pneg %p57
      $region14: #{_lambda_.8} parent=11 // pred_check_branch
        %142 = sbr.rel (%p140) target = $region16
      $region15: #{_lambda_.8} parent=11 // pred_region
        _
      $region16: #{_lambda_.8} parent=11 // pred_fallthru
        _
      // Predicated region
      $region17: #{_lambda_.8} parent=11 // pred_check
        %p143 = pneg %p78
      $region18: #{_lambda_.8} parent=11 // pred_check_branch
        %145 = sbr.rel (%p143) target = $region20
      $region19: #{_lambda_.8} parent=11 // pred_region
        _
      $region20: #{_lambda_.8} parent=11 // pred_fallthru
        _
      // Predicated region
      $region21: #{_lambda_.8} parent=11 // pred_check
        %p146 = pneg %p99
      $region22: #{_lambda_.8} parent=11 // pred_check_branch
        %148 = sbr.rel (%p146) target = $region24
      $region23: #{_lambda_.8} parent=11 // pred_region
        _
      $region24: #{_lambda_.8} parent=11 // pred_fallthru
        _
    $region12: #{_lambda_.8} parent=5 // pred_fallthru
      _
    %p149 = scmp.lt.s32.totalorder %s10, 2
    // Predicated region
    $region25: #{_lambda_.8} parent=5 // pred_check
      %p150 = pneg %p149
    $region26: #{_lambda_.8} parent=5 // pred_check_branch
      %152 = sbr.rel (%p150) target = $region28
    $region27: #{_lambda_.8} parent=5 // pred_region
      // Predicated region
      $region29: #{_lambda_.8} parent=27 // pred_check
        %p153 = pneg %p30
      $region30: #{_lambda_.8} parent=27 // pred_check_branch
        %155 = sbr.rel (%p153) target = $region32
      $region31: #{_lambda_.8} parent=27 // pred_region
        %s156 = smul.u32 32, %s10
        %p157 = scmp.lt.s32.totalorder %s156, 63
        %s158 = scalar_select %p157, %s156, 63
        %s159 = smul.addr %s158, 2
        %s160 = smul.addr %s159, 4
        %s161 = scalar_lea.vmem %s0, %s160
        %s162 = smul.u32 32, %s10
      $region32: #{_lambda_.8} parent=27 // pred_fallthru
        _
    $region28: #{_lambda_.8} parent=5 // pred_fallthru
      _
    %p163 = scmp.le.s32.totalorder 1, %s10
    %p164 = scmp.lt.s32.totalorder %s10, 3
    %p165 = pnand %p163, %p164
    %p166 = pneg %p165
    // Predicated region
    $region33: #{_lambda_.8} parent=5 // pred_check
      _
    $region34: #{_lambda_.8} parent=5 // pred_check_branch
      %168 = sbr.rel (%p165) target = $region36
    $region35: #{_lambda_.8} parent=5 // pred_region
      %s169 = ssub.s32 %s10, 1
      %s170 = smul.u32 32, %s15
      %p171 = scmp.lt.s32.totalorder %s170, 63
      %s172 = scalar_select %p171, %s170, 63
      %s173 = smul.addr %s172, 2
      %s174 = smul.addr %s173, 4
      %s175 = scalar_lea.vmem %s0, %s174
      %p176 = pneg %p36
      %p177 = pneg %p33
      %p178 = pneg %p57
      %p179 = pneg %p54
      %p180 = pneg %p78
      %p181 = pneg %p75
      %p182 = pneg %p99
      %p183 = pneg %p96
      %p184 = pneg %p125
      %p185 = pneg %p122
      %s186 = smul.u32 32, %s15
      %p187 = scmp.lt.s32.totalorder %s186, 63
      %s188 = scalar_select %p187, %s186, 63
      %s189 = smul.addr %s188, 4
      %s190 = scalar_lea.vmem %s4, %s189
      %s191 = smul.u32 32, %s15
      %p192 = scmp.lt.s32.totalorder %s191, 63
      %s193 = scalar_select %p192, %s191, 63
      %s194 = smul.addr %s193, 2
      %s195 = smul.addr %s194, 4
      %s196 = scalar_lea.vmem %s0, %s195
      %s197 = smul.u32 32, %s15
      %s198 = smul.u32 32, %s15
      %p199 = scmp.lt.s32.totalorder %s198, 63
      %s200 = scalar_select %p199, %s198, 63
      %s201 = smul.addr %s200, 4
      %s202 = scalar_lea.vmem %s4, %s201
      %s203 = smul.u32 32, %s15
      %v205 = vld [vmem:[%s196] sm:$0xff]
      %v206 = vld [vmem:[%s196 + $0x8] sm:$0xff]
      %v207 = vld [vmem:[%s196 + $0x10] sm:$0xff]
      %v208 = vld [vmem:[%s196 + $0x18] sm:$0xff]
      %v209 = vld [vmem:[%s196 + $0x20] sm:$0xff]
      %v210 = vld [vmem:[%s196 + $0x28] sm:$0xff]
      %v211 = vld [vmem:[%s196 + $0x30] sm:$0xff]
      %v212 = vld [vmem:[%s196 + $0x38] sm:$0xff]
      %v213 = vld [vmem:[%s196 + $0x40] sm:$0xff]
      %v214 = vld [vmem:[%s196 + $0x48] sm:$0xff]
      %v215 = vld [vmem:[%s196 + $0x50] sm:$0xff]
      %v216 = vld [vmem:[%s196 + $0x58] sm:$0xff]
      %v217 = vld [vmem:[%s196 + $0x60] sm:$0xff]
      %v218 = vld [vmem:[%s196 + $0x68] sm:$0xff]
      %v219 = vld [vmem:[%s196 + $0x70] sm:$0xff]
      %v220 = vld [vmem:[%s196 + $0x78] sm:$0xff]
      %v221 = vld [vmem:[%s196 + $0x80] sm:$0xff]
      %v222 = vld [vmem:[%s196 + $0x88] sm:$0xff]
      %v223 = vld [vmem:[%s196 + $0x90] sm:$0xff]
      %v224 = vld [vmem:[%s196 + $0x98] sm:$0xff]
      %v225 = vld [vmem:[%s196 + $0xa0] sm:$0xff]
      %v226 = vld [vmem:[%s196 + $0xa8] sm:$0xff]
      %v227 = vld [vmem:[%s196 + $0xb0] sm:$0xff]
      %v228 = vld [vmem:[%s196 + $0xb8] sm:$0xff]
      %v229 = vld [vmem:[%s196 + $0xc0] sm:$0xff]
      %v230 = vld [vmem:[%s196 + $0xc8] sm:$0xff]
      %v231 = vld [vmem:[%s196 + $0xd0] sm:$0xff]
      %v232 = vld [vmem:[%s196 + $0xd8] sm:$0xff]
      %v233 = vld [vmem:[%s196 + $0xe0] sm:$0xff]
      %v234 = vld [vmem:[%s196 + $0xe8] sm:$0xff]
      %v235 = vld [vmem:[%s196 + $0xf0] sm:$0xff]
      %v236 = vld [vmem:[%s196 + $0xf8] sm:$0xff]
      %v237 = vld [vmem:[%s1] sm:$0xf]
      %v238 = vld [vmem:[%s1 + $0x4] sm:$0xf]
      %v239 = vld [vmem:[%s1 + $0x8] sm:$0xf]
      %v240 = vld [vmem:[%s1 + $0xc] sm:$0xf]
      %v241 = vld [vmem:[%s1 + $0x10] sm:$0xf]
      %v242 = vld [vmem:[%s1 + $0x14] sm:$0xf]
      %v243 = vld [vmem:[%s1 + $0x18] sm:$0xf]
      %v244 = vld [vmem:[%s1 + $0x1c] sm:$0xf]
      %v245 = vld [vmem:[%s1 + $0x20] sm:$0xf]
      %v246 = vld [vmem:[%s1 + $0x24] sm:$0xf]
      %v247 = vld [vmem:[%s1 + $0x28] sm:$0xf]
      %v248 = vld [vmem:[%s1 + $0x2c] sm:$0xf]
      %v249 = vld [vmem:[%s1 + $0x30] sm:$0xf]
      %v250 = vld [vmem:[%s1 + $0x34] sm:$0xf]
      %v251 = vld [vmem:[%s1 + $0x38] sm:$0xf]
      %v252 = vld [vmem:[%s1 + $0x3c] sm:$0xf]
      %v253 = vld [vmem:[%s1 + $0x40] sm:$0xf]
      %v254 = vld [vmem:[%s1 + $0x44] sm:$0xf]
      %v287 = vunpack.c.l.b16 %v205
      %v288 = vunpack.c.h.b16 %v205
      %v289 = vunpack.c.l.b16 %v206
      %v290 = vunpack.c.h.b16 %v206
      %v291 = vunpack.c.l.b16 %v207
      %v292 = vunpack.c.h.b16 %v207
      %v293 = vunpack.c.l.b16 %v208
      %v294 = vunpack.c.h.b16 %v208
      %v295 = vunpack.c.l.b16 %v209
      %v296 = vunpack.c.h.b16 %v209
      %v297 = vunpack.c.l.b16 %v210
      %v298 = vunpack.c.h.b16 %v210
      %v299 = vunpack.c.l.b16 %v211
      %v300 = vunpack.c.h.b16 %v211
      %v301 = vunpack.c.l.b16 %v212
      %v302 = vunpack.c.h.b16 %v212
      %v303 = vunpack.c.l.b16 %v213
      %v304 = vunpack.c.h.b16 %v213
      %v305 = vunpack.c.l.b16 %v214
      %v306 = vunpack.c.h.b16 %v214
      %v307 = vunpack.c.l.b16 %v215
      %v308 = vunpack.c.h.b16 %v215
      %v309 = vunpack.c.l.b16 %v216
      %v310 = vunpack.c.h.b16 %v216
      %v311 = vunpack.c.l.b16 %v217
      %v312 = vunpack.c.h.b16 %v217
      %v313 = vunpack.c.l.b16 %v218
      %v314 = vunpack.c.h.b16 %v218
      %v315 = vunpack.c.l.b16 %v219
      %v316 = vunpack.c.h.b16 %v219
      %v317 = vunpack.c.l.b16 %v220
      %v318 = vunpack.c.h.b16 %v220
      %v319 = vunpack.c.l.b16 %v221
      %v320 = vunpack.c.h.b16 %v221
      %v321 = vunpack.c.l.b16 %v222
      %v322 = vunpack.c.h.b16 %v222
      %v323 = vunpack.c.l.b16 %v223
      %v324 = vunpack.c.h.b16 %v223
      %v325 = vunpack.c.l.b16 %v224
      %v326 = vunpack.c.h.b16 %v224
      %v327 = vunpack.c.l.b16 %v225
      %v328 = vunpack.c.h.b16 %v225
      %v329 = vunpack.c.l.b16 %v226
      %v330 = vunpack.c.h.b16 %v226
      %v331 = vunpack.c.l.b16 %v227
      %v332 = vunpack.c.h.b16 %v227
      %v333 = vunpack.c.l.b16 %v228
      %v334 = vunpack.c.h.b16 %v228
      %v335 = vunpack.c.l.b16 %v229
      %v336 = vunpack.c.h.b16 %v229
      %v337 = vunpack.c.l.b16 %v230
      %v338 = vunpack.c.h.b16 %v230
      %v339 = vunpack.c.l.b16 %v231
      %v340 = vunpack.c.h.b16 %v231
      %v341 = vunpack.c.l.b16 %v232
      %v342 = vunpack.c.h.b16 %v232
      %v343 = vunpack.c.l.b16 %v233
      %v344 = vunpack.c.h.b16 %v233
      %v345 = vunpack.c.l.b16 %v234
      %v346 = vunpack.c.h.b16 %v234
      %v347 = vunpack.c.l.b16 %v235
      %v348 = vunpack.c.h.b16 %v235
      %v349 = vunpack.c.l.b16 %v236
      %v350 = vunpack.c.h.b16 %v236
      %v351 = vpack.c.b16 %v289, %v287
      %v352 = vpack.c.b16 %v290, %v288
      %v353 = vpack.c.b16 %v293, %v291
      %v354 = vpack.c.b16 %v294, %v292
      %v355 = vpack.c.b16 %v297, %v295
      %v356 = vpack.c.b16 %v298, %v296
      %v357 = vpack.c.b16 %v301, %v299
      %v358 = vpack.c.b16 %v302, %v300
      %v359 = vpack.c.b16 %v305, %v303
      %v360 = vpack.c.b16 %v306, %v304
      %v361 = vpack.c.b16 %v309, %v307
      %v362 = vpack.c.b16 %v310, %v308
      %v363 = vpack.c.b16 %v313, %v311
      %v364 = vpack.c.b16 %v314, %v312
      %v365 = vpack.c.b16 %v317, %v315
      %v366 = vpack.c.b16 %v318, %v316
      %v367 = vpack.c.b16 %v321, %v319
      %v368 = vpack.c.b16 %v322, %v320
      %v369 = vpack.c.b16 %v325, %v323
      %v370 = vpack.c.b16 %v326, %v324
      %v371 = vpack.c.b16 %v329, %v327
      %v372 = vpack.c.b16 %v330, %v328
      %v373 = vpack.c.b16 %v333, %v331
      %v374 = vpack.c.b16 %v334, %v332
      %v375 = vpack.c.b16 %v337, %v335
      %v376 = vpack.c.b16 %v338, %v336
      %v377 = vpack.c.b16 %v341, %v339
      %v378 = vpack.c.b16 %v342, %v340
      %v379 = vpack.c.b16 %v345, %v343
      %v380 = vpack.c.b16 %v346, %v344
      %v381 = vpack.c.b16 %v349, %v347
      %v382 = vpack.c.b16 %v350, %v348
      %v417 = vunpack.c.l.b16 %v237
      %v418 = vunpack.c.l.b16 %v238
      %v419 = vunpack.c.l.b16 %v239
      %v420 = vunpack.c.l.b16 %v240
      %v421 = vunpack.c.l.b16 %v241
      %v422 = vunpack.c.l.b16 %v242
      %v423 = vunpack.c.l.b16 %v243
      %v424 = vunpack.c.l.b16 %v244
      %v425 = vunpack.c.l.b16 %v245
      %v426 = vunpack.c.l.b16 %v246
      %v427 = vunpack.c.l.b16 %v247
      %v428 = vunpack.c.l.b16 %v248
      %v429 = vunpack.c.l.b16 %v249
      %v430 = vunpack.c.l.b16 %v250
      %v431 = vunpack.c.l.b16 %v251
      %v432 = vunpack.c.l.b16 %v252
      %v433 = vunpack.c.l.b16 %v253
      %v434 = vunpack.c.l.b16 %v254
      %v435 = vpack.c.b16 %v418, %v417
      %v436 = vpack.c.b16 %v420, %v419
      %v437 = vpack.c.b16 %v422, %v421
      %v438 = vpack.c.b16 %v424, %v423
      %v439 = vpack.c.b16 %v426, %v425
      %v440 = vpack.c.b16 %v428, %v427
      %v441 = vpack.c.b16 %v430, %v429
      %v442 = vpack.c.b16 %v432, %v431
      %v443 = vpack.c.b16 %v434, %v433
      %vm453 = vcmask 130048
      %v455 = vsel %vm453, %v352, 0
      %v458 = vsel %vm453, %v354, 0
      %v461 = vsel %vm453, %v356, 0
      %v464 = vsel %vm453, %v358, 0
      %v467 = vsel %vm453, %v360, 0
      %v470 = vsel %vm453, %v362, 0
      %v473 = vsel %vm453, %v364, 0
      %v476 = vsel %vm453, %v366, 0
      %v479 = vsel %vm453, %v368, 0
      %v482 = vsel %vm453, %v370, 0
      %v485 = vsel %vm453, %v372, 0
      %v488 = vsel %vm453, %v374, 0
      %v491 = vsel %vm453, %v376, 0
      %v494 = vsel %vm453, %v378, 0
      %v497 = vsel %vm453, %v380, 0
      %v500 = vsel %vm453, %v382, 0
      %502 = vmatprep.subr.bf16.mxu0 0
      %503 = vmatpush1.bf16.msra.mxu0 %v435
      %504 = vmatprep.subr.bf16.mxu0 0
      %505 = vmatpush1.bf16.msra.mxu0 %v436
      %506 = vmatprep.subr.bf16.mxu0 0
      %507 = vmatpush1.bf16.msra.mxu0 %v437
      %508 = vmatprep.subr.bf16.mxu0 0
      %509 = vmatpush1.bf16.msra.mxu0 %v438
      %510 = vmatprep.subr.bf16.mxu0 0
      %511 = vmatpush1.bf16.msra.mxu0 %v439
      %512 = vmatprep.subr.bf16.mxu0 0
      %513 = vmatpush1.bf16.msra.mxu0 %v440
      %514 = vmatprep.subr.bf16.mxu0 0
      %515 = vmatpush1.bf16.msra.mxu0 %v441
      %516 = vmatprep.subr.bf16.mxu0 0
      %517 = vmatpush1.bf16.msra.mxu0 %v442
      %518 = vmatprep.subr.bf16.mxu0 0
      %519 = vmatpush1.bf16.msra.mxu0 %v443
      %520 = vmatprep.subr.bf16.mxu0 0
      %521 = vmatpush1.bf16.msra.mxu0 0
      %522 = vmatprep.subr.bf16.mxu0 0
      %523 = vmatpush1.bf16.msra.mxu0 0
      %524 = vmatprep.subr.bf16.mxu0 0
      %525 = vmatpush1.bf16.msra.mxu0 0
      %526 = vmatprep.subr.bf16.mxu0 0
      %527 = vmatpush1.bf16.msra.mxu0 0
      %528 = vmatprep.subr.bf16.mxu0 0
      %529 = vmatpush1.bf16.msra.mxu0 0
      %530 = vmatprep.subr.bf16.mxu0 0
      %531 = vmatpush1.bf16.msra.mxu0 0
      %532 = vmatprep.subr.bf16.mxu0 0
      %533 = vmatpush1.bf16.msra.mxu0 0
      %534 = vmatprep.mubr.bf16.mxu0 %v455
      %535 = vmatmul.mubr.bf16.gmra.mrb[0].mxu0 %v351
      %v536 = vpop.f32.mrb[0].mxu0
      %v537 = vadd.f32 0.0, %v536
      %v538 = vpop.f32.mrb[0].mxu0
      %v539 = vpop.f32.mrb[0].mxu0
      %v540 = vadd.f32 0.0, %v539
      %v541 = vpop.f32.mrb[0].mxu0
      %542 = vmatprep.mubr.bf16.mxu0 %v458
      %543 = vmatmul.mubr.bf16.gmra.mrb[0].mxu0 %v353
      %v544 = vpop.f32.mrb[0].mxu0
      %v545 = vadd.f32 0.0, %v544
      %v546 = vpop.f32.mrb[0].mxu0
      %v547 = vpop.f32.mrb[0].mxu0
      %v548 = vadd.f32 0.0, %v547
      %v549 = vpop.f32.mrb[0].mxu0
      %550 = vmatprep.mubr.bf16.mxu0 %v461
      %551 = vmatmul.mubr.bf16.gmra.mrb[0].mxu0 %v355
      %v552 = vpop.f32.mrb[0].mxu0
      %v553 = vadd.f32 0.0, %v552
      %v554 = vpop.f32.mrb[0].mxu0
      %v555 = vpop.f32.mrb[0].mxu0
      %v556 = vadd.f32 0.0, %v555
      %v557 = vpop.f32.mrb[0].mxu0
      %558 = vmatprep.mubr.bf16.mxu0 %v464
      %559 = vmatmul.mubr.bf16.gmra.mrb[0].mxu0 %v357
      %v560 = vpop.f32.mrb[0].mxu0
      %v561 = vadd.f32 0.0, %v560
      %v562 = vpop.f32.mrb[0].mxu0
      %v563 = vpop.f32.mrb[0].mxu0
      %v564 = vadd.f32 0.0, %v563
      %v565 = vpop.f32.mrb[0].mxu0
      %566 = vmatprep.mubr.bf16.mxu0 %v467
      %567 = vmatmul.mubr.bf16.gmra.mrb[0].mxu0 %v359
      %v568 = vpop.f32.mrb[0].mxu0
      %v569 = vadd.f32 0.0, %v568
      %v570 = vpop.f32.mrb[0].mxu0
      %v571 = vpop.f32.mrb[0].mxu0
      %v572 = vadd.f32 0.0, %v571
      %v573 = vpop.f32.mrb[0].mxu0
      %574 = vmatprep.mubr.bf16.mxu0 %v470
      %575 = vmatmul.mubr.bf16.gmra.mrb[0].mxu0 %v361
      %v576 = vpop.f32.mrb[0].mxu0
      %v577 = vadd.f32 0.0, %v576
      %v578 = vpop.f32.mrb[0].mxu0
      %v579 = vpop.f32.mrb[0].mxu0
      %v580 = vadd.f32 0.0, %v579
      %v581 = vpop.f32.mrb[0].mxu0
      %582 = vmatprep.mubr.bf16.mxu0 %v473
      %583 = vmatmul.mubr.bf16.gmra.mrb[0].mxu0 %v363
      %v584 = vpop.f32.mrb[0].mxu0
      %v585 = vadd.f32 0.0, %v584
      %v586 = vpop.f32.mrb[0].mxu0
      %v587 = vpop.f32.mrb[0].mxu0
      %v588 = vadd.f32 0.0, %v587
      %v589 = vpop.f32.mrb[0].mxu0
      %590 = vmatprep.mubr.bf16.mxu0 %v476
      %591 = vmatmul.mubr.bf16.gmra.mrb[0].mxu0 %v365
      %v592 = vpop.f32.mrb[0].mxu0
      %v593 = vadd.f32 0.0, %v592
      %v594 = vpop.f32.mrb[0].mxu0
      %v595 = vpop.f32.mrb[0].mxu0
      %v596 = vadd.f32 0.0, %v595
      %v597 = vpop.f32.mrb[0].mxu0
      %598 = vmatprep.mubr.bf16.mxu0 %v479
      %599 = vmatmul.mubr.bf16.gmra.mrb[0].mxu0 %v367
      %v600 = vpop.f32.mrb[0].mxu0
      %v601 = vadd.f32 0.0, %v600
      %v602 = vpop.f32.mrb[0].mxu0
      %v603 = vpop.f32.mrb[0].mxu0
      %v604 = vadd.f32 0.0, %v603
      %v605 = vpop.f32.mrb[0].mxu0
      %606 = vmatprep.mubr.bf16.mxu0 %v482
      %607 = vmatmul.mubr.bf16.gmra.mrb[0].mxu0 %v369
      %v608 = vpop.f32.mrb[0].mxu0
      %v609 = vadd.f32 0.0, %v608
      %v610 = vpop.f32.mrb[0].mxu0
      %v611 = vpop.f32.mrb[0].mxu0
      %v612 = vadd.f32 0.0, %v611
      %v613 = vpop.f32.mrb[0].mxu0
      %614 = vmatprep.mubr.bf16.mxu0 %v485
      %615 = vmatmul.mubr.bf16.gmra.mrb[0].mxu0 %v371
      %v616 = vpop.f32.mrb[0].mxu0
      %v617 = vadd.f32 0.0, %v616
      %v618 = vpop.f32.mrb[0].mxu0
      %v619 = vpop.f32.mrb[0].mxu0
      %v620 = vadd.f32 0.0, %v619
      %v621 = vpop.f32.mrb[0].mxu0
      %622 = vmatprep.mubr.bf16.mxu0 %v488
      %623 = vmatmul.mubr.bf16.gmra.mrb[0].mxu0 %v373
      %v624 = vpop.f32.mrb[0].mxu0
      %v625 = vadd.f32 0.0, %v624
      %v626 = vpop.f32.mrb[0].mxu0
      %v627 = vpop.f32.mrb[0].mxu0
      %v628 = vadd.f32 0.0, %v627
      %v629 = vpop.f32.mrb[0].mxu0
      %630 = vmatprep.mubr.bf16.mxu0 %v491
      %631 = vmatmul.mubr.bf16.gmra.mrb[0].mxu0 %v375
      %v632 = vpop.f32.mrb[0].mxu0
      %v633 = vadd.f32 0.0, %v632
      %v634 = vpop.f32.mrb[0].mxu0
      %v635 = vpop.f32.mrb[0].mxu0
      %v636 = vadd.f32 0.0, %v635
      %v637 = vpop.f32.mrb[0].mxu0
      %638 = vmatprep.mubr.bf16.mxu0 %v494
      %639 = vmatmul.mubr.bf16.gmra.mrb[0].mxu0 %v377
      %v640 = vpop.f32.mrb[0].mxu0
      %v641 = vadd.f32 0.0, %v640
      %v642 = vpop.f32.mrb[0].mxu0
      %v643 = vpop.f32.mrb[0].mxu0
      %v644 = vadd.f32 0.0, %v643
      %v645 = vpop.f32.mrb[0].mxu0
      %646 = vmatprep.mubr.bf16.mxu0 %v497
      %647 = vmatmul.mubr.bf16.gmra.mrb[0].mxu0 %v379
      %v648 = vpop.f32.mrb[0].mxu0
      %v649 = vadd.f32 0.0, %v648
      %v650 = vpop.f32.mrb[0].mxu0
      %v651 = vpop.f32.mrb[0].mxu0
      %v652 = vadd.f32 0.0, %v651
      %v653 = vpop.f32.mrb[0].mxu0
      %654 = vmatprep.mubr.bf16.mxu0 %v500
      %655 = vmatmul.mubr.bf16.gmra.mrb[0].mxu0 %v381
      %v656 = vpop.f32.mrb[0].mxu0
      %v657 = vadd.f32 0.0, %v656
      %v658 = vpop.f32.mrb[0].mxu0
      %v659 = vpop.f32.mrb[0].mxu0
      %v660 = vadd.f32 0.0, %v659
      %v661 = vpop.f32.mrb[0].mxu0
      %662 = vdwg.mxu0
      %v663 = vld [vmem:[%s2] sm:$0x1]
      %v665 = vlaneseq
      %v666 = vshrl.u32 %v665, 7
      %v667 = vsub.s32 0, %v666
      %v668 = vrot.slane %v663, %v667
      %v670 = vmul.f32 %v537, %v668
      %v671 = vmul.f32 %v540, %v668
      %v672 = vmul.f32 %v545, %v668
      %v673 = vmul.f32 %v548, %v668
      %v674 = vmul.f32 %v553, %v668
      %v675 = vmul.f32 %v556, %v668
      %v676 = vmul.f32 %v561, %v668
      %v677 = vmul.f32 %v564, %v668
      %v678 = vmul.f32 %v569, %v668
      %v679 = vmul.f32 %v572, %v668
      %v680 = vmul.f32 %v577, %v668
      %v681 = vmul.f32 %v580, %v668
      %v682 = vmul.f32 %v585, %v668
      %v683 = vmul.f32 %v588, %v668
      %v684 = vmul.f32 %v593, %v668
      %v685 = vmul.f32 %v596, %v668
      %v686 = vmul.f32 %v601, %v668
      %v687 = vmul.f32 %v604, %v668
      %v688 = vmul.f32 %v609, %v668
      %v689 = vmul.f32 %v612, %v668
      %v690 = vmul.f32 %v617, %v668
      %v691 = vmul.f32 %v620, %v668
      %v692 = vmul.f32 %v625, %v668
      %v693 = vmul.f32 %v628, %v668
      %v694 = vmul.f32 %v633, %v668
      %v695 = vmul.f32 %v636, %v668
      %v696 = vmul.f32 %v641, %v668
      %v697 = vmul.f32 %v644, %v668
      %v698 = vmul.f32 %v649, %v668
      %v699 = vmul.f32 %v652, %v668
      %v700 = vmul.f32 %v657, %v668
      %v701 = vmul.f32 %v660, %v668
      %v702 = vld [vmem:[%s3] sm:$0x1]
      %v704 = vlaneseq
      %v705 = vshrl.u32 %v704, 7
      %v706 = vsub.s32 0, %v705
      %v707 = vrot.slane %v702, %v706
      %v709 = vadd.f32 %v670, %v707
      %v710 = vadd.f32 %v671, %v707
      %v711 = vadd.f32 %v672, %v707
      %v712 = vadd.f32 %v673, %v707
      %v713 = vadd.f32 %v674, %v707
      %v714 = vadd.f32 %v675, %v707
      %v715 = vadd.f32 %v676, %v707
      %v716 = vadd.f32 %v677, %v707
      %v717 = vadd.f32 %v678, %v707
      %v718 = vadd.f32 %v679, %v707
      %v719 = vadd.f32 %v680, %v707
      %v720 = vadd.f32 %v681, %v707
      %v721 = vadd.f32 %v682, %v707
      %v722 = vadd.f32 %v683, %v707
      %v723 = vadd.f32 %v684, %v707
      %v724 = vadd.f32 %v685, %v707
      %v725 = vadd.f32 %v686, %v707
      %v726 = vadd.f32 %v687, %v707
      %v727 = vadd.f32 %v688, %v707
      %v728 = vadd.f32 %v689, %v707
      %v729 = vadd.f32 %v690, %v707
      %v730 = vadd.f32 %v691, %v707
      %v731 = vadd.f32 %v692, %v707
      %v732 = vadd.f32 %v693, %v707
      %v733 = vadd.f32 %v694, %v707
      %v734 = vadd.f32 %v695, %v707
      %v735 = vadd.f32 %v696, %v707
      %v736 = vadd.f32 %v697, %v707
      %v737 = vadd.f32 %v698, %v707
      %v738 = vadd.f32 %v699, %v707
      %v739 = vadd.f32 %v700, %v707
      %v740 = vadd.f32 %v701, %v707
      %v741 = vmax.f32 %v709, 0.0
      %v742 = vmax.f32 %v710, 0.0
      %v743 = vmax.f32 %v711, 0.0
      %v744 = vmax.f32 %v712, 0.0
      %v745 = vmax.f32 %v713, 0.0
      %v746 = vmax.f32 %v714, 0.0
      %v747 = vmax.f32 %v715, 0.0
      %v748 = vmax.f32 %v716, 0.0
      %v749 = vmax.f32 %v717, 0.0
      %v750 = vmax.f32 %v718, 0.0
      %v751 = vmax.f32 %v719, 0.0
      %v752 = vmax.f32 %v720, 0.0
      %v753 = vmax.f32 %v721, 0.0
      %v754 = vmax.f32 %v722, 0.0
      %v755 = vmax.f32 %v723, 0.0
      %v756 = vmax.f32 %v724, 0.0
      %v757 = vmax.f32 %v725, 0.0
      %v758 = vmax.f32 %v726, 0.0
      %v759 = vmax.f32 %v727, 0.0
      %v760 = vmax.f32 %v728, 0.0
      %v761 = vmax.f32 %v729, 0.0
      %v762 = vmax.f32 %v730, 0.0
      %v763 = vmax.f32 %v731, 0.0
      %v764 = vmax.f32 %v732, 0.0
      %v765 = vmax.f32 %v733, 0.0
      %v766 = vmax.f32 %v734, 0.0
      %v767 = vmax.f32 %v735, 0.0
      %v768 = vmax.f32 %v736, 0.0
      %v769 = vmax.f32 %v737, 0.0
      %v770 = vmax.f32 %v738, 0.0
      %v771 = vmax.f32 %v739, 0.0
      %v772 = vmax.f32 %v740, 0.0
      %v773 = vpack.c.bf16 %v742, %v741
      %v774 = vpack.c.bf16 %v744, %v743
      %v775 = vpack.c.bf16 %v746, %v745
      %v776 = vpack.c.bf16 %v748, %v747
      %v777 = vpack.c.bf16 %v750, %v749
      %v778 = vpack.c.bf16 %v752, %v751
      %v779 = vpack.c.bf16 %v754, %v753
      %v780 = vpack.c.bf16 %v756, %v755
      %v781 = vpack.c.bf16 %v758, %v757
      %v782 = vpack.c.bf16 %v760, %v759
      %v783 = vpack.c.bf16 %v762, %v761
      %v784 = vpack.c.bf16 %v764, %v763
      %v785 = vpack.c.bf16 %v766, %v765
      %v786 = vpack.c.bf16 %v768, %v767
      %v787 = vpack.c.bf16 %v770, %v769
      %v788 = vpack.c.bf16 %v772, %v771
      %v805 = vunpack.c.l.b16 %v773
      %v806 = vunpack.c.h.b16 %v773
      %v807 = vunpack.c.l.b16 %v774
      %v808 = vunpack.c.h.b16 %v774
      %v809 = vunpack.c.l.b16 %v775
      %v810 = vunpack.c.h.b16 %v775
      %v811 = vunpack.c.l.b16 %v776
      %v812 = vunpack.c.h.b16 %v776
      %v813 = vunpack.c.l.b16 %v777
      %v814 = vunpack.c.h.b16 %v777
      %v815 = vunpack.c.l.b16 %v778
      %v816 = vunpack.c.h.b16 %v778
      %v817 = vunpack.c.l.b16 %v779
      %v818 = vunpack.c.h.b16 %v779
      %v819 = vunpack.c.l.b16 %v780
      %v820 = vunpack.c.h.b16 %v780
      %v821 = vunpack.c.l.b16 %v781
      %v822 = vunpack.c.h.b16 %v781
      %v823 = vunpack.c.l.b16 %v782
      %v824 = vunpack.c.h.b16 %v782
      %v825 = vunpack.c.l.b16 %v783
      %v826 = vunpack.c.h.b16 %v783
      %v827 = vunpack.c.l.b16 %v784
      %v828 = vunpack.c.h.b16 %v784
      %v829 = vunpack.c.l.b16 %v785
      %v830 = vunpack.c.h.b16 %v785
      %v831 = vunpack.c.l.b16 %v786
      %v832 = vunpack.c.h.b16 %v786
      %v833 = vunpack.c.l.b16 %v787
      %v834 = vunpack.c.h.b16 %v787
      %v835 = vunpack.c.l.b16 %v788
      %v836 = vunpack.c.h.b16 %v788
      %v837 = vpack.c.b16 %v805, %v805
      %v838 = vpack.c.b16 %v806, %v806
      %v839 = vpack.c.b16 %v807, %v807
      %v840 = vpack.c.b16 %v808, %v808
      %v841 = vpack.c.b16 %v809, %v809
      %v842 = vpack.c.b16 %v810, %v810
      %v843 = vpack.c.b16 %v811, %v811
      %v844 = vpack.c.b16 %v812, %v812
      %v845 = vpack.c.b16 %v813, %v813
      %v846 = vpack.c.b16 %v814, %v814
      %v847 = vpack.c.b16 %v815, %v815
      %v848 = vpack.c.b16 %v816, %v816
      %v849 = vpack.c.b16 %v817, %v817
      %v850 = vpack.c.b16 %v818, %v818
      %v851 = vpack.c.b16 %v819, %v819
      %v852 = vpack.c.b16 %v820, %v820
      %v853 = vpack.c.b16 %v821, %v821
      %v854 = vpack.c.b16 %v822, %v822
      %v855 = vpack.c.b16 %v823, %v823
      %v856 = vpack.c.b16 %v824, %v824
      %v857 = vpack.c.b16 %v825, %v825
      %v858 = vpack.c.b16 %v826, %v826
      %v859 = vpack.c.b16 %v827, %v827
      %v860 = vpack.c.b16 %v828, %v828
      %v861 = vpack.c.b16 %v829, %v829
      %v862 = vpack.c.b16 %v830, %v830
      %v863 = vpack.c.b16 %v831, %v831
      %v864 = vpack.c.b16 %v832, %v832
      %v865 = vpack.c.b16 %v833, %v833
      %v866 = vpack.c.b16 %v834, %v834
      %v867 = vpack.c.b16 %v835, %v835
      %v868 = vpack.c.b16 %v836, %v836
      %vm901 = vcmask 125952
      %902 = vst.msk [vmem:[%s202] sm:$0xf] %vm901, %v837
      %903 = vst.msk [vmem:[%s202 + $0x4] sm:$0xf] %vm901, %v838
      %904 = vst.msk [vmem:[%s202 + $0x8] sm:$0xf] %vm901, %v839
      %905 = vst.msk [vmem:[%s202 + $0xc] sm:$0xf] %vm901, %v840
      %906 = vst.msk [vmem:[%s202 + $0x10] sm:$0xf] %vm901, %v841
      %907 = vst.msk [vmem:[%s202 + $0x14] sm:$0xf] %vm901, %v842
      %908 = vst.msk [vmem:[%s202 + $0x18] sm:$0xf] %vm901, %v843
      %909 = vst.msk [vmem:[%s202 + $0x1c] sm:$0xf] %vm901, %v844
      %910 = vst.msk [vmem:[%s202 + $0x20] sm:$0xf] %vm901, %v845
      %911 = vst.msk [vmem:[%s202 + $0x24] sm:$0xf] %vm901, %v846
      %912 = vst.msk [vmem:[%s202 + $0x28] sm:$0xf] %vm901, %v847
      %913 = vst.msk [vmem:[%s202 + $0x2c] sm:$0xf] %vm901, %v848
      %914 = vst.msk [vmem:[%s202 + $0x30] sm:$0xf] %vm901, %v849
      %915 = vst.msk [vmem:[%s202 + $0x34] sm:$0xf] %vm901, %v850
      %916 = vst.msk [vmem:[%s202 + $0x38] sm:$0xf] %vm901, %v851
      %917 = vst.msk [vmem:[%s202 + $0x3c] sm:$0xf] %vm901, %v852
      %918 = vst.msk [vmem:[%s202 + $0x40] sm:$0xf] %vm901, %v853
      %919 = vst.msk [vmem:[%s202 + $0x44] sm:$0xf] %vm901, %v854
      %920 = vst.msk [vmem:[%s202 + $0x48] sm:$0xf] %vm901, %v855
      %921 = vst.msk [vmem:[%s202 + $0x4c] sm:$0xf] %vm901, %v856
      %922 = vst.msk [vmem:[%s202 + $0x50] sm:$0xf] %vm901, %v857
      %923 = vst.msk [vmem:[%s202 + $0x54] sm:$0xf] %vm901, %v858
      %924 = vst.msk [vmem:[%s202 + $0x58] sm:$0xf] %vm901, %v859
      %925 = vst.msk [vmem:[%s202 + $0x5c] sm:$0xf] %vm901, %v860
      %926 = vst.msk [vmem:[%s202 + $0x60] sm:$0xf] %vm901, %v861
      %927 = vst.msk [vmem:[%s202 + $0x64] sm:$0xf] %vm901, %v862
      %928 = vst.msk [vmem:[%s202 + $0x68] sm:$0xf] %vm901, %v863
      %929 = vst.msk [vmem:[%s202 + $0x6c] sm:$0xf] %vm901, %v864
      %930 = vst.msk [vmem:[%s202 + $0x70] sm:$0xf] %vm901, %v865
      %931 = vst.msk [vmem:[%s202 + $0x74] sm:$0xf] %vm901, %v866
      %932 = vst.msk [vmem:[%s202 + $0x78] sm:$0xf] %vm901, %v867
      %933 = vst.msk [vmem:[%s202 + $0x7c] sm:$0xf] %vm901, %v868
      %s934 = smul.u32 32, %s15
      %p935 = scmp.lt.s32.totalorder %s934, 63
      %s936 = scalar_select %p935, %s934, 63
      %s937 = smul.addr %s936, 4
      %s938 = scalar_lea.vmem %s4, %s937
      // Predicated region
      $region37: #{_lambda_.8} parent=35 // pred_check
        %p939 = pneg %p122
      $region38: #{_lambda_.8} parent=35 // pred_check_branch
        %941 = sbr.rel (%p939) target = $region40
      $region39: #{_lambda_.8} parent=35 // pred_region
        %s942 = smul.u32 32, %s15
      $region40: #{_lambda_.8} parent=35 // pred_fallthru
        _
    $region36: #{_lambda_.8} parent=5 // pred_fallthru
      _
    %p943 = scmp.le.s32.totalorder 2, %s10
    // Predicated region
    $region41: #{_lambda_.8} parent=5 // pred_check
      %p944 = pneg %p943
    $region42: #{_lambda_.8} parent=5 // pred_check_branch
      %946 = sbr.rel (%p944) target = $region44
    $region43: #{_lambda_.8} parent=5 // pred_region
      %s947 = ssub.s32 %s10, 2
      // Predicated region
      $region45: #{_lambda_.8} parent=43 // pred_check
        %p948 = pneg %p128
      $region46: #{_lambda_.8} parent=43 // pred_check_branch
        %950 = sbr.rel (%p948) target = $region48
      $region47: #{_lambda_.8} parent=43 // pred_region
        %s951 = smul.u32 32, %s16
        %p952 = scmp.lt.s32.totalorder %s951, 63
        %s953 = scalar_select %p952, %s951, 63
        %s954 = smul.addr %s953, 4
        %s955 = scalar_lea.vmem %s4, %s954
      $region48: #{_lambda_.8} parent=43 // pred_fallthru
        _
    $region44: #{_lambda_.8} parent=5 // pred_fallthru
      _
  $region6: #{_lambda_.8} parent=0 // loop_footer
    %s14 = sadd.s32 1, %s10
  $region7: #{_lambda_.8} parent=0 // loop_footer_branch
    %9 = sbr.rel target = $region3
  $region8: #{_lambda_.8} parent=0 // loop_exit
    _

// kernel: _lambda_.11
$region0: #{_lambda_.11}
  #allocation0 [shape = 'u32[]', space=smem, size = 0x4, offset = 0x4, fixed_abs, tag = 'smem constant byte address 0x4 - core index']
  #allocation1 [shape = 'u32[144,128]{1,0:T(1,128)}', space=vmem, size = 0x12000, scoped, tag = 'internal scratch']
  %s0 = inlined_call_operand.vmem [shape: bf16[128,16], index: 0, kind: input, shape index: {}]
  %s1 = inlined_call_operand.vmem [shape: bf16[16,32], index: 1, kind: input, shape index: {}]
  %s2 = inlined_call_operand.vmem [shape: f32[1,32], index: 2, kind: input, shape index: {}]
  %s3 = inlined_call_operand.vmem [shape: f32[1,32], index: 3, kind: input, shape index: {}]
  %s4 = inlined_call_operand.vmem [shape: bf16[128,32], index: 4, kind: output, shape index: {}]
  %s5 = sld [smem:[#allocation0]]
  $region26: #{_lambda_.11} parent=0
    _
  %s7 = ssub.s32 1, %s5
  %s8 = scalar_select 0, %s7, %s5
  // Predicated region
  $region2: #{_lambda_.11} parent=0 // pred_check
    _
  $region3: #{_lambda_.11} parent=0 // pred_check_branch
    %10 = sbr.rel (0) target = $region5
  $region4: #{_lambda_.11} parent=0 // pred_region
    _
  $region5: #{_lambda_.11} parent=0 // pred_fallthru
    _
  // Predicated region
  $region6: #{_lambda_.11} parent=0 // pred_check
    _
  $region7: #{_lambda_.11} parent=0 // pred_check_branch
    %12 = sbr.rel (0) target = $region9
  $region8: #{_lambda_.11} parent=0 // pred_region
    _
  $region9: #{_lambda_.11} parent=0 // pred_fallthru
    _
  // Predicated region
  $region10: #{_lambda_.11} parent=0 // pred_check
    _
  $region11: #{_lambda_.11} parent=0 // pred_check_branch
    %14 = sbr.rel (0) target = $region13
  $region12: #{_lambda_.11} parent=0 // pred_region
    _
  $region13: #{_lambda_.11} parent=0 // pred_fallthru
    _
  // Predicated region
  $region14: #{_lambda_.11} parent=0 // pred_check
    _
  $region15: #{_lambda_.11} parent=0 // pred_check_branch
    %16 = sbr.rel (0) target = $region17
  $region16: #{_lambda_.11} parent=0 // pred_region
    _
  $region17: #{_lambda_.11} parent=0 // pred_fallthru
    _
  %v18 = vld [vmem:[%s0] sm:$0xf]
  %v19 = vld [vmem:[%s0 + $0x4] sm:$0xf]
  %v20 = vld [vmem:[%s0 + $0x8] sm:$0xf]
  %v21 = vld [vmem:[%s0 + $0xc] sm:$0xf]
  %v22 = vld [vmem:[%s0 + $0x10] sm:$0xf]
  %v23 = vld [vmem:[%s0 + $0x14] sm:$0xf]
  %v24 = vld [vmem:[%s0 + $0x18] sm:$0xf]
  %v25 = vld [vmem:[%s0 + $0x1c] sm:$0xf]
  %v26 = vld [vmem:[%s0 + $0x20] sm:$0xf]
  %v27 = vld [vmem:[%s0 + $0x24] sm:$0xf]
  %v28 = vld [vmem:[%s0 + $0x28] sm:$0xf]
  %v29 = vld [vmem:[%s0 + $0x2c] sm:$0xf]
  %v30 = vld [vmem:[%s0 + $0x30] sm:$0xf]
  %v31 = vld [vmem:[%s0 + $0x34] sm:$0xf]
  %v32 = vld [vmem:[%s0 + $0x38] sm:$0xf]
  %v33 = vld [vmem:[%s0 + $0x3c] sm:$0xf]
  %v34 = vld [vmem:[%s1] sm:$0xf]
  %v35 = vld [vmem:[%s1 + $0x4] sm:$0xf]
  %v52 = vunpack.c.l.b16 %v18
  %v53 = vunpack.c.l.b16 %v19
  %v54 = vunpack.c.l.b16 %v20
  %v55 = vunpack.c.l.b16 %v21
  %v56 = vunpack.c.l.b16 %v22
  %v57 = vunpack.c.l.b16 %v23
  %v58 = vunpack.c.l.b16 %v24
  %v59 = vunpack.c.l.b16 %v25
  %v60 = vunpack.c.l.b16 %v26
  %v61 = vunpack.c.l.b16 %v27
  %v62 = vunpack.c.l.b16 %v28
  %v63 = vunpack.c.l.b16 %v29
  %v64 = vunpack.c.l.b16 %v30
  %v65 = vunpack.c.l.b16 %v31
  %v66 = vunpack.c.l.b16 %v32
  %v67 = vunpack.c.l.b16 %v33
  %v68 = vpack.c.b16 %v53, %v52
  %v69 = vpack.c.b16 %v55, %v54
  %v70 = vpack.c.b16 %v57, %v56
  %v71 = vpack.c.b16 %v59, %v58
  %v72 = vpack.c.b16 %v61, %v60
  %v73 = vpack.c.b16 %v63, %v62
  %v74 = vpack.c.b16 %v65, %v64
  %v75 = vpack.c.b16 %v67, %v66
  %v78 = vunpack.c.l.b16 %v34
  %v79 = vunpack.c.l.b16 %v35
  %v80 = vpack.c.b16 %v79, %v78
  %vm82 = vcmask 130048
  %v84 = vsel %vm82, %v68, 0
  %v87 = vsel %vm82, %v69, 0
  %v90 = vsel %vm82, %v70, 0
  %v93 = vsel %vm82, %v71, 0
  %v96 = vsel %vm82, %v72, 0
  %v99 = vsel %vm82, %v73, 0
  %v102 = vsel %vm82, %v74, 0
  %v105 = vsel %vm82, %v75, 0
  %107 = vmatprep.subr.bf16.mxu0 0
  %108 = vmatpush1.bf16.msra.mxu0 %v80
  %109 = vmatprep.subr.bf16.mxu0 0
  %110 = vmatpush1.bf16.msra.mxu0 0
  %111 = vmatprep.subr.bf16.mxu0 0
  %112 = vmatpush1.bf16.msra.mxu0 0
  %113 = vmatprep.subr.bf16.mxu0 0
  %114 = vmatpush1.bf16.msra.mxu0 0
  %115 = vmatprep.subr.bf16.mxu0 0
  %116 = vmatpush1.bf16.msra.mxu0 0
  %117 = vmatprep.subr.bf16.mxu0 0
  %118 = vmatpush1.bf16.msra.mxu0 0
  %119 = vmatprep.subr.bf16.mxu0 0
  %120 = vmatpush1.bf16.msra.mxu0 0
  %121 = vmatprep.subr.bf16.mxu0 0
  %122 = vmatpush1.bf16.msra.mxu0 0
  %123 = vmatprep.subr.bf16.mxu0 0
  %124 = vmatpush1.bf16.msra.mxu0 0
  %125 = vmatprep.subr.bf16.mxu0 0
  %126 = vmatpush1.bf16.msra.mxu0 0
  %127 = vmatprep.subr.bf16.mxu0 0
  %128 = vmatpush1.bf16.msra.mxu0 0
  %129 = vmatprep.subr.bf16.mxu0 0
  %130 = vmatpush1.bf16.msra.mxu0 0
  %131 = vmatprep.subr.bf16.mxu0 0
  %132 = vmatpush1.bf16.msra.mxu0 0
  %133 = vmatprep.subr.bf16.mxu0 0
  %134 = vmatpush1.bf16.msra.mxu0 0
  %135 = vmatprep.subr.bf16.mxu0 0
  %136 = vmatpush1.bf16.msra.mxu0 0
  %137 = vmatprep.subr.bf16.mxu0 0
  %138 = vmatpush1.bf16.msra.mxu0 0
  %139 = vmatprep.mubr.bf16.mxu0 0
  %140 = vmatmul.mubr.bf16.gmra.mrb[0].mxu0 %v84
  %v141 = vpop.f32.mrb[0].mxu0
  %v142 = vadd.f32 0.0, %v141
  %v143 = vpop.f32.mrb[0].mxu0
  %v144 = vpop.f32.mrb[0].mxu0
  %v145 = vadd.f32 0.0, %v144
  %v146 = vpop.f32.mrb[0].mxu0
  %147 = vmatprep.mubr.bf16.mxu0 0
  %148 = vmatmul.mubr.bf16.gmra.mrb[0].mxu0 %v87
  %v149 = vpop.f32.mrb[0].mxu0
  %v150 = vadd.f32 0.0, %v149
  %v151 = vpop.f32.mrb[0].mxu0
  %v152 = vpop.f32.mrb[0].mxu0
  %v153 = vadd.f32 0.0, %v152
  %v154 = vpop.f32.mrb[0].mxu0
  %155 = vmatprep.mubr.bf16.mxu0 0
  %156 = vmatmul.mubr.bf16.gmra.mrb[0].mxu0 %v90
  %v157 = vpop.f32.mrb[0].mxu0
  %v158 = vadd.f32 0.0, %v157
  %v159 = vpop.f32.mrb[0].mxu0
  %v160 = vpop.f32.mrb[0].mxu0
  %v161 = vadd.f32 0.0, %v160
  %v162 = vpop.f32.mrb[0].mxu0
  %163 = vmatprep.mubr.bf16.mxu0 0
  %164 = vmatmul.mubr.bf16.gmra.mrb[0].mxu0 %v93
  %v165 = vpop.f32.mrb[0].mxu0
  %v166 = vadd.f32 0.0, %v165
  %v167 = vpop.f32.mrb[0].mxu0
  %v168 = vpop.f32.mrb[0].mxu0
  %v169 = vadd.f32 0.0, %v168
  %v170 = vpop.f32.mrb[0].mxu0
  %171 = vmatprep.mubr.bf16.mxu0 0
  %172 = vmatmul.mubr.bf16.gmra.mrb[0].mxu0 %v96
  %v173 = vpop.f32.mrb[0].mxu0
  %v174 = vadd.f32 0.0, %v173
  %v175 = vpop.f32.mrb[0].mxu0
  %v176 = vpop.f32.mrb[0].mxu0
  %v177 = vadd.f32 0.0, %v176
  %v178 = vpop.f32.mrb[0].mxu0
  %179 = vmatprep.mubr.bf16.mxu0 0
  %180 = vmatmul.mubr.bf16.gmra.mrb[0].mxu0 %v99
  %v181 = vpop.f32.mrb[0].mxu0
  %v182 = vadd.f32 0.0, %v181
  %v183 = vpop.f32.mrb[0].mxu0
  %v184 = vpop.f32.mrb[0].mxu0
  %v185 = vadd.f32 0.0, %v184
  %v186 = vpop.f32.mrb[0].mxu0
  %187 = vmatprep.mubr.bf16.mxu0 0
  %188 = vmatmul.mubr.bf16.gmra.mrb[0].mxu0 %v102
  %v189 = vpop.f32.mrb[0].mxu0
  %v190 = vadd.f32 0.0, %v189
  %v191 = vpop.f32.mrb[0].mxu0
  %v192 = vpop.f32.mrb[0].mxu0
  %v193 = vadd.f32 0.0, %v192
  %v194 = vpop.f32.mrb[0].mxu0
  %195 = vmatprep.mubr.bf16.mxu0 0
  %196 = vmatmul.mubr.bf16.gmra.mrb[0].mxu0 %v105
  %v197 = vpop.f32.mrb[0].mxu0
  %v198 = vadd.f32 0.0, %v197
  %v199 = vpop.f32.mrb[0].mxu0
  %v200 = vpop.f32.mrb[0].mxu0
  %v201 = vadd.f32 0.0, %v200
  %v202 = vpop.f32.mrb[0].mxu0
  %203 = vdwg.mxu0
  %v204 = vld [vmem:[%s2] sm:$0x1]
  %v206 = vlaneseq
  %v207 = vshrl.u32 %v206, 7
  %v208 = vsub.s32 0, %v207
  %v209 = vrot.slane %v204, %v208
  %v211 = vmul.f32 %v142, %v209
  %v212 = vmul.f32 %v145, %v209
  %v213 = vmul.f32 %v150, %v209
  %v214 = vmul.f32 %v153, %v209
  %v215 = vmul.f32 %v158, %v209
  %v216 = vmul.f32 %v161, %v209
  %v217 = vmul.f32 %v166, %v209
  %v218 = vmul.f32 %v169, %v209
  %v219 = vmul.f32 %v174, %v209
  %v220 = vmul.f32 %v177, %v209
  %v221 = vmul.f32 %v182, %v209
  %v222 = vmul.f32 %v185, %v209
  %v223 = vmul.f32 %v190, %v209
  %v224 = vmul.f32 %v193, %v209
  %v225 = vmul.f32 %v198, %v209
  %v226 = vmul.f32 %v201, %v209
  %v227 = vld [vmem:[%s3] sm:$0x1]
  %v229 = vlaneseq
  %v230 = vshrl.u32 %v229, 7
  %v231 = vsub.s32 0, %v230
  %v232 = vrot.slane %v227, %v231
  %v234 = vadd.f32 %v211, %v232
  %v235 = vadd.f32 %v212, %v232
  %v236 = vadd.f32 %v213, %v232
  %v237 = vadd.f32 %v214, %v232
  %v238 = vadd.f32 %v215, %v232
  %v239 = vadd.f32 %v216, %v232
  %v240 = vadd.f32 %v217, %v232
  %v241 = vadd.f32 %v218, %v232
  %v242 = vadd.f32 %v219, %v232
  %v243 = vadd.f32 %v220, %v232
  %v244 = vadd.f32 %v221, %v232
  %v245 = vadd.f32 %v222, %v232
  %v246 = vadd.f32 %v223, %v232
  %v247 = vadd.f32 %v224, %v232
  %v248 = vadd.f32 %v225, %v232
  %v249 = vadd.f32 %v226, %v232
  %v250 = vpack.c.bf16 %v235, %v234
  %v251 = vpack.c.bf16 %v237, %v236
  %v252 = vpack.c.bf16 %v239, %v238
  %v253 = vpack.c.bf16 %v241, %v240
  %v254 = vpack.c.bf16 %v243, %v242
  %v255 = vpack.c.bf16 %v245, %v244
  %v256 = vpack.c.bf16 %v247, %v246
  %v257 = vpack.c.bf16 %v249, %v248
  %v266 = vunpack.c.l.b16 %v250
  %v267 = vunpack.c.h.b16 %v250
  %v268 = vunpack.c.l.b16 %v251
  %v269 = vunpack.c.h.b16 %v251
  %v270 = vunpack.c.l.b16 %v252
  %v271 = vunpack.c.h.b16 %v252
  %v272 = vunpack.c.l.b16 %v253
  %v273 = vunpack.c.h.b16 %v253
  %v274 = vunpack.c.l.b16 %v254
  %v275 = vunpack.c.h.b16 %v254
  %v276 = vunpack.c.l.b16 %v255
  %v277 = vunpack.c.h.b16 %v255
  %v278 = vunpack.c.l.b16 %v256
  %v279 = vunpack.c.h.b16 %v256
  %v280 = vunpack.c.l.b16 %v257
  %v281 = vunpack.c.h.b16 %v257
  %v282 = vpack.c.b16 %v266, %v266
  %v283 = vpack.c.b16 %v267, %v267
  %v284 = vpack.c.b16 %v268, %v268
  %v285 = vpack.c.b16 %v269, %v269
  %v286 = vpack.c.b16 %v270, %v270
  %v287 = vpack.c.b16 %v271, %v271
  %v288 = vpack.c.b16 %v272, %v272
  %v289 = vpack.c.b16 %v273, %v273
  %v290 = vpack.c.b16 %v274, %v274
  %v291 = vpack.c.b16 %v275, %v275
  %v292 = vpack.c.b16 %v276, %v276
  %v293 = vpack.c.b16 %v277, %v277
  %v294 = vpack.c.b16 %v278, %v278
  %v295 = vpack.c.b16 %v279, %v279
  %v296 = vpack.c.b16 %v280, %v280
  %v297 = vpack.c.b16 %v281, %v281
  %vm314 = vcmask 257024
  %315 = vst.msk [vmem:[%s4] sm:$0xf] %vm314, %v282
  %316 = vst.msk [vmem:[%s4 + $0x4] sm:$0xf] %vm314, %v283
  %317 = vst.msk [vmem:[%s4 + $0x8] sm:$0xf] %vm314, %v284
  %318 = vst.msk [vmem:[%s4 + $0xc] sm:$0xf] %vm314, %v285
  %319 = vst.msk [vmem:[%s4 + $0x10] sm:$0xf] %vm314, %v286
  %320 = vst.msk [vmem:[%s4 + $0x14] sm:$0xf] %vm314, %v287
  %321 = vst.msk [vmem:[%s4 + $0x18] sm:$0xf] %vm314, %v288
  %322 = vst.msk [vmem:[%s4 + $0x1c] sm:$0xf] %vm314, %v289
  %323 = vst.msk [vmem:[%s4 + $0x20] sm:$0xf] %vm314, %v290
  %324 = vst.msk [vmem:[%s4 + $0x24] sm:$0xf] %vm314, %v291
  %325 = vst.msk [vmem:[%s4 + $0x28] sm:$0xf] %vm314, %v292
  %326 = vst.msk [vmem:[%s4 + $0x2c] sm:$0xf] %vm314, %v293
  %327 = vst.msk [vmem:[%s4 + $0x30] sm:$0xf] %vm314, %v294
  %328 = vst.msk [vmem:[%s4 + $0x34] sm:$0xf] %vm314, %v295
  %329 = vst.msk [vmem:[%s4 + $0x38] sm:$0xf] %vm314, %v296
  %330 = vst.msk [vmem:[%s4 + $0x3c] sm:$0xf] %vm314, %v297
  // Predicated region
  $region18: #{_lambda_.11} parent=0 // pred_check
    _
  $region19: #{_lambda_.11} parent=0 // pred_check_branch
    %332 = sbr.rel (0) target = $region21
  $region20: #{_lambda_.11} parent=0 // pred_region
    _
  $region21: #{_lambda_.11} parent=0 // pred_fallthru
    _
  // Predicated region
  $region22: #{_lambda_.11} parent=0 // pred_check
    _
  $region23: #{_lambda_.11} parent=0 // pred_check_branch
    %334 = sbr.rel (0) target = $region25
  $region24: #{_lambda_.11} parent=0 // pred_region
    _
  $region25: #{_lambda_.11} parent=0 // pred_fallthru
    _

// kernel: _lambda_.9
$region0: #{_lambda_.9}
  #allocation0 [shape = 'u32[]', space=smem, size = 0x4, offset = 0x4, fixed_abs, tag = 'smem constant byte address 0x4 - core index']
  #allocation1 [shape = 'u32[144,128]{1,0:T(1,128)}', space=vmem, size = 0x12000, scoped, tag = 'internal scratch']
  %s0 = inlined_call_operand.vmem [shape: bf16[512,144], index: 0, kind: input, shape index: {}]
  %s1 = inlined_call_operand.vmem [shape: bf16[144,16], index: 1, kind: input, shape index: {}]
  %s2 = inlined_call_operand.vmem [shape: f32[1,16], index: 2, kind: input, shape index: {}]
  %s3 = inlined_call_operand.vmem [shape: f32[1,16], index: 3, kind: input, shape index: {}]
  %s4 = inlined_call_operand.vmem [shape: bf16[512,16], index: 4, kind: input, shape index: {}]
  %s5 = inlined_call_operand.vmem [shape: bf16[512,16], index: 5, kind: output, shape index: {}]
  %s6 = sld [smem:[#allocation0]]
  $region53: #{_lambda_.9} parent=0
    _
  %s8 = ssub.s32 1, %s6
  %s9 = scalar_select 0, %s8, %s6
  loop: start=0, step=1, limit=4
  $region2: #{_lambda_.9} parent=0 // loop_pre_header
    _
  $region3: #{_lambda_.9} parent=0 // loop_header
    %s11 = sphi 0, %s15
    %p12 = scmp.ge.s32.totalorder %s11, 4
    %s21 = sphi 0, %s23
    %s24 = sphi 0, %s21
    %s25 = sphi 0, %s24
    %s41 = sphi 0, %s25
    %s45 = sphi 0, %s45
    %s47 = sphi 0, %s45
    %s48 = sphi 0, %s47
    %s62 = sphi 0, %s48
    %s66 = sphi 0, %s66
    %s68 = sphi 0, %s66
    %s69 = sphi 0, %s68
    %s83 = sphi 0, %s69
    %s87 = sphi 0, %s87
    %s89 = sphi 0, %s87
    %s90 = sphi 0, %s89
    %s104 = sphi 0, %s90
    %s110 = sphi 0, %s112
    %s113 = sphi 0, %s110
    %s114 = sphi 0, %s113
    %s130 = sphi 0, %s114
    %s136 = sphi 0, %s138
    %s139 = sphi 0, %s136
    %s140 = sphi 0, %s139
    %s156 = sphi 0, %s140
  $region4: #{_lambda_.9} parent=0 // loop_header_branch
    %14 = sbr.rel (%p12) target = $region8
  $region5: #{_lambda_.9} parent=0 // loop_body
    %s16 = ssub.s32 %s11, 1
    %s17 = ssub.s32 %s11, 2
    %s18 = sadd.s32 %s11, 1
    %s19 = ssub.s32 %s11, %s18
    %p20 = scmp.eq.s32.totalorder %s19, 0
    %s22 = sadd.s32 %s21, 1
    %s23 = scalar_select %p20, %s21, %s22
    %p26 = pneg %p20
    %p27 = scmp.eq.s32.totalorder %s11, 1
    %p28 = por %p26, %p27
    %p29 = scmp.ne.s32.totalorder %s21, %s24
    %p30 = scmp.eq.s32.totalorder %s11, 0
    %p31 = por %p29, %p30
    %p32 = scmp.ne.s32.totalorder %s21, %s24
    %p33 = scmp.eq.s32.totalorder %s16, 1
    %p34 = por %p32, %p33
    %p35 = scmp.ne.s32.totalorder %s24, %s25
    %p36 = scmp.eq.s32.totalorder %s16, 0
    %p37 = por %p35, %p36
    %p38 = scmp.ne.s32.totalorder %s24, %s25
    %p39 = scmp.eq.s32.totalorder %s17, 1
    %p40 = por %p38, %p39
    %p42 = scmp.ne.s32.totalorder %s25, %s41
    %p43 = scmp.eq.s32.totalorder %s17, 0
    %p44 = por %p42, %p43
    %s46 = sadd.s32 %s45, 1
    %p49 = scmp.eq.s32.totalorder %s11, 1
    %p50 = scmp.ne.s32.totalorder %s45, %s47
    %p51 = scmp.eq.s32.totalorder %s11, 0
    %p52 = por %p50, %p51
    %p53 = scmp.ne.s32.totalorder %s45, %s47
    %p54 = scmp.eq.s32.totalorder %s16, 1
    %p55 = por %p53, %p54
    %p56 = scmp.ne.s32.totalorder %s47, %s48
    %p57 = scmp.eq.s32.totalorder %s16, 0
    %p58 = por %p56, %p57
    %p59 = scmp.ne.s32.totalorder %s47, %s48
    %p60 = scmp.eq.s32.totalorder %s17, 1
    %p61 = por %p59, %p60
    %p63 = scmp.ne.s32.totalorder %s48, %s62
    %p64 = scmp.eq.s32.totalorder %s17, 0
    %p65 = por %p63, %p64
    %s67 = sadd.s32 %s66, 1
    %p70 = scmp.eq.s32.totalorder %s11, 1
    %p71 = scmp.ne.s32.totalorder %s66, %s68
    %p72 = scmp.eq.s32.totalorder %s11, 0
    %p73 = por %p71, %p72
    %p74 = scmp.ne.s32.totalorder %s66, %s68
    %p75 = scmp.eq.s32.totalorder %s16, 1
    %p76 = por %p74, %p75
    %p77 = scmp.ne.s32.totalorder %s68, %s69
    %p78 = scmp.eq.s32.totalorder %s16, 0
    %p79 = por %p77, %p78
    %p80 = scmp.ne.s32.totalorder %s68, %s69
    %p81 = scmp.eq.s32.totalorder %s17, 1
    %p82 = por %p80, %p81
    %p84 = scmp.ne.s32.totalorder %s69, %s83
    %p85 = scmp.eq.s32.totalorder %s17, 0
    %p86 = por %p84, %p85
    %s88 = sadd.s32 %s87, 1
    %p91 = scmp.eq.s32.totalorder %s11, 1
    %p92 = scmp.ne.s32.totalorder %s87, %s89
    %p93 = scmp.eq.s32.totalorder %s11, 0
    %p94 = por %p92, %p93
    %p95 = scmp.ne.s32.totalorder %s87, %s89
    %p96 = scmp.eq.s32.totalorder %s16, 1
    %p97 = por %p95, %p96
    %p98 = scmp.ne.s32.totalorder %s89, %s90
    %p99 = scmp.eq.s32.totalorder %s16, 0
    %p100 = por %p98, %p99
    %p101 = scmp.ne.s32.totalorder %s89, %s90
    %p102 = scmp.eq.s32.totalorder %s17, 1
    %p103 = por %p101, %p102
    %p105 = scmp.ne.s32.totalorder %s90, %s104
    %p106 = scmp.eq.s32.totalorder %s17, 0
    %p107 = por %p105, %p106
    %s108 = ssub.s32 %s11, %s18
    %p109 = scmp.eq.s32.totalorder %s108, 0
    %s111 = sadd.s32 %s110, 1
    %s112 = scalar_select %p109, %s110, %s111
    %p115 = pneg %p109
    %p116 = scmp.eq.s32.totalorder %s11, 1
    %p117 = por %p115, %p116
    %p118 = scmp.ne.s32.totalorder %s110, %s113
    %p119 = scmp.eq.s32.totalorder %s11, 0
    %p120 = por %p118, %p119
    %p121 = scmp.ne.s32.totalorder %s110, %s113
    %p122 = scmp.eq.s32.totalorder %s16, 1
    %p123 = por %p121, %p122
    %p124 = scmp.ne.s32.totalorder %s113, %s114
    %p125 = scmp.eq.s32.totalorder %s16, 0
    %p126 = por %p124, %p125
    %p127 = scmp.ne.s32.totalorder %s113, %s114
    %p128 = scmp.eq.s32.totalorder %s17, 1
    %p129 = por %p127, %p128
    %p131 = scmp.ne.s32.totalorder %s114, %s130
    %p132 = scmp.eq.s32.totalorder %s17, 0
    %p133 = por %p131, %p132
    %s134 = ssub.s32 %s11, %s18
    %p135 = scmp.eq.s32.totalorder %s134, 0
    %s137 = sadd.s32 %s136, 1
    %s138 = scalar_select %p135, %s136, %s137
    %p141 = pneg %p135
    %p142 = scmp.eq.s32.totalorder %s11, 1
    %p143 = por %p141, %p142
    %p144 = scmp.ne.s32.totalorder %s136, %s139
    %p145 = scmp.eq.s32.totalorder %s11, 0
    %p146 = por %p144, %p145
    %p147 = scmp.ne.s32.totalorder %s136, %s139
    %p148 = scmp.eq.s32.totalorder %s16, 1
    %p149 = por %p147, %p148
    %p150 = scmp.ne.s32.totalorder %s139, %s140
    %p151 = scmp.eq.s32.totalorder %s16, 0
    %p152 = por %p150, %p151
    %p153 = scmp.ne.s32.totalorder %s139, %s140
    %p154 = scmp.eq.s32.totalorder %s17, 1
    %p155 = por %p153, %p154
    %p157 = scmp.ne.s32.totalorder %s140, %s156
    %p158 = scmp.eq.s32.totalorder %s17, 0
    %p159 = por %p157, %p158
    %p160 = scmp.le.s32.totalorder 1, %s11
    %p161 = scmp.lt.s32.totalorder %s11, 3
    %p162 = pnand %p160, %p161
    %p163 = pneg %p162
    // Predicated region
    $region9: #{_lambda_.9} parent=5 // pred_check
      _
    $region10: #{_lambda_.9} parent=5 // pred_check_branch
      %165 = sbr.rel (%p162) target = $region12
    $region11: #{_lambda_.9} parent=5 // pred_region
      %s166 = ssub.s32 %s11, 1
      // Predicated region
      $region13: #{_lambda_.9} parent=11 // pred_check
        %p167 = pneg %p58
      $region14: #{_lambda_.9} parent=11 // pred_check_branch
        %169 = sbr.rel (%p167) target = $region16
      $region15: #{_lambda_.9} parent=11 // pred_region
        _
      $region16: #{_lambda_.9} parent=11 // pred_fallthru
        _
      // Predicated region
      $region17: #{_lambda_.9} parent=11 // pred_check
        %p170 = pneg %p79
      $region18: #{_lambda_.9} parent=11 // pred_check_branch
        %172 = sbr.rel (%p170) target = $region20
      $region19: #{_lambda_.9} parent=11 // pred_region
        _
      $region20: #{_lambda_.9} parent=11 // pred_fallthru
        _
      // Predicated region
      $region21: #{_lambda_.9} parent=11 // pred_check
        %p173 = pneg %p100
      $region22: #{_lambda_.9} parent=11 // pred_check_branch
        %175 = sbr.rel (%p173) target = $region24
      $region23: #{_lambda_.9} parent=11 // pred_region
        _
      $region24: #{_lambda_.9} parent=11 // pred_fallthru
        _
    $region12: #{_lambda_.9} parent=5 // pred_fallthru
      _
    %p176 = scmp.lt.s32.totalorder %s11, 2
    // Predicated region
    $region25: #{_lambda_.9} parent=5 // pred_check
      %p177 = pneg %p176
    $region26: #{_lambda_.9} parent=5 // pred_check_branch
      %179 = sbr.rel (%p177) target = $region28
    $region27: #{_lambda_.9} parent=5 // pred_region
      // Predicated region
      $region29: #{_lambda_.9} parent=27 // pred_check
        %p180 = pneg %p31
      $region30: #{_lambda_.9} parent=27 // pred_check_branch
        %182 = sbr.rel (%p180) target = $region32
      $region31: #{_lambda_.9} parent=27 // pred_region
        %s183 = smul.u32 32, %s11
        %p184 = scmp.lt.s32.totalorder %s183, 63
        %s185 = scalar_select %p184, %s183, 63
        %s186 = smul.addr %s185, 2
        %s187 = smul.addr %s186, 4
        %s188 = scalar_lea.vmem %s0, %s187
        %s189 = smul.u32 32, %s11
      $region32: #{_lambda_.9} parent=27 // pred_fallthru
        _
      // Predicated region
      $region33: #{_lambda_.9} parent=27 // pred_check
        %p190 = pneg %p120
      $region34: #{_lambda_.9} parent=27 // pred_check_branch
        %192 = sbr.rel (%p190) target = $region36
      $region35: #{_lambda_.9} parent=27 // pred_region
        %s193 = smul.u32 32, %s11
        %p194 = scmp.lt.s32.totalorder %s193, 63
        %s195 = scalar_select %p194, %s193, 63
        %s196 = smul.addr %s195, 4
        %s197 = scalar_lea.vmem %s4, %s196
        %s198 = smul.u32 32, %s11
      $region36: #{_lambda_.9} parent=27 // pred_fallthru
        _
    $region28: #{_lambda_.9} parent=5 // pred_fallthru
      _
    %p199 = scmp.le.s32.totalorder 1, %s11
    %p200 = scmp.lt.s32.totalorder %s11, 3
    %p201 = pnand %p199, %p200
    %p202 = pneg %p201
    // Predicated region
    $region37: #{_lambda_.9} parent=5 // pred_check
      _
    $region38: #{_lambda_.9} parent=5 // pred_check_branch
      %204 = sbr.rel (%p201) target = $region40
    $region39: #{_lambda_.9} parent=5 // pred_region
      %s205 = ssub.s32 %s11, 1
      %s206 = smul.u32 32, %s16
      %p207 = scmp.lt.s32.totalorder %s206, 63
      %s208 = scalar_select %p207, %s206, 63
      %s209 = smul.addr %s208, 2
      %s210 = smul.addr %s209, 4
      %s211 = scalar_lea.vmem %s0, %s210
      %p212 = pneg %p37
      %p213 = pneg %p34
      %p214 = pneg %p58
      %p215 = pneg %p55
      %p216 = pneg %p79
      %p217 = pneg %p76
      %p218 = pneg %p100
      %p219 = pneg %p97
      %s220 = smul.u32 32, %s16
      %p221 = scmp.lt.s32.totalorder %s220, 63
      %s222 = scalar_select %p221, %s220, 63
      %s223 = smul.addr %s222, 4
      %s224 = scalar_lea.vmem %s4, %s223
      %p225 = pneg %p126
      %p226 = pneg %p123
      %p227 = pneg %p152
      %p228 = pneg %p149
      %s229 = smul.u32 32, %s16
      %p230 = scmp.lt.s32.totalorder %s229, 63
      %s231 = scalar_select %p230, %s229, 63
      %s232 = smul.addr %s231, 4
      %s233 = scalar_lea.vmem %s5, %s232
      %s234 = smul.u32 32, %s16
      %p235 = scmp.lt.s32.totalorder %s234, 63
      %s236 = scalar_select %p235, %s234, 63
      %s237 = smul.addr %s236, 2
      %s238 = smul.addr %s237, 4
      %s239 = scalar_lea.vmem %s0, %s238
      %s240 = smul.u32 32, %s16
      %s241 = smul.u32 32, %s16
      %p242 = scmp.lt.s32.totalorder %s241, 63
      %s243 = scalar_select %p242, %s241, 63
      %s244 = smul.addr %s243, 4
      %s245 = scalar_lea.vmem %s4, %s244
      %s246 = smul.u32 32, %s16
      %s247 = smul.u32 32, %s16
      %p248 = scmp.lt.s32.totalorder %s247, 63
      %s249 = scalar_select %p248, %s247, 63
      %s250 = smul.addr %s249, 4
      %s251 = scalar_lea.vmem %s5, %s250
      %s252 = smul.u32 32, %s16
      %v254 = vld [vmem:[%s239] sm:$0xff]
      %v255 = vld [vmem:[%s239 + $0x8] sm:$0xff]
      %v256 = vld [vmem:[%s239 + $0x10] sm:$0xff]
      %v257 = vld [vmem:[%s239 + $0x18] sm:$0xff]
      %v258 = vld [vmem:[%s239 + $0x20] sm:$0xff]
      %v259 = vld [vmem:[%s239 + $0x28] sm:$0xff]
      %v260 = vld [vmem:[%s239 + $0x30] sm:$0xff]
      %v261 = vld [vmem:[%s239 + $0x38] sm:$0xff]
      %v262 = vld [vmem:[%s239 + $0x40] sm:$0xff]
      %v263 = vld [vmem:[%s239 + $0x48] sm:$0xff]
      %v264 = vld [vmem:[%s239 + $0x50] sm:$0xff]
      %v265 = vld [vmem:[%s239 + $0x58] sm:$0xff]
      %v266 = vld [vmem:[%s239 + $0x60] sm:$0xff]
      %v267 = vld [vmem:[%s239 + $0x68] sm:$0xff]
      %v268 = vld [vmem:[%s239 + $0x70] sm:$0xff]
      %v269 = vld [vmem:[%s239 + $0x78] sm:$0xff]
      %v270 = vld [vmem:[%s239 + $0x80] sm:$0xff]
      %v271 = vld [vmem:[%s239 + $0x88] sm:$0xff]
      %v272 = vld [vmem:[%s239 + $0x90] sm:$0xff]
      %v273 = vld [vmem:[%s239 + $0x98] sm:$0xff]
      %v274 = vld [vmem:[%s239 + $0xa0] sm:$0xff]
      %v275 = vld [vmem:[%s239 + $0xa8] sm:$0xff]
      %v276 = vld [vmem:[%s239 + $0xb0] sm:$0xff]
      %v277 = vld [vmem:[%s239 + $0xb8] sm:$0xff]
      %v278 = vld [vmem:[%s239 + $0xc0] sm:$0xff]
      %v279 = vld [vmem:[%s239 + $0xc8] sm:$0xff]
      %v280 = vld [vmem:[%s239 + $0xd0] sm:$0xff]
      %v281 = vld [vmem:[%s239 + $0xd8] sm:$0xff]
      %v282 = vld [vmem:[%s239 + $0xe0] sm:$0xff]
      %v283 = vld [vmem:[%s239 + $0xe8] sm:$0xff]
      %v284 = vld [vmem:[%s239 + $0xf0] sm:$0xff]
      %v285 = vld [vmem:[%s239 + $0xf8] sm:$0xff]
      %v286 = vld [vmem:[%s1] sm:$0xf]
      %v287 = vld [vmem:[%s1 + $0x4] sm:$0xf]
      %v288 = vld [vmem:[%s1 + $0x8] sm:$0xf]
      %v289 = vld [vmem:[%s1 + $0xc] sm:$0xf]
      %v290 = vld [vmem:[%s1 + $0x10] sm:$0xf]
      %v291 = vld [vmem:[%s1 + $0x14] sm:$0xf]
      %v292 = vld [vmem:[%s1 + $0x18] sm:$0xf]
      %v293 = vld [vmem:[%s1 + $0x1c] sm:$0xf]
      %v294 = vld [vmem:[%s1 + $0x20] sm:$0xf]
      %v295 = vld [vmem:[%s1 + $0x24] sm:$0xf]
      %v296 = vld [vmem:[%s1 + $0x28] sm:$0xf]
      %v297 = vld [vmem:[%s1 + $0x2c] sm:$0xf]
      %v298 = vld [vmem:[%s1 + $0x30] sm:$0xf]
      %v299 = vld [vmem:[%s1 + $0x34] sm:$0xf]
      %v300 = vld [vmem:[%s1 + $0x38] sm:$0xf]
      %v301 = vld [vmem:[%s1 + $0x3c] sm:$0xf]
      %v302 = vld [vmem:[%s1 + $0x40] sm:$0xf]
      %v303 = vld [vmem:[%s1 + $0x44] sm:$0xf]
      %v336 = vunpack.c.l.b16 %v254
      %v337 = vunpack.c.h.b16 %v254
      %v338 = vunpack.c.l.b16 %v255
      %v339 = vunpack.c.h.b16 %v255
      %v340 = vunpack.c.l.b16 %v256
      %v341 = vunpack.c.h.b16 %v256
      %v342 = vunpack.c.l.b16 %v257
      %v343 = vunpack.c.h.b16 %v257
      %v344 = vunpack.c.l.b16 %v258
      %v345 = vunpack.c.h.b16 %v258
      %v346 = vunpack.c.l.b16 %v259
      %v347 = vunpack.c.h.b16 %v259
      %v348 = vunpack.c.l.b16 %v260
      %v349 = vunpack.c.h.b16 %v260
      %v350 = vunpack.c.l.b16 %v261
      %v351 = vunpack.c.h.b16 %v261
      %v352 = vunpack.c.l.b16 %v262
      %v353 = vunpack.c.h.b16 %v262
      %v354 = vunpack.c.l.b16 %v263
      %v355 = vunpack.c.h.b16 %v263
      %v356 = vunpack.c.l.b16 %v264
      %v357 = vunpack.c.h.b16 %v264
      %v358 = vunpack.c.l.b16 %v265
      %v359 = vunpack.c.h.b16 %v265
      %v360 = vunpack.c.l.b16 %v266
      %v361 = vunpack.c.h.b16 %v266
      %v362 = vunpack.c.l.b16 %v267
      %v363 = vunpack.c.h.b16 %v267
      %v364 = vunpack.c.l.b16 %v268
      %v365 = vunpack.c.h.b16 %v268
      %v366 = vunpack.c.l.b16 %v269
      %v367 = vunpack.c.h.b16 %v269
      %v368 = vunpack.c.l.b16 %v270
      %v369 = vunpack.c.h.b16 %v270
      %v370 = vunpack.c.l.b16 %v271
      %v371 = vunpack.c.h.b16 %v271
      %v372 = vunpack.c.l.b16 %v272
      %v373 = vunpack.c.h.b16 %v272
      %v374 = vunpack.c.l.b16 %v273
      %v375 = vunpack.c.h.b16 %v273
      %v376 = vunpack.c.l.b16 %v274
      %v377 = vunpack.c.h.b16 %v274
      %v378 = vunpack.c.l.b16 %v275
      %v379 = vunpack.c.h.b16 %v275
      %v380 = vunpack.c.l.b16 %v276
      %v381 = vunpack.c.h.b16 %v276
      %v382 = vunpack.c.l.b16 %v277
      %v383 = vunpack.c.h.b16 %v277
      %v384 = vunpack.c.l.b16 %v278
      %v385 = vunpack.c.h.b16 %v278
      %v386 = vunpack.c.l.b16 %v279
      %v387 = vunpack.c.h.b16 %v279
      %v388 = vunpack.c.l.b16 %v280
      %v389 = vunpack.c.h.b16 %v280
      %v390 = vunpack.c.l.b16 %v281
      %v391 = vunpack.c.h.b16 %v281
      %v392 = vunpack.c.l.b16 %v282
      %v393 = vunpack.c.h.b16 %v282
      %v394 = vunpack.c.l.b16 %v283
      %v395 = vunpack.c.h.b16 %v283
      %v396 = vunpack.c.l.b16 %v284
      %v397 = vunpack.c.h.b16 %v284
      %v398 = vunpack.c.l.b16 %v285
      %v399 = vunpack.c.h.b16 %v285
      %v400 = vpack.c.b16 %v338, %v336
      %v401 = vpack.c.b16 %v339, %v337
      %v402 = vpack.c.b16 %v342, %v340
      %v403 = vpack.c.b16 %v343, %v341
      %v404 = vpack.c.b16 %v346, %v344
      %v405 = vpack.c.b16 %v347, %v345
      %v406 = vpack.c.b16 %v350, %v348
      %v407 = vpack.c.b16 %v351, %v349
      %v408 = vpack.c.b16 %v354, %v352
      %v409 = vpack.c.b16 %v355, %v353
      %v410 = vpack.c.b16 %v358, %v356
      %v411 = vpack.c.b16 %v359, %v357
      %v412 = vpack.c.b16 %v362, %v360
      %v413 = vpack.c.b16 %v363, %v361
      %v414 = vpack.c.b16 %v366, %v364
      %v415 = vpack.c.b16 %v367, %v365
      %v416 = vpack.c.b16 %v370, %v368
      %v417 = vpack.c.b16 %v371, %v369
      %v418 = vpack.c.b16 %v374, %v372
      %v419 = vpack.c.b16 %v375, %v373
      %v420 = vpack.c.b16 %v378, %v376
      %v421 = vpack.c.b16 %v379, %v377
      %v422 = vpack.c.b16 %v382, %v380
      %v423 = vpack.c.b16 %v383, %v381
      %v424 = vpack.c.b16 %v386, %v384
      %v425 = vpack.c.b16 %v387, %v385
      %v426 = vpack.c.b16 %v390, %v388
      %v427 = vpack.c.b16 %v391, %v389
      %v428 = vpack.c.b16 %v394, %v392
      %v429 = vpack.c.b16 %v395, %v393
      %v430 = vpack.c.b16 %v398, %v396
      %v431 = vpack.c.b16 %v399, %v397
      %v466 = vunpack.c.l.b16 %v286
      %v467 = vunpack.c.l.b16 %v287
      %v468 = vunpack.c.l.b16 %v288
      %v469 = vunpack.c.l.b16 %v289
      %v470 = vunpack.c.l.b16 %v290
      %v471 = vunpack.c.l.b16 %v291
      %v472 = vunpack.c.l.b16 %v292
      %v473 = vunpack.c.l.b16 %v293
      %v474 = vunpack.c.l.b16 %v294
      %v475 = vunpack.c.l.b16 %v295
      %v476 = vunpack.c.l.b16 %v296
      %v477 = vunpack.c.l.b16 %v297
      %v478 = vunpack.c.l.b16 %v298
      %v479 = vunpack.c.l.b16 %v299
      %v480 = vunpack.c.l.b16 %v300
      %v481 = vunpack.c.l.b16 %v301
      %v482 = vunpack.c.l.b16 %v302
      %v483 = vunpack.c.l.b16 %v303
      %v484 = vpack.c.b16 %v467, %v466
      %v485 = vpack.c.b16 %v469, %v468
      %v486 = vpack.c.b16 %v471, %v470
      %v487 = vpack.c.b16 %v473, %v472
      %v488 = vpack.c.b16 %v475, %v474
      %v489 = vpack.c.b16 %v477, %v476
      %v490 = vpack.c.b16 %v479, %v478
      %v491 = vpack.c.b16 %v481, %v480
      %v492 = vpack.c.b16 %v483, %v482
      %vm502 = vcmask 130048
      %v504 = vsel %vm502, %v401, 0
      %v507 = vsel %vm502, %v403, 0
      %v510 = vsel %vm502, %v405, 0
      %v513 = vsel %vm502, %v407, 0
      %v516 = vsel %vm502, %v409, 0
      %v519 = vsel %vm502, %v411, 0
      %v522 = vsel %vm502, %v413, 0
      %v525 = vsel %vm502, %v415, 0
      %v528 = vsel %vm502, %v417, 0
      %v531 = vsel %vm502, %v419, 0
      %v534 = vsel %vm502, %v421, 0
      %v537 = vsel %vm502, %v423, 0
      %v540 = vsel %vm502, %v425, 0
      %v543 = vsel %vm502, %v427, 0
      %v546 = vsel %vm502, %v429, 0
      %v549 = vsel %vm502, %v431, 0
      %551 = vmatprep.subr.bf16.mxu0 0
      %552 = vmatpush1.bf16.msra.mxu0 %v484
      %553 = vmatprep.subr.bf16.mxu0 0
      %554 = vmatpush1.bf16.msra.mxu0 %v485
      %555 = vmatprep.subr.bf16.mxu0 0
      %556 = vmatpush1.bf16.msra.mxu0 %v486
      %557 = vmatprep.subr.bf16.mxu0 0
      %558 = vmatpush1.bf16.msra.mxu0 %v487
      %559 = vmatprep.subr.bf16.mxu0 0
      %560 = vmatpush1.bf16.msra.mxu0 %v488
      %561 = vmatprep.subr.bf16.mxu0 0
      %562 = vmatpush1.bf16.msra.mxu0 %v489
      %563 = vmatprep.subr.bf16.mxu0 0
      %564 = vmatpush1.bf16.msra.mxu0 %v490
      %565 = vmatprep.subr.bf16.mxu0 0
      %566 = vmatpush1.bf16.msra.mxu0 %v491
      %567 = vmatprep.subr.bf16.mxu0 0
      %568 = vmatpush1.bf16.msra.mxu0 %v492
      %569 = vmatprep.subr.bf16.mxu0 0
      %570 = vmatpush1.bf16.msra.mxu0 0
      %571 = vmatprep.subr.bf16.mxu0 0
      %572 = vmatpush1.bf16.msra.mxu0 0
      %573 = vmatprep.subr.bf16.mxu0 0
      %574 = vmatpush1.bf16.msra.mxu0 0
      %575 = vmatprep.subr.bf16.mxu0 0
      %576 = vmatpush1.bf16.msra.mxu0 0
      %577 = vmatprep.subr.bf16.mxu0 0
      %578 = vmatpush1.bf16.msra.mxu0 0
      %579 = vmatprep.subr.bf16.mxu0 0
      %580 = vmatpush1.bf16.msra.mxu0 0
      %581 = vmatprep.subr.bf16.mxu0 0
      %582 = vmatpush1.bf16.msra.mxu0 0
      %583 = vmatprep.mubr.bf16.mxu0 %v504
      %584 = vmatmul.mubr.bf16.gmra.mrb[0].mxu0 %v400
      %v585 = vpop.f32.mrb[0].mxu0
      %v586 = vadd.f32 0.0, %v585
      %v587 = vpop.f32.mrb[0].mxu0
      %v588 = vpop.f32.mrb[0].mxu0
      %v589 = vadd.f32 0.0, %v588
      %v590 = vpop.f32.mrb[0].mxu0
      %591 = vmatprep.mubr.bf16.mxu0 %v507
      %592 = vmatmul.mubr.bf16.gmra.mrb[0].mxu0 %v402
      %v593 = vpop.f32.mrb[0].mxu0
      %v594 = vadd.f32 0.0, %v593
      %v595 = vpop.f32.mrb[0].mxu0
      %v596 = vpop.f32.mrb[0].mxu0
      %v597 = vadd.f32 0.0, %v596
      %v598 = vpop.f32.mrb[0].mxu0
      %599 = vmatprep.mubr.bf16.mxu0 %v510
      %600 = vmatmul.mubr.bf16.gmra.mrb[0].mxu0 %v404
      %v601 = vpop.f32.mrb[0].mxu0
      %v602 = vadd.f32 0.0, %v601
      %v603 = vpop.f32.mrb[0].mxu0
      %v604 = vpop.f32.mrb[0].mxu0
      %v605 = vadd.f32 0.0, %v604
      %v606 = vpop.f32.mrb[0].mxu0
      %607 = vmatprep.mubr.bf16.mxu0 %v513
      %608 = vmatmul.mubr.bf16.gmra.mrb[0].mxu0 %v406
      %v609 = vpop.f32.mrb[0].mxu0
      %v610 = vadd.f32 0.0, %v609
      %v611 = vpop.f32.mrb[0].mxu0
      %v612 = vpop.f32.mrb[0].mxu0
      %v613 = vadd.f32 0.0, %v612
      %v614 = vpop.f32.mrb[0].mxu0
      %615 = vmatprep.mubr.bf16.mxu0 %v516
      %616 = vmatmul.mubr.bf16.gmra.mrb[0].mxu0 %v408
      %v617 = vpop.f32.mrb[0].mxu0
      %v618 = vadd.f32 0.0, %v617
      %v619 = vpop.f32.mrb[0].mxu0
      %v620 = vpop.f32.mrb[0].mxu0
      %v621 = vadd.f32 0.0, %v620
      %v622 = vpop.f32.mrb[0].mxu0
      %623 = vmatprep.mubr.bf16.mxu0 %v519
      %624 = vmatmul.mubr.bf16.gmra.mrb[0].mxu0 %v410
      %v625 = vpop.f32.mrb[0].mxu0
      %v626 = vadd.f32 0.0, %v625
      %v627 = vpop.f32.mrb[0].mxu0
      %v628 = vpop.f32.mrb[0].mxu0
      %v629 = vadd.f32 0.0, %v628
      %v630 = vpop.f32.mrb[0].mxu0
      %631 = vmatprep.mubr.bf16.mxu0 %v522
      %632 = vmatmul.mubr.bf16.gmra.mrb[0].mxu0 %v412
      %v633 = vpop.f32.mrb[0].mxu0
      %v634 = vadd.f32 0.0, %v633
      %v635 = vpop.f32.mrb[0].mxu0
      %v636 = vpop.f32.mrb[0].mxu0
      %v637 = vadd.f32 0.0, %v636
      %v638 = vpop.f32.mrb[0].mxu0
      %639 = vmatprep.mubr.bf16.mxu0 %v525
      %640 = vmatmul.mubr.bf16.gmra.mrb[0].mxu0 %v414
      %v641 = vpop.f32.mrb[0].mxu0
      %v642 = vadd.f32 0.0, %v641
      %v643 = vpop.f32.mrb[0].mxu0
      %v644 = vpop.f32.mrb[0].mxu0
      %v645 = vadd.f32 0.0, %v644
      %v646 = vpop.f32.mrb[0].mxu0
      %647 = vmatprep.mubr.bf16.mxu0 %v528
      %648 = vmatmul.mubr.bf16.gmra.mrb[0].mxu0 %v416
      %v649 = vpop.f32.mrb[0].mxu0
      %v650 = vadd.f32 0.0, %v649
      %v651 = vpop.f32.mrb[0].mxu0
      %v652 = vpop.f32.mrb[0].mxu0
      %v653 = vadd.f32 0.0, %v652
      %v654 = vpop.f32.mrb[0].mxu0
      %655 = vmatprep.mubr.bf16.mxu0 %v531
      %656 = vmatmul.mubr.bf16.gmra.mrb[0].mxu0 %v418
      %v657 = vpop.f32.mrb[0].mxu0
      %v658 = vadd.f32 0.0, %v657
      %v659 = vpop.f32.mrb[0].mxu0
      %v660 = vpop.f32.mrb[0].mxu0
      %v661 = vadd.f32 0.0, %v660
      %v662 = vpop.f32.mrb[0].mxu0
      %663 = vmatprep.mubr.bf16.mxu0 %v534
      %664 = vmatmul.mubr.bf16.gmra.mrb[0].mxu0 %v420
      %v665 = vpop.f32.mrb[0].mxu0
      %v666 = vadd.f32 0.0, %v665
      %v667 = vpop.f32.mrb[0].mxu0
      %v668 = vpop.f32.mrb[0].mxu0
      %v669 = vadd.f32 0.0, %v668
      %v670 = vpop.f32.mrb[0].mxu0
      %671 = vmatprep.mubr.bf16.mxu0 %v537
      %672 = vmatmul.mubr.bf16.gmra.mrb[0].mxu0 %v422
      %v673 = vpop.f32.mrb[0].mxu0
      %v674 = vadd.f32 0.0, %v673
      %v675 = vpop.f32.mrb[0].mxu0
      %v676 = vpop.f32.mrb[0].mxu0
      %v677 = vadd.f32 0.0, %v676
      %v678 = vpop.f32.mrb[0].mxu0
      %679 = vmatprep.mubr.bf16.mxu0 %v540
      %680 = vmatmul.mubr.bf16.gmra.mrb[0].mxu0 %v424
      %v681 = vpop.f32.mrb[0].mxu0
      %v682 = vadd.f32 0.0, %v681
      %v683 = vpop.f32.mrb[0].mxu0
      %v684 = vpop.f32.mrb[0].mxu0
      %v685 = vadd.f32 0.0, %v684
      %v686 = vpop.f32.mrb[0].mxu0
      %687 = vmatprep.mubr.bf16.mxu0 %v543
      %688 = vmatmul.mubr.bf16.gmra.mrb[0].mxu0 %v426
      %v689 = vpop.f32.mrb[0].mxu0
      %v690 = vadd.f32 0.0, %v689
      %v691 = vpop.f32.mrb[0].mxu0
      %v692 = vpop.f32.mrb[0].mxu0
      %v693 = vadd.f32 0.0, %v692
      %v694 = vpop.f32.mrb[0].mxu0
      %695 = vmatprep.mubr.bf16.mxu0 %v546
      %696 = vmatmul.mubr.bf16.gmra.mrb[0].mxu0 %v428
      %v697 = vpop.f32.mrb[0].mxu0
      %v698 = vadd.f32 0.0, %v697
      %v699 = vpop.f32.mrb[0].mxu0
      %v700 = vpop.f32.mrb[0].mxu0
      %v701 = vadd.f32 0.0, %v700
      %v702 = vpop.f32.mrb[0].mxu0
      %703 = vmatprep.mubr.bf16.mxu0 %v549
      %704 = vmatmul.mubr.bf16.gmra.mrb[0].mxu0 %v430
      %v705 = vpop.f32.mrb[0].mxu0
      %v706 = vadd.f32 0.0, %v705
      %v707 = vpop.f32.mrb[0].mxu0
      %v708 = vpop.f32.mrb[0].mxu0
      %v709 = vadd.f32 0.0, %v708
      %v710 = vpop.f32.mrb[0].mxu0
      %711 = vdwg.mxu0
      %v712 = vld [vmem:[%s2] sm:$0x1]
      %v714 = vlaneseq
      %v715 = vshrl.u32 %v714, 7
      %v716 = vsub.s32 0, %v715
      %v717 = vrot.slane %v712, %v716
      %v719 = vmul.f32 %v586, %v717
      %v720 = vmul.f32 %v589, %v717
      %v721 = vmul.f32 %v594, %v717
      %v722 = vmul.f32 %v597, %v717
      %v723 = vmul.f32 %v602, %v717
      %v724 = vmul.f32 %v605, %v717
      %v725 = vmul.f32 %v610, %v717
      %v726 = vmul.f32 %v613, %v717
      %v727 = vmul.f32 %v618, %v717
      %v728 = vmul.f32 %v621, %v717
      %v729 = vmul.f32 %v626, %v717
      %v730 = vmul.f32 %v629, %v717
      %v731 = vmul.f32 %v634, %v717
      %v732 = vmul.f32 %v637, %v717
      %v733 = vmul.f32 %v642, %v717
      %v734 = vmul.f32 %v645, %v717
      %v735 = vmul.f32 %v650, %v717
      %v736 = vmul.f32 %v653, %v717
      %v737 = vmul.f32 %v658, %v717
      %v738 = vmul.f32 %v661, %v717
      %v739 = vmul.f32 %v666, %v717
      %v740 = vmul.f32 %v669, %v717
      %v741 = vmul.f32 %v674, %v717
      %v742 = vmul.f32 %v677, %v717
      %v743 = vmul.f32 %v682, %v717
      %v744 = vmul.f32 %v685, %v717
      %v745 = vmul.f32 %v690, %v717
      %v746 = vmul.f32 %v693, %v717
      %v747 = vmul.f32 %v698, %v717
      %v748 = vmul.f32 %v701, %v717
      %v749 = vmul.f32 %v706, %v717
      %v750 = vmul.f32 %v709, %v717
      %v751 = vld [vmem:[%s3] sm:$0x1]
      %v753 = vlaneseq
      %v754 = vshrl.u32 %v753, 7
      %v755 = vsub.s32 0, %v754
      %v756 = vrot.slane %v751, %v755
      %v758 = vadd.f32 %v719, %v756
      %v759 = vadd.f32 %v720, %v756
      %v760 = vadd.f32 %v721, %v756
      %v761 = vadd.f32 %v722, %v756
      %v762 = vadd.f32 %v723, %v756
      %v763 = vadd.f32 %v724, %v756
      %v764 = vadd.f32 %v725, %v756
      %v765 = vadd.f32 %v726, %v756
      %v766 = vadd.f32 %v727, %v756
      %v767 = vadd.f32 %v728, %v756
      %v768 = vadd.f32 %v729, %v756
      %v769 = vadd.f32 %v730, %v756
      %v770 = vadd.f32 %v731, %v756
      %v771 = vadd.f32 %v732, %v756
      %v772 = vadd.f32 %v733, %v756
      %v773 = vadd.f32 %v734, %v756
      %v774 = vadd.f32 %v735, %v756
      %v775 = vadd.f32 %v736, %v756
      %v776 = vadd.f32 %v737, %v756
      %v777 = vadd.f32 %v738, %v756
      %v778 = vadd.f32 %v739, %v756
      %v779 = vadd.f32 %v740, %v756
      %v780 = vadd.f32 %v741, %v756
      %v781 = vadd.f32 %v742, %v756
      %v782 = vadd.f32 %v743, %v756
      %v783 = vadd.f32 %v744, %v756
      %v784 = vadd.f32 %v745, %v756
      %v785 = vadd.f32 %v746, %v756
      %v786 = vadd.f32 %v747, %v756
      %v787 = vadd.f32 %v748, %v756
      %v788 = vadd.f32 %v749, %v756
      %v789 = vadd.f32 %v750, %v756
      %v790 = vld [vmem:[%s245] sm:$0xf]
      %v791 = vld [vmem:[%s245 + $0x4] sm:$0xf]
      %v792 = vld [vmem:[%s245 + $0x8] sm:$0xf]
      %v793 = vld [vmem:[%s245 + $0xc] sm:$0xf]
      %v794 = vld [vmem:[%s245 + $0x10] sm:$0xf]
      %v795 = vld [vmem:[%s245 + $0x14] sm:$0xf]
      %v796 = vld [vmem:[%s245 + $0x18] sm:$0xf]
      %v797 = vld [vmem:[%s245 + $0x1c] sm:$0xf]
      %v798 = vld [vmem:[%s245 + $0x20] sm:$0xf]
      %v799 = vld [vmem:[%s245 + $0x24] sm:$0xf]
      %v800 = vld [vmem:[%s245 + $0x28] sm:$0xf]
      %v801 = vld [vmem:[%s245 + $0x2c] sm:$0xf]
      %v802 = vld [vmem:[%s245 + $0x30] sm:$0xf]
      %v803 = vld [vmem:[%s245 + $0x34] sm:$0xf]
      %v804 = vld [vmem:[%s245 + $0x38] sm:$0xf]
      %v805 = vld [vmem:[%s245 + $0x3c] sm:$0xf]
      %v806 = vld [vmem:[%s245 + $0x40] sm:$0xf]
      %v807 = vld [vmem:[%s245 + $0x44] sm:$0xf]
      %v808 = vld [vmem:[%s245 + $0x48] sm:$0xf]
      %v809 = vld [vmem:[%s245 + $0x4c] sm:$0xf]
      %v810 = vld [vmem:[%s245 + $0x50] sm:$0xf]
      %v811 = vld [vmem:[%s245 + $0x54] sm:$0xf]
      %v812 = vld [vmem:[%s245 + $0x58] sm:$0xf]
      %v813 = vld [vmem:[%s245 + $0x5c] sm:$0xf]
      %v814 = vld [vmem:[%s245 + $0x60] sm:$0xf]
      %v815 = vld [vmem:[%s245 + $0x64] sm:$0xf]
      %v816 = vld [vmem:[%s245 + $0x68] sm:$0xf]
      %v817 = vld [vmem:[%s245 + $0x6c] sm:$0xf]
      %v818 = vld [vmem:[%s245 + $0x70] sm:$0xf]
      %v819 = vld [vmem:[%s245 + $0x74] sm:$0xf]
      %v820 = vld [vmem:[%s245 + $0x78] sm:$0xf]
      %v821 = vld [vmem:[%s245 + $0x7c] sm:$0xf]
      %v822 = vunpack.c.l.bf16 %v790
      %v823 = vunpack.c.l.bf16 %v791
      %v824 = vunpack.c.l.bf16 %v792
      %v825 = vunpack.c.l.bf16 %v793
      %v826 = vunpack.c.l.bf16 %v794
      %v827 = vunpack.c.l.bf16 %v795
      %v828 = vunpack.c.l.bf16 %v796
      %v829 = vunpack.c.l.bf16 %v797
      %v830 = vunpack.c.l.bf16 %v798
      %v831 = vunpack.c.l.bf16 %v799
      %v832 = vunpack.c.l.bf16 %v800
      %v833 = vunpack.c.l.bf16 %v801
      %v834 = vunpack.c.l.bf16 %v802
      %v835 = vunpack.c.l.bf16 %v803
      %v836 = vunpack.c.l.bf16 %v804
      %v837 = vunpack.c.l.bf16 %v805
      %v838 = vunpack.c.l.bf16 %v806
      %v839 = vunpack.c.l.bf16 %v807
      %v840 = vunpack.c.l.bf16 %v808
      %v841 = vunpack.c.l.bf16 %v809
      %v842 = vunpack.c.l.bf16 %v810
      %v843 = vunpack.c.l.bf16 %v811
      %v844 = vunpack.c.l.bf16 %v812
      %v845 = vunpack.c.l.bf16 %v813
      %v846 = vunpack.c.l.bf16 %v814
      %v847 = vunpack.c.l.bf16 %v815
      %v848 = vunpack.c.l.bf16 %v816
      %v849 = vunpack.c.l.bf16 %v817
      %v850 = vunpack.c.l.bf16 %v818
      %v851 = vunpack.c.l.bf16 %v819
      %v852 = vunpack.c.l.bf16 %v820
      %v853 = vunpack.c.l.bf16 %v821
      %v854 = vadd.f32 %v758, %v822
      %v855 = vadd.f32 %v759, %v823
      %v856 = vadd.f32 %v760, %v824
      %v857 = vadd.f32 %v761, %v825
      %v858 = vadd.f32 %v762, %v826
      %v859 = vadd.f32 %v763, %v827
      %v860 = vadd.f32 %v764, %v828
      %v861 = vadd.f32 %v765, %v829
      %v862 = vadd.f32 %v766, %v830
      %v863 = vadd.f32 %v767, %v831
      %v864 = vadd.f32 %v768, %v832
      %v865 = vadd.f32 %v769, %v833
      %v866 = vadd.f32 %v770, %v834
      %v867 = vadd.f32 %v771, %v835
      %v868 = vadd.f32 %v772, %v836
      %v869 = vadd.f32 %v773, %v837
      %v870 = vadd.f32 %v774, %v838
      %v871 = vadd.f32 %v775, %v839
      %v872 = vadd.f32 %v776, %v840
      %v873 = vadd.f32 %v777, %v841
      %v874 = vadd.f32 %v778, %v842
      %v875 = vadd.f32 %v779, %v843
      %v876 = vadd.f32 %v780, %v844
      %v877 = vadd.f32 %v781, %v845
      %v878 = vadd.f32 %v782, %v846
      %v879 = vadd.f32 %v783, %v847
      %v880 = vadd.f32 %v784, %v848
      %v881 = vadd.f32 %v785, %v849
      %v882 = vadd.f32 %v786, %v850
      %v883 = vadd.f32 %v787, %v851
      %v884 = vadd.f32 %v788, %v852
      %v885 = vadd.f32 %v789, %v853
      %v886 = vmax.f32 %v854, 0.0
      %v887 = vmax.f32 %v855, 0.0
      %v888 = vmax.f32 %v856, 0.0
      %v889 = vmax.f32 %v857, 0.0
      %v890 = vmax.f32 %v858, 0.0
      %v891 = vmax.f32 %v859, 0.0
      %v892 = vmax.f32 %v860, 0.0
      %v893 = vmax.f32 %v861, 0.0
      %v894 = vmax.f32 %v862, 0.0
      %v895 = vmax.f32 %v863, 0.0
      %v896 = vmax.f32 %v864, 0.0
      %v897 = vmax.f32 %v865, 0.0
      %v898 = vmax.f32 %v866, 0.0
      %v899 = vmax.f32 %v867, 0.0
      %v900 = vmax.f32 %v868, 0.0
      %v901 = vmax.f32 %v869, 0.0
      %v902 = vmax.f32 %v870, 0.0
      %v903 = vmax.f32 %v871, 0.0
      %v904 = vmax.f32 %v872, 0.0
      %v905 = vmax.f32 %v873, 0.0
      %v906 = vmax.f32 %v874, 0.0
      %v907 = vmax.f32 %v875, 0.0
      %v908 = vmax.f32 %v876, 0.0
      %v909 = vmax.f32 %v877, 0.0
      %v910 = vmax.f32 %v878, 0.0
      %v911 = vmax.f32 %v879, 0.0
      %v912 = vmax.f32 %v880, 0.0
      %v913 = vmax.f32 %v881, 0.0
      %v914 = vmax.f32 %v882, 0.0
      %v915 = vmax.f32 %v883, 0.0
      %v916 = vmax.f32 %v884, 0.0
      %v917 = vmax.f32 %v885, 0.0
      %v918 = vpack.c.bf16 %v887, %v886
      %v919 = vpack.c.bf16 %v889, %v888
      %v920 = vpack.c.bf16 %v891, %v890
      %v921 = vpack.c.bf16 %v893, %v892
      %v922 = vpack.c.bf16 %v895, %v894
      %v923 = vpack.c.bf16 %v897, %v896
      %v924 = vpack.c.bf16 %v899, %v898
      %v925 = vpack.c.bf16 %v901, %v900
      %v926 = vpack.c.bf16 %v903, %v902
      %v927 = vpack.c.bf16 %v905, %v904
      %v928 = vpack.c.bf16 %v907, %v906
      %v929 = vpack.c.bf16 %v909, %v908
      %v930 = vpack.c.bf16 %v911, %v910
      %v931 = vpack.c.bf16 %v913, %v912
      %v932 = vpack.c.bf16 %v915, %v914
      %v933 = vpack.c.bf16 %v917, %v916
      %v950 = vunpack.c.l.b16 %v918
      %v951 = vunpack.c.h.b16 %v918
      %v952 = vunpack.c.l.b16 %v919
      %v953 = vunpack.c.h.b16 %v919
      %v954 = vunpack.c.l.b16 %v920
      %v955 = vunpack.c.h.b16 %v920
      %v956 = vunpack.c.l.b16 %v921
      %v957 = vunpack.c.h.b16 %v921
      %v958 = vunpack.c.l.b16 %v922
      %v959 = vunpack.c.h.b16 %v922
      %v960 = vunpack.c.l.b16 %v923
      %v961 = vunpack.c.h.b16 %v923
      %v962 = vunpack.c.l.b16 %v924
      %v963 = vunpack.c.h.b16 %v924
      %v964 = vunpack.c.l.b16 %v925
      %v965 = vunpack.c.h.b16 %v925
      %v966 = vunpack.c.l.b16 %v926
      %v967 = vunpack.c.h.b16 %v926
      %v968 = vunpack.c.l.b16 %v927
      %v969 = vunpack.c.h.b16 %v927
      %v970 = vunpack.c.l.b16 %v928
      %v971 = vunpack.c.h.b16 %v928
      %v972 = vunpack.c.l.b16 %v929
      %v973 = vunpack.c.h.b16 %v929
      %v974 = vunpack.c.l.b16 %v930
      %v975 = vunpack.c.h.b16 %v930
      %v976 = vunpack.c.l.b16 %v931
      %v977 = vunpack.c.h.b16 %v931
      %v978 = vunpack.c.l.b16 %v932
      %v979 = vunpack.c.h.b16 %v932
      %v980 = vunpack.c.l.b16 %v933
      %v981 = vunpack.c.h.b16 %v933
      %v982 = vpack.c.b16 %v950, %v950
      %v983 = vpack.c.b16 %v951, %v951
      %v984 = vpack.c.b16 %v952, %v952
      %v985 = vpack.c.b16 %v953, %v953
      %v986 = vpack.c.b16 %v954, %v954
      %v987 = vpack.c.b16 %v955, %v955
      %v988 = vpack.c.b16 %v956, %v956
      %v989 = vpack.c.b16 %v957, %v957
      %v990 = vpack.c.b16 %v958, %v958
      %v991 = vpack.c.b16 %v959, %v959
      %v992 = vpack.c.b16 %v960, %v960
      %v993 = vpack.c.b16 %v961, %v961
      %v994 = vpack.c.b16 %v962, %v962
      %v995 = vpack.c.b16 %v963, %v963
      %v996 = vpack.c.b16 %v964, %v964
      %v997 = vpack.c.b16 %v965, %v965
      %v998 = vpack.c.b16 %v966, %v966
      %v999 = vpack.c.b16 %v967, %v967
      %v1000 = vpack.c.b16 %v968, %v968
      %v1001 = vpack.c.b16 %v969, %v969
      %v1002 = vpack.c.b16 %v970, %v970
      %v1003 = vpack.c.b16 %v971, %v971
      %v1004 = vpack.c.b16 %v972, %v972
      %v1005 = vpack.c.b16 %v973, %v973
      %v1006 = vpack.c.b16 %v974, %v974
      %v1007 = vpack.c.b16 %v975, %v975
      %v1008 = vpack.c.b16 %v976, %v976
      %v1009 = vpack.c.b16 %v977, %v977
      %v1010 = vpack.c.b16 %v978, %v978
      %v1011 = vpack.c.b16 %v979, %v979
      %v1012 = vpack.c.b16 %v980, %v980
      %v1013 = vpack.c.b16 %v981, %v981
      %vm1046 = vcmask 125952
      %1047 = vst.msk [vmem:[%s251] sm:$0xf] %vm1046, %v982
      %1048 = vst.msk [vmem:[%s251 + $0x4] sm:$0xf] %vm1046, %v983
      %1049 = vst.msk [vmem:[%s251 + $0x8] sm:$0xf] %vm1046, %v984
      %1050 = vst.msk [vmem:[%s251 + $0xc] sm:$0xf] %vm1046, %v985
      %1051 = vst.msk [vmem:[%s251 + $0x10] sm:$0xf] %vm1046, %v986
      %1052 = vst.msk [vmem:[%s251 + $0x14] sm:$0xf] %vm1046, %v987
      %1053 = vst.msk [vmem:[%s251 + $0x18] sm:$0xf] %vm1046, %v988
      %1054 = vst.msk [vmem:[%s251 + $0x1c] sm:$0xf] %vm1046, %v989
      %1055 = vst.msk [vmem:[%s251 + $0x20] sm:$0xf] %vm1046, %v990
      %1056 = vst.msk [vmem:[%s251 + $0x24] sm:$0xf] %vm1046, %v991
      %1057 = vst.msk [vmem:[%s251 + $0x28] sm:$0xf] %vm1046, %v992
      %1058 = vst.msk [vmem:[%s251 + $0x2c] sm:$0xf] %vm1046, %v993
      %1059 = vst.msk [vmem:[%s251 + $0x30] sm:$0xf] %vm1046, %v994
      %1060 = vst.msk [vmem:[%s251 + $0x34] sm:$0xf] %vm1046, %v995
      %1061 = vst.msk [vmem:[%s251 + $0x38] sm:$0xf] %vm1046, %v996
      %1062 = vst.msk [vmem:[%s251 + $0x3c] sm:$0xf] %vm1046, %v997
      %1063 = vst.msk [vmem:[%s251 + $0x40] sm:$0xf] %vm1046, %v998
      %1064 = vst.msk [vmem:[%s251 + $0x44] sm:$0xf] %vm1046, %v999
      %1065 = vst.msk [vmem:[%s251 + $0x48] sm:$0xf] %vm1046, %v1000
      %1066 = vst.msk [vmem:[%s251 + $0x4c] sm:$0xf] %vm1046, %v1001
      %1067 = vst.msk [vmem:[%s251 + $0x50] sm:$0xf] %vm1046, %v1002
      %1068 = vst.msk [vmem:[%s251 + $0x54] sm:$0xf] %vm1046, %v1003
      %1069 = vst.msk [vmem:[%s251 + $0x58] sm:$0xf] %vm1046, %v1004
      %1070 = vst.msk [vmem:[%s251 + $0x5c] sm:$0xf] %vm1046, %v1005
      %1071 = vst.msk [vmem:[%s251 + $0x60] sm:$0xf] %vm1046, %v1006
      %1072 = vst.msk [vmem:[%s251 + $0x64] sm:$0xf] %vm1046, %v1007
      %1073 = vst.msk [vmem:[%s251 + $0x68] sm:$0xf] %vm1046, %v1008
      %1074 = vst.msk [vmem:[%s251 + $0x6c] sm:$0xf] %vm1046, %v1009
      %1075 = vst.msk [vmem:[%s251 + $0x70] sm:$0xf] %vm1046, %v1010
      %1076 = vst.msk [vmem:[%s251 + $0x74] sm:$0xf] %vm1046, %v1011
      %1077 = vst.msk [vmem:[%s251 + $0x78] sm:$0xf] %vm1046, %v1012
      %1078 = vst.msk [vmem:[%s251 + $0x7c] sm:$0xf] %vm1046, %v1013
      %s1079 = smul.u32 32, %s16
      %p1080 = scmp.lt.s32.totalorder %s1079, 63
      %s1081 = scalar_select %p1080, %s1079, 63
      %s1082 = smul.addr %s1081, 4
      %s1083 = scalar_lea.vmem %s5, %s1082
      // Predicated region
      $region41: #{_lambda_.9} parent=39 // pred_check
        %p1084 = pneg %p149
      $region42: #{_lambda_.9} parent=39 // pred_check_branch
        %1086 = sbr.rel (%p1084) target = $region44
      $region43: #{_lambda_.9} parent=39 // pred_region
        %s1087 = smul.u32 32, %s16
      $region44: #{_lambda_.9} parent=39 // pred_fallthru
        _
    $region40: #{_lambda_.9} parent=5 // pred_fallthru
      _
    %p1088 = scmp.le.s32.totalorder 2, %s11
    // Predicated region
    $region45: #{_lambda_.9} parent=5 // pred_check
      %p1089 = pneg %p1088
    $region46: #{_lambda_.9} parent=5 // pred_check_branch
      %1091 = sbr.rel (%p1089) target = $region48
    $region47: #{_lambda_.9} parent=5 // pred_region
      %s1092 = ssub.s32 %s11, 2
      // Predicated region
      $region49: #{_lambda_.9} parent=47 // pred_check
        %p1093 = pneg %p155
      $region50: #{_lambda_.9} parent=47 // pred_check_branch
        %1095 = sbr.rel (%p1093) target = $region52
      $region51: #{_lambda_.9} parent=47 // pred_region
        %s1096 = smul.u32 32, %s17
        %p1097 = scmp.lt.s32.totalorder %s1096, 63
        %s1098 = scalar_select %p1097, %s1096, 63
        %s1099 = smul.addr %s1098, 4
        %s1100 = scalar_lea.vmem %s5, %s1099
      $region52: #{_lambda_.9} parent=47 // pred_fallthru
        _
    $region48: #{_lambda_.9} parent=5 // pred_fallthru
      _
  $region6: #{_lambda_.9} parent=0 // loop_footer
    %s15 = sadd.s32 1, %s11
  $region7: #{_lambda_.9} parent=0 // loop_footer_branch
    %10 = sbr.rel target = $region3
  $region8: #{_lambda_.9} parent=0 // loop_exit
    _

// kernel: _lambda_.10
$region0: #{_lambda_.10}
  #allocation0 [shape = 'u32[]', space=smem, size = 0x4, offset = 0x4, fixed_abs, tag = 'smem constant byte address 0x4 - core index']
  #allocation1 [shape = 'u32[144,128]{1,0:T(1,128)}', space=vmem, size = 0x12000, scoped, tag = 'internal scratch']
  %s0 = inlined_call_operand.vmem [shape: bf16[128,144], index: 0, kind: input, shape index: {}]
  %s1 = inlined_call_operand.vmem [shape: bf16[144,32], index: 1, kind: input, shape index: {}]
  %s2 = inlined_call_operand.vmem [shape: f32[1,32], index: 2, kind: input, shape index: {}]
  %s3 = inlined_call_operand.vmem [shape: f32[1,32], index: 3, kind: input, shape index: {}]
  %s4 = inlined_call_operand.vmem [shape: bf16[128,32], index: 4, kind: output, shape index: {}]
  %s5 = sld [smem:[#allocation0]]
  $region26: #{_lambda_.10} parent=0
    _
  %s7 = ssub.s32 1, %s5
  %s8 = scalar_select 0, %s7, %s5
  // Predicated region
  $region2: #{_lambda_.10} parent=0 // pred_check
    _
  $region3: #{_lambda_.10} parent=0 // pred_check_branch
    %10 = sbr.rel (0) target = $region5
  $region4: #{_lambda_.10} parent=0 // pred_region
    _
  $region5: #{_lambda_.10} parent=0 // pred_fallthru
    _
  // Predicated region
  $region6: #{_lambda_.10} parent=0 // pred_check
    _
  $region7: #{_lambda_.10} parent=0 // pred_check_branch
    %12 = sbr.rel (0) target = $region9
  $region8: #{_lambda_.10} parent=0 // pred_region
    _
  $region9: #{_lambda_.10} parent=0 // pred_fallthru
    _
  // Predicated region
  $region10: #{_lambda_.10} parent=0 // pred_check
    _
  $region11: #{_lambda_.10} parent=0 // pred_check_branch
    %14 = sbr.rel (0) target = $region13
  $region12: #{_lambda_.10} parent=0 // pred_region
    _
  $region13: #{_lambda_.10} parent=0 // pred_fallthru
    _
  // Predicated region
  $region14: #{_lambda_.10} parent=0 // pred_check
    _
  $region15: #{_lambda_.10} parent=0 // pred_check_branch
    %16 = sbr.rel (0) target = $region17
  $region16: #{_lambda_.10} parent=0 // pred_region
    _
  $region17: #{_lambda_.10} parent=0 // pred_fallthru
    _
  %v18 = vld [vmem:[%s0] sm:$0xff]
  %v19 = vld [vmem:[%s0 + $0x8] sm:$0xff]
  %v20 = vld [vmem:[%s0 + $0x10] sm:$0xff]
  %v21 = vld [vmem:[%s0 + $0x18] sm:$0xff]
  %v22 = vld [vmem:[%s0 + $0x20] sm:$0xff]
  %v23 = vld [vmem:[%s0 + $0x28] sm:$0xff]
  %v24 = vld [vmem:[%s0 + $0x30] sm:$0xff]
  %v25 = vld [vmem:[%s0 + $0x38] sm:$0xff]
  %v26 = vld [vmem:[%s0 + $0x40] sm:$0xff]
  %v27 = vld [vmem:[%s0 + $0x48] sm:$0xff]
  %v28 = vld [vmem:[%s0 + $0x50] sm:$0xff]
  %v29 = vld [vmem:[%s0 + $0x58] sm:$0xff]
  %v30 = vld [vmem:[%s0 + $0x60] sm:$0xff]
  %v31 = vld [vmem:[%s0 + $0x68] sm:$0xff]
  %v32 = vld [vmem:[%s0 + $0x70] sm:$0xff]
  %v33 = vld [vmem:[%s0 + $0x78] sm:$0xff]
  %v34 = vld [vmem:[%s1] sm:$0xf]
  %v35 = vld [vmem:[%s1 + $0x4] sm:$0xf]
  %v36 = vld [vmem:[%s1 + $0x8] sm:$0xf]
  %v37 = vld [vmem:[%s1 + $0xc] sm:$0xf]
  %v38 = vld [vmem:[%s1 + $0x10] sm:$0xf]
  %v39 = vld [vmem:[%s1 + $0x14] sm:$0xf]
  %v40 = vld [vmem:[%s1 + $0x18] sm:$0xf]
  %v41 = vld [vmem:[%s1 + $0x1c] sm:$0xf]
  %v42 = vld [vmem:[%s1 + $0x20] sm:$0xf]
  %v43 = vld [vmem:[%s1 + $0x24] sm:$0xf]
  %v44 = vld [vmem:[%s1 + $0x28] sm:$0xf]
  %v45 = vld [vmem:[%s1 + $0x2c] sm:$0xf]
  %v46 = vld [vmem:[%s1 + $0x30] sm:$0xf]
  %v47 = vld [vmem:[%s1 + $0x34] sm:$0xf]
  %v48 = vld [vmem:[%s1 + $0x38] sm:$0xf]
  %v49 = vld [vmem:[%s1 + $0x3c] sm:$0xf]
  %v50 = vld [vmem:[%s1 + $0x40] sm:$0xf]
  %v51 = vld [vmem:[%s1 + $0x44] sm:$0xf]
  %v68 = vunpack.c.l.b16 %v18
  %v69 = vunpack.c.h.b16 %v18
  %v70 = vunpack.c.l.b16 %v19
  %v71 = vunpack.c.h.b16 %v19
  %v72 = vunpack.c.l.b16 %v20
  %v73 = vunpack.c.h.b16 %v20
  %v74 = vunpack.c.l.b16 %v21
  %v75 = vunpack.c.h.b16 %v21
  %v76 = vunpack.c.l.b16 %v22
  %v77 = vunpack.c.h.b16 %v22
  %v78 = vunpack.c.l.b16 %v23
  %v79 = vunpack.c.h.b16 %v23
  %v80 = vunpack.c.l.b16 %v24
  %v81 = vunpack.c.h.b16 %v24
  %v82 = vunpack.c.l.b16 %v25
  %v83 = vunpack.c.h.b16 %v25
  %v84 = vunpack.c.l.b16 %v26
  %v85 = vunpack.c.h.b16 %v26
  %v86 = vunpack.c.l.b16 %v27
  %v87 = vunpack.c.h.b16 %v27
  %v88 = vunpack.c.l.b16 %v28
  %v89 = vunpack.c.h.b16 %v28
  %v90 = vunpack.c.l.b16 %v29
  %v91 = vunpack.c.h.b16 %v29
  %v92 = vunpack.c.l.b16 %v30
  %v93 = vunpack.c.h.b16 %v30
  %v94 = vunpack.c.l.b16 %v31
  %v95 = vunpack.c.h.b16 %v31
  %v96 = vunpack.c.l.b16 %v32
  %v97 = vunpack.c.h.b16 %v32
  %v98 = vunpack.c.l.b16 %v33
  %v99 = vunpack.c.h.b16 %v33
  %v100 = vpack.c.b16 %v70, %v68
  %v101 = vpack.c.b16 %v71, %v69
  %v102 = vpack.c.b16 %v74, %v72
  %v103 = vpack.c.b16 %v75, %v73
  %v104 = vpack.c.b16 %v78, %v76
  %v105 = vpack.c.b16 %v79, %v77
  %v106 = vpack.c.b16 %v82, %v80
  %v107 = vpack.c.b16 %v83, %v81
  %v108 = vpack.c.b16 %v86, %v84
  %v109 = vpack.c.b16 %v87, %v85
  %v110 = vpack.c.b16 %v90, %v88
  %v111 = vpack.c.b16 %v91, %v89
  %v112 = vpack.c.b16 %v94, %v92
  %v113 = vpack.c.b16 %v95, %v93
  %v114 = vpack.c.b16 %v98, %v96
  %v115 = vpack.c.b16 %v99, %v97
  %v142 = vunpack.c.l.b16 %v34
  %v143 = vunpack.c.l.b16 %v35
  %v144 = vunpack.c.l.b16 %v36
  %v145 = vunpack.c.l.b16 %v37
  %v146 = vunpack.c.l.b16 %v38
  %v147 = vunpack.c.l.b16 %v39
  %v148 = vunpack.c.l.b16 %v40
  %v149 = vunpack.c.l.b16 %v41
  %v150 = vunpack.c.l.b16 %v42
  %v151 = vunpack.c.l.b16 %v43
  %v152 = vunpack.c.l.b16 %v44
  %v153 = vunpack.c.l.b16 %v45
  %v154 = vunpack.c.l.b16 %v46
  %v155 = vunpack.c.l.b16 %v47
  %v156 = vunpack.c.l.b16 %v48
  %v157 = vunpack.c.l.b16 %v49
  %v158 = vunpack.c.l.b16 %v50
  %v159 = vunpack.c.l.b16 %v51
  %v160 = vpack.c.b16 %v143, %v142
  %v161 = vpack.c.b16 %v145, %v144
  %v162 = vpack.c.b16 %v147, %v146
  %v163 = vpack.c.b16 %v149, %v148
  %v164 = vpack.c.b16 %v151, %v150
  %v165 = vpack.c.b16 %v153, %v152
  %v166 = vpack.c.b16 %v155, %v154
  %v167 = vpack.c.b16 %v157, %v156
  %v168 = vpack.c.b16 %v159, %v158
  %vm178 = vcmask 130048
  %v180 = vsel %vm178, %v101, 0
  %v183 = vsel %vm178, %v103, 0
  %v186 = vsel %vm178, %v105, 0
  %v189 = vsel %vm178, %v107, 0
  %v192 = vsel %vm178, %v109, 0
  %v195 = vsel %vm178, %v111, 0
  %v198 = vsel %vm178, %v113, 0
  %v201 = vsel %vm178, %v115, 0
  %203 = vmatprep.subr.bf16.mxu0 0
  %204 = vmatpush1.bf16.msra.mxu0 %v160
  %205 = vmatprep.subr.bf16.mxu0 0
  %206 = vmatpush1.bf16.msra.mxu0 %v161
  %207 = vmatprep.subr.bf16.mxu0 0
  %208 = vmatpush1.bf16.msra.mxu0 %v162
  %209 = vmatprep.subr.bf16.mxu0 0
  %210 = vmatpush1.bf16.msra.mxu0 %v163
  %211 = vmatprep.subr.bf16.mxu0 0
  %212 = vmatpush1.bf16.msra.mxu0 %v164
  %213 = vmatprep.subr.bf16.mxu0 0
  %214 = vmatpush1.bf16.msra.mxu0 %v165
  %215 = vmatprep.subr.bf16.mxu0 0
  %216 = vmatpush1.bf16.msra.mxu0 %v166
  %217 = vmatprep.subr.bf16.mxu0 0
  %218 = vmatpush1.bf16.msra.mxu0 %v167
  %219 = vmatprep.subr.bf16.mxu0 0
  %220 = vmatpush1.bf16.msra.mxu0 %v168
  %221 = vmatprep.subr.bf16.mxu0 0
  %222 = vmatpush1.bf16.msra.mxu0 0
  %223 = vmatprep.subr.bf16.mxu0 0
  %224 = vmatpush1.bf16.msra.mxu0 0
  %225 = vmatprep.subr.bf16.mxu0 0
  %226 = vmatpush1.bf16.msra.mxu0 0
  %227 = vmatprep.subr.bf16.mxu0 0
  %228 = vmatpush1.bf16.msra.mxu0 0
  %229 = vmatprep.subr.bf16.mxu0 0
  %230 = vmatpush1.bf16.msra.mxu0 0
  %231 = vmatprep.subr.bf16.mxu0 0
  %232 = vmatpush1.bf16.msra.mxu0 0
  %233 = vmatprep.subr.bf16.mxu0 0
  %234 = vmatpush1.bf16.msra.mxu0 0
  %235 = vmatprep.mubr.bf16.mxu0 %v180
  %236 = vmatmul.mubr.bf16.gmra.mrb[0].mxu0 %v100
  %v237 = vpop.f32.mrb[0].mxu0
  %v238 = vadd.f32 0.0, %v237
  %v239 = vpop.f32.mrb[0].mxu0
  %v240 = vpop.f32.mrb[0].mxu0
  %v241 = vadd.f32 0.0, %v240
  %v242 = vpop.f32.mrb[0].mxu0
  %243 = vmatprep.mubr.bf16.mxu0 %v183
  %244 = vmatmul.mubr.bf16.gmra.mrb[0].mxu0 %v102
  %v245 = vpop.f32.mrb[0].mxu0
  %v246 = vadd.f32 0.0, %v245
  %v247 = vpop.f32.mrb[0].mxu0
  %v248 = vpop.f32.mrb[0].mxu0
  %v249 = vadd.f32 0.0, %v248
  %v250 = vpop.f32.mrb[0].mxu0
  %251 = vmatprep.mubr.bf16.mxu0 %v186
  %252 = vmatmul.mubr.bf16.gmra.mrb[0].mxu0 %v104
  %v253 = vpop.f32.mrb[0].mxu0
  %v254 = vadd.f32 0.0, %v253
  %v255 = vpop.f32.mrb[0].mxu0
  %v256 = vpop.f32.mrb[0].mxu0
  %v257 = vadd.f32 0.0, %v256
  %v258 = vpop.f32.mrb[0].mxu0
  %259 = vmatprep.mubr.bf16.mxu0 %v189
  %260 = vmatmul.mubr.bf16.gmra.mrb[0].mxu0 %v106
  %v261 = vpop.f32.mrb[0].mxu0
  %v262 = vadd.f32 0.0, %v261
  %v263 = vpop.f32.mrb[0].mxu0
  %v264 = vpop.f32.mrb[0].mxu0
  %v265 = vadd.f32 0.0, %v264
  %v266 = vpop.f32.mrb[0].mxu0
  %267 = vmatprep.mubr.bf16.mxu0 %v192
  %268 = vmatmul.mubr.bf16.gmra.mrb[0].mxu0 %v108
  %v269 = vpop.f32.mrb[0].mxu0
  %v270 = vadd.f32 0.0, %v269
  %v271 = vpop.f32.mrb[0].mxu0
  %v272 = vpop.f32.mrb[0].mxu0
  %v273 = vadd.f32 0.0, %v272
  %v274 = vpop.f32.mrb[0].mxu0
  %275 = vmatprep.mubr.bf16.mxu0 %v195
  %276 = vmatmul.mubr.bf16.gmra.mrb[0].mxu0 %v110
  %v277 = vpop.f32.mrb[0].mxu0
  %v278 = vadd.f32 0.0, %v277
  %v279 = vpop.f32.mrb[0].mxu0
  %v280 = vpop.f32.mrb[0].mxu0
  %v281 = vadd.f32 0.0, %v280
  %v282 = vpop.f32.mrb[0].mxu0
  %283 = vmatprep.mubr.bf16.mxu0 %v198
  %284 = vmatmul.mubr.bf16.gmra.mrb[0].mxu0 %v112
  %v285 = vpop.f32.mrb[0].mxu0
  %v286 = vadd.f32 0.0, %v285
  %v287 = vpop.f32.mrb[0].mxu0
  %v288 = vpop.f32.mrb[0].mxu0
  %v289 = vadd.f32 0.0, %v288
  %v290 = vpop.f32.mrb[0].mxu0
  %291 = vmatprep.mubr.bf16.mxu0 %v201
  %292 = vmatmul.mubr.bf16.gmra.mrb[0].mxu0 %v114
  %v293 = vpop.f32.mrb[0].mxu0
  %v294 = vadd.f32 0.0, %v293
  %v295 = vpop.f32.mrb[0].mxu0
  %v296 = vpop.f32.mrb[0].mxu0
  %v297 = vadd.f32 0.0, %v296
  %v298 = vpop.f32.mrb[0].mxu0
  %299 = vdwg.mxu0
  %v300 = vld [vmem:[%s2] sm:$0x1]
  %v302 = vlaneseq
  %v303 = vshrl.u32 %v302, 7
  %v304 = vsub.s32 0, %v303
  %v305 = vrot.slane %v300, %v304
  %v307 = vmul.f32 %v238, %v305
  %v308 = vmul.f32 %v241, %v305
  %v309 = vmul.f32 %v246, %v305
  %v310 = vmul.f32 %v249, %v305
  %v311 = vmul.f32 %v254, %v305
  %v312 = vmul.f32 %v257, %v305
  %v313 = vmul.f32 %v262, %v305
  %v314 = vmul.f32 %v265, %v305
  %v315 = vmul.f32 %v270, %v305
  %v316 = vmul.f32 %v273, %v305
  %v317 = vmul.f32 %v278, %v305
  %v318 = vmul.f32 %v281, %v305
  %v319 = vmul.f32 %v286, %v305
  %v320 = vmul.f32 %v289, %v305
  %v321 = vmul.f32 %v294, %v305
  %v322 = vmul.f32 %v297, %v305
  %v323 = vld [vmem:[%s3] sm:$0x1]
  %v325 = vlaneseq
  %v326 = vshrl.u32 %v325, 7
  %v327 = vsub.s32 0, %v326
  %v328 = vrot.slane %v323, %v327
  %v330 = vadd.f32 %v307, %v328
  %v331 = vadd.f32 %v308, %v328
  %v332 = vadd.f32 %v309, %v328
  %v333 = vadd.f32 %v310, %v328
  %v334 = vadd.f32 %v311, %v328
  %v335 = vadd.f32 %v312, %v328
  %v336 = vadd.f32 %v313, %v328
  %v337 = vadd.f32 %v314, %v328
  %v338 = vadd.f32 %v315, %v328
  %v339 = vadd.f32 %v316, %v328
  %v340 = vadd.f32 %v317, %v328
  %v341 = vadd.f32 %v318, %v328
  %v342 = vadd.f32 %v319, %v328
  %v343 = vadd.f32 %v320, %v328
  %v344 = vadd.f32 %v321, %v328
  %v345 = vadd.f32 %v322, %v328
  %v346 = vmax.f32 %v330, 0.0
  %v347 = vmax.f32 %v331, 0.0
  %v348 = vmax.f32 %v332, 0.0
  %v349 = vmax.f32 %v333, 0.0
  %v350 = vmax.f32 %v334, 0.0
  %v351 = vmax.f32 %v335, 0.0
  %v352 = vmax.f32 %v336, 0.0
  %v353 = vmax.f32 %v337, 0.0
  %v354 = vmax.f32 %v338, 0.0
  %v355 = vmax.f32 %v339, 0.0
  %v356 = vmax.f32 %v340, 0.0
  %v357 = vmax.f32 %v341, 0.0
  %v358 = vmax.f32 %v342, 0.0
  %v359 = vmax.f32 %v343, 0.0
  %v360 = vmax.f32 %v344, 0.0
  %v361 = vmax.f32 %v345, 0.0
  %v362 = vpack.c.bf16 %v347, %v346
  %v363 = vpack.c.bf16 %v349, %v348
  %v364 = vpack.c.bf16 %v351, %v350
  %v365 = vpack.c.bf16 %v353, %v352
  %v366 = vpack.c.bf16 %v355, %v354
  %v367 = vpack.c.bf16 %v357, %v356
  %v368 = vpack.c.bf16 %v359, %v358
  %v369 = vpack.c.bf16 %v361, %v360
  %v378 = vunpack.c.l.b16 %v362
  %v379 = vunpack.c.h.b16 %v362
  %v380 = vunpack.c.l.b16 %v363
  %v381 = vunpack.c.h.b16 %v363
  %v382 = vunpack.c.l.b16 %v364
  %v383 = vunpack.c.h.b16 %v364
  %v384 = vunpack.c.l.b16 %v365
  %v385 = vunpack.c.h.b16 %v365
  %v386 = vunpack.c.l.b16 %v366
  %v387 = vunpack.c.h.b16 %v366
  %v388 = vunpack.c.l.b16 %v367
  %v389 = vunpack.c.h.b16 %v367
  %v390 = vunpack.c.l.b16 %v368
  %v391 = vunpack.c.h.b16 %v368
  %v392 = vunpack.c.l.b16 %v369
  %v393 = vunpack.c.h.b16 %v369
  %v394 = vpack.c.b16 %v378, %v378
  %v395 = vpack.c.b16 %v379, %v379
  %v396 = vpack.c.b16 %v380, %v380
  %v397 = vpack.c.b16 %v381, %v381
  %v398 = vpack.c.b16 %v382, %v382
  %v399 = vpack.c.b16 %v383, %v383
  %v400 = vpack.c.b16 %v384, %v384
  %v401 = vpack.c.b16 %v385, %v385
  %v402 = vpack.c.b16 %v386, %v386
  %v403 = vpack.c.b16 %v387, %v387
  %v404 = vpack.c.b16 %v388, %v388
  %v405 = vpack.c.b16 %v389, %v389
  %v406 = vpack.c.b16 %v390, %v390
  %v407 = vpack.c.b16 %v391, %v391
  %v408 = vpack.c.b16 %v392, %v392
  %v409 = vpack.c.b16 %v393, %v393
  %vm426 = vcmask 257024
  %427 = vst.msk [vmem:[%s4] sm:$0xf] %vm426, %v394
  %428 = vst.msk [vmem:[%s4 + $0x4] sm:$0xf] %vm426, %v395
  %429 = vst.msk [vmem:[%s4 + $0x8] sm:$0xf] %vm426, %v396
  %430 = vst.msk [vmem:[%s4 + $0xc] sm:$0xf] %vm426, %v397
  %431 = vst.msk [vmem:[%s4 + $0x10] sm:$0xf] %vm426, %v398
  %432 = vst.msk [vmem:[%s4 + $0x14] sm:$0xf] %vm426, %v399
  %433 = vst.msk [vmem:[%s4 + $0x18] sm:$0xf] %vm426, %v400
  %434 = vst.msk [vmem:[%s4 + $0x1c] sm:$0xf] %vm426, %v401
  %435 = vst.msk [vmem:[%s4 + $0x20] sm:$0xf] %vm426, %v402
  %436 = vst.msk [vmem:[%s4 + $0x24] sm:$0xf] %vm426, %v403
  %437 = vst.msk [vmem:[%s4 + $0x28] sm:$0xf] %vm426, %v404
  %438 = vst.msk [vmem:[%s4 + $0x2c] sm:$0xf] %vm426, %v405
  %439 = vst.msk [vmem:[%s4 + $0x30] sm:$0xf] %vm426, %v406
  %440 = vst.msk [vmem:[%s4 + $0x34] sm:$0xf] %vm426, %v407
  %441 = vst.msk [vmem:[%s4 + $0x38] sm:$0xf] %vm426, %v408
  %442 = vst.msk [vmem:[%s4 + $0x3c] sm:$0xf] %vm426, %v409
  // Predicated region
  $region18: #{_lambda_.10} parent=0 // pred_check
    _
  $region19: #{_lambda_.10} parent=0 // pred_check_branch
    %444 = sbr.rel (0) target = $region21
  $region20: #{_lambda_.10} parent=0 // pred_region
    _
  $region21: #{_lambda_.10} parent=0 // pred_fallthru
    _
  // Predicated region
  $region22: #{_lambda_.10} parent=0 // pred_check
    _
  $region23: #{_lambda_.10} parent=0 // pred_check_branch
    %446 = sbr.rel (0) target = $region25
  $region24: #{_lambda_.10} parent=0 // pred_region
    _
  $region25: #{_lambda_.10} parent=0 // pred_fallthru
    _

// kernel: _lambda_.12
$region0: #{_lambda_.12}
  #allocation0 [shape = 'u32[]', space=smem, size = 0x4, offset = 0x4, fixed_abs, tag = 'smem constant byte address 0x4 - core index']
  #allocation1 [shape = 'u32[144,128]{1,0:T(1,128)}', space=vmem, size = 0x12000, scoped, tag = 'internal scratch']
  %s0 = inlined_call_operand.vmem [shape: bf16[128,288], index: 0, kind: input, shape index: {}]
  %s1 = inlined_call_operand.vmem [shape: bf16[288,32], index: 1, kind: input, shape index: {}]
  %s2 = inlined_call_operand.vmem [shape: f32[1,32], index: 2, kind: input, shape index: {}]
  %s3 = inlined_call_operand.vmem [shape: f32[1,32], index: 3, kind: input, shape index: {}]
  %s4 = inlined_call_operand.vmem [shape: bf16[128,32], index: 4, kind: input, shape index: {}]
  %s5 = inlined_call_operand.vmem [shape: bf16[128,32], index: 5, kind: output, shape index: {}]
  %s6 = sld [smem:[#allocation0]]
  $region30: #{_lambda_.12} parent=0
    _
  %s8 = ssub.s32 1, %s6
  %s9 = scalar_select 0, %s8, %s6
  // Predicated region
  $region2: #{_lambda_.12} parent=0 // pred_check
    _
  $region3: #{_lambda_.12} parent=0 // pred_check_branch
    %11 = sbr.rel (0) target = $region5
  $region4: #{_lambda_.12} parent=0 // pred_region
    _
  $region5: #{_lambda_.12} parent=0 // pred_fallthru
    _
  // Predicated region
  $region6: #{_lambda_.12} parent=0 // pred_check
    _
  $region7: #{_lambda_.12} parent=0 // pred_check_branch
    %13 = sbr.rel (0) target = $region9
  $region8: #{_lambda_.12} parent=0 // pred_region
    _
  $region9: #{_lambda_.12} parent=0 // pred_fallthru
    _
  // Predicated region
  $region10: #{_lambda_.12} parent=0 // pred_check
    _
  $region11: #{_lambda_.12} parent=0 // pred_check_branch
    %15 = sbr.rel (0) target = $region13
  $region12: #{_lambda_.12} parent=0 // pred_region
    _
  $region13: #{_lambda_.12} parent=0 // pred_fallthru
    _
  // Predicated region
  $region14: #{_lambda_.12} parent=0 // pred_check
    _
  $region15: #{_lambda_.12} parent=0 // pred_check_branch
    %17 = sbr.rel (0) target = $region17
  $region16: #{_lambda_.12} parent=0 // pred_region
    _
  $region17: #{_lambda_.12} parent=0 // pred_fallthru
    _
  // Predicated region
  $region18: #{_lambda_.12} parent=0 // pred_check
    _
  $region19: #{_lambda_.12} parent=0 // pred_check_branch
    %19 = sbr.rel (0) target = $region21
  $region20: #{_lambda_.12} parent=0 // pred_region
    _
  $region21: #{_lambda_.12} parent=0 // pred_fallthru
    _
  %v21 = vld [vmem:[%s0] sm:$0xff]
  %v22 = vld [vmem:[%s0 + $0x8] sm:$0xf]
  %v23 = vld [vmem:[%s0 + $0xc] sm:$0xff]
  %v24 = vld [vmem:[%s0 + $0x14] sm:$0xf]
  %v25 = vld [vmem:[%s0 + $0x18] sm:$0xff]
  %v26 = vld [vmem:[%s0 + $0x20] sm:$0xf]
  %v27 = vld [vmem:[%s0 + $0x24] sm:$0xff]
  %v28 = vld [vmem:[%s0 + $0x2c] sm:$0xf]
  %v29 = vld [vmem:[%s0 + $0x30] sm:$0xff]
  %v30 = vld [vmem:[%s0 + $0x38] sm:$0xf]
  %v31 = vld [vmem:[%s0 + $0x3c] sm:$0xff]
  %v32 = vld [vmem:[%s0 + $0x44] sm:$0xf]
  %v33 = vld [vmem:[%s0 + $0x48] sm:$0xff]
  %v34 = vld [vmem:[%s0 + $0x50] sm:$0xf]
  %v35 = vld [vmem:[%s0 + $0x54] sm:$0xff]
  %v36 = vld [vmem:[%s0 + $0x5c] sm:$0xf]
  %v37 = vld [vmem:[%s0 + $0x60] sm:$0xff]
  %v38 = vld [vmem:[%s0 + $0x68] sm:$0xf]
  %v39 = vld [vmem:[%s0 + $0x6c] sm:$0xff]
  %v40 = vld [vmem:[%s0 + $0x74] sm:$0xf]
  %v41 = vld [vmem:[%s0 + $0x78] sm:$0xff]
  %v42 = vld [vmem:[%s0 + $0x80] sm:$0xf]
  %v43 = vld [vmem:[%s0 + $0x84] sm:$0xff]
  %v44 = vld [vmem:[%s0 + $0x8c] sm:$0xf]
  %v45 = vld [vmem:[%s0 + $0x90] sm:$0xff]
  %v46 = vld [vmem:[%s0 + $0x98] sm:$0xf]
  %v47 = vld [vmem:[%s0 + $0x9c] sm:$0xff]
  %v48 = vld [vmem:[%s0 + $0xa4] sm:$0xf]
  %v49 = vld [vmem:[%s0 + $0xa8] sm:$0xff]
  %v50 = vld [vmem:[%s0 + $0xb0] sm:$0xf]
  %v51 = vld [vmem:[%s0 + $0xb4] sm:$0xff]
  %v52 = vld [vmem:[%s0 + $0xbc] sm:$0xf]
  %v53 = vld [vmem:[%s1] sm:$0xf]
  %v54 = vld [vmem:[%s1 + $0x4] sm:$0xf]
  %v55 = vld [vmem:[%s1 + $0x8] sm:$0xf]
  %v56 = vld [vmem:[%s1 + $0xc] sm:$0xf]
  %v57 = vld [vmem:[%s1 + $0x10] sm:$0xf]
  %v58 = vld [vmem:[%s1 + $0x14] sm:$0xf]
  %v59 = vld [vmem:[%s1 + $0x18] sm:$0xf]
  %v60 = vld [vmem:[%s1 + $0x1c] sm:$0xf]
  %v61 = vld [vmem:[%s1 + $0x20] sm:$0xf]
  %v62 = vld [vmem:[%s1 + $0x24] sm:$0xf]
  %v63 = vld [vmem:[%s1 + $0x28] sm:$0xf]
  %v64 = vld [vmem:[%s1 + $0x2c] sm:$0xf]
  %v65 = vld [vmem:[%s1 + $0x30] sm:$0xf]
  %v66 = vld [vmem:[%s1 + $0x34] sm:$0xf]
  %v67 = vld [vmem:[%s1 + $0x38] sm:$0xf]
  %v68 = vld [vmem:[%s1 + $0x3c] sm:$0xf]
  %v69 = vld [vmem:[%s1 + $0x40] sm:$0xf]
  %v70 = vld [vmem:[%s1 + $0x44] sm:$0xf]
  %v71 = vld [vmem:[%s1 + $0x48] sm:$0xf]
  %v72 = vld [vmem:[%s1 + $0x4c] sm:$0xf]
  %v73 = vld [vmem:[%s1 + $0x50] sm:$0xf]
  %v74 = vld [vmem:[%s1 + $0x54] sm:$0xf]
  %v75 = vld [vmem:[%s1 + $0x58] sm:$0xf]
  %v76 = vld [vmem:[%s1 + $0x5c] sm:$0xf]
  %v77 = vld [vmem:[%s1 + $0x60] sm:$0xf]
  %v78 = vld [vmem:[%s1 + $0x64] sm:$0xf]
  %v79 = vld [vmem:[%s1 + $0x68] sm:$0xf]
  %v80 = vld [vmem:[%s1 + $0x6c] sm:$0xf]
  %v81 = vld [vmem:[%s1 + $0x70] sm:$0xf]
  %v82 = vld [vmem:[%s1 + $0x74] sm:$0xf]
  %v83 = vld [vmem:[%s1 + $0x78] sm:$0xf]
  %v84 = vld [vmem:[%s1 + $0x7c] sm:$0xf]
  %v85 = vld [vmem:[%s1 + $0x80] sm:$0xf]
  %v86 = vld [vmem:[%s1 + $0x84] sm:$0xf]
  %v87 = vld [vmem:[%s1 + $0x88] sm:$0xf]
  %v88 = vld [vmem:[%s1 + $0x8c] sm:$0xf]
  %v121 = vunpack.c.l.b16 %v21
  %v122 = vunpack.c.h.b16 %v21
  %v123 = vunpack.c.l.b16 %v22
  %v124 = vunpack.c.l.b16 %v23
  %v125 = vunpack.c.h.b16 %v23
  %v126 = vunpack.c.l.b16 %v24
  %v127 = vunpack.c.l.b16 %v25
  %v128 = vunpack.c.h.b16 %v25
  %v129 = vunpack.c.l.b16 %v26
  %v130 = vunpack.c.l.b16 %v27
  %v131 = vunpack.c.h.b16 %v27
  %v132 = vunpack.c.l.b16 %v28
  %v133 = vunpack.c.l.b16 %v29
  %v134 = vunpack.c.h.b16 %v29
  %v135 = vunpack.c.l.b16 %v30
  %v136 = vunpack.c.l.b16 %v31
  %v137 = vunpack.c.h.b16 %v31
  %v138 = vunpack.c.l.b16 %v32
  %v139 = vunpack.c.l.b16 %v33
  %v140 = vunpack.c.h.b16 %v33
  %v141 = vunpack.c.l.b16 %v34
  %v142 = vunpack.c.l.b16 %v35
  %v143 = vunpack.c.h.b16 %v35
  %v144 = vunpack.c.l.b16 %v36
  %v145 = vunpack.c.l.b16 %v37
  %v146 = vunpack.c.h.b16 %v37
  %v147 = vunpack.c.l.b16 %v38
  %v148 = vunpack.c.l.b16 %v39
  %v149 = vunpack.c.h.b16 %v39
  %v150 = vunpack.c.l.b16 %v40
  %v151 = vunpack.c.l.b16 %v41
  %v152 = vunpack.c.h.b16 %v41
  %v153 = vunpack.c.l.b16 %v42
  %v154 = vunpack.c.l.b16 %v43
  %v155 = vunpack.c.h.b16 %v43
  %v156 = vunpack.c.l.b16 %v44
  %v157 = vunpack.c.l.b16 %v45
  %v158 = vunpack.c.h.b16 %v45
  %v159 = vunpack.c.l.b16 %v46
  %v160 = vunpack.c.l.b16 %v47
  %v161 = vunpack.c.h.b16 %v47
  %v162 = vunpack.c.l.b16 %v48
  %v163 = vunpack.c.l.b16 %v49
  %v164 = vunpack.c.h.b16 %v49
  %v165 = vunpack.c.l.b16 %v50
  %v166 = vunpack.c.l.b16 %v51
  %v167 = vunpack.c.h.b16 %v51
  %v168 = vunpack.c.l.b16 %v52
  %v169 = vpack.c.b16 %v124, %v121
  %v170 = vpack.c.b16 %v125, %v122
  %v171 = vpack.c.b16 %v126, %v123
  %v172 = vpack.c.b16 %v130, %v127
  %v173 = vpack.c.b16 %v131, %v128
  %v174 = vpack.c.b16 %v132, %v129
  %v175 = vpack.c.b16 %v136, %v133
  %v176 = vpack.c.b16 %v137, %v134
  %v177 = vpack.c.b16 %v138, %v135
  %v178 = vpack.c.b16 %v142, %v139
  %v179 = vpack.c.b16 %v143, %v140
  %v180 = vpack.c.b16 %v144, %v141
  %v181 = vpack.c.b16 %v148, %v145
  %v182 = vpack.c.b16 %v149, %v146
  %v183 = vpack.c.b16 %v150, %v147
  %v184 = vpack.c.b16 %v154, %v151
  %v185 = vpack.c.b16 %v155, %v152
  %v186 = vpack.c.b16 %v156, %v153
  %v187 = vpack.c.b16 %v160, %v157
  %v188 = vpack.c.b16 %v161, %v158
  %v189 = vpack.c.b16 %v162, %v159
  %v190 = vpack.c.b16 %v166, %v163
  %v191 = vpack.c.b16 %v167, %v164
  %v192 = vpack.c.b16 %v168, %v165
  %v245 = vunpack.c.l.b16 %v53
  %v246 = vunpack.c.l.b16 %v54
  %v247 = vunpack.c.l.b16 %v55
  %v248 = vunpack.c.l.b16 %v56
  %v249 = vunpack.c.l.b16 %v57
  %v250 = vunpack.c.l.b16 %v58
  %v251 = vunpack.c.l.b16 %v59
  %v252 = vunpack.c.l.b16 %v60
  %v253 = vunpack.c.l.b16 %v61
  %v254 = vunpack.c.l.b16 %v62
  %v255 = vunpack.c.l.b16 %v63
  %v256 = vunpack.c.l.b16 %v64
  %v257 = vunpack.c.l.b16 %v65
  %v258 = vunpack.c.l.b16 %v66
  %v259 = vunpack.c.l.b16 %v67
  %v260 = vunpack.c.l.b16 %v68
  %v261 = vunpack.c.l.b16 %v69
  %v262 = vunpack.c.l.b16 %v70
  %v263 = vunpack.c.l.b16 %v71
  %v264 = vunpack.c.l.b16 %v72
  %v265 = vunpack.c.l.b16 %v73
  %v266 = vunpack.c.l.b16 %v74
  %v267 = vunpack.c.l.b16 %v75
  %v268 = vunpack.c.l.b16 %v76
  %v269 = vunpack.c.l.b16 %v77
  %v270 = vunpack.c.l.b16 %v78
  %v271 = vunpack.c.l.b16 %v79
  %v272 = vunpack.c.l.b16 %v80
  %v273 = vunpack.c.l.b16 %v81
  %v274 = vunpack.c.l.b16 %v82
  %v275 = vunpack.c.l.b16 %v83
  %v276 = vunpack.c.l.b16 %v84
  %v277 = vunpack.c.l.b16 %v85
  %v278 = vunpack.c.l.b16 %v86
  %v279 = vunpack.c.l.b16 %v87
  %v280 = vunpack.c.l.b16 %v88
  %v281 = vpack.c.b16 %v246, %v245
  %v282 = vpack.c.b16 %v248, %v247
  %v283 = vpack.c.b16 %v250, %v249
  %v284 = vpack.c.b16 %v252, %v251
  %v285 = vpack.c.b16 %v254, %v253
  %v286 = vpack.c.b16 %v256, %v255
  %v287 = vpack.c.b16 %v258, %v257
  %v288 = vpack.c.b16 %v260, %v259
  %v289 = vpack.c.b16 %v262, %v261
  %v290 = vpack.c.b16 %v264, %v263
  %v291 = vpack.c.b16 %v266, %v265
  %v292 = vpack.c.b16 %v268, %v267
  %v293 = vpack.c.b16 %v270, %v269
  %v294 = vpack.c.b16 %v272, %v271
  %v295 = vpack.c.b16 %v274, %v273
  %v296 = vpack.c.b16 %v276, %v275
  %v297 = vpack.c.b16 %v278, %v277
  %v298 = vpack.c.b16 %v280, %v279
  %vm317 = vcmask 261120
  %v319 = vsel %vm317, %v171, 0
  %v322 = vsel %vm317, %v174, 0
  %v325 = vsel %vm317, %v177, 0
  %v328 = vsel %vm317, %v180, 0
  %v331 = vsel %vm317, %v183, 0
  %v334 = vsel %vm317, %v186, 0
  %v337 = vsel %vm317, %v189, 0
  %v340 = vsel %vm317, %v192, 0
  %342 = vmatprep.subr.bf16.mxu0 0
  %343 = vmatpush1.bf16.msra.mxu0 %v281
  %344 = vmatprep.subr.bf16.mxu0 0
  %345 = vmatpush1.bf16.msra.mxu0 %v282
  %346 = vmatprep.subr.bf16.mxu0 0
  %347 = vmatpush1.bf16.msra.mxu0 %v283
  %348 = vmatprep.subr.bf16.mxu0 0
  %349 = vmatpush1.bf16.msra.mxu0 %v284
  %350 = vmatprep.subr.bf16.mxu0 0
  %351 = vmatpush1.bf16.msra.mxu0 %v285
  %352 = vmatprep.subr.bf16.mxu0 0
  %353 = vmatpush1.bf16.msra.mxu0 %v286
  %354 = vmatprep.subr.bf16.mxu0 0
  %355 = vmatpush1.bf16.msra.mxu0 %v287
  %356 = vmatprep.subr.bf16.mxu0 0
  %357 = vmatpush1.bf16.msra.mxu0 %v288
  %358 = vmatprep.subr.bf16.mxu0 0
  %359 = vmatpush1.bf16.msra.mxu0 %v289
  %360 = vmatprep.subr.bf16.mxu0 0
  %361 = vmatpush1.bf16.msra.mxu0 %v290
  %362 = vmatprep.subr.bf16.mxu0 0
  %363 = vmatpush1.bf16.msra.mxu0 %v291
  %364 = vmatprep.subr.bf16.mxu0 0
  %365 = vmatpush1.bf16.msra.mxu0 %v292
  %366 = vmatprep.subr.bf16.mxu0 0
  %367 = vmatpush1.bf16.msra.mxu0 %v293
  %368 = vmatprep.subr.bf16.mxu0 0
  %369 = vmatpush1.bf16.msra.mxu0 %v294
  %370 = vmatprep.subr.bf16.mxu0 0
  %371 = vmatpush1.bf16.msra.mxu0 %v295
  %372 = vmatprep.subr.bf16.mxu0 0
  %373 = vmatpush1.bf16.msra.mxu0 %v296
  %374 = vmatprep.mubr.bf16.mxu0 %v170
  %375 = vmatmul.mubr.bf16.gmra.mrb[0].mxu0 %v169
  %v376 = vpop.f32.mrb[0].mxu0
  %v377 = vadd.f32 0.0, %v376
  %v378 = vpop.f32.mrb[0].mxu0
  %v379 = vpop.f32.mrb[0].mxu0
  %v380 = vadd.f32 0.0, %v379
  %v381 = vpop.f32.mrb[0].mxu0
  %382 = vmatprep.mubr.bf16.mxu0 %v173
  %383 = vmatmul.mubr.bf16.gmra.mrb[0].mxu0 %v172
  %v384 = vpop.f32.mrb[0].mxu0
  %v385 = vadd.f32 0.0, %v384
  %v386 = vpop.f32.mrb[0].mxu0
  %v387 = vpop.f32.mrb[0].mxu0
  %v388 = vadd.f32 0.0, %v387
  %v389 = vpop.f32.mrb[0].mxu0
  %390 = vmatprep.mubr.bf16.mxu0 %v176
  %391 = vmatmul.mubr.bf16.gmra.mrb[0].mxu0 %v175
  %v392 = vpop.f32.mrb[0].mxu0
  %v393 = vadd.f32 0.0, %v392
  %v394 = vpop.f32.mrb[0].mxu0
  %v395 = vpop.f32.mrb[0].mxu0
  %v396 = vadd.f32 0.0, %v395
  %v397 = vpop.f32.mrb[0].mxu0
  %398 = vmatprep.mubr.bf16.mxu0 %v179
  %399 = vmatmul.mubr.bf16.gmra.mrb[0].mxu0 %v178
  %v400 = vpop.f32.mrb[0].mxu0
  %v401 = vadd.f32 0.0, %v400
  %v402 = vpop.f32.mrb[0].mxu0
  %v403 = vpop.f32.mrb[0].mxu0
  %v404 = vadd.f32 0.0, %v403
  %v405 = vpop.f32.mrb[0].mxu0
  %406 = vmatprep.mubr.bf16.mxu0 %v182
  %407 = vmatmul.mubr.bf16.gmra.mrb[0].mxu0 %v181
  %v408 = vpop.f32.mrb[0].mxu0
  %v409 = vadd.f32 0.0, %v408
  %v410 = vpop.f32.mrb[0].mxu0
  %v411 = vpop.f32.mrb[0].mxu0
  %v412 = vadd.f32 0.0, %v411
  %v413 = vpop.f32.mrb[0].mxu0
  %414 = vmatprep.mubr.bf16.mxu0 %v185
  %415 = vmatmul.mubr.bf16.gmra.mrb[0].mxu0 %v184
  %v416 = vpop.f32.mrb[0].mxu0
  %v417 = vadd.f32 0.0, %v416
  %v418 = vpop.f32.mrb[0].mxu0
  %v419 = vpop.f32.mrb[0].mxu0
  %v420 = vadd.f32 0.0, %v419
  %v421 = vpop.f32.mrb[0].mxu0
  %422 = vmatprep.mubr.bf16.mxu0 %v188
  %423 = vmatmul.mubr.bf16.gmra.mrb[0].mxu0 %v187
  %v424 = vpop.f32.mrb[0].mxu0
  %v425 = vadd.f32 0.0, %v424
  %v426 = vpop.f32.mrb[0].mxu0
  %v427 = vpop.f32.mrb[0].mxu0
  %v428 = vadd.f32 0.0, %v427
  %v429 = vpop.f32.mrb[0].mxu0
  %430 = vmatprep.mubr.bf16.mxu0 %v191
  %431 = vmatmul.mubr.bf16.gmra.mrb[0].mxu0 %v190
  %v432 = vpop.f32.mrb[0].mxu0
  %v433 = vadd.f32 0.0, %v432
  %v434 = vpop.f32.mrb[0].mxu0
  %v435 = vpop.f32.mrb[0].mxu0
  %v436 = vadd.f32 0.0, %v435
  %v437 = vpop.f32.mrb[0].mxu0
  %438 = vdwg.mxu0
  %439 = vmatprep.subr.bf16.mxu0 0
  %440 = vmatpush1.bf16.msra.mxu0 %v297
  %441 = vmatprep.subr.bf16.mxu0 0
  %442 = vmatpush1.bf16.msra.mxu0 %v298
  %443 = vmatprep.subr.bf16.mxu0 0
  %444 = vmatpush1.bf16.msra.mxu0 0
  %445 = vmatprep.subr.bf16.mxu0 0
  %446 = vmatpush1.bf16.msra.mxu0 0
  %447 = vmatprep.subr.bf16.mxu0 0
  %448 = vmatpush1.bf16.msra.mxu0 0
  %449 = vmatprep.subr.bf16.mxu0 0
  %450 = vmatpush1.bf16.msra.mxu0 0
  %451 = vmatprep.subr.bf16.mxu0 0
  %452 = vmatpush1.bf16.msra.mxu0 0
  %453 = vmatprep.subr.bf16.mxu0 0
  %454 = vmatpush1.bf16.msra.mxu0 0
  %455 = vmatprep.subr.bf16.mxu0 0
  %456 = vmatpush1.bf16.msra.mxu0 0
  %457 = vmatprep.subr.bf16.mxu0 0
  %458 = vmatpush1.bf16.msra.mxu0 0
  %459 = vmatprep.subr.bf16.mxu0 0
  %460 = vmatpush1.bf16.msra.mxu0 0
  %461 = vmatprep.subr.bf16.mxu0 0
  %462 = vmatpush1.bf16.msra.mxu0 0
  %463 = vmatprep.subr.bf16.mxu0 0
  %464 = vmatpush1.bf16.msra.mxu0 0
  %465 = vmatprep.subr.bf16.mxu0 0
  %466 = vmatpush1.bf16.msra.mxu0 0
  %467 = vmatprep.subr.bf16.mxu0 0
  %468 = vmatpush1.bf16.msra.mxu0 0
  %469 = vmatprep.subr.bf16.mxu0 0
  %470 = vmatpush1.bf16.msra.mxu0 0
  %471 = vmatprep.mubr.bf16.mxu0 0
  %472 = vmatmul.mubr.bf16.gmra.mrb[0].mxu0 %v319
  %v473 = vpop.f32.mrb[0].mxu0
  %v474 = vadd.f32 %v377, %v473
  %v475 = vpop.f32.mrb[0].mxu0
  %v476 = vpop.f32.mrb[0].mxu0
  %v477 = vadd.f32 %v380, %v476
  %v478 = vpop.f32.mrb[0].mxu0
  %479 = vmatprep.mubr.bf16.mxu0 0
  %480 = vmatmul.mubr.bf16.gmra.mrb[0].mxu0 %v322
  %v481 = vpop.f32.mrb[0].mxu0
  %v482 = vadd.f32 %v385, %v481
  %v483 = vpop.f32.mrb[0].mxu0
  %v484 = vpop.f32.mrb[0].mxu0
  %v485 = vadd.f32 %v388, %v484
  %v486 = vpop.f32.mrb[0].mxu0
  %487 = vmatprep.mubr.bf16.mxu0 0
  %488 = vmatmul.mubr.bf16.gmra.mrb[0].mxu0 %v325
  %v489 = vpop.f32.mrb[0].mxu0
  %v490 = vadd.f32 %v393, %v489
  %v491 = vpop.f32.mrb[0].mxu0
  %v492 = vpop.f32.mrb[0].mxu0
  %v493 = vadd.f32 %v396, %v492
  %v494 = vpop.f32.mrb[0].mxu0
  %495 = vmatprep.mubr.bf16.mxu0 0
  %496 = vmatmul.mubr.bf16.gmra.mrb[0].mxu0 %v328
  %v497 = vpop.f32.mrb[0].mxu0
  %v498 = vadd.f32 %v401, %v497
  %v499 = vpop.f32.mrb[0].mxu0
  %v500 = vpop.f32.mrb[0].mxu0
  %v501 = vadd.f32 %v404, %v500
  %v502 = vpop.f32.mrb[0].mxu0
  %503 = vmatprep.mubr.bf16.mxu0 0
  %504 = vmatmul.mubr.bf16.gmra.mrb[0].mxu0 %v331
  %v505 = vpop.f32.mrb[0].mxu0
  %v506 = vadd.f32 %v409, %v505
  %v507 = vpop.f32.mrb[0].mxu0
  %v508 = vpop.f32.mrb[0].mxu0
  %v509 = vadd.f32 %v412, %v508
  %v510 = vpop.f32.mrb[0].mxu0
  %511 = vmatprep.mubr.bf16.mxu0 0
  %512 = vmatmul.mubr.bf16.gmra.mrb[0].mxu0 %v334
  %v513 = vpop.f32.mrb[0].mxu0
  %v514 = vadd.f32 %v417, %v513
  %v515 = vpop.f32.mrb[0].mxu0
  %v516 = vpop.f32.mrb[0].mxu0
  %v517 = vadd.f32 %v420, %v516
  %v518 = vpop.f32.mrb[0].mxu0
  %519 = vmatprep.mubr.bf16.mxu0 0
  %520 = vmatmul.mubr.bf16.gmra.mrb[0].mxu0 %v337
  %v521 = vpop.f32.mrb[0].mxu0
  %v522 = vadd.f32 %v425, %v521
  %v523 = vpop.f32.mrb[0].mxu0
  %v524 = vpop.f32.mrb[0].mxu0
  %v525 = vadd.f32 %v428, %v524
  %v526 = vpop.f32.mrb[0].mxu0
  %527 = vmatprep.mubr.bf16.mxu0 0
  %528 = vmatmul.mubr.bf16.gmra.mrb[0].mxu0 %v340
  %v529 = vpop.f32.mrb[0].mxu0
  %v530 = vadd.f32 %v433, %v529
  %v531 = vpop.f32.mrb[0].mxu0
  %v532 = vpop.f32.mrb[0].mxu0
  %v533 = vadd.f32 %v436, %v532
  %v534 = vpop.f32.mrb[0].mxu0
  %535 = vdwg.mxu0
  %v536 = vld [vmem:[%s2] sm:$0x1]
  %v538 = vlaneseq
  %v539 = vshrl.u32 %v538, 7
  %v540 = vsub.s32 0, %v539
  %v541 = vrot.slane %v536, %v540
  %v543 = vmul.f32 %v474, %v541
  %v544 = vmul.f32 %v477, %v541
  %v545 = vmul.f32 %v482, %v541
  %v546 = vmul.f32 %v485, %v541
  %v547 = vmul.f32 %v490, %v541
  %v548 = vmul.f32 %v493, %v541
  %v549 = vmul.f32 %v498, %v541
  %v550 = vmul.f32 %v501, %v541
  %v551 = vmul.f32 %v506, %v541
  %v552 = vmul.f32 %v509, %v541
  %v553 = vmul.f32 %v514, %v541
  %v554 = vmul.f32 %v517, %v541
  %v555 = vmul.f32 %v522, %v541
  %v556 = vmul.f32 %v525, %v541
  %v557 = vmul.f32 %v530, %v541
  %v558 = vmul.f32 %v533, %v541
  %v559 = vld [vmem:[%s3] sm:$0x1]
  %v561 = vlaneseq
  %v562 = vshrl.u32 %v561, 7
  %v563 = vsub.s32 0, %v562
  %v564 = vrot.slane %v559, %v563
  %v566 = vadd.f32 %v543, %v564
  %v567 = vadd.f32 %v544, %v564
  %v568 = vadd.f32 %v545, %v564
  %v569 = vadd.f32 %v546, %v564
  %v570 = vadd.f32 %v547, %v564
  %v571 = vadd.f32 %v548, %v564
  %v572 = vadd.f32 %v549, %v564
  %v573 = vadd.f32 %v550, %v564
  %v574 = vadd.f32 %v551, %v564
  %v575 = vadd.f32 %v552, %v564
  %v576 = vadd.f32 %v553, %v564
  %v577 = vadd.f32 %v554, %v564
  %v578 = vadd.f32 %v555, %v564
  %v579 = vadd.f32 %v556, %v564
  %v580 = vadd.f32 %v557, %v564
  %v581 = vadd.f32 %v558, %v564
  %v582 = vld [vmem:[%s4] sm:$0xf]
  %v583 = vld [vmem:[%s4 + $0x4] sm:$0xf]
  %v584 = vld [vmem:[%s4 + $0x8] sm:$0xf]
  %v585 = vld [vmem:[%s4 + $0xc] sm:$0xf]
  %v586 = vld [vmem:[%s4 + $0x10] sm:$0xf]
  %v587 = vld [vmem:[%s4 + $0x14] sm:$0xf]
  %v588 = vld [vmem:[%s4 + $0x18] sm:$0xf]
  %v589 = vld [vmem:[%s4 + $0x1c] sm:$0xf]
  %v590 = vld [vmem:[%s4 + $0x20] sm:$0xf]
  %v591 = vld [vmem:[%s4 + $0x24] sm:$0xf]
  %v592 = vld [vmem:[%s4 + $0x28] sm:$0xf]
  %v593 = vld [vmem:[%s4 + $0x2c] sm:$0xf]
  %v594 = vld [vmem:[%s4 + $0x30] sm:$0xf]
  %v595 = vld [vmem:[%s4 + $0x34] sm:$0xf]
  %v596 = vld [vmem:[%s4 + $0x38] sm:$0xf]
  %v597 = vld [vmem:[%s4 + $0x3c] sm:$0xf]
  %v598 = vunpack.c.l.bf16 %v582
  %v599 = vunpack.c.l.bf16 %v583
  %v600 = vunpack.c.l.bf16 %v584
  %v601 = vunpack.c.l.bf16 %v585
  %v602 = vunpack.c.l.bf16 %v586
  %v603 = vunpack.c.l.bf16 %v587
  %v604 = vunpack.c.l.bf16 %v588
  %v605 = vunpack.c.l.bf16 %v589
  %v606 = vunpack.c.l.bf16 %v590
  %v607 = vunpack.c.l.bf16 %v591
  %v608 = vunpack.c.l.bf16 %v592
  %v609 = vunpack.c.l.bf16 %v593
  %v610 = vunpack.c.l.bf16 %v594
  %v611 = vunpack.c.l.bf16 %v595
  %v612 = vunpack.c.l.bf16 %v596
  %v613 = vunpack.c.l.bf16 %v597
  %v614 = vadd.f32 %v566, %v598
  %v615 = vadd.f32 %v567, %v599
  %v616 = vadd.f32 %v568, %v600
  %v617 = vadd.f32 %v569, %v601
  %v618 = vadd.f32 %v570, %v602
  %v619 = vadd.f32 %v571, %v603
  %v620 = vadd.f32 %v572, %v604
  %v621 = vadd.f32 %v573, %v605
  %v622 = vadd.f32 %v574, %v606
  %v623 = vadd.f32 %v575, %v607
  %v624 = vadd.f32 %v576, %v608
  %v625 = vadd.f32 %v577, %v609
  %v626 = vadd.f32 %v578, %v610
  %v627 = vadd.f32 %v579, %v611
  %v628 = vadd.f32 %v580, %v612
  %v629 = vadd.f32 %v581, %v613
  %v630 = vmax.f32 %v614, 0.0
  %v631 = vmax.f32 %v615, 0.0
  %v632 = vmax.f32 %v616, 0.0
  %v633 = vmax.f32 %v617, 0.0
  %v634 = vmax.f32 %v618, 0.0
  %v635 = vmax.f32 %v619, 0.0
  %v636 = vmax.f32 %v620, 0.0
  %v637 = vmax.f32 %v621, 0.0
  %v638 = vmax.f32 %v622, 0.0
  %v639 = vmax.f32 %v623, 0.0
  %v640 = vmax.f32 %v624, 0.0
  %v641 = vmax.f32 %v625, 0.0
  %v642 = vmax.f32 %v626, 0.0
  %v643 = vmax.f32 %v627, 0.0
  %v644 = vmax.f32 %v628, 0.0
  %v645 = vmax.f32 %v629, 0.0
  %v646 = vpack.c.bf16 %v631, %v630
  %v647 = vpack.c.bf16 %v633, %v632
  %v648 = vpack.c.bf16 %v635, %v634
  %v649 = vpack.c.bf16 %v637, %v636
  %v650 = vpack.c.bf16 %v639, %v638
  %v651 = vpack.c.bf16 %v641, %v640
  %v652 = vpack.c.bf16 %v643, %v642
  %v653 = vpack.c.bf16 %v645, %v644
  %v662 = vunpack.c.l.b16 %v646
  %v663 = vunpack.c.h.b16 %v646
  %v664 = vunpack.c.l.b16 %v647
  %v665 = vunpack.c.h.b16 %v647
  %v666 = vunpack.c.l.b16 %v648
  %v667 = vunpack.c.h.b16 %v648
  %v668 = vunpack.c.l.b16 %v649
  %v669 = vunpack.c.h.b16 %v649
  %v670 = vunpack.c.l.b16 %v650
  %v671 = vunpack.c.h.b16 %v650
  %v672 = vunpack.c.l.b16 %v651
  %v673 = vunpack.c.h.b16 %v651
  %v674 = vunpack.c.l.b16 %v652
  %v675 = vunpack.c.h.b16 %v652
  %v676 = vunpack.c.l.b16 %v653
  %v677 = vunpack.c.h.b16 %v653
  %v678 = vpack.c.b16 %v662, %v662
  %v679 = vpack.c.b16 %v663, %v663
  %v680 = vpack.c.b16 %v664, %v664
  %v681 = vpack.c.b16 %v665, %v665
  %v682 = vpack.c.b16 %v666, %v666
  %v683 = vpack.c.b16 %v667, %v667
  %v684 = vpack.c.b16 %v668, %v668
  %v685 = vpack.c.b16 %v669, %v669
  %v686 = vpack.c.b16 %v670, %v670
  %v687 = vpack.c.b16 %v671, %v671
  %v688 = vpack.c.b16 %v672, %v672
  %v689 = vpack.c.b16 %v673, %v673
  %v690 = vpack.c.b16 %v674, %v674
  %v691 = vpack.c.b16 %v675, %v675
  %v692 = vpack.c.b16 %v676, %v676
  %v693 = vpack.c.b16 %v677, %v677
  %vm710 = vcmask 257024
  %711 = vst.msk [vmem:[%s5] sm:$0xf] %vm710, %v678
  %712 = vst.msk [vmem:[%s5 + $0x4] sm:$0xf] %vm710, %v679
  %713 = vst.msk [vmem:[%s5 + $0x8] sm:$0xf] %vm710, %v680
  %714 = vst.msk [vmem:[%s5 + $0xc] sm:$0xf] %vm710, %v681
  %715 = vst.msk [vmem:[%s5 + $0x10] sm:$0xf] %vm710, %v682
  %716 = vst.msk [vmem:[%s5 + $0x14] sm:$0xf] %vm710, %v683
  %717 = vst.msk [vmem:[%s5 + $0x18] sm:$0xf] %vm710, %v684
  %718 = vst.msk [vmem:[%s5 + $0x1c] sm:$0xf] %vm710, %v685
  %719 = vst.msk [vmem:[%s5 + $0x20] sm:$0xf] %vm710, %v686
  %720 = vst.msk [vmem:[%s5 + $0x24] sm:$0xf] %vm710, %v687
  %721 = vst.msk [vmem:[%s5 + $0x28] sm:$0xf] %vm710, %v688
  %722 = vst.msk [vmem:[%s5 + $0x2c] sm:$0xf] %vm710, %v689
  %723 = vst.msk [vmem:[%s5 + $0x30] sm:$0xf] %vm710, %v690
  %724 = vst.msk [vmem:[%s5 + $0x34] sm:$0xf] %vm710, %v691
  %725 = vst.msk [vmem:[%s5 + $0x38] sm:$0xf] %vm710, %v692
  %726 = vst.msk [vmem:[%s5 + $0x3c] sm:$0xf] %vm710, %v693
  // Predicated region
  $region22: #{_lambda_.12} parent=0 // pred_check
    _
  $region23: #{_lambda_.12} parent=0 // pred_check_branch
    %728 = sbr.rel (0) target = $region25
  $region24: #{_lambda_.12} parent=0 // pred_region
    _
  $region25: #{_lambda_.12} parent=0 // pred_fallthru
    _
  // Predicated region
  $region26: #{_lambda_.12} parent=0 // pred_check
    _
  $region27: #{_lambda_.12} parent=0 // pred_check_branch
    %730 = sbr.rel (0) target = $region29
  $region28: #{_lambda_.12} parent=0 // pred_region
    _
  $region29: #{_lambda_.12} parent=0 // pred_fallthru
    _

// kernel: _lambda_.13
$region0: #{_lambda_.13}
  #allocation0 [shape = 'u32[]', space=smem, size = 0x4, offset = 0x4, fixed_abs, tag = 'smem constant byte address 0x4 - core index']
  #allocation1 [shape = 'u32[144,128]{1,0:T(1,128)}', space=vmem, size = 0x12000, scoped, tag = 'internal scratch']
  %s0 = inlined_call_operand.vmem [shape: bf16[2,64,32], index: 0, kind: input, shape index: {}]
  %s1 = inlined_call_operand.vmem [shape: bf16[32,32], index: 1, kind: input, shape index: {}]
  %s2 = inlined_call_operand.vmem [shape: f32[1,32], index: 2, kind: input, shape index: {}]
  %s3 = inlined_call_operand.vmem [shape: bf16[32,32], index: 3, kind: input, shape index: {}]
  %s4 = inlined_call_operand.vmem [shape: f32[1,32], index: 4, kind: input, shape index: {}]
  %s5 = inlined_call_operand.vmem [shape: bf16[32,32], index: 5, kind: input, shape index: {}]
  %s6 = inlined_call_operand.vmem [shape: f32[1,32], index: 6, kind: input, shape index: {}]
  %s7 = inlined_call_operand.hbm [shape: f32[2,32], index: 7, kind: output, shape index: {}]
  %s8 = sld [smem:[#allocation0]]
  $region38: #{_lambda_.13} parent=0
    _
  %s10 = ssub.s32 1, %s8
  %s11 = scalar_select 0, %s10, %s8
  $region1: #{_lambda_.13} parent=0
    #allocation2 [shape = 'u8[1024]{0}', space=vmem, size = 0x400, scoped, tag = 'output window, operand 0, single buffered']
    #allocation3 [shape = 's32[1]{0}', space=sflag, size = 0x4, scoped, tag = 'scoped memory for _lambda_.13']
    %12 = vsyncpa [#allocation3], 0
    // Predicated region
    $region2: #{_lambda_.13} parent=1 // pred_check
      _
    $region3: #{_lambda_.13} parent=1 // pred_check_branch
      %14 = sbr.rel (0) target = $region5
    $region4: #{_lambda_.13} parent=1 // pred_region
      _
    $region5: #{_lambda_.13} parent=1 // pred_fallthru
      _
    // Predicated region
    $region6: #{_lambda_.13} parent=1 // pred_check
      _
    $region7: #{_lambda_.13} parent=1 // pred_check_branch
      %16 = sbr.rel (0) target = $region9
    $region8: #{_lambda_.13} parent=1 // pred_region
      _
    $region9: #{_lambda_.13} parent=1 // pred_fallthru
      _
    // Predicated region
    $region10: #{_lambda_.13} parent=1 // pred_check
      _
    $region11: #{_lambda_.13} parent=1 // pred_check_branch
      %18 = sbr.rel (0) target = $region13
    $region12: #{_lambda_.13} parent=1 // pred_region
      _
    $region13: #{_lambda_.13} parent=1 // pred_fallthru
      _
    // Predicated region
    $region14: #{_lambda_.13} parent=1 // pred_check
      _
    $region15: #{_lambda_.13} parent=1 // pred_check_branch
      %20 = sbr.rel (0) target = $region17
    $region16: #{_lambda_.13} parent=1 // pred_region
      _
    $region17: #{_lambda_.13} parent=1 // pred_fallthru
      _
    // Predicated region
    $region18: #{_lambda_.13} parent=1 // pred_check
      _
    $region19: #{_lambda_.13} parent=1 // pred_check_branch
      %22 = sbr.rel (0) target = $region21
    $region20: #{_lambda_.13} parent=1 // pred_region
      _
    $region21: #{_lambda_.13} parent=1 // pred_fallthru
      _
    // Predicated region
    $region22: #{_lambda_.13} parent=1 // pred_check
      _
    $region23: #{_lambda_.13} parent=1 // pred_check_branch
      %24 = sbr.rel (0) target = $region25
    $region24: #{_lambda_.13} parent=1 // pred_region
      _
    $region25: #{_lambda_.13} parent=1 // pred_fallthru
      _
    // Predicated region
    $region26: #{_lambda_.13} parent=1 // pred_check
      _
    $region27: #{_lambda_.13} parent=1 // pred_check_branch
      %26 = sbr.rel (0) target = $region29
    $region28: #{_lambda_.13} parent=1 // pred_region
      _
    $region29: #{_lambda_.13} parent=1 // pred_fallthru
      _
    %v28 = vld [vmem:[%s0] sm:$0xf]
    %v29 = vld [vmem:[%s0 + $0x4] sm:$0xf]
    %v30 = vld [vmem:[%s0 + $0x8] sm:$0xf]
    %v31 = vld [vmem:[%s0 + $0xc] sm:$0xf]
    %v32 = vld [vmem:[%s0 + $0x10] sm:$0xf]
    %v33 = vld [vmem:[%s0 + $0x14] sm:$0xf]
    %v34 = vld [vmem:[%s0 + $0x18] sm:$0xf]
    %v35 = vld [vmem:[%s0 + $0x1c] sm:$0xf]
    %v36 = vld [vmem:[%s0 + $0x20] sm:$0xf]
    %v37 = vld [vmem:[%s0 + $0x24] sm:$0xf]
    %v38 = vld [vmem:[%s0 + $0x28] sm:$0xf]
    %v39 = vld [vmem:[%s0 + $0x2c] sm:$0xf]
    %v40 = vld [vmem:[%s0 + $0x30] sm:$0xf]
    %v41 = vld [vmem:[%s0 + $0x34] sm:$0xf]
    %v42 = vld [vmem:[%s0 + $0x38] sm:$0xf]
    %v43 = vld [vmem:[%s0 + $0x3c] sm:$0xf]
    %v44 = vunpack.c.l.bf16 %v28
    %v45 = vunpack.c.l.bf16 %v29
    %v46 = vunpack.c.l.bf16 %v30
    %v47 = vunpack.c.l.bf16 %v31
    %v48 = vunpack.c.l.bf16 %v32
    %v49 = vunpack.c.l.bf16 %v33
    %v50 = vunpack.c.l.bf16 %v34
    %v51 = vunpack.c.l.bf16 %v35
    %v52 = vunpack.c.l.bf16 %v36
    %v53 = vunpack.c.l.bf16 %v37
    %v54 = vunpack.c.l.bf16 %v38
    %v55 = vunpack.c.l.bf16 %v39
    %v56 = vunpack.c.l.bf16 %v40
    %v57 = vunpack.c.l.bf16 %v41
    %v58 = vunpack.c.l.bf16 %v42
    %v59 = vunpack.c.l.bf16 %v43
    %vm60 = vcmask 261120
    %v61 = vsel %vm60, %v44, 0.0
    %v62 = vsel %vm60, %v45, 0.0
    %v63 = vadd.f32 %v61, %v62
    %v64 = vsel %vm60, %v46, 0.0
    %v65 = vadd.f32 %v63, %v64
    %v66 = vsel %vm60, %v47, 0.0
    %v67 = vadd.f32 %v65, %v66
    %v68 = vsel %vm60, %v48, 0.0
    %v69 = vadd.f32 %v67, %v68
    %v70 = vsel %vm60, %v49, 0.0
    %v71 = vadd.f32 %v69, %v70
    %v72 = vsel %vm60, %v50, 0.0
    %v73 = vadd.f32 %v71, %v72
    %v74 = vsel %vm60, %v51, 0.0
    %v75 = vadd.f32 %v73, %v74
    %v76 = vrot.slane %v75, 4
    %v77 = vadd.f32 %v75, %v76
    %v78 = vrot.slane %v77, 2
    %v79 = vadd.f32 %v77, %v78
    %v80 = vrot.slane %v79, 1
    %v81 = vadd.f32 %v79, %v80
    %v82 = vsel %vm60, %v52, 0.0
    %v83 = vsel %vm60, %v53, 0.0
    %v84 = vadd.f32 %v82, %v83
    %v85 = vsel %vm60, %v54, 0.0
    %v86 = vadd.f32 %v84, %v85
    %v87 = vsel %vm60, %v55, 0.0
    %v88 = vadd.f32 %v86, %v87
    %v89 = vsel %vm60, %v56, 0.0
    %v90 = vadd.f32 %v88, %v89
    %v91 = vsel %vm60, %v57, 0.0
    %v92 = vadd.f32 %v90, %v91
    %v93 = vsel %vm60, %v58, 0.0
    %v94 = vadd.f32 %v92, %v93
    %v95 = vsel %vm60, %v59, 0.0
    %v96 = vadd.f32 %v94, %v95
    %v97 = vrot.slane %v96, 4
    %v98 = vadd.f32 %v96, %v97
    %v99 = vrot.slane %v98, 2
    %v100 = vadd.f32 %v98, %v99
    %v101 = vrot.slane %v100, 1
    %v102 = vadd.f32 %v100, %v101
    %v103 = vrcp.pop 64.0
    %v104 = vmul.f32 %v81, %v103
    %v105 = vmul.f32 %v102, %v103
    %v106 = vld [vmem:[%s1] sm:$0xf]
    %v107 = vld [vmem:[%s1 + $0x4] sm:$0xf]
    %v108 = vld [vmem:[%s1 + $0x8] sm:$0xf]
    %v109 = vld [vmem:[%s1 + $0xc] sm:$0xf]
    %v110 = vld [vmem:[%s2] sm:$0x1]
    %v111 = vpack.c.bf16 %v104, %v104
    %v112 = vpack.c.bf16 %v105, %v105
    %v114 = vlaneseq
    %v115 = vshrl.u32 %v114, 7
    %v116 = vsub.s32 0, %v115
    %v117 = vrot.slane %v110, %v116
    %v121 = vunpack.c.l.b16 %v111
    %v122 = vunpack.c.l.b16 %v112
    %vm123 = vcmask 1041409
    %v124 = vsel %vm123, %v122, %v121
    %v125 = vpack.c.b16 %v124, %v124
    %v130 = vunpack.c.l.b16 %v106
    %v131 = vunpack.c.l.b16 %v107
    %v132 = vunpack.c.l.b16 %v108
    %v133 = vunpack.c.l.b16 %v109
    %v134 = vpack.c.b16 %v131, %v130
    %v135 = vpack.c.b16 %v133, %v132
    %v139 = vsel %vm60, %v125, 0
    %141 = vmatprep.subr.bf16.mxu0 0
    %142 = vmatpush1.bf16.msra.mxu0 %v134
    %143 = vmatprep.subr.bf16.mxu0 0
    %144 = vmatpush1.bf16.msra.mxu0 %v135
    %145 = vmatprep.subr.bf16.mxu0 0
    %146 = vmatpush1.bf16.msra.mxu0 0
    %147 = vmatprep.subr.bf16.mxu0 0
    %148 = vmatpush1.bf16.msra.mxu0 0
    %149 = vmatprep.subr.bf16.mxu0 0
    %150 = vmatpush1.bf16.msra.mxu0 0
    %151 = vmatprep.subr.bf16.mxu0 0
    %152 = vmatpush1.bf16.msra.mxu0 0
    %153 = vmatprep.subr.bf16.mxu0 0
    %154 = vmatpush1.bf16.msra.mxu0 0
    %155 = vmatprep.subr.bf16.mxu0 0
    %156 = vmatpush1.bf16.msra.mxu0 0
    %157 = vmatprep.subr.bf16.mxu0 0
    %158 = vmatpush1.bf16.msra.mxu0 0
    %159 = vmatprep.subr.bf16.mxu0 0
    %160 = vmatpush1.bf16.msra.mxu0 0
    %161 = vmatprep.subr.bf16.mxu0 0
    %162 = vmatpush1.bf16.msra.mxu0 0
    %163 = vmatprep.subr.bf16.mxu0 0
    %164 = vmatpush1.bf16.msra.mxu0 0
    %165 = vmatprep.subr.bf16.mxu0 0
    %166 = vmatpush1.bf16.msra.mxu0 0
    %167 = vmatprep.subr.bf16.mxu0 0
    %168 = vmatpush1.bf16.msra.mxu0 0
    %169 = vmatprep.subr.bf16.mxu0 0
    %170 = vmatpush1.bf16.msra.mxu0 0
    %171 = vmatprep.subr.bf16.mxu0 0
    %172 = vmatpush1.bf16.msra.mxu0 0
    %173 = vmatprep.mubr.bf16.mxu0 0
    %174 = vmatmul.mubr.bf16.gmra.mrb[0].mxu0 %v139
    %v175 = vpop.f32.mrb[0].mxu0
    %v176 = vadd.f32 %v117, %v175
    %v177 = vpop.f32.mrb[0].mxu0
    %v178 = vpop.f32.mrb[0].mxu0
    %v179 = vpop.f32.mrb[0].mxu0
    %180 = vdwg.mxu0
    %v181 = vmax.f32 %v176, 0.0
    %v182 = vld [vmem:[%s3] sm:$0xf]
    %v183 = vld [vmem:[%s3 + $0x4] sm:$0xf]
    %v184 = vld [vmem:[%s3 + $0x8] sm:$0xf]
    %v185 = vld [vmem:[%s3 + $0xc] sm:$0xf]
    %v186 = vld [vmem:[%s4] sm:$0x1]
    %v187 = vpack.c.bf16 %v181, %v181
    %v189 = vlaneseq
    %v190 = vshrl.u32 %v189, 7
    %v191 = vsub.s32 0, %v190
    %v192 = vrot.slane %v186, %v191
    %v198 = vunpack.c.l.b16 %v182
    %v199 = vunpack.c.l.b16 %v183
    %v200 = vunpack.c.l.b16 %v184
    %v201 = vunpack.c.l.b16 %v185
    %v202 = vpack.c.b16 %v199, %v198
    %v203 = vpack.c.b16 %v201, %v200
    %v207 = vsel %vm60, %v187, 0
    %209 = vmatprep.subr.bf16.mxu0 0
    %210 = vmatpush1.bf16.msra.mxu0 %v202
    %211 = vmatprep.subr.bf16.mxu0 0
    %212 = vmatpush1.bf16.msra.mxu0 %v203
    %213 = vmatprep.subr.bf16.mxu0 0
    %214 = vmatpush1.bf16.msra.mxu0 0
    %215 = vmatprep.subr.bf16.mxu0 0
    %216 = vmatpush1.bf16.msra.mxu0 0
    %217 = vmatprep.subr.bf16.mxu0 0
    %218 = vmatpush1.bf16.msra.mxu0 0
    %219 = vmatprep.subr.bf16.mxu0 0
    %220 = vmatpush1.bf16.msra.mxu0 0
    %221 = vmatprep.subr.bf16.mxu0 0
    %222 = vmatpush1.bf16.msra.mxu0 0
    %223 = vmatprep.subr.bf16.mxu0 0
    %224 = vmatpush1.bf16.msra.mxu0 0
    %225 = vmatprep.subr.bf16.mxu0 0
    %226 = vmatpush1.bf16.msra.mxu0 0
    %227 = vmatprep.subr.bf16.mxu0 0
    %228 = vmatpush1.bf16.msra.mxu0 0
    %229 = vmatprep.subr.bf16.mxu0 0
    %230 = vmatpush1.bf16.msra.mxu0 0
    %231 = vmatprep.subr.bf16.mxu0 0
    %232 = vmatpush1.bf16.msra.mxu0 0
    %233 = vmatprep.subr.bf16.mxu0 0
    %234 = vmatpush1.bf16.msra.mxu0 0
    %235 = vmatprep.subr.bf16.mxu0 0
    %236 = vmatpush1.bf16.msra.mxu0 0
    %237 = vmatprep.subr.bf16.mxu0 0
    %238 = vmatpush1.bf16.msra.mxu0 0
    %239 = vmatprep.subr.bf16.mxu0 0
    %240 = vmatpush1.bf16.msra.mxu0 0
    %241 = vmatprep.mubr.bf16.mxu0 0
    %242 = vmatmul.mubr.bf16.gmra.mrb[0].mxu0 %v207
    %v243 = vpop.f32.mrb[0].mxu0
    %v244 = vadd.f32 %v192, %v243
    %v245 = vpop.f32.mrb[0].mxu0
    %v246 = vpop.f32.mrb[0].mxu0
    %v247 = vpop.f32.mrb[0].mxu0
    %248 = vdwg.mxu0
    %v249 = vmax.f32 %v244, 0.0
    %v250 = vld [vmem:[%s5] sm:$0xf]
    %v251 = vld [vmem:[%s5 + $0x4] sm:$0xf]
    %v252 = vld [vmem:[%s5 + $0x8] sm:$0xf]
    %v253 = vld [vmem:[%s5 + $0xc] sm:$0xf]
    %v254 = vld [vmem:[%s6] sm:$0x1]
    %v255 = vpack.c.bf16 %v249, %v249
    %v257 = vlaneseq
    %v258 = vshrl.u32 %v257, 7
    %v259 = vsub.s32 0, %v258
    %v260 = vrot.slane %v254, %v259
    %v266 = vunpack.c.l.b16 %v250
    %v267 = vunpack.c.l.b16 %v251
    %v268 = vunpack.c.l.b16 %v252
    %v269 = vunpack.c.l.b16 %v253
    %v270 = vpack.c.b16 %v267, %v266
    %v271 = vpack.c.b16 %v269, %v268
    %v275 = vsel %vm60, %v255, 0
    %277 = vmatprep.subr.bf16.mxu0 0
    %278 = vmatpush1.bf16.msra.mxu0 %v270
    %279 = vmatprep.subr.bf16.mxu0 0
    %280 = vmatpush1.bf16.msra.mxu0 %v271
    %281 = vmatprep.subr.bf16.mxu0 0
    %282 = vmatpush1.bf16.msra.mxu0 0
    %283 = vmatprep.subr.bf16.mxu0 0
    %284 = vmatpush1.bf16.msra.mxu0 0
    %285 = vmatprep.subr.bf16.mxu0 0
    %286 = vmatpush1.bf16.msra.mxu0 0
    %287 = vmatprep.subr.bf16.mxu0 0
    %288 = vmatpush1.bf16.msra.mxu0 0
    %289 = vmatprep.subr.bf16.mxu0 0
    %290 = vmatpush1.bf16.msra.mxu0 0
    %291 = vmatprep.subr.bf16.mxu0 0
    %292 = vmatpush1.bf16.msra.mxu0 0
    %293 = vmatprep.subr.bf16.mxu0 0
    %294 = vmatpush1.bf16.msra.mxu0 0
    %295 = vmatprep.subr.bf16.mxu0 0
    %296 = vmatpush1.bf16.msra.mxu0 0
    %297 = vmatprep.subr.bf16.mxu0 0
    %298 = vmatpush1.bf16.msra.mxu0 0
    %299 = vmatprep.subr.bf16.mxu0 0
    %300 = vmatpush1.bf16.msra.mxu0 0
    %301 = vmatprep.subr.bf16.mxu0 0
    %302 = vmatpush1.bf16.msra.mxu0 0
    %303 = vmatprep.subr.bf16.mxu0 0
    %304 = vmatpush1.bf16.msra.mxu0 0
    %305 = vmatprep.subr.bf16.mxu0 0
    %306 = vmatpush1.bf16.msra.mxu0 0
    %307 = vmatprep.subr.bf16.mxu0 0
    %308 = vmatpush1.bf16.msra.mxu0 0
    %309 = vmatprep.mubr.bf16.mxu0 0
    %310 = vmatmul.mubr.bf16.gmra.mrb[0].mxu0 %v275
    %v311 = vpop.f32.mrb[0].mxu0
    %v312 = vadd.f32 %v260, %v311
    %v313 = vpop.f32.mrb[0].mxu0
    %v314 = vpop.f32.mrb[0].mxu0
    %v315 = vpop.f32.mrb[0].mxu0
    %316 = vdwg.mxu0
    %vm317 = vcmask 254976
    %318 = vst.msk [vmem:[#allocation2] sm:$0x3] %vm317, %v312
    // Predicated region
    $region30: #{_lambda_.13} parent=1 // pred_check
      _
    $region31: #{_lambda_.13} parent=1 // pred_check_branch
      %320 = sbr.rel (0) target = $region33
    $region32: #{_lambda_.13} parent=1 // pred_region
      %s322 = ssub.s32 32, 32
      %323 = vsyncadd [#allocation3], %s322
      %s325 = sshll.u32 [#allocation2], 4
      %s326 = int_to_ptr.vmem [resolvable:$true] %s325
      %328 = dma.vmem_to_hbm [thread:$0]  %s326, 32, %s7, [#allocation3]
    $region33: #{_lambda_.13} parent=1 // pred_fallthru
      _
    // Predicated region
    $region34: #{_lambda_.13} parent=1 // pred_check
      _
    $region35: #{_lambda_.13} parent=1 // pred_check_branch
      %330 = sbr.rel (0) target = $region37
    $region36: #{_lambda_.13} parent=1 // pred_region
      %331 = dma.done [#allocation3], 32
    $region37: #{_lambda_.13} parent=1 // pred_fallthru
      _
    %332 = vsyncpa [#allocation3], 1

</llo_original>
